<compile_context>
chip_gen: v7x
topology: tpu7x:2x2x1
jax: 0.10.0
libtpu: 0.0.40
codegen_flags: <defaults>
</compile_context>

<pallas_src>
import functools

import jax
import jax.numpy as jnp
from jax import lax
from jax.experimental import pallas as pl
from jax.experimental.pallas import tpu as pltpu

EPS = 1e-5  # PyTorch BatchNorm2d default eps


# ---------------------------------------------------------------------------
# Fused kernel: conv3x3 + BN + ReLU -> conv3x3 + BN + ReLU, all in VMEM.
# ---------------------------------------------------------------------------
def _bridge_kernel(x_ref, b1_ref, b2_ref, g1_ref, be1_ref, g2_ref, be2_ref,
                   gmat_ref, mt_ref, mb_ref, o_ref, *, N, H, W, Cout):
    NH = N * H
    WC = W * Cout
    mask_top = mt_ref[...]   # (NH,1): 0 where h == 0    (dh=0 tap hits the zero pad row)
    mask_bot = mb_ref[...]   # (NH,1): 0 where h == H-1  (dh=2 tap hits the zero pad row)
    gmat = gmat_ref[...]     # (2*WC, 2*WC) block-diag channel-averaging matrix (1/m folded)

    def conv3x3(x_flat, b_cat):
        # All three height taps in ONE MXU matmul; height shift realized on the
        # result with sublane rolls + per-image boundary masking (== zero height pad).
        y = jnp.dot(x_flat, b_cat, preferred_element_type=jnp.float32)      # (NH, 3*WC)
        top = pltpu.roll(y[:, 0 * WC:1 * WC], 1, 0) * mask_top               # needs x[h-1]
        mid = y[:, 1 * WC:2 * WC]                                            # needs x[h]
        bot = pltpu.roll(y[:, 2 * WC:3 * WC], NH - 1, 0) * mask_bot          # needs x[h+1]
        return top + mid + bot

    def bn_relu(acc, gamma_l, beta_l):
        # Train-mode BatchNorm2d + ReLU, single-pass stats: var = E[x^2] - mean^2.
        # One matmul maps [col_sum | col_sqsum] straight to lane-broadcast
        # mean / E[x^2]; all stats math stays f32.
        col_sum = jnp.sum(acc, axis=0, keepdims=True)                        # (1, WC)
        col_sq = jnp.sum(acc * acc, axis=0, keepdims=True)                   # (1, WC)
        wide = jnp.concatenate([col_sum, col_sq], axis=1)                    # (1, 2*WC)
        stats = jnp.dot(wide, gmat, preferred_element_type=jnp.float32)      # (1, 2*WC)
        mean_l = stats[:, :WC]
        var_l = stats[:, WC:] - mean_l * mean_l
        scale_l = gamma_l * lax.rsqrt(var_l + EPS)                           # EUP rsqrt
        shift_l = beta_l - mean_l * scale_l
        return jnp.maximum(acc * scale_l + shift_l, 0.0)

    # ConvBlock 1 (conv bias omitted on purpose -- cancels under train-mode BN).
    h = bn_relu(conv3x3(x_ref[...], b1_ref[...]), g1_ref[...], be1_ref[...])
    # ConvBlock 2 (activation cast to bf16 only as an MXU operand).
    o_ref[...] = bn_relu(conv3x3(h.astype(jnp.bfloat16), b2_ref[...]),
                         g2_ref[...], be2_ref[...])


# ---------------------------------------------------------------------------
# Wrapper (weight preprocessing + layout glue; hot path is the single kernel)
# ---------------------------------------------------------------------------
def _band_weights(w_oihw, W):
    """Fold the 3x3 conv's width taps + width zero-padding into banded matrices.

    B[dh, u*Cin+ci, w*Cout+co] = w[co, ci, dh, u-w+1] when |u-w| <= 1 else 0.
    """
    Cout, Cin, KH, KW = w_oihw.shape
    assert (KH, KW) == (3, 3)
    u = jnp.arange(W)[:, None]                 # input pixel
    wo = jnp.arange(W)[None, :]                # output pixel
    kw = u - wo + 1                            # width tap index, valid in [0, 3)
    valid = ((kw >= 0) & (kw < 3)).astype(w_oihw.dtype)           # (W, W)
    taps = jnp.take(w_oihw, jnp.clip(kw, 0, 2), axis=3)           # (Cout,Cin,3,W,W)
    taps = taps * valid[None, None, None]
    b = jnp.transpose(taps, (2, 3, 1, 4, 0))                      # (dh,u,ci,w,co)
    return b.reshape(3, W * Cin, W * Cout)


def bridge_forward(params, x_nchw):
    """Bridge.forward(x): two fused ConvBlocks in ONE pallas_call.  NCHW in/out."""
    N, Cin, H, W = x_nchw.shape
    Cout = params["c1_w"].shape[0]
    NH, WC = N * H, W * Cout

    # Lane-dense channels-last activations (N*H, W*Cin); bf16 as an MXU operand only.
    x_l = jnp.transpose(x_nchw, (0, 2, 3, 1)).reshape(NH, W * Cin).astype(jnp.bfloat16)

    # Banded conv weights, all 3 height taps concatenated along the output axis
    # -> each conv is a single (NH, W*Ci) @ (W*Ci, 3*W*Cout) MXU matmul. bf16 storage.
    b1 = _band_weights(params["c1_w"], W)
    b2 = _band_weights(params["c2_w"], W)
    b1 = jnp.concatenate([b1[0], b1[1], b1[2]], axis=1).astype(jnp.bfloat16)
    b2 = jnp.concatenate([b2[0], b2[1], b2[2]], axis=1).astype(jnp.bfloat16)

    # Block-diagonal channel-averaging matrix: [col_sum | col_sqsum] @ gmat gives
    # lane-broadcast [mean | E[x^2]] in one matmul (1/m folded in; stays f32).
    e = jnp.tile(jnp.eye(Cout, dtype=jnp.float32), (W, 1))            # (WC, C)
    g = e @ e.T                                                       # (WC, WC)
    z = jnp.zeros_like(g)
    gmat = jnp.concatenate(
        [jnp.concatenate([g, z], axis=1), jnp.concatenate([z, g], axis=1)],
        axis=0) * (1.0 / float(N * H * W))                            # (2*WC, 2*WC)

    # BN affine params broadcast to the lane layout (lane index = w*Cout + c).
    g1_l = jnp.tile(params["c1_g"], W).reshape(1, WC)
    be1_l = jnp.tile(params["c1_be"], W).reshape(1, WC)
    g2_l = jnp.tile(params["c2_g"], W).reshape(1, WC)
    be2_l = jnp.tile(params["c2_be"], W).reshape(1, WC)

    # Per-image boundary-row masks: the rolled dh=0 / dh=2 tap results must be
    # zeroed at h==0 / h==H-1 (the conv's zero height padding) so the roll over
    # the flat N*H rows never leaks between images.
    hrow = jnp.tile(jnp.arange(H), N)
    mask_top = (hrow != 0).astype(jnp.float32).reshape(NH, 1)
    mask_bot = (hrow != H - 1).astype(jnp.float32).reshape(NH, 1)

    kernel = functools.partial(_bridge_kernel, N=N, H=H, W=W, Cout=Cout)
    vmem = pl.BlockSpec(memory_space=pltpu.MemorySpace.VMEM)
    out = pl.pallas_call(
        kernel,
        out_shape=jax.ShapeDtypeStruct((NH, WC), jnp.float32),
        in_specs=[vmem] * 10,
        out_specs=vmem,
        compiler_params=pltpu.CompilerParams(vmem_limit_bytes=32 * 1024 * 1024),
    )(x_l, b1, b2, g1_l, be1_l, g2_l, be2_l, gmat, mask_top, mask_bot)

    # (N*H, W*Cout) row-major == (N, H, W, Cout) row-major -> free reshape, then NCHW.
    return jnp.transpose(out.reshape(N, H, W, Cout), (0, 3, 1, 2))


# ---------------------------------------------------------------------------
# Pure-JAX reference (keeps the conv bias, proving it cancels under train BN)
# ---------------------------------------------------------------------------
def _conv_block_ref(x_nchw, w_oihw, b, gamma, beta):
    y = lax.conv_general_dilated(
        x_nchw, w_oihw, window_strides=(1, 1), padding=((1, 1), (1, 1)),
        dimension_numbers=("NCHW", "OIHW", "NCHW"))
    y = y + b[None, :, None, None]
    mean = jnp.mean(y, axis=(0, 2, 3), keepdims=True)
    var = jnp.mean((y - mean) ** 2, axis=(0, 2, 3), keepdims=True)
    y = (y - mean) * lax.rsqrt(var + EPS)
    y = y * gamma[None, :, None, None] + beta[None, :, None, None]
    return jnp.maximum(y, 0.0)


def bridge_ref(params, x):
    h = _conv_block_ref(x, params["c1_w"], params["c1_b"],
                        params["c1_g"], params["c1_be"])
    return _conv_block_ref(h, params["c2_w"], params["c2_b"],
                           params["c2_g"], params["c2_be"])


# ---------------------------------------------------------------------------
if __name__ == "__main__":
    key = jax.random.PRNGKey(0)
    ks = jax.random.split(key, 9)

    # Bridge(chan_in=8, chan_out=8) on a 16x16 bottleneck feature map.
    # (W * Cout = 128 -> the kernel's activations are exactly lane-dense.)
    N, chan_in, chan_out, H, W = 2, 8, 8, 16, 16

    x = jax.random.normal(ks[0], (N, chan_in, H, W), jnp.float32)
    params = {
        # ConvBlock(chan_in, chan_out): Conv2d weight (out, in, 3, 3) + BN affine
        "c1_w": 0.1 * jax.random.normal(ks[1], (chan_out, chan_in, 3, 3), jnp.float32),
        "c1_b": 0.1 * jax.random.normal(ks[2], (chan_out,), jnp.float32),
        "c1_g": 1.0 + 0.1 * jax.random.normal(ks[3], (chan_out,), jnp.float32),
        "c1_be": 0.1 * jax.random.normal(ks[4], (chan_out,), jnp.float32),
        # ConvBlock(chan_out, chan_out)
        "c2_w": 0.1 * jax.random.normal(ks[5], (chan_out, chan_out, 3, 3), jnp.float32),
        "c2_b": 0.1 * jax.random.normal(ks[6], (chan_out,), jnp.float32),
        "c2_g": 1.0 + 0.1 * jax.random.normal(ks[7], (chan_out,), jnp.float32),
        "c2_be": 0.1 * jax.random.normal(ks[8], (chan_out,), jnp.float32),
    }

    out = jax.block_until_ready(jax.jit(bridge_forward)(params, x))
    assert out.shape == (N, chan_out, H, W), out.shape

    ref = jax.block_until_ready(bridge_ref(params, x))
    max_err = float(jnp.max(jnp.abs(out - ref)))
    # bf16 MXU multiplies (TPU default precision) in both paths -> a few e-2 worst case.
    assert max_err < 5e-2, f"mismatch vs reference: max abs err {max_err}"

    print("KERNEL_OK")
</pallas_src>

<mosaic_0001>
module attributes {stable_mosaic.version = 11 : i64} {
  func.func @_bridge_kernel(%arg0: memref<32x128xbf16, #tpu.memory_space<vmem>>, %arg1: memref<128x384xbf16, #tpu.memory_space<vmem>>, %arg2: memref<128x384xbf16, #tpu.memory_space<vmem>>, %arg3: memref<1x128xf32, #tpu.memory_space<vmem>>, %arg4: memref<1x128xf32, #tpu.memory_space<vmem>>, %arg5: memref<1x128xf32, #tpu.memory_space<vmem>>, %arg6: memref<1x128xf32, #tpu.memory_space<vmem>>, %arg7: memref<256x256xf32, #tpu.memory_space<vmem>>, %arg8: memref<32x1xf32, #tpu.memory_space<vmem>>, %arg9: memref<32x1xf32, #tpu.memory_space<vmem>>, %arg10: memref<32x128xf32, #tpu.memory_space<vmem>>) attributes {dimension_semantics = [], scalar_prefetch = 0 : i64, scratch_operands = 0 : i64, tpu.core_type = #tpu.core_type<tc>} {
    %c0 = arith.constant 0 : index
    %c0_0 = arith.constant 0 : index
    %0 = vector.load %arg8[%c0, %c0_0] : memref<32x1xf32, #tpu.memory_space<vmem>>, vector<32x1xf32>
    %c0_1 = arith.constant 0 : index
    %c0_2 = arith.constant 0 : index
    %1 = vector.load %arg9[%c0_1, %c0_2] : memref<32x1xf32, #tpu.memory_space<vmem>>, vector<32x1xf32>
    %c0_3 = arith.constant 0 : index
    %c0_4 = arith.constant 0 : index
    %2 = vector.load %arg7[%c0_3, %c0_4] : memref<256x256xf32, #tpu.memory_space<vmem>>, vector<256x256xf32>
    %c0_5 = arith.constant 0 : index
    %c0_6 = arith.constant 0 : index
    %3 = vector.load %arg0[%c0_5, %c0_6] : memref<32x128xbf16, #tpu.memory_space<vmem>>, vector<32x128xbf16>
    %c0_7 = arith.constant 0 : index
    %c0_8 = arith.constant 0 : index
    %4 = vector.load %arg1[%c0_7, %c0_8] : memref<128x384xbf16, #tpu.memory_space<vmem>>, vector<128x384xbf16>
    %cst = arith.constant dense<0.000000e+00> : vector<32x384xf32>
    %5 = tpu.matmul %3, %4, %cst {dimension_numbers = #tpu.dot_dimension_numbers<[1], [0], [0], [1], [0, 0, 1, 1], [], []>} : vector<32x128xbf16>, vector<128x384xbf16>, vector<32x384xf32> -> vector<32x384xf32>
    %6 = vector.extract_strided_slice %5 {offsets = [0, 0], sizes = [32, 128], strides = [1, 1]} : vector<32x384xf32> to vector<32x128xf32>
    %c1_i32 = arith.constant 1 : i32
    %7 = tpu.dynamic_rotate %6 by %c1_i32 dim 0 : vector<32x128xf32>, i32 -> vector<32x128xf32>
    %8 = vector.broadcast %0 : vector<32x1xf32> to vector<32x128xf32>
    %9 = arith.mulf %7, %8 : vector<32x128xf32>
    %10 = vector.extract_strided_slice %5 {offsets = [0, 128], sizes = [32, 128], strides = [1, 1]} : vector<32x384xf32> to vector<32x128xf32>
    %11 = vector.extract_strided_slice %5 {offsets = [0, 256], sizes = [32, 128], strides = [1, 1]} : vector<32x384xf32> to vector<32x128xf32>
    %c31_i32 = arith.constant 31 : i32
    %12 = tpu.dynamic_rotate %11 by %c31_i32 dim 0 : vector<32x128xf32>, i32 -> vector<32x128xf32>
    %13 = vector.broadcast %1 : vector<32x1xf32> to vector<32x128xf32>
    %14 = arith.mulf %12, %13 : vector<32x128xf32>
    %15 = arith.addf %9, %10 : vector<32x128xf32>
    %16 = arith.addf %15, %14 : vector<32x128xf32>
    %c0_9 = arith.constant 0 : index
    %c0_10 = arith.constant 0 : index
    %17 = vector.load %arg3[%c0_9, %c0_10] : memref<1x128xf32, #tpu.memory_space<vmem>>, vector<1x128xf32>
    %c0_11 = arith.constant 0 : index
    %c0_12 = arith.constant 0 : index
    %18 = vector.load %arg4[%c0_11, %c0_12] : memref<1x128xf32, #tpu.memory_space<vmem>>, vector<1x128xf32>
    %cst_13 = arith.constant dense<0.000000e+00> : vector<128xf32>
    %19 = vector.multi_reduction <add>, %16, %cst_13 [0] : vector<32x128xf32> to vector<128xf32>
    %20 = vector.shape_cast %19 : vector<128xf32> to vector<1x128xf32>
    %21 = arith.mulf %16, %16 : vector<32x128xf32>
    %cst_14 = arith.constant dense<0.000000e+00> : vector<128xf32>
    %22 = vector.multi_reduction <add>, %21, %cst_14 [0] : vector<32x128xf32> to vector<128xf32>
    %23 = vector.shape_cast %22 : vector<128xf32> to vector<1x128xf32>
    %24 = tpu.concatenate %20, %23 in 1 : vector<1x128xf32>, vector<1x128xf32> -> vector<1x256xf32>
    %cst_15 = arith.constant dense<0.000000e+00> : vector<1x256xf32>
    %25 = tpu.matmul %24, %2, %cst_15 {dimension_numbers = #tpu.dot_dimension_numbers<[1], [0], [0], [1], [0, 0, 1, 1], [], []>} : vector<1x256xf32>, vector<256x256xf32>, vector<1x256xf32> -> vector<1x256xf32>
    %26 = vector.extract_strided_slice %25 {offsets = [0, 0], sizes = [1, 128], strides = [1, 1]} : vector<1x256xf32> to vector<1x128xf32>
    %27 = vector.extract_strided_slice %25 {offsets = [0, 128], sizes = [1, 128], strides = [1, 1]} : vector<1x256xf32> to vector<1x128xf32>
    %28 = arith.mulf %26, %26 : vector<1x128xf32>
    %29 = arith.subf %27, %28 : vector<1x128xf32>
    %cst_16 = arith.constant 9.99999974E-6 : f32
    %30 = vector.broadcast %cst_16 : f32 to vector<1x128xf32>
    %31 = arith.addf %29, %30 : vector<1x128xf32>
    %32 = math.rsqrt %31 : vector<1x128xf32>
    %33 = arith.mulf %17, %32 : vector<1x128xf32>
    %34 = arith.mulf %26, %33 : vector<1x128xf32>
    %35 = arith.subf %18, %34 : vector<1x128xf32>
    %36 = vector.broadcast %33 : vector<1x128xf32> to vector<32x128xf32>
    %37 = arith.mulf %16, %36 : vector<32x128xf32>
    %38 = vector.broadcast %35 : vector<1x128xf32> to vector<32x128xf32>
    %39 = arith.addf %37, %38 : vector<32x128xf32>
    %cst_17 = arith.constant 0.000000e+00 : f32
    %40 = vector.broadcast %cst_17 : f32 to vector<32x128xf32>
    %41 = arith.maximumf %39, %40 : vector<32x128xf32>
    %42 = arith.truncf %41 : vector<32x128xf32> to vector<32x128xbf16>
    %c0_18 = arith.constant 0 : index
    %c0_19 = arith.constant 0 : index
    %43 = vector.load %arg2[%c0_18, %c0_19] : memref<128x384xbf16, #tpu.memory_space<vmem>>, vector<128x384xbf16>
    %cst_20 = arith.constant dense<0.000000e+00> : vector<32x384xf32>
    %44 = tpu.matmul %42, %43, %cst_20 {dimension_numbers = #tpu.dot_dimension_numbers<[1], [0], [0], [1], [0, 0, 1, 1], [], []>} : vector<32x128xbf16>, vector<128x384xbf16>, vector<32x384xf32> -> vector<32x384xf32>
    %45 = vector.extract_strided_slice %44 {offsets = [0, 0], sizes = [32, 128], strides = [1, 1]} : vector<32x384xf32> to vector<32x128xf32>
    %c1_i32_21 = arith.constant 1 : i32
    %46 = tpu.dynamic_rotate %45 by %c1_i32_21 dim 0 : vector<32x128xf32>, i32 -> vector<32x128xf32>
    %47 = vector.broadcast %0 : vector<32x1xf32> to vector<32x128xf32>
    %48 = arith.mulf %46, %47 : vector<32x128xf32>
    %49 = vector.extract_strided_slice %44 {offsets = [0, 128], sizes = [32, 128], strides = [1, 1]} : vector<32x384xf32> to vector<32x128xf32>
    %50 = vector.extract_strided_slice %44 {offsets = [0, 256], sizes = [32, 128], strides = [1, 1]} : vector<32x384xf32> to vector<32x128xf32>
    %c31_i32_22 = arith.constant 31 : i32
    %51 = tpu.dynamic_rotate %50 by %c31_i32_22 dim 0 : vector<32x128xf32>, i32 -> vector<32x128xf32>
    %52 = vector.broadcast %1 : vector<32x1xf32> to vector<32x128xf32>
    %53 = arith.mulf %51, %52 : vector<32x128xf32>
    %54 = arith.addf %48, %49 : vector<32x128xf32>
    %55 = arith.addf %54, %53 : vector<32x128xf32>
    %c0_23 = arith.constant 0 : index
    %c0_24 = arith.constant 0 : index
    %56 = vector.load %arg5[%c0_23, %c0_24] : memref<1x128xf32, #tpu.memory_space<vmem>>, vector<1x128xf32>
    %c0_25 = arith.constant 0 : index
    %c0_26 = arith.constant 0 : index
    %57 = vector.load %arg6[%c0_25, %c0_26] : memref<1x128xf32, #tpu.memory_space<vmem>>, vector<1x128xf32>
    %cst_27 = arith.constant dense<0.000000e+00> : vector<128xf32>
    %58 = vector.multi_reduction <add>, %55, %cst_27 [0] : vector<32x128xf32> to vector<128xf32>
    %59 = vector.shape_cast %58 : vector<128xf32> to vector<1x128xf32>
    %60 = arith.mulf %55, %55 : vector<32x128xf32>
    %cst_28 = arith.constant dense<0.000000e+00> : vector<128xf32>
    %61 = vector.multi_reduction <add>, %60, %cst_28 [0] : vector<32x128xf32> to vector<128xf32>
    %62 = vector.shape_cast %61 : vector<128xf32> to vector<1x128xf32>
    %63 = tpu.concatenate %59, %62 in 1 : vector<1x128xf32>, vector<1x128xf32> -> vector<1x256xf32>
    %cst_29 = arith.constant dense<0.000000e+00> : vector<1x256xf32>
    %64 = tpu.matmul %63, %2, %cst_29 {dimension_numbers = #tpu.dot_dimension_numbers<[1], [0], [0], [1], [0, 0, 1, 1], [], []>} : vector<1x256xf32>, vector<256x256xf32>, vector<1x256xf32> -> vector<1x256xf32>
    %65 = vector.extract_strided_slice %64 {offsets = [0, 0], sizes = [1, 128], strides = [1, 1]} : vector<1x256xf32> to vector<1x128xf32>
    %66 = vector.extract_strided_slice %64 {offsets = [0, 128], sizes = [1, 128], strides = [1, 1]} : vector<1x256xf32> to vector<1x128xf32>
    %67 = arith.mulf %65, %65 : vector<1x128xf32>
    %68 = arith.subf %66, %67 : vector<1x128xf32>
    %cst_30 = arith.constant 9.99999974E-6 : f32
    %69 = vector.broadcast %cst_30 : f32 to vector<1x128xf32>
    %70 = arith.addf %68, %69 : vector<1x128xf32>
    %71 = math.rsqrt %70 : vector<1x128xf32>
    %72 = arith.mulf %56, %71 : vector<1x128xf32>
    %73 = arith.mulf %65, %72 : vector<1x128xf32>
    %74 = arith.subf %57, %73 : vector<1x128xf32>
    %75 = vector.broadcast %72 : vector<1x128xf32> to vector<32x128xf32>
    %76 = arith.mulf %55, %75 : vector<32x128xf32>
    %77 = vector.broadcast %74 : vector<1x128xf32> to vector<32x128xf32>
    %78 = arith.addf %76, %77 : vector<32x128xf32>
    %cst_31 = arith.constant 0.000000e+00 : f32
    %79 = vector.broadcast %cst_31 : f32 to vector<32x128xf32>
    %80 = arith.maximumf %78, %79 : vector<32x128xf32>
    %c0_32 = arith.constant 0 : index
    %c0_33 = arith.constant 0 : index
    %81 = vector.load %arg10[%c0_32, %c0_33] : memref<32x128xf32, #tpu.memory_space<vmem>>, vector<32x128xf32>
    tpu.vector_store %arg10[%c0_32, %c0_33], %80 {strides = array<i32>} : memref<32x128xf32, #tpu.memory_space<vmem>>, vector<32x128xf32>,
    return
  }
}

</mosaic_0001>

<llo_original>
// kernel: squeeze.2
$region0: #{squeeze.2}
  %s0 = inlined_call_operand.vmem [shape: bf16[1,16,8,16,8], index: 0, kind: input, shape index: {}]
  %s1 = inlined_call_operand.vmem [shape: bf16[128,128], index: 1, kind: output, shape index: {}]
  $region1: #{squeeze.2} parent=0
    #allocation0 [shape = 'u8[65536]{0}', space=vmem, size = 0x10000, scoped, tag = 'scoped mem for output reshape']
    #allocation1 [shape = 'u8[1048576]{0}', space=vmem, size = 0x100000, scoped, tag = 'scoped mem for input reshape']
    %s3 = smul.u32 4, 2
    %s4 = sshllo.u32 0, %s3
    %s5 = smul.addr 4, 255
    %s6 = scalar_lea.vmem %s0, %s5
    %s7 = sshrl.u32 %s4, 1
    %s8 = sor.u32 %s4, %s7
    %s9 = sand.u32 %s8, 85
    %s10 = sshrl.u32 %s9, 1
    %s11 = sor.u32 %s9, %s10
    %s12 = sand.u32 51, %s11
    %s13 = sshrl.u32 %s12, 2
    %s14 = sor.u32 %s12, %s13
    %s15 = sand.u32 15, %s14
    %v16 = vld [vmem:[%s6] sm:%s15]
    %v17 = vunpack.c.l.bf16 %v16
    %v18 = vunpack.c.h.bf16 %v16
    %s19 = scalar_lea.vmem [#allocation1], 2040
    %20 = vst [vmem:[%s19] sm:%s4] %v17
    %s21 = smul.addr 4, 254
    %s22 = scalar_lea.vmem %s0, %s21
    %s23 = sshrl.u32 %s4, 1
    %s24 = sor.u32 %s4, %s23
    %s25 = sand.u32 %s24, 85
    %s26 = sshrl.u32 %s25, 1
    %s27 = sor.u32 %s25, %s26
    %s28 = sand.u32 51, %s27
    %s29 = sshrl.u32 %s28, 2
    %s30 = sor.u32 %s28, %s29
    %s31 = sand.u32 15, %s30
    %v32 = vld [vmem:[%s22] sm:%s31]
    %v33 = vunpack.c.l.bf16 %v32
    %v34 = vunpack.c.h.bf16 %v32
    %s35 = scalar_lea.vmem [#allocation1], 2032
    %36 = vst [vmem:[%s35] sm:%s4] %v33
    %s37 = smul.addr 4, 253
    %s38 = scalar_lea.vmem %s0, %s37
    %s39 = sshrl.u32 %s4, 1
    %s40 = sor.u32 %s4, %s39
    %s41 = sand.u32 %s40, 85
    %s42 = sshrl.u32 %s41, 1
    %s43 = sor.u32 %s41, %s42
    %s44 = sand.u32 51, %s43
    %s45 = sshrl.u32 %s44, 2
    %s46 = sor.u32 %s44, %s45
    %s47 = sand.u32 15, %s46
    %v48 = vld [vmem:[%s38] sm:%s47]
    %v49 = vunpack.c.l.bf16 %v48
    %v50 = vunpack.c.h.bf16 %v48
    %s51 = scalar_lea.vmem [#allocation1], 2024
    %52 = vst [vmem:[%s51] sm:%s4] %v49
    %s53 = smul.addr 4, 252
    %s54 = scalar_lea.vmem %s0, %s53
    %s55 = sshrl.u32 %s4, 1
    %s56 = sor.u32 %s4, %s55
    %s57 = sand.u32 %s56, 85
    %s58 = sshrl.u32 %s57, 1
    %s59 = sor.u32 %s57, %s58
    %s60 = sand.u32 51, %s59
    %s61 = sshrl.u32 %s60, 2
    %s62 = sor.u32 %s60, %s61
    %s63 = sand.u32 15, %s62
    %v64 = vld [vmem:[%s54] sm:%s63]
    %v65 = vunpack.c.l.bf16 %v64
    %v66 = vunpack.c.h.bf16 %v64
    %s67 = scalar_lea.vmem [#allocation1], 2016
    %68 = vst [vmem:[%s67] sm:%s4] %v65
    %s69 = smul.addr 4, 251
    %s70 = scalar_lea.vmem %s0, %s69
    %s71 = sshrl.u32 %s4, 1
    %s72 = sor.u32 %s4, %s71
    %s73 = sand.u32 %s72, 85
    %s74 = sshrl.u32 %s73, 1
    %s75 = sor.u32 %s73, %s74
    %s76 = sand.u32 51, %s75
    %s77 = sshrl.u32 %s76, 2
    %s78 = sor.u32 %s76, %s77
    %s79 = sand.u32 15, %s78
    %v80 = vld [vmem:[%s70] sm:%s79]
    %v81 = vunpack.c.l.bf16 %v80
    %v82 = vunpack.c.h.bf16 %v80
    %s83 = scalar_lea.vmem [#allocation1], 2008
    %84 = vst [vmem:[%s83] sm:%s4] %v81
    %s85 = smul.addr 4, 250
    %s86 = scalar_lea.vmem %s0, %s85
    %s87 = sshrl.u32 %s4, 1
    %s88 = sor.u32 %s4, %s87
    %s89 = sand.u32 %s88, 85
    %s90 = sshrl.u32 %s89, 1
    %s91 = sor.u32 %s89, %s90
    %s92 = sand.u32 51, %s91
    %s93 = sshrl.u32 %s92, 2
    %s94 = sor.u32 %s92, %s93
    %s95 = sand.u32 15, %s94
    %v96 = vld [vmem:[%s86] sm:%s95]
    %v97 = vunpack.c.l.bf16 %v96
    %v98 = vunpack.c.h.bf16 %v96
    %s99 = scalar_lea.vmem [#allocation1], 2000
    %100 = vst [vmem:[%s99] sm:%s4] %v97
    %s101 = smul.addr 4, 249
    %s102 = scalar_lea.vmem %s0, %s101
    %s103 = sshrl.u32 %s4, 1
    %s104 = sor.u32 %s4, %s103
    %s105 = sand.u32 %s104, 85
    %s106 = sshrl.u32 %s105, 1
    %s107 = sor.u32 %s105, %s106
    %s108 = sand.u32 51, %s107
    %s109 = sshrl.u32 %s108, 2
    %s110 = sor.u32 %s108, %s109
    %s111 = sand.u32 15, %s110
    %v112 = vld [vmem:[%s102] sm:%s111]
    %v113 = vunpack.c.l.bf16 %v112
    %v114 = vunpack.c.h.bf16 %v112
    %s115 = scalar_lea.vmem [#allocation1], 1992
    %116 = vst [vmem:[%s115] sm:%s4] %v113
    %s117 = smul.addr 4, 248
    %s118 = scalar_lea.vmem %s0, %s117
    %s119 = sshrl.u32 %s4, 1
    %s120 = sor.u32 %s4, %s119
    %s121 = sand.u32 %s120, 85
    %s122 = sshrl.u32 %s121, 1
    %s123 = sor.u32 %s121, %s122
    %s124 = sand.u32 51, %s123
    %s125 = sshrl.u32 %s124, 2
    %s126 = sor.u32 %s124, %s125
    %s127 = sand.u32 15, %s126
    %v128 = vld [vmem:[%s118] sm:%s127]
    %v129 = vunpack.c.l.bf16 %v128
    %v130 = vunpack.c.h.bf16 %v128
    %s131 = scalar_lea.vmem [#allocation1], 1984
    %132 = vst [vmem:[%s131] sm:%s4] %v129
    %s133 = smul.addr 4, 247
    %s134 = scalar_lea.vmem %s0, %s133
    %s135 = sshrl.u32 %s4, 1
    %s136 = sor.u32 %s4, %s135
    %s137 = sand.u32 %s136, 85
    %s138 = sshrl.u32 %s137, 1
    %s139 = sor.u32 %s137, %s138
    %s140 = sand.u32 51, %s139
    %s141 = sshrl.u32 %s140, 2
    %s142 = sor.u32 %s140, %s141
    %s143 = sand.u32 15, %s142
    %v144 = vld [vmem:[%s134] sm:%s143]
    %v145 = vunpack.c.l.bf16 %v144
    %v146 = vunpack.c.h.bf16 %v144
    %s147 = scalar_lea.vmem [#allocation1], 1976
    %148 = vst [vmem:[%s147] sm:%s4] %v145
    %s149 = smul.addr 4, 246
    %s150 = scalar_lea.vmem %s0, %s149
    %s151 = sshrl.u32 %s4, 1
    %s152 = sor.u32 %s4, %s151
    %s153 = sand.u32 %s152, 85
    %s154 = sshrl.u32 %s153, 1
    %s155 = sor.u32 %s153, %s154
    %s156 = sand.u32 51, %s155
    %s157 = sshrl.u32 %s156, 2
    %s158 = sor.u32 %s156, %s157
    %s159 = sand.u32 15, %s158
    %v160 = vld [vmem:[%s150] sm:%s159]
    %v161 = vunpack.c.l.bf16 %v160
    %v162 = vunpack.c.h.bf16 %v160
    %s163 = scalar_lea.vmem [#allocation1], 1968
    %164 = vst [vmem:[%s163] sm:%s4] %v161
    %s165 = smul.addr 4, 245
    %s166 = scalar_lea.vmem %s0, %s165
    %s167 = sshrl.u32 %s4, 1
    %s168 = sor.u32 %s4, %s167
    %s169 = sand.u32 %s168, 85
    %s170 = sshrl.u32 %s169, 1
    %s171 = sor.u32 %s169, %s170
    %s172 = sand.u32 51, %s171
    %s173 = sshrl.u32 %s172, 2
    %s174 = sor.u32 %s172, %s173
    %s175 = sand.u32 15, %s174
    %v176 = vld [vmem:[%s166] sm:%s175]
    %v177 = vunpack.c.l.bf16 %v176
    %v178 = vunpack.c.h.bf16 %v176
    %s179 = scalar_lea.vmem [#allocation1], 1960
    %180 = vst [vmem:[%s179] sm:%s4] %v177
    %s181 = smul.addr 4, 244
    %s182 = scalar_lea.vmem %s0, %s181
    %s183 = sshrl.u32 %s4, 1
    %s184 = sor.u32 %s4, %s183
    %s185 = sand.u32 %s184, 85
    %s186 = sshrl.u32 %s185, 1
    %s187 = sor.u32 %s185, %s186
    %s188 = sand.u32 51, %s187
    %s189 = sshrl.u32 %s188, 2
    %s190 = sor.u32 %s188, %s189
    %s191 = sand.u32 15, %s190
    %v192 = vld [vmem:[%s182] sm:%s191]
    %v193 = vunpack.c.l.bf16 %v192
    %v194 = vunpack.c.h.bf16 %v192
    %s195 = scalar_lea.vmem [#allocation1], 1952
    %196 = vst [vmem:[%s195] sm:%s4] %v193
    %s197 = smul.addr 4, 243
    %s198 = scalar_lea.vmem %s0, %s197
    %s199 = sshrl.u32 %s4, 1
    %s200 = sor.u32 %s4, %s199
    %s201 = sand.u32 %s200, 85
    %s202 = sshrl.u32 %s201, 1
    %s203 = sor.u32 %s201, %s202
    %s204 = sand.u32 51, %s203
    %s205 = sshrl.u32 %s204, 2
    %s206 = sor.u32 %s204, %s205
    %s207 = sand.u32 15, %s206
    %v208 = vld [vmem:[%s198] sm:%s207]
    %v209 = vunpack.c.l.bf16 %v208
    %v210 = vunpack.c.h.bf16 %v208
    %s211 = scalar_lea.vmem [#allocation1], 1944
    %212 = vst [vmem:[%s211] sm:%s4] %v209
    %s213 = smul.addr 4, 242
    %s214 = scalar_lea.vmem %s0, %s213
    %s215 = sshrl.u32 %s4, 1
    %s216 = sor.u32 %s4, %s215
    %s217 = sand.u32 %s216, 85
    %s218 = sshrl.u32 %s217, 1
    %s219 = sor.u32 %s217, %s218
    %s220 = sand.u32 51, %s219
    %s221 = sshrl.u32 %s220, 2
    %s222 = sor.u32 %s220, %s221
    %s223 = sand.u32 15, %s222
    %v224 = vld [vmem:[%s214] sm:%s223]
    %v225 = vunpack.c.l.bf16 %v224
    %v226 = vunpack.c.h.bf16 %v224
    %s227 = scalar_lea.vmem [#allocation1], 1936
    %228 = vst [vmem:[%s227] sm:%s4] %v225
    %s229 = smul.addr 4, 241
    %s230 = scalar_lea.vmem %s0, %s229
    %s231 = sshrl.u32 %s4, 1
    %s232 = sor.u32 %s4, %s231
    %s233 = sand.u32 %s232, 85
    %s234 = sshrl.u32 %s233, 1
    %s235 = sor.u32 %s233, %s234
    %s236 = sand.u32 51, %s235
    %s237 = sshrl.u32 %s236, 2
    %s238 = sor.u32 %s236, %s237
    %s239 = sand.u32 15, %s238
    %v240 = vld [vmem:[%s230] sm:%s239]
    %v241 = vunpack.c.l.bf16 %v240
    %v242 = vunpack.c.h.bf16 %v240
    %s243 = scalar_lea.vmem [#allocation1], 1928
    %244 = vst [vmem:[%s243] sm:%s4] %v241
    %s245 = smul.addr 4, 240
    %s246 = scalar_lea.vmem %s0, %s245
    %s247 = sshrl.u32 %s4, 1
    %s248 = sor.u32 %s4, %s247
    %s249 = sand.u32 %s248, 85
    %s250 = sshrl.u32 %s249, 1
    %s251 = sor.u32 %s249, %s250
    %s252 = sand.u32 51, %s251
    %s253 = sshrl.u32 %s252, 2
    %s254 = sor.u32 %s252, %s253
    %s255 = sand.u32 15, %s254
    %v256 = vld [vmem:[%s246] sm:%s255]
    %v257 = vunpack.c.l.bf16 %v256
    %v258 = vunpack.c.h.bf16 %v256
    %s259 = scalar_lea.vmem [#allocation1], 1920
    %260 = vst [vmem:[%s259] sm:%s4] %v257
    %s261 = smul.addr 4, 239
    %s262 = scalar_lea.vmem %s0, %s261
    %s263 = sshrl.u32 %s4, 1
    %s264 = sor.u32 %s4, %s263
    %s265 = sand.u32 %s264, 85
    %s266 = sshrl.u32 %s265, 1
    %s267 = sor.u32 %s265, %s266
    %s268 = sand.u32 51, %s267
    %s269 = sshrl.u32 %s268, 2
    %s270 = sor.u32 %s268, %s269
    %s271 = sand.u32 15, %s270
    %v272 = vld [vmem:[%s262] sm:%s271]
    %v273 = vunpack.c.l.bf16 %v272
    %v274 = vunpack.c.h.bf16 %v272
    %s275 = scalar_lea.vmem [#allocation1], 1912
    %276 = vst [vmem:[%s275] sm:%s4] %v273
    %s277 = smul.addr 4, 238
    %s278 = scalar_lea.vmem %s0, %s277
    %s279 = sshrl.u32 %s4, 1
    %s280 = sor.u32 %s4, %s279
    %s281 = sand.u32 %s280, 85
    %s282 = sshrl.u32 %s281, 1
    %s283 = sor.u32 %s281, %s282
    %s284 = sand.u32 51, %s283
    %s285 = sshrl.u32 %s284, 2
    %s286 = sor.u32 %s284, %s285
    %s287 = sand.u32 15, %s286
    %v288 = vld [vmem:[%s278] sm:%s287]
    %v289 = vunpack.c.l.bf16 %v288
    %v290 = vunpack.c.h.bf16 %v288
    %s291 = scalar_lea.vmem [#allocation1], 1904
    %292 = vst [vmem:[%s291] sm:%s4] %v289
    %s293 = smul.addr 4, 237
    %s294 = scalar_lea.vmem %s0, %s293
    %s295 = sshrl.u32 %s4, 1
    %s296 = sor.u32 %s4, %s295
    %s297 = sand.u32 %s296, 85
    %s298 = sshrl.u32 %s297, 1
    %s299 = sor.u32 %s297, %s298
    %s300 = sand.u32 51, %s299
    %s301 = sshrl.u32 %s300, 2
    %s302 = sor.u32 %s300, %s301
    %s303 = sand.u32 15, %s302
    %v304 = vld [vmem:[%s294] sm:%s303]
    %v305 = vunpack.c.l.bf16 %v304
    %v306 = vunpack.c.h.bf16 %v304
    %s307 = scalar_lea.vmem [#allocation1], 1896
    %308 = vst [vmem:[%s307] sm:%s4] %v305
    %s309 = smul.addr 4, 236
    %s310 = scalar_lea.vmem %s0, %s309
    %s311 = sshrl.u32 %s4, 1
    %s312 = sor.u32 %s4, %s311
    %s313 = sand.u32 %s312, 85
    %s314 = sshrl.u32 %s313, 1
    %s315 = sor.u32 %s313, %s314
    %s316 = sand.u32 51, %s315
    %s317 = sshrl.u32 %s316, 2
    %s318 = sor.u32 %s316, %s317
    %s319 = sand.u32 15, %s318
    %v320 = vld [vmem:[%s310] sm:%s319]
    %v321 = vunpack.c.l.bf16 %v320
    %v322 = vunpack.c.h.bf16 %v320
    %s323 = scalar_lea.vmem [#allocation1], 1888
    %324 = vst [vmem:[%s323] sm:%s4] %v321
    %s325 = smul.addr 4, 235
    %s326 = scalar_lea.vmem %s0, %s325
    %s327 = sshrl.u32 %s4, 1
    %s328 = sor.u32 %s4, %s327
    %s329 = sand.u32 %s328, 85
    %s330 = sshrl.u32 %s329, 1
    %s331 = sor.u32 %s329, %s330
    %s332 = sand.u32 51, %s331
    %s333 = sshrl.u32 %s332, 2
    %s334 = sor.u32 %s332, %s333
    %s335 = sand.u32 15, %s334
    %v336 = vld [vmem:[%s326] sm:%s335]
    %v337 = vunpack.c.l.bf16 %v336
    %v338 = vunpack.c.h.bf16 %v336
    %s339 = scalar_lea.vmem [#allocation1], 1880
    %340 = vst [vmem:[%s339] sm:%s4] %v337
    %s341 = smul.addr 4, 234
    %s342 = scalar_lea.vmem %s0, %s341
    %s343 = sshrl.u32 %s4, 1
    %s344 = sor.u32 %s4, %s343
    %s345 = sand.u32 %s344, 85
    %s346 = sshrl.u32 %s345, 1
    %s347 = sor.u32 %s345, %s346
    %s348 = sand.u32 51, %s347
    %s349 = sshrl.u32 %s348, 2
    %s350 = sor.u32 %s348, %s349
    %s351 = sand.u32 15, %s350
    %v352 = vld [vmem:[%s342] sm:%s351]
    %v353 = vunpack.c.l.bf16 %v352
    %v354 = vunpack.c.h.bf16 %v352
    %s355 = scalar_lea.vmem [#allocation1], 1872
    %356 = vst [vmem:[%s355] sm:%s4] %v353
    %s357 = smul.addr 4, 233
    %s358 = scalar_lea.vmem %s0, %s357
    %s359 = sshrl.u32 %s4, 1
    %s360 = sor.u32 %s4, %s359
    %s361 = sand.u32 %s360, 85
    %s362 = sshrl.u32 %s361, 1
    %s363 = sor.u32 %s361, %s362
    %s364 = sand.u32 51, %s363
    %s365 = sshrl.u32 %s364, 2
    %s366 = sor.u32 %s364, %s365
    %s367 = sand.u32 15, %s366
    %v368 = vld [vmem:[%s358] sm:%s367]
    %v369 = vunpack.c.l.bf16 %v368
    %v370 = vunpack.c.h.bf16 %v368
    %s371 = scalar_lea.vmem [#allocation1], 1864
    %372 = vst [vmem:[%s371] sm:%s4] %v369
    %s373 = smul.addr 4, 232
    %s374 = scalar_lea.vmem %s0, %s373
    %s375 = sshrl.u32 %s4, 1
    %s376 = sor.u32 %s4, %s375
    %s377 = sand.u32 %s376, 85
    %s378 = sshrl.u32 %s377, 1
    %s379 = sor.u32 %s377, %s378
    %s380 = sand.u32 51, %s379
    %s381 = sshrl.u32 %s380, 2
    %s382 = sor.u32 %s380, %s381
    %s383 = sand.u32 15, %s382
    %v384 = vld [vmem:[%s374] sm:%s383]
    %v385 = vunpack.c.l.bf16 %v384
    %v386 = vunpack.c.h.bf16 %v384
    %s387 = scalar_lea.vmem [#allocation1], 1856
    %388 = vst [vmem:[%s387] sm:%s4] %v385
    %s389 = smul.addr 4, 231
    %s390 = scalar_lea.vmem %s0, %s389
    %s391 = sshrl.u32 %s4, 1
    %s392 = sor.u32 %s4, %s391
    %s393 = sand.u32 %s392, 85
    %s394 = sshrl.u32 %s393, 1
    %s395 = sor.u32 %s393, %s394
    %s396 = sand.u32 51, %s395
    %s397 = sshrl.u32 %s396, 2
    %s398 = sor.u32 %s396, %s397
    %s399 = sand.u32 15, %s398
    %v400 = vld [vmem:[%s390] sm:%s399]
    %v401 = vunpack.c.l.bf16 %v400
    %v402 = vunpack.c.h.bf16 %v400
    %s403 = scalar_lea.vmem [#allocation1], 1848
    %404 = vst [vmem:[%s403] sm:%s4] %v401
    %s405 = smul.addr 4, 230
    %s406 = scalar_lea.vmem %s0, %s405
    %s407 = sshrl.u32 %s4, 1
    %s408 = sor.u32 %s4, %s407
    %s409 = sand.u32 %s408, 85
    %s410 = sshrl.u32 %s409, 1
    %s411 = sor.u32 %s409, %s410
    %s412 = sand.u32 51, %s411
    %s413 = sshrl.u32 %s412, 2
    %s414 = sor.u32 %s412, %s413
    %s415 = sand.u32 15, %s414
    %v416 = vld [vmem:[%s406] sm:%s415]
    %v417 = vunpack.c.l.bf16 %v416
    %v418 = vunpack.c.h.bf16 %v416
    %s419 = scalar_lea.vmem [#allocation1], 1840
    %420 = vst [vmem:[%s419] sm:%s4] %v417
    %s421 = smul.addr 4, 229
    %s422 = scalar_lea.vmem %s0, %s421
    %s423 = sshrl.u32 %s4, 1
    %s424 = sor.u32 %s4, %s423
    %s425 = sand.u32 %s424, 85
    %s426 = sshrl.u32 %s425, 1
    %s427 = sor.u32 %s425, %s426
    %s428 = sand.u32 51, %s427
    %s429 = sshrl.u32 %s428, 2
    %s430 = sor.u32 %s428, %s429
    %s431 = sand.u32 15, %s430
    %v432 = vld [vmem:[%s422] sm:%s431]
    %v433 = vunpack.c.l.bf16 %v432
    %v434 = vunpack.c.h.bf16 %v432
    %s435 = scalar_lea.vmem [#allocation1], 1832
    %436 = vst [vmem:[%s435] sm:%s4] %v433
    %s437 = smul.addr 4, 228
    %s438 = scalar_lea.vmem %s0, %s437
    %s439 = sshrl.u32 %s4, 1
    %s440 = sor.u32 %s4, %s439
    %s441 = sand.u32 %s440, 85
    %s442 = sshrl.u32 %s441, 1
    %s443 = sor.u32 %s441, %s442
    %s444 = sand.u32 51, %s443
    %s445 = sshrl.u32 %s444, 2
    %s446 = sor.u32 %s444, %s445
    %s447 = sand.u32 15, %s446
    %v448 = vld [vmem:[%s438] sm:%s447]
    %v449 = vunpack.c.l.bf16 %v448
    %v450 = vunpack.c.h.bf16 %v448
    %s451 = scalar_lea.vmem [#allocation1], 1824
    %452 = vst [vmem:[%s451] sm:%s4] %v449
    %s453 = smul.addr 4, 227
    %s454 = scalar_lea.vmem %s0, %s453
    %s455 = sshrl.u32 %s4, 1
    %s456 = sor.u32 %s4, %s455
    %s457 = sand.u32 %s456, 85
    %s458 = sshrl.u32 %s457, 1
    %s459 = sor.u32 %s457, %s458
    %s460 = sand.u32 51, %s459
    %s461 = sshrl.u32 %s460, 2
    %s462 = sor.u32 %s460, %s461
    %s463 = sand.u32 15, %s462
    %v464 = vld [vmem:[%s454] sm:%s463]
    %v465 = vunpack.c.l.bf16 %v464
    %v466 = vunpack.c.h.bf16 %v464
    %s467 = scalar_lea.vmem [#allocation1], 1816
    %468 = vst [vmem:[%s467] sm:%s4] %v465
    %s469 = smul.addr 4, 226
    %s470 = scalar_lea.vmem %s0, %s469
    %s471 = sshrl.u32 %s4, 1
    %s472 = sor.u32 %s4, %s471
    %s473 = sand.u32 %s472, 85
    %s474 = sshrl.u32 %s473, 1
    %s475 = sor.u32 %s473, %s474
    %s476 = sand.u32 51, %s475
    %s477 = sshrl.u32 %s476, 2
    %s478 = sor.u32 %s476, %s477
    %s479 = sand.u32 15, %s478
    %v480 = vld [vmem:[%s470] sm:%s479]
    %v481 = vunpack.c.l.bf16 %v480
    %v482 = vunpack.c.h.bf16 %v480
    %s483 = scalar_lea.vmem [#allocation1], 1808
    %484 = vst [vmem:[%s483] sm:%s4] %v481
    %s485 = smul.addr 4, 225
    %s486 = scalar_lea.vmem %s0, %s485
    %s487 = sshrl.u32 %s4, 1
    %s488 = sor.u32 %s4, %s487
    %s489 = sand.u32 %s488, 85
    %s490 = sshrl.u32 %s489, 1
    %s491 = sor.u32 %s489, %s490
    %s492 = sand.u32 51, %s491
    %s493 = sshrl.u32 %s492, 2
    %s494 = sor.u32 %s492, %s493
    %s495 = sand.u32 15, %s494
    %v496 = vld [vmem:[%s486] sm:%s495]
    %v497 = vunpack.c.l.bf16 %v496
    %v498 = vunpack.c.h.bf16 %v496
    %s499 = scalar_lea.vmem [#allocation1], 1800
    %500 = vst [vmem:[%s499] sm:%s4] %v497
    %s501 = smul.addr 4, 224
    %s502 = scalar_lea.vmem %s0, %s501
    %s503 = sshrl.u32 %s4, 1
    %s504 = sor.u32 %s4, %s503
    %s505 = sand.u32 %s504, 85
    %s506 = sshrl.u32 %s505, 1
    %s507 = sor.u32 %s505, %s506
    %s508 = sand.u32 51, %s507
    %s509 = sshrl.u32 %s508, 2
    %s510 = sor.u32 %s508, %s509
    %s511 = sand.u32 15, %s510
    %v512 = vld [vmem:[%s502] sm:%s511]
    %v513 = vunpack.c.l.bf16 %v512
    %v514 = vunpack.c.h.bf16 %v512
    %s515 = scalar_lea.vmem [#allocation1], 1792
    %516 = vst [vmem:[%s515] sm:%s4] %v513
    %s517 = smul.addr 4, 223
    %s518 = scalar_lea.vmem %s0, %s517
    %s519 = sshrl.u32 %s4, 1
    %s520 = sor.u32 %s4, %s519
    %s521 = sand.u32 %s520, 85
    %s522 = sshrl.u32 %s521, 1
    %s523 = sor.u32 %s521, %s522
    %s524 = sand.u32 51, %s523
    %s525 = sshrl.u32 %s524, 2
    %s526 = sor.u32 %s524, %s525
    %s527 = sand.u32 15, %s526
    %v528 = vld [vmem:[%s518] sm:%s527]
    %v529 = vunpack.c.l.bf16 %v528
    %v530 = vunpack.c.h.bf16 %v528
    %s531 = scalar_lea.vmem [#allocation1], 1784
    %532 = vst [vmem:[%s531] sm:%s4] %v529
    %s533 = smul.addr 4, 222
    %s534 = scalar_lea.vmem %s0, %s533
    %s535 = sshrl.u32 %s4, 1
    %s536 = sor.u32 %s4, %s535
    %s537 = sand.u32 %s536, 85
    %s538 = sshrl.u32 %s537, 1
    %s539 = sor.u32 %s537, %s538
    %s540 = sand.u32 51, %s539
    %s541 = sshrl.u32 %s540, 2
    %s542 = sor.u32 %s540, %s541
    %s543 = sand.u32 15, %s542
    %v544 = vld [vmem:[%s534] sm:%s543]
    %v545 = vunpack.c.l.bf16 %v544
    %v546 = vunpack.c.h.bf16 %v544
    %s547 = scalar_lea.vmem [#allocation1], 1776
    %548 = vst [vmem:[%s547] sm:%s4] %v545
    %s549 = smul.addr 4, 221
    %s550 = scalar_lea.vmem %s0, %s549
    %s551 = sshrl.u32 %s4, 1
    %s552 = sor.u32 %s4, %s551
    %s553 = sand.u32 %s552, 85
    %s554 = sshrl.u32 %s553, 1
    %s555 = sor.u32 %s553, %s554
    %s556 = sand.u32 51, %s555
    %s557 = sshrl.u32 %s556, 2
    %s558 = sor.u32 %s556, %s557
    %s559 = sand.u32 15, %s558
    %v560 = vld [vmem:[%s550] sm:%s559]
    %v561 = vunpack.c.l.bf16 %v560
    %v562 = vunpack.c.h.bf16 %v560
    %s563 = scalar_lea.vmem [#allocation1], 1768
    %564 = vst [vmem:[%s563] sm:%s4] %v561
    %s565 = smul.addr 4, 220
    %s566 = scalar_lea.vmem %s0, %s565
    %s567 = sshrl.u32 %s4, 1
    %s568 = sor.u32 %s4, %s567
    %s569 = sand.u32 %s568, 85
    %s570 = sshrl.u32 %s569, 1
    %s571 = sor.u32 %s569, %s570
    %s572 = sand.u32 51, %s571
    %s573 = sshrl.u32 %s572, 2
    %s574 = sor.u32 %s572, %s573
    %s575 = sand.u32 15, %s574
    %v576 = vld [vmem:[%s566] sm:%s575]
    %v577 = vunpack.c.l.bf16 %v576
    %v578 = vunpack.c.h.bf16 %v576
    %s579 = scalar_lea.vmem [#allocation1], 1760
    %580 = vst [vmem:[%s579] sm:%s4] %v577
    %s581 = smul.addr 4, 219
    %s582 = scalar_lea.vmem %s0, %s581
    %s583 = sshrl.u32 %s4, 1
    %s584 = sor.u32 %s4, %s583
    %s585 = sand.u32 %s584, 85
    %s586 = sshrl.u32 %s585, 1
    %s587 = sor.u32 %s585, %s586
    %s588 = sand.u32 51, %s587
    %s589 = sshrl.u32 %s588, 2
    %s590 = sor.u32 %s588, %s589
    %s591 = sand.u32 15, %s590
    %v592 = vld [vmem:[%s582] sm:%s591]
    %v593 = vunpack.c.l.bf16 %v592
    %v594 = vunpack.c.h.bf16 %v592
    %s595 = scalar_lea.vmem [#allocation1], 1752
    %596 = vst [vmem:[%s595] sm:%s4] %v593
    %s597 = smul.addr 4, 218
    %s598 = scalar_lea.vmem %s0, %s597
    %s599 = sshrl.u32 %s4, 1
    %s600 = sor.u32 %s4, %s599
    %s601 = sand.u32 %s600, 85
    %s602 = sshrl.u32 %s601, 1
    %s603 = sor.u32 %s601, %s602
    %s604 = sand.u32 51, %s603
    %s605 = sshrl.u32 %s604, 2
    %s606 = sor.u32 %s604, %s605
    %s607 = sand.u32 15, %s606
    %v608 = vld [vmem:[%s598] sm:%s607]
    %v609 = vunpack.c.l.bf16 %v608
    %v610 = vunpack.c.h.bf16 %v608
    %s611 = scalar_lea.vmem [#allocation1], 1744
    %612 = vst [vmem:[%s611] sm:%s4] %v609
    %s613 = smul.addr 4, 217
    %s614 = scalar_lea.vmem %s0, %s613
    %s615 = sshrl.u32 %s4, 1
    %s616 = sor.u32 %s4, %s615
    %s617 = sand.u32 %s616, 85
    %s618 = sshrl.u32 %s617, 1
    %s619 = sor.u32 %s617, %s618
    %s620 = sand.u32 51, %s619
    %s621 = sshrl.u32 %s620, 2
    %s622 = sor.u32 %s620, %s621
    %s623 = sand.u32 15, %s622
    %v624 = vld [vmem:[%s614] sm:%s623]
    %v625 = vunpack.c.l.bf16 %v624
    %v626 = vunpack.c.h.bf16 %v624
    %s627 = scalar_lea.vmem [#allocation1], 1736
    %628 = vst [vmem:[%s627] sm:%s4] %v625
    %s629 = smul.addr 4, 216
    %s630 = scalar_lea.vmem %s0, %s629
    %s631 = sshrl.u32 %s4, 1
    %s632 = sor.u32 %s4, %s631
    %s633 = sand.u32 %s632, 85
    %s634 = sshrl.u32 %s633, 1
    %s635 = sor.u32 %s633, %s634
    %s636 = sand.u32 51, %s635
    %s637 = sshrl.u32 %s636, 2
    %s638 = sor.u32 %s636, %s637
    %s639 = sand.u32 15, %s638
    %v640 = vld [vmem:[%s630] sm:%s639]
    %v641 = vunpack.c.l.bf16 %v640
    %v642 = vunpack.c.h.bf16 %v640
    %s643 = scalar_lea.vmem [#allocation1], 1728
    %644 = vst [vmem:[%s643] sm:%s4] %v641
    %s645 = smul.addr 4, 215
    %s646 = scalar_lea.vmem %s0, %s645
    %s647 = sshrl.u32 %s4, 1
    %s648 = sor.u32 %s4, %s647
    %s649 = sand.u32 %s648, 85
    %s650 = sshrl.u32 %s649, 1
    %s651 = sor.u32 %s649, %s650
    %s652 = sand.u32 51, %s651
    %s653 = sshrl.u32 %s652, 2
    %s654 = sor.u32 %s652, %s653
    %s655 = sand.u32 15, %s654
    %v656 = vld [vmem:[%s646] sm:%s655]
    %v657 = vunpack.c.l.bf16 %v656
    %v658 = vunpack.c.h.bf16 %v656
    %s659 = scalar_lea.vmem [#allocation1], 1720
    %660 = vst [vmem:[%s659] sm:%s4] %v657
    %s661 = smul.addr 4, 214
    %s662 = scalar_lea.vmem %s0, %s661
    %s663 = sshrl.u32 %s4, 1
    %s664 = sor.u32 %s4, %s663
    %s665 = sand.u32 %s664, 85
    %s666 = sshrl.u32 %s665, 1
    %s667 = sor.u32 %s665, %s666
    %s668 = sand.u32 51, %s667
    %s669 = sshrl.u32 %s668, 2
    %s670 = sor.u32 %s668, %s669
    %s671 = sand.u32 15, %s670
    %v672 = vld [vmem:[%s662] sm:%s671]
    %v673 = vunpack.c.l.bf16 %v672
    %v674 = vunpack.c.h.bf16 %v672
    %s675 = scalar_lea.vmem [#allocation1], 1712
    %676 = vst [vmem:[%s675] sm:%s4] %v673
    %s677 = smul.addr 4, 213
    %s678 = scalar_lea.vmem %s0, %s677
    %s679 = sshrl.u32 %s4, 1
    %s680 = sor.u32 %s4, %s679
    %s681 = sand.u32 %s680, 85
    %s682 = sshrl.u32 %s681, 1
    %s683 = sor.u32 %s681, %s682
    %s684 = sand.u32 51, %s683
    %s685 = sshrl.u32 %s684, 2
    %s686 = sor.u32 %s684, %s685
    %s687 = sand.u32 15, %s686
    %v688 = vld [vmem:[%s678] sm:%s687]
    %v689 = vunpack.c.l.bf16 %v688
    %v690 = vunpack.c.h.bf16 %v688
    %s691 = scalar_lea.vmem [#allocation1], 1704
    %692 = vst [vmem:[%s691] sm:%s4] %v689
    %s693 = smul.addr 4, 212
    %s694 = scalar_lea.vmem %s0, %s693
    %s695 = sshrl.u32 %s4, 1
    %s696 = sor.u32 %s4, %s695
    %s697 = sand.u32 %s696, 85
    %s698 = sshrl.u32 %s697, 1
    %s699 = sor.u32 %s697, %s698
    %s700 = sand.u32 51, %s699
    %s701 = sshrl.u32 %s700, 2
    %s702 = sor.u32 %s700, %s701
    %s703 = sand.u32 15, %s702
    %v704 = vld [vmem:[%s694] sm:%s703]
    %v705 = vunpack.c.l.bf16 %v704
    %v706 = vunpack.c.h.bf16 %v704
    %s707 = scalar_lea.vmem [#allocation1], 1696
    %708 = vst [vmem:[%s707] sm:%s4] %v705
    %s709 = smul.addr 4, 211
    %s710 = scalar_lea.vmem %s0, %s709
    %s711 = sshrl.u32 %s4, 1
    %s712 = sor.u32 %s4, %s711
    %s713 = sand.u32 %s712, 85
    %s714 = sshrl.u32 %s713, 1
    %s715 = sor.u32 %s713, %s714
    %s716 = sand.u32 51, %s715
    %s717 = sshrl.u32 %s716, 2
    %s718 = sor.u32 %s716, %s717
    %s719 = sand.u32 15, %s718
    %v720 = vld [vmem:[%s710] sm:%s719]
    %v721 = vunpack.c.l.bf16 %v720
    %v722 = vunpack.c.h.bf16 %v720
    %s723 = scalar_lea.vmem [#allocation1], 1688
    %724 = vst [vmem:[%s723] sm:%s4] %v721
    %s725 = smul.addr 4, 210
    %s726 = scalar_lea.vmem %s0, %s725
    %s727 = sshrl.u32 %s4, 1
    %s728 = sor.u32 %s4, %s727
    %s729 = sand.u32 %s728, 85
    %s730 = sshrl.u32 %s729, 1
    %s731 = sor.u32 %s729, %s730
    %s732 = sand.u32 51, %s731
    %s733 = sshrl.u32 %s732, 2
    %s734 = sor.u32 %s732, %s733
    %s735 = sand.u32 15, %s734
    %v736 = vld [vmem:[%s726] sm:%s735]
    %v737 = vunpack.c.l.bf16 %v736
    %v738 = vunpack.c.h.bf16 %v736
    %s739 = scalar_lea.vmem [#allocation1], 1680
    %740 = vst [vmem:[%s739] sm:%s4] %v737
    %s741 = smul.addr 4, 209
    %s742 = scalar_lea.vmem %s0, %s741
    %s743 = sshrl.u32 %s4, 1
    %s744 = sor.u32 %s4, %s743
    %s745 = sand.u32 %s744, 85
    %s746 = sshrl.u32 %s745, 1
    %s747 = sor.u32 %s745, %s746
    %s748 = sand.u32 51, %s747
    %s749 = sshrl.u32 %s748, 2
    %s750 = sor.u32 %s748, %s749
    %s751 = sand.u32 15, %s750
    %v752 = vld [vmem:[%s742] sm:%s751]
    %v753 = vunpack.c.l.bf16 %v752
    %v754 = vunpack.c.h.bf16 %v752
    %s755 = scalar_lea.vmem [#allocation1], 1672
    %756 = vst [vmem:[%s755] sm:%s4] %v753
    %s757 = smul.addr 4, 208
    %s758 = scalar_lea.vmem %s0, %s757
    %s759 = sshrl.u32 %s4, 1
    %s760 = sor.u32 %s4, %s759
    %s761 = sand.u32 %s760, 85
    %s762 = sshrl.u32 %s761, 1
    %s763 = sor.u32 %s761, %s762
    %s764 = sand.u32 51, %s763
    %s765 = sshrl.u32 %s764, 2
    %s766 = sor.u32 %s764, %s765
    %s767 = sand.u32 15, %s766
    %v768 = vld [vmem:[%s758] sm:%s767]
    %v769 = vunpack.c.l.bf16 %v768
    %v770 = vunpack.c.h.bf16 %v768
    %s771 = scalar_lea.vmem [#allocation1], 1664
    %772 = vst [vmem:[%s771] sm:%s4] %v769
    %s773 = smul.addr 4, 207
    %s774 = scalar_lea.vmem %s0, %s773
    %s775 = sshrl.u32 %s4, 1
    %s776 = sor.u32 %s4, %s775
    %s777 = sand.u32 %s776, 85
    %s778 = sshrl.u32 %s777, 1
    %s779 = sor.u32 %s777, %s778
    %s780 = sand.u32 51, %s779
    %s781 = sshrl.u32 %s780, 2
    %s782 = sor.u32 %s780, %s781
    %s783 = sand.u32 15, %s782
    %v784 = vld [vmem:[%s774] sm:%s783]
    %v785 = vunpack.c.l.bf16 %v784
    %v786 = vunpack.c.h.bf16 %v784
    %s787 = scalar_lea.vmem [#allocation1], 1656
    %788 = vst [vmem:[%s787] sm:%s4] %v785
    %s789 = smul.addr 4, 206
    %s790 = scalar_lea.vmem %s0, %s789
    %s791 = sshrl.u32 %s4, 1
    %s792 = sor.u32 %s4, %s791
    %s793 = sand.u32 %s792, 85
    %s794 = sshrl.u32 %s793, 1
    %s795 = sor.u32 %s793, %s794
    %s796 = sand.u32 51, %s795
    %s797 = sshrl.u32 %s796, 2
    %s798 = sor.u32 %s796, %s797
    %s799 = sand.u32 15, %s798
    %v800 = vld [vmem:[%s790] sm:%s799]
    %v801 = vunpack.c.l.bf16 %v800
    %v802 = vunpack.c.h.bf16 %v800
    %s803 = scalar_lea.vmem [#allocation1], 1648
    %804 = vst [vmem:[%s803] sm:%s4] %v801
    %s805 = smul.addr 4, 205
    %s806 = scalar_lea.vmem %s0, %s805
    %s807 = sshrl.u32 %s4, 1
    %s808 = sor.u32 %s4, %s807
    %s809 = sand.u32 %s808, 85
    %s810 = sshrl.u32 %s809, 1
    %s811 = sor.u32 %s809, %s810
    %s812 = sand.u32 51, %s811
    %s813 = sshrl.u32 %s812, 2
    %s814 = sor.u32 %s812, %s813
    %s815 = sand.u32 15, %s814
    %v816 = vld [vmem:[%s806] sm:%s815]
    %v817 = vunpack.c.l.bf16 %v816
    %v818 = vunpack.c.h.bf16 %v816
    %s819 = scalar_lea.vmem [#allocation1], 1640
    %820 = vst [vmem:[%s819] sm:%s4] %v817
    %s821 = smul.addr 4, 204
    %s822 = scalar_lea.vmem %s0, %s821
    %s823 = sshrl.u32 %s4, 1
    %s824 = sor.u32 %s4, %s823
    %s825 = sand.u32 %s824, 85
    %s826 = sshrl.u32 %s825, 1
    %s827 = sor.u32 %s825, %s826
    %s828 = sand.u32 51, %s827
    %s829 = sshrl.u32 %s828, 2
    %s830 = sor.u32 %s828, %s829
    %s831 = sand.u32 15, %s830
    %v832 = vld [vmem:[%s822] sm:%s831]
    %v833 = vunpack.c.l.bf16 %v832
    %v834 = vunpack.c.h.bf16 %v832
    %s835 = scalar_lea.vmem [#allocation1], 1632
    %836 = vst [vmem:[%s835] sm:%s4] %v833
    %s837 = smul.addr 4, 203
    %s838 = scalar_lea.vmem %s0, %s837
    %s839 = sshrl.u32 %s4, 1
    %s840 = sor.u32 %s4, %s839
    %s841 = sand.u32 %s840, 85
    %s842 = sshrl.u32 %s841, 1
    %s843 = sor.u32 %s841, %s842
    %s844 = sand.u32 51, %s843
    %s845 = sshrl.u32 %s844, 2
    %s846 = sor.u32 %s844, %s845
    %s847 = sand.u32 15, %s846
    %v848 = vld [vmem:[%s838] sm:%s847]
    %v849 = vunpack.c.l.bf16 %v848
    %v850 = vunpack.c.h.bf16 %v848
    %s851 = scalar_lea.vmem [#allocation1], 1624
    %852 = vst [vmem:[%s851] sm:%s4] %v849
    %s853 = smul.addr 4, 202
    %s854 = scalar_lea.vmem %s0, %s853
    %s855 = sshrl.u32 %s4, 1
    %s856 = sor.u32 %s4, %s855
    %s857 = sand.u32 %s856, 85
    %s858 = sshrl.u32 %s857, 1
    %s859 = sor.u32 %s857, %s858
    %s860 = sand.u32 51, %s859
    %s861 = sshrl.u32 %s860, 2
    %s862 = sor.u32 %s860, %s861
    %s863 = sand.u32 15, %s862
    %v864 = vld [vmem:[%s854] sm:%s863]
    %v865 = vunpack.c.l.bf16 %v864
    %v866 = vunpack.c.h.bf16 %v864
    %s867 = scalar_lea.vmem [#allocation1], 1616
    %868 = vst [vmem:[%s867] sm:%s4] %v865
    %s869 = smul.addr 4, 201
    %s870 = scalar_lea.vmem %s0, %s869
    %s871 = sshrl.u32 %s4, 1
    %s872 = sor.u32 %s4, %s871
    %s873 = sand.u32 %s872, 85
    %s874 = sshrl.u32 %s873, 1
    %s875 = sor.u32 %s873, %s874
    %s876 = sand.u32 51, %s875
    %s877 = sshrl.u32 %s876, 2
    %s878 = sor.u32 %s876, %s877
    %s879 = sand.u32 15, %s878
    %v880 = vld [vmem:[%s870] sm:%s879]
    %v881 = vunpack.c.l.bf16 %v880
    %v882 = vunpack.c.h.bf16 %v880
    %s883 = scalar_lea.vmem [#allocation1], 1608
    %884 = vst [vmem:[%s883] sm:%s4] %v881
    %s885 = smul.addr 4, 200
    %s886 = scalar_lea.vmem %s0, %s885
    %s887 = sshrl.u32 %s4, 1
    %s888 = sor.u32 %s4, %s887
    %s889 = sand.u32 %s888, 85
    %s890 = sshrl.u32 %s889, 1
    %s891 = sor.u32 %s889, %s890
    %s892 = sand.u32 51, %s891
    %s893 = sshrl.u32 %s892, 2
    %s894 = sor.u32 %s892, %s893
    %s895 = sand.u32 15, %s894
    %v896 = vld [vmem:[%s886] sm:%s895]
    %v897 = vunpack.c.l.bf16 %v896
    %v898 = vunpack.c.h.bf16 %v896
    %s899 = scalar_lea.vmem [#allocation1], 1600
    %900 = vst [vmem:[%s899] sm:%s4] %v897
    %s901 = smul.addr 4, 199
    %s902 = scalar_lea.vmem %s0, %s901
    %s903 = sshrl.u32 %s4, 1
    %s904 = sor.u32 %s4, %s903
    %s905 = sand.u32 %s904, 85
    %s906 = sshrl.u32 %s905, 1
    %s907 = sor.u32 %s905, %s906
    %s908 = sand.u32 51, %s907
    %s909 = sshrl.u32 %s908, 2
    %s910 = sor.u32 %s908, %s909
    %s911 = sand.u32 15, %s910
    %v912 = vld [vmem:[%s902] sm:%s911]
    %v913 = vunpack.c.l.bf16 %v912
    %v914 = vunpack.c.h.bf16 %v912
    %s915 = scalar_lea.vmem [#allocation1], 1592
    %916 = vst [vmem:[%s915] sm:%s4] %v913
    %s917 = smul.addr 4, 198
    %s918 = scalar_lea.vmem %s0, %s917
    %s919 = sshrl.u32 %s4, 1
    %s920 = sor.u32 %s4, %s919
    %s921 = sand.u32 %s920, 85
    %s922 = sshrl.u32 %s921, 1
    %s923 = sor.u32 %s921, %s922
    %s924 = sand.u32 51, %s923
    %s925 = sshrl.u32 %s924, 2
    %s926 = sor.u32 %s924, %s925
    %s927 = sand.u32 15, %s926
    %v928 = vld [vmem:[%s918] sm:%s927]
    %v929 = vunpack.c.l.bf16 %v928
    %v930 = vunpack.c.h.bf16 %v928
    %s931 = scalar_lea.vmem [#allocation1], 1584
    %932 = vst [vmem:[%s931] sm:%s4] %v929
    %s933 = smul.addr 4, 197
    %s934 = scalar_lea.vmem %s0, %s933
    %s935 = sshrl.u32 %s4, 1
    %s936 = sor.u32 %s4, %s935
    %s937 = sand.u32 %s936, 85
    %s938 = sshrl.u32 %s937, 1
    %s939 = sor.u32 %s937, %s938
    %s940 = sand.u32 51, %s939
    %s941 = sshrl.u32 %s940, 2
    %s942 = sor.u32 %s940, %s941
    %s943 = sand.u32 15, %s942
    %v944 = vld [vmem:[%s934] sm:%s943]
    %v945 = vunpack.c.l.bf16 %v944
    %v946 = vunpack.c.h.bf16 %v944
    %s947 = scalar_lea.vmem [#allocation1], 1576
    %948 = vst [vmem:[%s947] sm:%s4] %v945
    %s949 = smul.addr 4, 196
    %s950 = scalar_lea.vmem %s0, %s949
    %s951 = sshrl.u32 %s4, 1
    %s952 = sor.u32 %s4, %s951
    %s953 = sand.u32 %s952, 85
    %s954 = sshrl.u32 %s953, 1
    %s955 = sor.u32 %s953, %s954
    %s956 = sand.u32 51, %s955
    %s957 = sshrl.u32 %s956, 2
    %s958 = sor.u32 %s956, %s957
    %s959 = sand.u32 15, %s958
    %v960 = vld [vmem:[%s950] sm:%s959]
    %v961 = vunpack.c.l.bf16 %v960
    %v962 = vunpack.c.h.bf16 %v960
    %s963 = scalar_lea.vmem [#allocation1], 1568
    %964 = vst [vmem:[%s963] sm:%s4] %v961
    %s965 = smul.addr 4, 195
    %s966 = scalar_lea.vmem %s0, %s965
    %s967 = sshrl.u32 %s4, 1
    %s968 = sor.u32 %s4, %s967
    %s969 = sand.u32 %s968, 85
    %s970 = sshrl.u32 %s969, 1
    %s971 = sor.u32 %s969, %s970
    %s972 = sand.u32 51, %s971
    %s973 = sshrl.u32 %s972, 2
    %s974 = sor.u32 %s972, %s973
    %s975 = sand.u32 15, %s974
    %v976 = vld [vmem:[%s966] sm:%s975]
    %v977 = vunpack.c.l.bf16 %v976
    %v978 = vunpack.c.h.bf16 %v976
    %s979 = scalar_lea.vmem [#allocation1], 1560
    %980 = vst [vmem:[%s979] sm:%s4] %v977
    %s981 = smul.addr 4, 194
    %s982 = scalar_lea.vmem %s0, %s981
    %s983 = sshrl.u32 %s4, 1
    %s984 = sor.u32 %s4, %s983
    %s985 = sand.u32 %s984, 85
    %s986 = sshrl.u32 %s985, 1
    %s987 = sor.u32 %s985, %s986
    %s988 = sand.u32 51, %s987
    %s989 = sshrl.u32 %s988, 2
    %s990 = sor.u32 %s988, %s989
    %s991 = sand.u32 15, %s990
    %v992 = vld [vmem:[%s982] sm:%s991]
    %v993 = vunpack.c.l.bf16 %v992
    %v994 = vunpack.c.h.bf16 %v992
    %s995 = scalar_lea.vmem [#allocation1], 1552
    %996 = vst [vmem:[%s995] sm:%s4] %v993
    %s997 = smul.addr 4, 193
    %s998 = scalar_lea.vmem %s0, %s997
    %s999 = sshrl.u32 %s4, 1
    %s1000 = sor.u32 %s4, %s999
    %s1001 = sand.u32 %s1000, 85
    %s1002 = sshrl.u32 %s1001, 1
    %s1003 = sor.u32 %s1001, %s1002
    %s1004 = sand.u32 51, %s1003
    %s1005 = sshrl.u32 %s1004, 2
    %s1006 = sor.u32 %s1004, %s1005
    %s1007 = sand.u32 15, %s1006
    %v1008 = vld [vmem:[%s998] sm:%s1007]
    %v1009 = vunpack.c.l.bf16 %v1008
    %v1010 = vunpack.c.h.bf16 %v1008
    %s1011 = scalar_lea.vmem [#allocation1], 1544
    %1012 = vst [vmem:[%s1011] sm:%s4] %v1009
    %s1013 = smul.addr 4, 192
    %s1014 = scalar_lea.vmem %s0, %s1013
    %s1015 = sshrl.u32 %s4, 1
    %s1016 = sor.u32 %s4, %s1015
    %s1017 = sand.u32 %s1016, 85
    %s1018 = sshrl.u32 %s1017, 1
    %s1019 = sor.u32 %s1017, %s1018
    %s1020 = sand.u32 51, %s1019
    %s1021 = sshrl.u32 %s1020, 2
    %s1022 = sor.u32 %s1020, %s1021
    %s1023 = sand.u32 15, %s1022
    %v1024 = vld [vmem:[%s1014] sm:%s1023]
    %v1025 = vunpack.c.l.bf16 %v1024
    %v1026 = vunpack.c.h.bf16 %v1024
    %s1027 = scalar_lea.vmem [#allocation1], 1536
    %1028 = vst [vmem:[%s1027] sm:%s4] %v1025
    %s1029 = smul.addr 4, 191
    %s1030 = scalar_lea.vmem %s0, %s1029
    %s1031 = sshrl.u32 %s4, 1
    %s1032 = sor.u32 %s4, %s1031
    %s1033 = sand.u32 %s1032, 85
    %s1034 = sshrl.u32 %s1033, 1
    %s1035 = sor.u32 %s1033, %s1034
    %s1036 = sand.u32 51, %s1035
    %s1037 = sshrl.u32 %s1036, 2
    %s1038 = sor.u32 %s1036, %s1037
    %s1039 = sand.u32 15, %s1038
    %v1040 = vld [vmem:[%s1030] sm:%s1039]
    %v1041 = vunpack.c.l.bf16 %v1040
    %v1042 = vunpack.c.h.bf16 %v1040
    %s1043 = scalar_lea.vmem [#allocation1], 1528
    %1044 = vst [vmem:[%s1043] sm:%s4] %v1041
    %s1045 = smul.addr 4, 190
    %s1046 = scalar_lea.vmem %s0, %s1045
    %s1047 = sshrl.u32 %s4, 1
    %s1048 = sor.u32 %s4, %s1047
    %s1049 = sand.u32 %s1048, 85
    %s1050 = sshrl.u32 %s1049, 1
    %s1051 = sor.u32 %s1049, %s1050
    %s1052 = sand.u32 51, %s1051
    %s1053 = sshrl.u32 %s1052, 2
    %s1054 = sor.u32 %s1052, %s1053
    %s1055 = sand.u32 15, %s1054
    %v1056 = vld [vmem:[%s1046] sm:%s1055]
    %v1057 = vunpack.c.l.bf16 %v1056
    %v1058 = vunpack.c.h.bf16 %v1056
    %s1059 = scalar_lea.vmem [#allocation1], 1520
    %1060 = vst [vmem:[%s1059] sm:%s4] %v1057
    %s1061 = smul.addr 4, 189
    %s1062 = scalar_lea.vmem %s0, %s1061
    %s1063 = sshrl.u32 %s4, 1
    %s1064 = sor.u32 %s4, %s1063
    %s1065 = sand.u32 %s1064, 85
    %s1066 = sshrl.u32 %s1065, 1
    %s1067 = sor.u32 %s1065, %s1066
    %s1068 = sand.u32 51, %s1067
    %s1069 = sshrl.u32 %s1068, 2
    %s1070 = sor.u32 %s1068, %s1069
    %s1071 = sand.u32 15, %s1070
    %v1072 = vld [vmem:[%s1062] sm:%s1071]
    %v1073 = vunpack.c.l.bf16 %v1072
    %v1074 = vunpack.c.h.bf16 %v1072
    %s1075 = scalar_lea.vmem [#allocation1], 1512
    %1076 = vst [vmem:[%s1075] sm:%s4] %v1073
    %s1077 = smul.addr 4, 188
    %s1078 = scalar_lea.vmem %s0, %s1077
    %s1079 = sshrl.u32 %s4, 1
    %s1080 = sor.u32 %s4, %s1079
    %s1081 = sand.u32 %s1080, 85
    %s1082 = sshrl.u32 %s1081, 1
    %s1083 = sor.u32 %s1081, %s1082
    %s1084 = sand.u32 51, %s1083
    %s1085 = sshrl.u32 %s1084, 2
    %s1086 = sor.u32 %s1084, %s1085
    %s1087 = sand.u32 15, %s1086
    %v1088 = vld [vmem:[%s1078] sm:%s1087]
    %v1089 = vunpack.c.l.bf16 %v1088
    %v1090 = vunpack.c.h.bf16 %v1088
    %s1091 = scalar_lea.vmem [#allocation1], 1504
    %1092 = vst [vmem:[%s1091] sm:%s4] %v1089
    %s1093 = smul.addr 4, 187
    %s1094 = scalar_lea.vmem %s0, %s1093
    %s1095 = sshrl.u32 %s4, 1
    %s1096 = sor.u32 %s4, %s1095
    %s1097 = sand.u32 %s1096, 85
    %s1098 = sshrl.u32 %s1097, 1
    %s1099 = sor.u32 %s1097, %s1098
    %s1100 = sand.u32 51, %s1099
    %s1101 = sshrl.u32 %s1100, 2
    %s1102 = sor.u32 %s1100, %s1101
    %s1103 = sand.u32 15, %s1102
    %v1104 = vld [vmem:[%s1094] sm:%s1103]
    %v1105 = vunpack.c.l.bf16 %v1104
    %v1106 = vunpack.c.h.bf16 %v1104
    %s1107 = scalar_lea.vmem [#allocation1], 1496
    %1108 = vst [vmem:[%s1107] sm:%s4] %v1105
    %s1109 = smul.addr 4, 186
    %s1110 = scalar_lea.vmem %s0, %s1109
    %s1111 = sshrl.u32 %s4, 1
    %s1112 = sor.u32 %s4, %s1111
    %s1113 = sand.u32 %s1112, 85
    %s1114 = sshrl.u32 %s1113, 1
    %s1115 = sor.u32 %s1113, %s1114
    %s1116 = sand.u32 51, %s1115
    %s1117 = sshrl.u32 %s1116, 2
    %s1118 = sor.u32 %s1116, %s1117
    %s1119 = sand.u32 15, %s1118
    %v1120 = vld [vmem:[%s1110] sm:%s1119]
    %v1121 = vunpack.c.l.bf16 %v1120
    %v1122 = vunpack.c.h.bf16 %v1120
    %s1123 = scalar_lea.vmem [#allocation1], 1488
    %1124 = vst [vmem:[%s1123] sm:%s4] %v1121
    %s1125 = smul.addr 4, 185
    %s1126 = scalar_lea.vmem %s0, %s1125
    %s1127 = sshrl.u32 %s4, 1
    %s1128 = sor.u32 %s4, %s1127
    %s1129 = sand.u32 %s1128, 85
    %s1130 = sshrl.u32 %s1129, 1
    %s1131 = sor.u32 %s1129, %s1130
    %s1132 = sand.u32 51, %s1131
    %s1133 = sshrl.u32 %s1132, 2
    %s1134 = sor.u32 %s1132, %s1133
    %s1135 = sand.u32 15, %s1134
    %v1136 = vld [vmem:[%s1126] sm:%s1135]
    %v1137 = vunpack.c.l.bf16 %v1136
    %v1138 = vunpack.c.h.bf16 %v1136
    %s1139 = scalar_lea.vmem [#allocation1], 1480
    %1140 = vst [vmem:[%s1139] sm:%s4] %v1137
    %s1141 = smul.addr 4, 184
    %s1142 = scalar_lea.vmem %s0, %s1141
    %s1143 = sshrl.u32 %s4, 1
    %s1144 = sor.u32 %s4, %s1143
    %s1145 = sand.u32 %s1144, 85
    %s1146 = sshrl.u32 %s1145, 1
    %s1147 = sor.u32 %s1145, %s1146
    %s1148 = sand.u32 51, %s1147
    %s1149 = sshrl.u32 %s1148, 2
    %s1150 = sor.u32 %s1148, %s1149
    %s1151 = sand.u32 15, %s1150
    %v1152 = vld [vmem:[%s1142] sm:%s1151]
    %v1153 = vunpack.c.l.bf16 %v1152
    %v1154 = vunpack.c.h.bf16 %v1152
    %s1155 = scalar_lea.vmem [#allocation1], 1472
    %1156 = vst [vmem:[%s1155] sm:%s4] %v1153
    %s1157 = smul.addr 4, 183
    %s1158 = scalar_lea.vmem %s0, %s1157
    %s1159 = sshrl.u32 %s4, 1
    %s1160 = sor.u32 %s4, %s1159
    %s1161 = sand.u32 %s1160, 85
    %s1162 = sshrl.u32 %s1161, 1
    %s1163 = sor.u32 %s1161, %s1162
    %s1164 = sand.u32 51, %s1163
    %s1165 = sshrl.u32 %s1164, 2
    %s1166 = sor.u32 %s1164, %s1165
    %s1167 = sand.u32 15, %s1166
    %v1168 = vld [vmem:[%s1158] sm:%s1167]
    %v1169 = vunpack.c.l.bf16 %v1168
    %v1170 = vunpack.c.h.bf16 %v1168
    %s1171 = scalar_lea.vmem [#allocation1], 1464
    %1172 = vst [vmem:[%s1171] sm:%s4] %v1169
    %s1173 = smul.addr 4, 182
    %s1174 = scalar_lea.vmem %s0, %s1173
    %s1175 = sshrl.u32 %s4, 1
    %s1176 = sor.u32 %s4, %s1175
    %s1177 = sand.u32 %s1176, 85
    %s1178 = sshrl.u32 %s1177, 1
    %s1179 = sor.u32 %s1177, %s1178
    %s1180 = sand.u32 51, %s1179
    %s1181 = sshrl.u32 %s1180, 2
    %s1182 = sor.u32 %s1180, %s1181
    %s1183 = sand.u32 15, %s1182
    %v1184 = vld [vmem:[%s1174] sm:%s1183]
    %v1185 = vunpack.c.l.bf16 %v1184
    %v1186 = vunpack.c.h.bf16 %v1184
    %s1187 = scalar_lea.vmem [#allocation1], 1456
    %1188 = vst [vmem:[%s1187] sm:%s4] %v1185
    %s1189 = smul.addr 4, 181
    %s1190 = scalar_lea.vmem %s0, %s1189
    %s1191 = sshrl.u32 %s4, 1
    %s1192 = sor.u32 %s4, %s1191
    %s1193 = sand.u32 %s1192, 85
    %s1194 = sshrl.u32 %s1193, 1
    %s1195 = sor.u32 %s1193, %s1194
    %s1196 = sand.u32 51, %s1195
    %s1197 = sshrl.u32 %s1196, 2
    %s1198 = sor.u32 %s1196, %s1197
    %s1199 = sand.u32 15, %s1198
    %v1200 = vld [vmem:[%s1190] sm:%s1199]
    %v1201 = vunpack.c.l.bf16 %v1200
    %v1202 = vunpack.c.h.bf16 %v1200
    %s1203 = scalar_lea.vmem [#allocation1], 1448
    %1204 = vst [vmem:[%s1203] sm:%s4] %v1201
    %s1205 = smul.addr 4, 180
    %s1206 = scalar_lea.vmem %s0, %s1205
    %s1207 = sshrl.u32 %s4, 1
    %s1208 = sor.u32 %s4, %s1207
    %s1209 = sand.u32 %s1208, 85
    %s1210 = sshrl.u32 %s1209, 1
    %s1211 = sor.u32 %s1209, %s1210
    %s1212 = sand.u32 51, %s1211
    %s1213 = sshrl.u32 %s1212, 2
    %s1214 = sor.u32 %s1212, %s1213
    %s1215 = sand.u32 15, %s1214
    %v1216 = vld [vmem:[%s1206] sm:%s1215]
    %v1217 = vunpack.c.l.bf16 %v1216
    %v1218 = vunpack.c.h.bf16 %v1216
    %s1219 = scalar_lea.vmem [#allocation1], 1440
    %1220 = vst [vmem:[%s1219] sm:%s4] %v1217
    %s1221 = smul.addr 4, 179
    %s1222 = scalar_lea.vmem %s0, %s1221
    %s1223 = sshrl.u32 %s4, 1
    %s1224 = sor.u32 %s4, %s1223
    %s1225 = sand.u32 %s1224, 85
    %s1226 = sshrl.u32 %s1225, 1
    %s1227 = sor.u32 %s1225, %s1226
    %s1228 = sand.u32 51, %s1227
    %s1229 = sshrl.u32 %s1228, 2
    %s1230 = sor.u32 %s1228, %s1229
    %s1231 = sand.u32 15, %s1230
    %v1232 = vld [vmem:[%s1222] sm:%s1231]
    %v1233 = vunpack.c.l.bf16 %v1232
    %v1234 = vunpack.c.h.bf16 %v1232
    %s1235 = scalar_lea.vmem [#allocation1], 1432
    %1236 = vst [vmem:[%s1235] sm:%s4] %v1233
    %s1237 = smul.addr 4, 178
    %s1238 = scalar_lea.vmem %s0, %s1237
    %s1239 = sshrl.u32 %s4, 1
    %s1240 = sor.u32 %s4, %s1239
    %s1241 = sand.u32 %s1240, 85
    %s1242 = sshrl.u32 %s1241, 1
    %s1243 = sor.u32 %s1241, %s1242
    %s1244 = sand.u32 51, %s1243
    %s1245 = sshrl.u32 %s1244, 2
    %s1246 = sor.u32 %s1244, %s1245
    %s1247 = sand.u32 15, %s1246
    %v1248 = vld [vmem:[%s1238] sm:%s1247]
    %v1249 = vunpack.c.l.bf16 %v1248
    %v1250 = vunpack.c.h.bf16 %v1248
    %s1251 = scalar_lea.vmem [#allocation1], 1424
    %1252 = vst [vmem:[%s1251] sm:%s4] %v1249
    %s1253 = smul.addr 4, 177
    %s1254 = scalar_lea.vmem %s0, %s1253
    %s1255 = sshrl.u32 %s4, 1
    %s1256 = sor.u32 %s4, %s1255
    %s1257 = sand.u32 %s1256, 85
    %s1258 = sshrl.u32 %s1257, 1
    %s1259 = sor.u32 %s1257, %s1258
    %s1260 = sand.u32 51, %s1259
    %s1261 = sshrl.u32 %s1260, 2
    %s1262 = sor.u32 %s1260, %s1261
    %s1263 = sand.u32 15, %s1262
    %v1264 = vld [vmem:[%s1254] sm:%s1263]
    %v1265 = vunpack.c.l.bf16 %v1264
    %v1266 = vunpack.c.h.bf16 %v1264
    %s1267 = scalar_lea.vmem [#allocation1], 1416
    %1268 = vst [vmem:[%s1267] sm:%s4] %v1265
    %s1269 = smul.addr 4, 176
    %s1270 = scalar_lea.vmem %s0, %s1269
    %s1271 = sshrl.u32 %s4, 1
    %s1272 = sor.u32 %s4, %s1271
    %s1273 = sand.u32 %s1272, 85
    %s1274 = sshrl.u32 %s1273, 1
    %s1275 = sor.u32 %s1273, %s1274
    %s1276 = sand.u32 51, %s1275
    %s1277 = sshrl.u32 %s1276, 2
    %s1278 = sor.u32 %s1276, %s1277
    %s1279 = sand.u32 15, %s1278
    %v1280 = vld [vmem:[%s1270] sm:%s1279]
    %v1281 = vunpack.c.l.bf16 %v1280
    %v1282 = vunpack.c.h.bf16 %v1280
    %s1283 = scalar_lea.vmem [#allocation1], 1408
    %1284 = vst [vmem:[%s1283] sm:%s4] %v1281
    %s1285 = smul.addr 4, 175
    %s1286 = scalar_lea.vmem %s0, %s1285
    %s1287 = sshrl.u32 %s4, 1
    %s1288 = sor.u32 %s4, %s1287
    %s1289 = sand.u32 %s1288, 85
    %s1290 = sshrl.u32 %s1289, 1
    %s1291 = sor.u32 %s1289, %s1290
    %s1292 = sand.u32 51, %s1291
    %s1293 = sshrl.u32 %s1292, 2
    %s1294 = sor.u32 %s1292, %s1293
    %s1295 = sand.u32 15, %s1294
    %v1296 = vld [vmem:[%s1286] sm:%s1295]
    %v1297 = vunpack.c.l.bf16 %v1296
    %v1298 = vunpack.c.h.bf16 %v1296
    %s1299 = scalar_lea.vmem [#allocation1], 1400
    %1300 = vst [vmem:[%s1299] sm:%s4] %v1297
    %s1301 = smul.addr 4, 174
    %s1302 = scalar_lea.vmem %s0, %s1301
    %s1303 = sshrl.u32 %s4, 1
    %s1304 = sor.u32 %s4, %s1303
    %s1305 = sand.u32 %s1304, 85
    %s1306 = sshrl.u32 %s1305, 1
    %s1307 = sor.u32 %s1305, %s1306
    %s1308 = sand.u32 51, %s1307
    %s1309 = sshrl.u32 %s1308, 2
    %s1310 = sor.u32 %s1308, %s1309
    %s1311 = sand.u32 15, %s1310
    %v1312 = vld [vmem:[%s1302] sm:%s1311]
    %v1313 = vunpack.c.l.bf16 %v1312
    %v1314 = vunpack.c.h.bf16 %v1312
    %s1315 = scalar_lea.vmem [#allocation1], 1392
    %1316 = vst [vmem:[%s1315] sm:%s4] %v1313
    %s1317 = smul.addr 4, 173
    %s1318 = scalar_lea.vmem %s0, %s1317
    %s1319 = sshrl.u32 %s4, 1
    %s1320 = sor.u32 %s4, %s1319
    %s1321 = sand.u32 %s1320, 85
    %s1322 = sshrl.u32 %s1321, 1
    %s1323 = sor.u32 %s1321, %s1322
    %s1324 = sand.u32 51, %s1323
    %s1325 = sshrl.u32 %s1324, 2
    %s1326 = sor.u32 %s1324, %s1325
    %s1327 = sand.u32 15, %s1326
    %v1328 = vld [vmem:[%s1318] sm:%s1327]
    %v1329 = vunpack.c.l.bf16 %v1328
    %v1330 = vunpack.c.h.bf16 %v1328
    %s1331 = scalar_lea.vmem [#allocation1], 1384
    %1332 = vst [vmem:[%s1331] sm:%s4] %v1329
    %s1333 = smul.addr 4, 172
    %s1334 = scalar_lea.vmem %s0, %s1333
    %s1335 = sshrl.u32 %s4, 1
    %s1336 = sor.u32 %s4, %s1335
    %s1337 = sand.u32 %s1336, 85
    %s1338 = sshrl.u32 %s1337, 1
    %s1339 = sor.u32 %s1337, %s1338
    %s1340 = sand.u32 51, %s1339
    %s1341 = sshrl.u32 %s1340, 2
    %s1342 = sor.u32 %s1340, %s1341
    %s1343 = sand.u32 15, %s1342
    %v1344 = vld [vmem:[%s1334] sm:%s1343]
    %v1345 = vunpack.c.l.bf16 %v1344
    %v1346 = vunpack.c.h.bf16 %v1344
    %s1347 = scalar_lea.vmem [#allocation1], 1376
    %1348 = vst [vmem:[%s1347] sm:%s4] %v1345
    %s1349 = smul.addr 4, 171
    %s1350 = scalar_lea.vmem %s0, %s1349
    %s1351 = sshrl.u32 %s4, 1
    %s1352 = sor.u32 %s4, %s1351
    %s1353 = sand.u32 %s1352, 85
    %s1354 = sshrl.u32 %s1353, 1
    %s1355 = sor.u32 %s1353, %s1354
    %s1356 = sand.u32 51, %s1355
    %s1357 = sshrl.u32 %s1356, 2
    %s1358 = sor.u32 %s1356, %s1357
    %s1359 = sand.u32 15, %s1358
    %v1360 = vld [vmem:[%s1350] sm:%s1359]
    %v1361 = vunpack.c.l.bf16 %v1360
    %v1362 = vunpack.c.h.bf16 %v1360
    %s1363 = scalar_lea.vmem [#allocation1], 1368
    %1364 = vst [vmem:[%s1363] sm:%s4] %v1361
    %s1365 = smul.addr 4, 170
    %s1366 = scalar_lea.vmem %s0, %s1365
    %s1367 = sshrl.u32 %s4, 1
    %s1368 = sor.u32 %s4, %s1367
    %s1369 = sand.u32 %s1368, 85
    %s1370 = sshrl.u32 %s1369, 1
    %s1371 = sor.u32 %s1369, %s1370
    %s1372 = sand.u32 51, %s1371
    %s1373 = sshrl.u32 %s1372, 2
    %s1374 = sor.u32 %s1372, %s1373
    %s1375 = sand.u32 15, %s1374
    %v1376 = vld [vmem:[%s1366] sm:%s1375]
    %v1377 = vunpack.c.l.bf16 %v1376
    %v1378 = vunpack.c.h.bf16 %v1376
    %s1379 = scalar_lea.vmem [#allocation1], 1360
    %1380 = vst [vmem:[%s1379] sm:%s4] %v1377
    %s1381 = smul.addr 4, 169
    %s1382 = scalar_lea.vmem %s0, %s1381
    %s1383 = sshrl.u32 %s4, 1
    %s1384 = sor.u32 %s4, %s1383
    %s1385 = sand.u32 %s1384, 85
    %s1386 = sshrl.u32 %s1385, 1
    %s1387 = sor.u32 %s1385, %s1386
    %s1388 = sand.u32 51, %s1387
    %s1389 = sshrl.u32 %s1388, 2
    %s1390 = sor.u32 %s1388, %s1389
    %s1391 = sand.u32 15, %s1390
    %v1392 = vld [vmem:[%s1382] sm:%s1391]
    %v1393 = vunpack.c.l.bf16 %v1392
    %v1394 = vunpack.c.h.bf16 %v1392
    %s1395 = scalar_lea.vmem [#allocation1], 1352
    %1396 = vst [vmem:[%s1395] sm:%s4] %v1393
    %s1397 = smul.addr 4, 168
    %s1398 = scalar_lea.vmem %s0, %s1397
    %s1399 = sshrl.u32 %s4, 1
    %s1400 = sor.u32 %s4, %s1399
    %s1401 = sand.u32 %s1400, 85
    %s1402 = sshrl.u32 %s1401, 1
    %s1403 = sor.u32 %s1401, %s1402
    %s1404 = sand.u32 51, %s1403
    %s1405 = sshrl.u32 %s1404, 2
    %s1406 = sor.u32 %s1404, %s1405
    %s1407 = sand.u32 15, %s1406
    %v1408 = vld [vmem:[%s1398] sm:%s1407]
    %v1409 = vunpack.c.l.bf16 %v1408
    %v1410 = vunpack.c.h.bf16 %v1408
    %s1411 = scalar_lea.vmem [#allocation1], 1344
    %1412 = vst [vmem:[%s1411] sm:%s4] %v1409
    %s1413 = smul.addr 4, 167
    %s1414 = scalar_lea.vmem %s0, %s1413
    %s1415 = sshrl.u32 %s4, 1
    %s1416 = sor.u32 %s4, %s1415
    %s1417 = sand.u32 %s1416, 85
    %s1418 = sshrl.u32 %s1417, 1
    %s1419 = sor.u32 %s1417, %s1418
    %s1420 = sand.u32 51, %s1419
    %s1421 = sshrl.u32 %s1420, 2
    %s1422 = sor.u32 %s1420, %s1421
    %s1423 = sand.u32 15, %s1422
    %v1424 = vld [vmem:[%s1414] sm:%s1423]
    %v1425 = vunpack.c.l.bf16 %v1424
    %v1426 = vunpack.c.h.bf16 %v1424
    %s1427 = scalar_lea.vmem [#allocation1], 1336
    %1428 = vst [vmem:[%s1427] sm:%s4] %v1425
    %s1429 = smul.addr 4, 166
    %s1430 = scalar_lea.vmem %s0, %s1429
    %s1431 = sshrl.u32 %s4, 1
    %s1432 = sor.u32 %s4, %s1431
    %s1433 = sand.u32 %s1432, 85
    %s1434 = sshrl.u32 %s1433, 1
    %s1435 = sor.u32 %s1433, %s1434
    %s1436 = sand.u32 51, %s1435
    %s1437 = sshrl.u32 %s1436, 2
    %s1438 = sor.u32 %s1436, %s1437
    %s1439 = sand.u32 15, %s1438
    %v1440 = vld [vmem:[%s1430] sm:%s1439]
    %v1441 = vunpack.c.l.bf16 %v1440
    %v1442 = vunpack.c.h.bf16 %v1440
    %s1443 = scalar_lea.vmem [#allocation1], 1328
    %1444 = vst [vmem:[%s1443] sm:%s4] %v1441
    %s1445 = smul.addr 4, 165
    %s1446 = scalar_lea.vmem %s0, %s1445
    %s1447 = sshrl.u32 %s4, 1
    %s1448 = sor.u32 %s4, %s1447
    %s1449 = sand.u32 %s1448, 85
    %s1450 = sshrl.u32 %s1449, 1
    %s1451 = sor.u32 %s1449, %s1450
    %s1452 = sand.u32 51, %s1451
    %s1453 = sshrl.u32 %s1452, 2
    %s1454 = sor.u32 %s1452, %s1453
    %s1455 = sand.u32 15, %s1454
    %v1456 = vld [vmem:[%s1446] sm:%s1455]
    %v1457 = vunpack.c.l.bf16 %v1456
    %v1458 = vunpack.c.h.bf16 %v1456
    %s1459 = scalar_lea.vmem [#allocation1], 1320
    %1460 = vst [vmem:[%s1459] sm:%s4] %v1457
    %s1461 = smul.addr 4, 164
    %s1462 = scalar_lea.vmem %s0, %s1461
    %s1463 = sshrl.u32 %s4, 1
    %s1464 = sor.u32 %s4, %s1463
    %s1465 = sand.u32 %s1464, 85
    %s1466 = sshrl.u32 %s1465, 1
    %s1467 = sor.u32 %s1465, %s1466
    %s1468 = sand.u32 51, %s1467
    %s1469 = sshrl.u32 %s1468, 2
    %s1470 = sor.u32 %s1468, %s1469
    %s1471 = sand.u32 15, %s1470
    %v1472 = vld [vmem:[%s1462] sm:%s1471]
    %v1473 = vunpack.c.l.bf16 %v1472
    %v1474 = vunpack.c.h.bf16 %v1472
    %s1475 = scalar_lea.vmem [#allocation1], 1312
    %1476 = vst [vmem:[%s1475] sm:%s4] %v1473
    %s1477 = smul.addr 4, 163
    %s1478 = scalar_lea.vmem %s0, %s1477
    %s1479 = sshrl.u32 %s4, 1
    %s1480 = sor.u32 %s4, %s1479
    %s1481 = sand.u32 %s1480, 85
    %s1482 = sshrl.u32 %s1481, 1
    %s1483 = sor.u32 %s1481, %s1482
    %s1484 = sand.u32 51, %s1483
    %s1485 = sshrl.u32 %s1484, 2
    %s1486 = sor.u32 %s1484, %s1485
    %s1487 = sand.u32 15, %s1486
    %v1488 = vld [vmem:[%s1478] sm:%s1487]
    %v1489 = vunpack.c.l.bf16 %v1488
    %v1490 = vunpack.c.h.bf16 %v1488
    %s1491 = scalar_lea.vmem [#allocation1], 1304
    %1492 = vst [vmem:[%s1491] sm:%s4] %v1489
    %s1493 = smul.addr 4, 162
    %s1494 = scalar_lea.vmem %s0, %s1493
    %s1495 = sshrl.u32 %s4, 1
    %s1496 = sor.u32 %s4, %s1495
    %s1497 = sand.u32 %s1496, 85
    %s1498 = sshrl.u32 %s1497, 1
    %s1499 = sor.u32 %s1497, %s1498
    %s1500 = sand.u32 51, %s1499
    %s1501 = sshrl.u32 %s1500, 2
    %s1502 = sor.u32 %s1500, %s1501
    %s1503 = sand.u32 15, %s1502
    %v1504 = vld [vmem:[%s1494] sm:%s1503]
    %v1505 = vunpack.c.l.bf16 %v1504
    %v1506 = vunpack.c.h.bf16 %v1504
    %s1507 = scalar_lea.vmem [#allocation1], 1296
    %1508 = vst [vmem:[%s1507] sm:%s4] %v1505
    %s1509 = smul.addr 4, 161
    %s1510 = scalar_lea.vmem %s0, %s1509
    %s1511 = sshrl.u32 %s4, 1
    %s1512 = sor.u32 %s4, %s1511
    %s1513 = sand.u32 %s1512, 85
    %s1514 = sshrl.u32 %s1513, 1
    %s1515 = sor.u32 %s1513, %s1514
    %s1516 = sand.u32 51, %s1515
    %s1517 = sshrl.u32 %s1516, 2
    %s1518 = sor.u32 %s1516, %s1517
    %s1519 = sand.u32 15, %s1518
    %v1520 = vld [vmem:[%s1510] sm:%s1519]
    %v1521 = vunpack.c.l.bf16 %v1520
    %v1522 = vunpack.c.h.bf16 %v1520
    %s1523 = scalar_lea.vmem [#allocation1], 1288
    %1524 = vst [vmem:[%s1523] sm:%s4] %v1521
    %s1525 = smul.addr 4, 160
    %s1526 = scalar_lea.vmem %s0, %s1525
    %s1527 = sshrl.u32 %s4, 1
    %s1528 = sor.u32 %s4, %s1527
    %s1529 = sand.u32 %s1528, 85
    %s1530 = sshrl.u32 %s1529, 1
    %s1531 = sor.u32 %s1529, %s1530
    %s1532 = sand.u32 51, %s1531
    %s1533 = sshrl.u32 %s1532, 2
    %s1534 = sor.u32 %s1532, %s1533
    %s1535 = sand.u32 15, %s1534
    %v1536 = vld [vmem:[%s1526] sm:%s1535]
    %v1537 = vunpack.c.l.bf16 %v1536
    %v1538 = vunpack.c.h.bf16 %v1536
    %s1539 = scalar_lea.vmem [#allocation1], 1280
    %1540 = vst [vmem:[%s1539] sm:%s4] %v1537
    %s1541 = smul.addr 4, 159
    %s1542 = scalar_lea.vmem %s0, %s1541
    %s1543 = sshrl.u32 %s4, 1
    %s1544 = sor.u32 %s4, %s1543
    %s1545 = sand.u32 %s1544, 85
    %s1546 = sshrl.u32 %s1545, 1
    %s1547 = sor.u32 %s1545, %s1546
    %s1548 = sand.u32 51, %s1547
    %s1549 = sshrl.u32 %s1548, 2
    %s1550 = sor.u32 %s1548, %s1549
    %s1551 = sand.u32 15, %s1550
    %v1552 = vld [vmem:[%s1542] sm:%s1551]
    %v1553 = vunpack.c.l.bf16 %v1552
    %v1554 = vunpack.c.h.bf16 %v1552
    %s1555 = scalar_lea.vmem [#allocation1], 1272
    %1556 = vst [vmem:[%s1555] sm:%s4] %v1553
    %s1557 = smul.addr 4, 158
    %s1558 = scalar_lea.vmem %s0, %s1557
    %s1559 = sshrl.u32 %s4, 1
    %s1560 = sor.u32 %s4, %s1559
    %s1561 = sand.u32 %s1560, 85
    %s1562 = sshrl.u32 %s1561, 1
    %s1563 = sor.u32 %s1561, %s1562
    %s1564 = sand.u32 51, %s1563
    %s1565 = sshrl.u32 %s1564, 2
    %s1566 = sor.u32 %s1564, %s1565
    %s1567 = sand.u32 15, %s1566
    %v1568 = vld [vmem:[%s1558] sm:%s1567]
    %v1569 = vunpack.c.l.bf16 %v1568
    %v1570 = vunpack.c.h.bf16 %v1568
    %s1571 = scalar_lea.vmem [#allocation1], 1264
    %1572 = vst [vmem:[%s1571] sm:%s4] %v1569
    %s1573 = smul.addr 4, 157
    %s1574 = scalar_lea.vmem %s0, %s1573
    %s1575 = sshrl.u32 %s4, 1
    %s1576 = sor.u32 %s4, %s1575
    %s1577 = sand.u32 %s1576, 85
    %s1578 = sshrl.u32 %s1577, 1
    %s1579 = sor.u32 %s1577, %s1578
    %s1580 = sand.u32 51, %s1579
    %s1581 = sshrl.u32 %s1580, 2
    %s1582 = sor.u32 %s1580, %s1581
    %s1583 = sand.u32 15, %s1582
    %v1584 = vld [vmem:[%s1574] sm:%s1583]
    %v1585 = vunpack.c.l.bf16 %v1584
    %v1586 = vunpack.c.h.bf16 %v1584
    %s1587 = scalar_lea.vmem [#allocation1], 1256
    %1588 = vst [vmem:[%s1587] sm:%s4] %v1585
    %s1589 = smul.addr 4, 156
    %s1590 = scalar_lea.vmem %s0, %s1589
    %s1591 = sshrl.u32 %s4, 1
    %s1592 = sor.u32 %s4, %s1591
    %s1593 = sand.u32 %s1592, 85
    %s1594 = sshrl.u32 %s1593, 1
    %s1595 = sor.u32 %s1593, %s1594
    %s1596 = sand.u32 51, %s1595
    %s1597 = sshrl.u32 %s1596, 2
    %s1598 = sor.u32 %s1596, %s1597
    %s1599 = sand.u32 15, %s1598
    %v1600 = vld [vmem:[%s1590] sm:%s1599]
    %v1601 = vunpack.c.l.bf16 %v1600
    %v1602 = vunpack.c.h.bf16 %v1600
    %s1603 = scalar_lea.vmem [#allocation1], 1248
    %1604 = vst [vmem:[%s1603] sm:%s4] %v1601
    %s1605 = smul.addr 4, 155
    %s1606 = scalar_lea.vmem %s0, %s1605
    %s1607 = sshrl.u32 %s4, 1
    %s1608 = sor.u32 %s4, %s1607
    %s1609 = sand.u32 %s1608, 85
    %s1610 = sshrl.u32 %s1609, 1
    %s1611 = sor.u32 %s1609, %s1610
    %s1612 = sand.u32 51, %s1611
    %s1613 = sshrl.u32 %s1612, 2
    %s1614 = sor.u32 %s1612, %s1613
    %s1615 = sand.u32 15, %s1614
    %v1616 = vld [vmem:[%s1606] sm:%s1615]
    %v1617 = vunpack.c.l.bf16 %v1616
    %v1618 = vunpack.c.h.bf16 %v1616
    %s1619 = scalar_lea.vmem [#allocation1], 1240
    %1620 = vst [vmem:[%s1619] sm:%s4] %v1617
    %s1621 = smul.addr 4, 154
    %s1622 = scalar_lea.vmem %s0, %s1621
    %s1623 = sshrl.u32 %s4, 1
    %s1624 = sor.u32 %s4, %s1623
    %s1625 = sand.u32 %s1624, 85
    %s1626 = sshrl.u32 %s1625, 1
    %s1627 = sor.u32 %s1625, %s1626
    %s1628 = sand.u32 51, %s1627
    %s1629 = sshrl.u32 %s1628, 2
    %s1630 = sor.u32 %s1628, %s1629
    %s1631 = sand.u32 15, %s1630
    %v1632 = vld [vmem:[%s1622] sm:%s1631]
    %v1633 = vunpack.c.l.bf16 %v1632
    %v1634 = vunpack.c.h.bf16 %v1632
    %s1635 = scalar_lea.vmem [#allocation1], 1232
    %1636 = vst [vmem:[%s1635] sm:%s4] %v1633
    %s1637 = smul.addr 4, 153
    %s1638 = scalar_lea.vmem %s0, %s1637
    %s1639 = sshrl.u32 %s4, 1
    %s1640 = sor.u32 %s4, %s1639
    %s1641 = sand.u32 %s1640, 85
    %s1642 = sshrl.u32 %s1641, 1
    %s1643 = sor.u32 %s1641, %s1642
    %s1644 = sand.u32 51, %s1643
    %s1645 = sshrl.u32 %s1644, 2
    %s1646 = sor.u32 %s1644, %s1645
    %s1647 = sand.u32 15, %s1646
    %v1648 = vld [vmem:[%s1638] sm:%s1647]
    %v1649 = vunpack.c.l.bf16 %v1648
    %v1650 = vunpack.c.h.bf16 %v1648
    %s1651 = scalar_lea.vmem [#allocation1], 1224
    %1652 = vst [vmem:[%s1651] sm:%s4] %v1649
    %s1653 = smul.addr 4, 152
    %s1654 = scalar_lea.vmem %s0, %s1653
    %s1655 = sshrl.u32 %s4, 1
    %s1656 = sor.u32 %s4, %s1655
    %s1657 = sand.u32 %s1656, 85
    %s1658 = sshrl.u32 %s1657, 1
    %s1659 = sor.u32 %s1657, %s1658
    %s1660 = sand.u32 51, %s1659
    %s1661 = sshrl.u32 %s1660, 2
    %s1662 = sor.u32 %s1660, %s1661
    %s1663 = sand.u32 15, %s1662
    %v1664 = vld [vmem:[%s1654] sm:%s1663]
    %v1665 = vunpack.c.l.bf16 %v1664
    %v1666 = vunpack.c.h.bf16 %v1664
    %s1667 = scalar_lea.vmem [#allocation1], 1216
    %1668 = vst [vmem:[%s1667] sm:%s4] %v1665
    %s1669 = smul.addr 4, 151
    %s1670 = scalar_lea.vmem %s0, %s1669
    %s1671 = sshrl.u32 %s4, 1
    %s1672 = sor.u32 %s4, %s1671
    %s1673 = sand.u32 %s1672, 85
    %s1674 = sshrl.u32 %s1673, 1
    %s1675 = sor.u32 %s1673, %s1674
    %s1676 = sand.u32 51, %s1675
    %s1677 = sshrl.u32 %s1676, 2
    %s1678 = sor.u32 %s1676, %s1677
    %s1679 = sand.u32 15, %s1678
    %v1680 = vld [vmem:[%s1670] sm:%s1679]
    %v1681 = vunpack.c.l.bf16 %v1680
    %v1682 = vunpack.c.h.bf16 %v1680
    %s1683 = scalar_lea.vmem [#allocation1], 1208
    %1684 = vst [vmem:[%s1683] sm:%s4] %v1681
    %s1685 = smul.addr 4, 150
    %s1686 = scalar_lea.vmem %s0, %s1685
    %s1687 = sshrl.u32 %s4, 1
    %s1688 = sor.u32 %s4, %s1687
    %s1689 = sand.u32 %s1688, 85
    %s1690 = sshrl.u32 %s1689, 1
    %s1691 = sor.u32 %s1689, %s1690
    %s1692 = sand.u32 51, %s1691
    %s1693 = sshrl.u32 %s1692, 2
    %s1694 = sor.u32 %s1692, %s1693
    %s1695 = sand.u32 15, %s1694
    %v1696 = vld [vmem:[%s1686] sm:%s1695]
    %v1697 = vunpack.c.l.bf16 %v1696
    %v1698 = vunpack.c.h.bf16 %v1696
    %s1699 = scalar_lea.vmem [#allocation1], 1200
    %1700 = vst [vmem:[%s1699] sm:%s4] %v1697
    %s1701 = smul.addr 4, 149
    %s1702 = scalar_lea.vmem %s0, %s1701
    %s1703 = sshrl.u32 %s4, 1
    %s1704 = sor.u32 %s4, %s1703
    %s1705 = sand.u32 %s1704, 85
    %s1706 = sshrl.u32 %s1705, 1
    %s1707 = sor.u32 %s1705, %s1706
    %s1708 = sand.u32 51, %s1707
    %s1709 = sshrl.u32 %s1708, 2
    %s1710 = sor.u32 %s1708, %s1709
    %s1711 = sand.u32 15, %s1710
    %v1712 = vld [vmem:[%s1702] sm:%s1711]
    %v1713 = vunpack.c.l.bf16 %v1712
    %v1714 = vunpack.c.h.bf16 %v1712
    %s1715 = scalar_lea.vmem [#allocation1], 1192
    %1716 = vst [vmem:[%s1715] sm:%s4] %v1713
    %s1717 = smul.addr 4, 148
    %s1718 = scalar_lea.vmem %s0, %s1717
    %s1719 = sshrl.u32 %s4, 1
    %s1720 = sor.u32 %s4, %s1719
    %s1721 = sand.u32 %s1720, 85
    %s1722 = sshrl.u32 %s1721, 1
    %s1723 = sor.u32 %s1721, %s1722
    %s1724 = sand.u32 51, %s1723
    %s1725 = sshrl.u32 %s1724, 2
    %s1726 = sor.u32 %s1724, %s1725
    %s1727 = sand.u32 15, %s1726
    %v1728 = vld [vmem:[%s1718] sm:%s1727]
    %v1729 = vunpack.c.l.bf16 %v1728
    %v1730 = vunpack.c.h.bf16 %v1728
    %s1731 = scalar_lea.vmem [#allocation1], 1184
    %1732 = vst [vmem:[%s1731] sm:%s4] %v1729
    %s1733 = smul.addr 4, 147
    %s1734 = scalar_lea.vmem %s0, %s1733
    %s1735 = sshrl.u32 %s4, 1
    %s1736 = sor.u32 %s4, %s1735
    %s1737 = sand.u32 %s1736, 85
    %s1738 = sshrl.u32 %s1737, 1
    %s1739 = sor.u32 %s1737, %s1738
    %s1740 = sand.u32 51, %s1739
    %s1741 = sshrl.u32 %s1740, 2
    %s1742 = sor.u32 %s1740, %s1741
    %s1743 = sand.u32 15, %s1742
    %v1744 = vld [vmem:[%s1734] sm:%s1743]
    %v1745 = vunpack.c.l.bf16 %v1744
    %v1746 = vunpack.c.h.bf16 %v1744
    %s1747 = scalar_lea.vmem [#allocation1], 1176
    %1748 = vst [vmem:[%s1747] sm:%s4] %v1745
    %s1749 = smul.addr 4, 146
    %s1750 = scalar_lea.vmem %s0, %s1749
    %s1751 = sshrl.u32 %s4, 1
    %s1752 = sor.u32 %s4, %s1751
    %s1753 = sand.u32 %s1752, 85
    %s1754 = sshrl.u32 %s1753, 1
    %s1755 = sor.u32 %s1753, %s1754
    %s1756 = sand.u32 51, %s1755
    %s1757 = sshrl.u32 %s1756, 2
    %s1758 = sor.u32 %s1756, %s1757
    %s1759 = sand.u32 15, %s1758
    %v1760 = vld [vmem:[%s1750] sm:%s1759]
    %v1761 = vunpack.c.l.bf16 %v1760
    %v1762 = vunpack.c.h.bf16 %v1760
    %s1763 = scalar_lea.vmem [#allocation1], 1168
    %1764 = vst [vmem:[%s1763] sm:%s4] %v1761
    %s1765 = smul.addr 4, 145
    %s1766 = scalar_lea.vmem %s0, %s1765
    %s1767 = sshrl.u32 %s4, 1
    %s1768 = sor.u32 %s4, %s1767
    %s1769 = sand.u32 %s1768, 85
    %s1770 = sshrl.u32 %s1769, 1
    %s1771 = sor.u32 %s1769, %s1770
    %s1772 = sand.u32 51, %s1771
    %s1773 = sshrl.u32 %s1772, 2
    %s1774 = sor.u32 %s1772, %s1773
    %s1775 = sand.u32 15, %s1774
    %v1776 = vld [vmem:[%s1766] sm:%s1775]
    %v1777 = vunpack.c.l.bf16 %v1776
    %v1778 = vunpack.c.h.bf16 %v1776
    %s1779 = scalar_lea.vmem [#allocation1], 1160
    %1780 = vst [vmem:[%s1779] sm:%s4] %v1777
    %s1781 = smul.addr 4, 144
    %s1782 = scalar_lea.vmem %s0, %s1781
    %s1783 = sshrl.u32 %s4, 1
    %s1784 = sor.u32 %s4, %s1783
    %s1785 = sand.u32 %s1784, 85
    %s1786 = sshrl.u32 %s1785, 1
    %s1787 = sor.u32 %s1785, %s1786
    %s1788 = sand.u32 51, %s1787
    %s1789 = sshrl.u32 %s1788, 2
    %s1790 = sor.u32 %s1788, %s1789
    %s1791 = sand.u32 15, %s1790
    %v1792 = vld [vmem:[%s1782] sm:%s1791]
    %v1793 = vunpack.c.l.bf16 %v1792
    %v1794 = vunpack.c.h.bf16 %v1792
    %s1795 = scalar_lea.vmem [#allocation1], 1152
    %1796 = vst [vmem:[%s1795] sm:%s4] %v1793
    %s1797 = smul.addr 4, 143
    %s1798 = scalar_lea.vmem %s0, %s1797
    %s1799 = sshrl.u32 %s4, 1
    %s1800 = sor.u32 %s4, %s1799
    %s1801 = sand.u32 %s1800, 85
    %s1802 = sshrl.u32 %s1801, 1
    %s1803 = sor.u32 %s1801, %s1802
    %s1804 = sand.u32 51, %s1803
    %s1805 = sshrl.u32 %s1804, 2
    %s1806 = sor.u32 %s1804, %s1805
    %s1807 = sand.u32 15, %s1806
    %v1808 = vld [vmem:[%s1798] sm:%s1807]
    %v1809 = vunpack.c.l.bf16 %v1808
    %v1810 = vunpack.c.h.bf16 %v1808
    %s1811 = scalar_lea.vmem [#allocation1], 1144
    %1812 = vst [vmem:[%s1811] sm:%s4] %v1809
    %s1813 = smul.addr 4, 142
    %s1814 = scalar_lea.vmem %s0, %s1813
    %s1815 = sshrl.u32 %s4, 1
    %s1816 = sor.u32 %s4, %s1815
    %s1817 = sand.u32 %s1816, 85
    %s1818 = sshrl.u32 %s1817, 1
    %s1819 = sor.u32 %s1817, %s1818
    %s1820 = sand.u32 51, %s1819
    %s1821 = sshrl.u32 %s1820, 2
    %s1822 = sor.u32 %s1820, %s1821
    %s1823 = sand.u32 15, %s1822
    %v1824 = vld [vmem:[%s1814] sm:%s1823]
    %v1825 = vunpack.c.l.bf16 %v1824
    %v1826 = vunpack.c.h.bf16 %v1824
    %s1827 = scalar_lea.vmem [#allocation1], 1136
    %1828 = vst [vmem:[%s1827] sm:%s4] %v1825
    %s1829 = smul.addr 4, 141
    %s1830 = scalar_lea.vmem %s0, %s1829
    %s1831 = sshrl.u32 %s4, 1
    %s1832 = sor.u32 %s4, %s1831
    %s1833 = sand.u32 %s1832, 85
    %s1834 = sshrl.u32 %s1833, 1
    %s1835 = sor.u32 %s1833, %s1834
    %s1836 = sand.u32 51, %s1835
    %s1837 = sshrl.u32 %s1836, 2
    %s1838 = sor.u32 %s1836, %s1837
    %s1839 = sand.u32 15, %s1838
    %v1840 = vld [vmem:[%s1830] sm:%s1839]
    %v1841 = vunpack.c.l.bf16 %v1840
    %v1842 = vunpack.c.h.bf16 %v1840
    %s1843 = scalar_lea.vmem [#allocation1], 1128
    %1844 = vst [vmem:[%s1843] sm:%s4] %v1841
    %s1845 = smul.addr 4, 140
    %s1846 = scalar_lea.vmem %s0, %s1845
    %s1847 = sshrl.u32 %s4, 1
    %s1848 = sor.u32 %s4, %s1847
    %s1849 = sand.u32 %s1848, 85
    %s1850 = sshrl.u32 %s1849, 1
    %s1851 = sor.u32 %s1849, %s1850
    %s1852 = sand.u32 51, %s1851
    %s1853 = sshrl.u32 %s1852, 2
    %s1854 = sor.u32 %s1852, %s1853
    %s1855 = sand.u32 15, %s1854
    %v1856 = vld [vmem:[%s1846] sm:%s1855]
    %v1857 = vunpack.c.l.bf16 %v1856
    %v1858 = vunpack.c.h.bf16 %v1856
    %s1859 = scalar_lea.vmem [#allocation1], 1120
    %1860 = vst [vmem:[%s1859] sm:%s4] %v1857
    %s1861 = smul.addr 4, 139
    %s1862 = scalar_lea.vmem %s0, %s1861
    %s1863 = sshrl.u32 %s4, 1
    %s1864 = sor.u32 %s4, %s1863
    %s1865 = sand.u32 %s1864, 85
    %s1866 = sshrl.u32 %s1865, 1
    %s1867 = sor.u32 %s1865, %s1866
    %s1868 = sand.u32 51, %s1867
    %s1869 = sshrl.u32 %s1868, 2
    %s1870 = sor.u32 %s1868, %s1869
    %s1871 = sand.u32 15, %s1870
    %v1872 = vld [vmem:[%s1862] sm:%s1871]
    %v1873 = vunpack.c.l.bf16 %v1872
    %v1874 = vunpack.c.h.bf16 %v1872
    %s1875 = scalar_lea.vmem [#allocation1], 1112
    %1876 = vst [vmem:[%s1875] sm:%s4] %v1873
    %s1877 = smul.addr 4, 138
    %s1878 = scalar_lea.vmem %s0, %s1877
    %s1879 = sshrl.u32 %s4, 1
    %s1880 = sor.u32 %s4, %s1879
    %s1881 = sand.u32 %s1880, 85
    %s1882 = sshrl.u32 %s1881, 1
    %s1883 = sor.u32 %s1881, %s1882
    %s1884 = sand.u32 51, %s1883
    %s1885 = sshrl.u32 %s1884, 2
    %s1886 = sor.u32 %s1884, %s1885
    %s1887 = sand.u32 15, %s1886
    %v1888 = vld [vmem:[%s1878] sm:%s1887]
    %v1889 = vunpack.c.l.bf16 %v1888
    %v1890 = vunpack.c.h.bf16 %v1888
    %s1891 = scalar_lea.vmem [#allocation1], 1104
    %1892 = vst [vmem:[%s1891] sm:%s4] %v1889
    %s1893 = smul.addr 4, 137
    %s1894 = scalar_lea.vmem %s0, %s1893
    %s1895 = sshrl.u32 %s4, 1
    %s1896 = sor.u32 %s4, %s1895
    %s1897 = sand.u32 %s1896, 85
    %s1898 = sshrl.u32 %s1897, 1
    %s1899 = sor.u32 %s1897, %s1898
    %s1900 = sand.u32 51, %s1899
    %s1901 = sshrl.u32 %s1900, 2
    %s1902 = sor.u32 %s1900, %s1901
    %s1903 = sand.u32 15, %s1902
    %v1904 = vld [vmem:[%s1894] sm:%s1903]
    %v1905 = vunpack.c.l.bf16 %v1904
    %v1906 = vunpack.c.h.bf16 %v1904
    %s1907 = scalar_lea.vmem [#allocation1], 1096
    %1908 = vst [vmem:[%s1907] sm:%s4] %v1905
    %s1909 = smul.addr 4, 136
    %s1910 = scalar_lea.vmem %s0, %s1909
    %s1911 = sshrl.u32 %s4, 1
    %s1912 = sor.u32 %s4, %s1911
    %s1913 = sand.u32 %s1912, 85
    %s1914 = sshrl.u32 %s1913, 1
    %s1915 = sor.u32 %s1913, %s1914
    %s1916 = sand.u32 51, %s1915
    %s1917 = sshrl.u32 %s1916, 2
    %s1918 = sor.u32 %s1916, %s1917
    %s1919 = sand.u32 15, %s1918
    %v1920 = vld [vmem:[%s1910] sm:%s1919]
    %v1921 = vunpack.c.l.bf16 %v1920
    %v1922 = vunpack.c.h.bf16 %v1920
    %s1923 = scalar_lea.vmem [#allocation1], 1088
    %1924 = vst [vmem:[%s1923] sm:%s4] %v1921
    %s1925 = smul.addr 4, 135
    %s1926 = scalar_lea.vmem %s0, %s1925
    %s1927 = sshrl.u32 %s4, 1
    %s1928 = sor.u32 %s4, %s1927
    %s1929 = sand.u32 %s1928, 85
    %s1930 = sshrl.u32 %s1929, 1
    %s1931 = sor.u32 %s1929, %s1930
    %s1932 = sand.u32 51, %s1931
    %s1933 = sshrl.u32 %s1932, 2
    %s1934 = sor.u32 %s1932, %s1933
    %s1935 = sand.u32 15, %s1934
    %v1936 = vld [vmem:[%s1926] sm:%s1935]
    %v1937 = vunpack.c.l.bf16 %v1936
    %v1938 = vunpack.c.h.bf16 %v1936
    %s1939 = scalar_lea.vmem [#allocation1], 1080
    %1940 = vst [vmem:[%s1939] sm:%s4] %v1937
    %s1941 = smul.addr 4, 134
    %s1942 = scalar_lea.vmem %s0, %s1941
    %s1943 = sshrl.u32 %s4, 1
    %s1944 = sor.u32 %s4, %s1943
    %s1945 = sand.u32 %s1944, 85
    %s1946 = sshrl.u32 %s1945, 1
    %s1947 = sor.u32 %s1945, %s1946
    %s1948 = sand.u32 51, %s1947
    %s1949 = sshrl.u32 %s1948, 2
    %s1950 = sor.u32 %s1948, %s1949
    %s1951 = sand.u32 15, %s1950
    %v1952 = vld [vmem:[%s1942] sm:%s1951]
    %v1953 = vunpack.c.l.bf16 %v1952
    %v1954 = vunpack.c.h.bf16 %v1952
    %s1955 = scalar_lea.vmem [#allocation1], 1072
    %1956 = vst [vmem:[%s1955] sm:%s4] %v1953
    %s1957 = smul.addr 4, 133
    %s1958 = scalar_lea.vmem %s0, %s1957
    %s1959 = sshrl.u32 %s4, 1
    %s1960 = sor.u32 %s4, %s1959
    %s1961 = sand.u32 %s1960, 85
    %s1962 = sshrl.u32 %s1961, 1
    %s1963 = sor.u32 %s1961, %s1962
    %s1964 = sand.u32 51, %s1963
    %s1965 = sshrl.u32 %s1964, 2
    %s1966 = sor.u32 %s1964, %s1965
    %s1967 = sand.u32 15, %s1966
    %v1968 = vld [vmem:[%s1958] sm:%s1967]
    %v1969 = vunpack.c.l.bf16 %v1968
    %v1970 = vunpack.c.h.bf16 %v1968
    %s1971 = scalar_lea.vmem [#allocation1], 1064
    %1972 = vst [vmem:[%s1971] sm:%s4] %v1969
    %s1973 = smul.addr 4, 132
    %s1974 = scalar_lea.vmem %s0, %s1973
    %s1975 = sshrl.u32 %s4, 1
    %s1976 = sor.u32 %s4, %s1975
    %s1977 = sand.u32 %s1976, 85
    %s1978 = sshrl.u32 %s1977, 1
    %s1979 = sor.u32 %s1977, %s1978
    %s1980 = sand.u32 51, %s1979
    %s1981 = sshrl.u32 %s1980, 2
    %s1982 = sor.u32 %s1980, %s1981
    %s1983 = sand.u32 15, %s1982
    %v1984 = vld [vmem:[%s1974] sm:%s1983]
    %v1985 = vunpack.c.l.bf16 %v1984
    %v1986 = vunpack.c.h.bf16 %v1984
    %s1987 = scalar_lea.vmem [#allocation1], 1056
    %1988 = vst [vmem:[%s1987] sm:%s4] %v1985
    %s1989 = smul.addr 4, 131
    %s1990 = scalar_lea.vmem %s0, %s1989
    %s1991 = sshrl.u32 %s4, 1
    %s1992 = sor.u32 %s4, %s1991
    %s1993 = sand.u32 %s1992, 85
    %s1994 = sshrl.u32 %s1993, 1
    %s1995 = sor.u32 %s1993, %s1994
    %s1996 = sand.u32 51, %s1995
    %s1997 = sshrl.u32 %s1996, 2
    %s1998 = sor.u32 %s1996, %s1997
    %s1999 = sand.u32 15, %s1998
    %v2000 = vld [vmem:[%s1990] sm:%s1999]
    %v2001 = vunpack.c.l.bf16 %v2000
    %v2002 = vunpack.c.h.bf16 %v2000
    %s2003 = scalar_lea.vmem [#allocation1], 1048
    %2004 = vst [vmem:[%s2003] sm:%s4] %v2001
    %s2005 = smul.addr 4, 130
    %s2006 = scalar_lea.vmem %s0, %s2005
    %s2007 = sshrl.u32 %s4, 1
    %s2008 = sor.u32 %s4, %s2007
    %s2009 = sand.u32 %s2008, 85
    %s2010 = sshrl.u32 %s2009, 1
    %s2011 = sor.u32 %s2009, %s2010
    %s2012 = sand.u32 51, %s2011
    %s2013 = sshrl.u32 %s2012, 2
    %s2014 = sor.u32 %s2012, %s2013
    %s2015 = sand.u32 15, %s2014
    %v2016 = vld [vmem:[%s2006] sm:%s2015]
    %v2017 = vunpack.c.l.bf16 %v2016
    %v2018 = vunpack.c.h.bf16 %v2016
    %s2019 = scalar_lea.vmem [#allocation1], 1040
    %2020 = vst [vmem:[%s2019] sm:%s4] %v2017
    %s2021 = smul.addr 4, 129
    %s2022 = scalar_lea.vmem %s0, %s2021
    %s2023 = sshrl.u32 %s4, 1
    %s2024 = sor.u32 %s4, %s2023
    %s2025 = sand.u32 %s2024, 85
    %s2026 = sshrl.u32 %s2025, 1
    %s2027 = sor.u32 %s2025, %s2026
    %s2028 = sand.u32 51, %s2027
    %s2029 = sshrl.u32 %s2028, 2
    %s2030 = sor.u32 %s2028, %s2029
    %s2031 = sand.u32 15, %s2030
    %v2032 = vld [vmem:[%s2022] sm:%s2031]
    %v2033 = vunpack.c.l.bf16 %v2032
    %v2034 = vunpack.c.h.bf16 %v2032
    %s2035 = scalar_lea.vmem [#allocation1], 1032
    %2036 = vst [vmem:[%s2035] sm:%s4] %v2033
    %s2037 = smul.addr 4, 128
    %s2038 = scalar_lea.vmem %s0, %s2037
    %s2039 = sshrl.u32 %s4, 1
    %s2040 = sor.u32 %s4, %s2039
    %s2041 = sand.u32 %s2040, 85
    %s2042 = sshrl.u32 %s2041, 1
    %s2043 = sor.u32 %s2041, %s2042
    %s2044 = sand.u32 51, %s2043
    %s2045 = sshrl.u32 %s2044, 2
    %s2046 = sor.u32 %s2044, %s2045
    %s2047 = sand.u32 15, %s2046
    %v2048 = vld [vmem:[%s2038] sm:%s2047]
    %v2049 = vunpack.c.l.bf16 %v2048
    %v2050 = vunpack.c.h.bf16 %v2048
    %s2051 = scalar_lea.vmem [#allocation1], 1024
    %2052 = vst [vmem:[%s2051] sm:%s4] %v2049
    %s2053 = smul.addr 4, 127
    %s2054 = scalar_lea.vmem %s0, %s2053
    %s2055 = sshrl.u32 %s4, 1
    %s2056 = sor.u32 %s4, %s2055
    %s2057 = sand.u32 %s2056, 85
    %s2058 = sshrl.u32 %s2057, 1
    %s2059 = sor.u32 %s2057, %s2058
    %s2060 = sand.u32 51, %s2059
    %s2061 = sshrl.u32 %s2060, 2
    %s2062 = sor.u32 %s2060, %s2061
    %s2063 = sand.u32 15, %s2062
    %v2064 = vld [vmem:[%s2054] sm:%s2063]
    %v2065 = vunpack.c.l.bf16 %v2064
    %v2066 = vunpack.c.h.bf16 %v2064
    %s2067 = scalar_lea.vmem [#allocation1], 1016
    %2068 = vst [vmem:[%s2067] sm:%s4] %v2065
    %s2069 = smul.addr 4, 126
    %s2070 = scalar_lea.vmem %s0, %s2069
    %s2071 = sshrl.u32 %s4, 1
    %s2072 = sor.u32 %s4, %s2071
    %s2073 = sand.u32 %s2072, 85
    %s2074 = sshrl.u32 %s2073, 1
    %s2075 = sor.u32 %s2073, %s2074
    %s2076 = sand.u32 51, %s2075
    %s2077 = sshrl.u32 %s2076, 2
    %s2078 = sor.u32 %s2076, %s2077
    %s2079 = sand.u32 15, %s2078
    %v2080 = vld [vmem:[%s2070] sm:%s2079]
    %v2081 = vunpack.c.l.bf16 %v2080
    %v2082 = vunpack.c.h.bf16 %v2080
    %s2083 = scalar_lea.vmem [#allocation1], 1008
    %2084 = vst [vmem:[%s2083] sm:%s4] %v2081
    %s2085 = smul.addr 4, 125
    %s2086 = scalar_lea.vmem %s0, %s2085
    %s2087 = sshrl.u32 %s4, 1
    %s2088 = sor.u32 %s4, %s2087
    %s2089 = sand.u32 %s2088, 85
    %s2090 = sshrl.u32 %s2089, 1
    %s2091 = sor.u32 %s2089, %s2090
    %s2092 = sand.u32 51, %s2091
    %s2093 = sshrl.u32 %s2092, 2
    %s2094 = sor.u32 %s2092, %s2093
    %s2095 = sand.u32 15, %s2094
    %v2096 = vld [vmem:[%s2086] sm:%s2095]
    %v2097 = vunpack.c.l.bf16 %v2096
    %v2098 = vunpack.c.h.bf16 %v2096
    %s2099 = scalar_lea.vmem [#allocation1], 1000
    %2100 = vst [vmem:[%s2099] sm:%s4] %v2097
    %s2101 = smul.addr 4, 124
    %s2102 = scalar_lea.vmem %s0, %s2101
    %s2103 = sshrl.u32 %s4, 1
    %s2104 = sor.u32 %s4, %s2103
    %s2105 = sand.u32 %s2104, 85
    %s2106 = sshrl.u32 %s2105, 1
    %s2107 = sor.u32 %s2105, %s2106
    %s2108 = sand.u32 51, %s2107
    %s2109 = sshrl.u32 %s2108, 2
    %s2110 = sor.u32 %s2108, %s2109
    %s2111 = sand.u32 15, %s2110
    %v2112 = vld [vmem:[%s2102] sm:%s2111]
    %v2113 = vunpack.c.l.bf16 %v2112
    %v2114 = vunpack.c.h.bf16 %v2112
    %s2115 = scalar_lea.vmem [#allocation1], 992
    %2116 = vst [vmem:[%s2115] sm:%s4] %v2113
    %s2117 = smul.addr 4, 123
    %s2118 = scalar_lea.vmem %s0, %s2117
    %s2119 = sshrl.u32 %s4, 1
    %s2120 = sor.u32 %s4, %s2119
    %s2121 = sand.u32 %s2120, 85
    %s2122 = sshrl.u32 %s2121, 1
    %s2123 = sor.u32 %s2121, %s2122
    %s2124 = sand.u32 51, %s2123
    %s2125 = sshrl.u32 %s2124, 2
    %s2126 = sor.u32 %s2124, %s2125
    %s2127 = sand.u32 15, %s2126
    %v2128 = vld [vmem:[%s2118] sm:%s2127]
    %v2129 = vunpack.c.l.bf16 %v2128
    %v2130 = vunpack.c.h.bf16 %v2128
    %s2131 = scalar_lea.vmem [#allocation1], 984
    %2132 = vst [vmem:[%s2131] sm:%s4] %v2129
    %s2133 = smul.addr 4, 122
    %s2134 = scalar_lea.vmem %s0, %s2133
    %s2135 = sshrl.u32 %s4, 1
    %s2136 = sor.u32 %s4, %s2135
    %s2137 = sand.u32 %s2136, 85
    %s2138 = sshrl.u32 %s2137, 1
    %s2139 = sor.u32 %s2137, %s2138
    %s2140 = sand.u32 51, %s2139
    %s2141 = sshrl.u32 %s2140, 2
    %s2142 = sor.u32 %s2140, %s2141
    %s2143 = sand.u32 15, %s2142
    %v2144 = vld [vmem:[%s2134] sm:%s2143]
    %v2145 = vunpack.c.l.bf16 %v2144
    %v2146 = vunpack.c.h.bf16 %v2144
    %s2147 = scalar_lea.vmem [#allocation1], 976
    %2148 = vst [vmem:[%s2147] sm:%s4] %v2145
    %s2149 = smul.addr 4, 121
    %s2150 = scalar_lea.vmem %s0, %s2149
    %s2151 = sshrl.u32 %s4, 1
    %s2152 = sor.u32 %s4, %s2151
    %s2153 = sand.u32 %s2152, 85
    %s2154 = sshrl.u32 %s2153, 1
    %s2155 = sor.u32 %s2153, %s2154
    %s2156 = sand.u32 51, %s2155
    %s2157 = sshrl.u32 %s2156, 2
    %s2158 = sor.u32 %s2156, %s2157
    %s2159 = sand.u32 15, %s2158
    %v2160 = vld [vmem:[%s2150] sm:%s2159]
    %v2161 = vunpack.c.l.bf16 %v2160
    %v2162 = vunpack.c.h.bf16 %v2160
    %s2163 = scalar_lea.vmem [#allocation1], 968
    %2164 = vst [vmem:[%s2163] sm:%s4] %v2161
    %s2165 = smul.addr 4, 120
    %s2166 = scalar_lea.vmem %s0, %s2165
    %s2167 = sshrl.u32 %s4, 1
    %s2168 = sor.u32 %s4, %s2167
    %s2169 = sand.u32 %s2168, 85
    %s2170 = sshrl.u32 %s2169, 1
    %s2171 = sor.u32 %s2169, %s2170
    %s2172 = sand.u32 51, %s2171
    %s2173 = sshrl.u32 %s2172, 2
    %s2174 = sor.u32 %s2172, %s2173
    %s2175 = sand.u32 15, %s2174
    %v2176 = vld [vmem:[%s2166] sm:%s2175]
    %v2177 = vunpack.c.l.bf16 %v2176
    %v2178 = vunpack.c.h.bf16 %v2176
    %s2179 = scalar_lea.vmem [#allocation1], 960
    %2180 = vst [vmem:[%s2179] sm:%s4] %v2177
    %s2181 = smul.addr 4, 119
    %s2182 = scalar_lea.vmem %s0, %s2181
    %s2183 = sshrl.u32 %s4, 1
    %s2184 = sor.u32 %s4, %s2183
    %s2185 = sand.u32 %s2184, 85
    %s2186 = sshrl.u32 %s2185, 1
    %s2187 = sor.u32 %s2185, %s2186
    %s2188 = sand.u32 51, %s2187
    %s2189 = sshrl.u32 %s2188, 2
    %s2190 = sor.u32 %s2188, %s2189
    %s2191 = sand.u32 15, %s2190
    %v2192 = vld [vmem:[%s2182] sm:%s2191]
    %v2193 = vunpack.c.l.bf16 %v2192
    %v2194 = vunpack.c.h.bf16 %v2192
    %s2195 = scalar_lea.vmem [#allocation1], 952
    %2196 = vst [vmem:[%s2195] sm:%s4] %v2193
    %s2197 = smul.addr 4, 118
    %s2198 = scalar_lea.vmem %s0, %s2197
    %s2199 = sshrl.u32 %s4, 1
    %s2200 = sor.u32 %s4, %s2199
    %s2201 = sand.u32 %s2200, 85
    %s2202 = sshrl.u32 %s2201, 1
    %s2203 = sor.u32 %s2201, %s2202
    %s2204 = sand.u32 51, %s2203
    %s2205 = sshrl.u32 %s2204, 2
    %s2206 = sor.u32 %s2204, %s2205
    %s2207 = sand.u32 15, %s2206
    %v2208 = vld [vmem:[%s2198] sm:%s2207]
    %v2209 = vunpack.c.l.bf16 %v2208
    %v2210 = vunpack.c.h.bf16 %v2208
    %s2211 = scalar_lea.vmem [#allocation1], 944
    %2212 = vst [vmem:[%s2211] sm:%s4] %v2209
    %s2213 = smul.addr 4, 117
    %s2214 = scalar_lea.vmem %s0, %s2213
    %s2215 = sshrl.u32 %s4, 1
    %s2216 = sor.u32 %s4, %s2215
    %s2217 = sand.u32 %s2216, 85
    %s2218 = sshrl.u32 %s2217, 1
    %s2219 = sor.u32 %s2217, %s2218
    %s2220 = sand.u32 51, %s2219
    %s2221 = sshrl.u32 %s2220, 2
    %s2222 = sor.u32 %s2220, %s2221
    %s2223 = sand.u32 15, %s2222
    %v2224 = vld [vmem:[%s2214] sm:%s2223]
    %v2225 = vunpack.c.l.bf16 %v2224
    %v2226 = vunpack.c.h.bf16 %v2224
    %s2227 = scalar_lea.vmem [#allocation1], 936
    %2228 = vst [vmem:[%s2227] sm:%s4] %v2225
    %s2229 = smul.addr 4, 116
    %s2230 = scalar_lea.vmem %s0, %s2229
    %s2231 = sshrl.u32 %s4, 1
    %s2232 = sor.u32 %s4, %s2231
    %s2233 = sand.u32 %s2232, 85
    %s2234 = sshrl.u32 %s2233, 1
    %s2235 = sor.u32 %s2233, %s2234
    %s2236 = sand.u32 51, %s2235
    %s2237 = sshrl.u32 %s2236, 2
    %s2238 = sor.u32 %s2236, %s2237
    %s2239 = sand.u32 15, %s2238
    %v2240 = vld [vmem:[%s2230] sm:%s2239]
    %v2241 = vunpack.c.l.bf16 %v2240
    %v2242 = vunpack.c.h.bf16 %v2240
    %s2243 = scalar_lea.vmem [#allocation1], 928
    %2244 = vst [vmem:[%s2243] sm:%s4] %v2241
    %s2245 = smul.addr 4, 115
    %s2246 = scalar_lea.vmem %s0, %s2245
    %s2247 = sshrl.u32 %s4, 1
    %s2248 = sor.u32 %s4, %s2247
    %s2249 = sand.u32 %s2248, 85
    %s2250 = sshrl.u32 %s2249, 1
    %s2251 = sor.u32 %s2249, %s2250
    %s2252 = sand.u32 51, %s2251
    %s2253 = sshrl.u32 %s2252, 2
    %s2254 = sor.u32 %s2252, %s2253
    %s2255 = sand.u32 15, %s2254
    %v2256 = vld [vmem:[%s2246] sm:%s2255]
    %v2257 = vunpack.c.l.bf16 %v2256
    %v2258 = vunpack.c.h.bf16 %v2256
    %s2259 = scalar_lea.vmem [#allocation1], 920
    %2260 = vst [vmem:[%s2259] sm:%s4] %v2257
    %s2261 = smul.addr 4, 114
    %s2262 = scalar_lea.vmem %s0, %s2261
    %s2263 = sshrl.u32 %s4, 1
    %s2264 = sor.u32 %s4, %s2263
    %s2265 = sand.u32 %s2264, 85
    %s2266 = sshrl.u32 %s2265, 1
    %s2267 = sor.u32 %s2265, %s2266
    %s2268 = sand.u32 51, %s2267
    %s2269 = sshrl.u32 %s2268, 2
    %s2270 = sor.u32 %s2268, %s2269
    %s2271 = sand.u32 15, %s2270
    %v2272 = vld [vmem:[%s2262] sm:%s2271]
    %v2273 = vunpack.c.l.bf16 %v2272
    %v2274 = vunpack.c.h.bf16 %v2272
    %s2275 = scalar_lea.vmem [#allocation1], 912
    %2276 = vst [vmem:[%s2275] sm:%s4] %v2273
    %s2277 = smul.addr 4, 113
    %s2278 = scalar_lea.vmem %s0, %s2277
    %s2279 = sshrl.u32 %s4, 1
    %s2280 = sor.u32 %s4, %s2279
    %s2281 = sand.u32 %s2280, 85
    %s2282 = sshrl.u32 %s2281, 1
    %s2283 = sor.u32 %s2281, %s2282
    %s2284 = sand.u32 51, %s2283
    %s2285 = sshrl.u32 %s2284, 2
    %s2286 = sor.u32 %s2284, %s2285
    %s2287 = sand.u32 15, %s2286
    %v2288 = vld [vmem:[%s2278] sm:%s2287]
    %v2289 = vunpack.c.l.bf16 %v2288
    %v2290 = vunpack.c.h.bf16 %v2288
    %s2291 = scalar_lea.vmem [#allocation1], 904
    %2292 = vst [vmem:[%s2291] sm:%s4] %v2289
    %s2293 = smul.addr 4, 112
    %s2294 = scalar_lea.vmem %s0, %s2293
    %s2295 = sshrl.u32 %s4, 1
    %s2296 = sor.u32 %s4, %s2295
    %s2297 = sand.u32 %s2296, 85
    %s2298 = sshrl.u32 %s2297, 1
    %s2299 = sor.u32 %s2297, %s2298
    %s2300 = sand.u32 51, %s2299
    %s2301 = sshrl.u32 %s2300, 2
    %s2302 = sor.u32 %s2300, %s2301
    %s2303 = sand.u32 15, %s2302
    %v2304 = vld [vmem:[%s2294] sm:%s2303]
    %v2305 = vunpack.c.l.bf16 %v2304
    %v2306 = vunpack.c.h.bf16 %v2304
    %s2307 = scalar_lea.vmem [#allocation1], 896
    %2308 = vst [vmem:[%s2307] sm:%s4] %v2305
    %s2309 = smul.addr 4, 111
    %s2310 = scalar_lea.vmem %s0, %s2309
    %s2311 = sshrl.u32 %s4, 1
    %s2312 = sor.u32 %s4, %s2311
    %s2313 = sand.u32 %s2312, 85
    %s2314 = sshrl.u32 %s2313, 1
    %s2315 = sor.u32 %s2313, %s2314
    %s2316 = sand.u32 51, %s2315
    %s2317 = sshrl.u32 %s2316, 2
    %s2318 = sor.u32 %s2316, %s2317
    %s2319 = sand.u32 15, %s2318
    %v2320 = vld [vmem:[%s2310] sm:%s2319]
    %v2321 = vunpack.c.l.bf16 %v2320
    %v2322 = vunpack.c.h.bf16 %v2320
    %s2323 = scalar_lea.vmem [#allocation1], 888
    %2324 = vst [vmem:[%s2323] sm:%s4] %v2321
    %s2325 = smul.addr 4, 110
    %s2326 = scalar_lea.vmem %s0, %s2325
    %s2327 = sshrl.u32 %s4, 1
    %s2328 = sor.u32 %s4, %s2327
    %s2329 = sand.u32 %s2328, 85
    %s2330 = sshrl.u32 %s2329, 1
    %s2331 = sor.u32 %s2329, %s2330
    %s2332 = sand.u32 51, %s2331
    %s2333 = sshrl.u32 %s2332, 2
    %s2334 = sor.u32 %s2332, %s2333
    %s2335 = sand.u32 15, %s2334
    %v2336 = vld [vmem:[%s2326] sm:%s2335]
    %v2337 = vunpack.c.l.bf16 %v2336
    %v2338 = vunpack.c.h.bf16 %v2336
    %s2339 = scalar_lea.vmem [#allocation1], 880
    %2340 = vst [vmem:[%s2339] sm:%s4] %v2337
    %s2341 = smul.addr 4, 109
    %s2342 = scalar_lea.vmem %s0, %s2341
    %s2343 = sshrl.u32 %s4, 1
    %s2344 = sor.u32 %s4, %s2343
    %s2345 = sand.u32 %s2344, 85
    %s2346 = sshrl.u32 %s2345, 1
    %s2347 = sor.u32 %s2345, %s2346
    %s2348 = sand.u32 51, %s2347
    %s2349 = sshrl.u32 %s2348, 2
    %s2350 = sor.u32 %s2348, %s2349
    %s2351 = sand.u32 15, %s2350
    %v2352 = vld [vmem:[%s2342] sm:%s2351]
    %v2353 = vunpack.c.l.bf16 %v2352
    %v2354 = vunpack.c.h.bf16 %v2352
    %s2355 = scalar_lea.vmem [#allocation1], 872
    %2356 = vst [vmem:[%s2355] sm:%s4] %v2353
    %s2357 = smul.addr 4, 108
    %s2358 = scalar_lea.vmem %s0, %s2357
    %s2359 = sshrl.u32 %s4, 1
    %s2360 = sor.u32 %s4, %s2359
    %s2361 = sand.u32 %s2360, 85
    %s2362 = sshrl.u32 %s2361, 1
    %s2363 = sor.u32 %s2361, %s2362
    %s2364 = sand.u32 51, %s2363
    %s2365 = sshrl.u32 %s2364, 2
    %s2366 = sor.u32 %s2364, %s2365
    %s2367 = sand.u32 15, %s2366
    %v2368 = vld [vmem:[%s2358] sm:%s2367]
    %v2369 = vunpack.c.l.bf16 %v2368
    %v2370 = vunpack.c.h.bf16 %v2368
    %s2371 = scalar_lea.vmem [#allocation1], 864
    %2372 = vst [vmem:[%s2371] sm:%s4] %v2369
    %s2373 = smul.addr 4, 107
    %s2374 = scalar_lea.vmem %s0, %s2373
    %s2375 = sshrl.u32 %s4, 1
    %s2376 = sor.u32 %s4, %s2375
    %s2377 = sand.u32 %s2376, 85
    %s2378 = sshrl.u32 %s2377, 1
    %s2379 = sor.u32 %s2377, %s2378
    %s2380 = sand.u32 51, %s2379
    %s2381 = sshrl.u32 %s2380, 2
    %s2382 = sor.u32 %s2380, %s2381
    %s2383 = sand.u32 15, %s2382
    %v2384 = vld [vmem:[%s2374] sm:%s2383]
    %v2385 = vunpack.c.l.bf16 %v2384
    %v2386 = vunpack.c.h.bf16 %v2384
    %s2387 = scalar_lea.vmem [#allocation1], 856
    %2388 = vst [vmem:[%s2387] sm:%s4] %v2385
    %s2389 = smul.addr 4, 106
    %s2390 = scalar_lea.vmem %s0, %s2389
    %s2391 = sshrl.u32 %s4, 1
    %s2392 = sor.u32 %s4, %s2391
    %s2393 = sand.u32 %s2392, 85
    %s2394 = sshrl.u32 %s2393, 1
    %s2395 = sor.u32 %s2393, %s2394
    %s2396 = sand.u32 51, %s2395
    %s2397 = sshrl.u32 %s2396, 2
    %s2398 = sor.u32 %s2396, %s2397
    %s2399 = sand.u32 15, %s2398
    %v2400 = vld [vmem:[%s2390] sm:%s2399]
    %v2401 = vunpack.c.l.bf16 %v2400
    %v2402 = vunpack.c.h.bf16 %v2400
    %s2403 = scalar_lea.vmem [#allocation1], 848
    %2404 = vst [vmem:[%s2403] sm:%s4] %v2401
    %s2405 = smul.addr 4, 105
    %s2406 = scalar_lea.vmem %s0, %s2405
    %s2407 = sshrl.u32 %s4, 1
    %s2408 = sor.u32 %s4, %s2407
    %s2409 = sand.u32 %s2408, 85
    %s2410 = sshrl.u32 %s2409, 1
    %s2411 = sor.u32 %s2409, %s2410
    %s2412 = sand.u32 51, %s2411
    %s2413 = sshrl.u32 %s2412, 2
    %s2414 = sor.u32 %s2412, %s2413
    %s2415 = sand.u32 15, %s2414
    %v2416 = vld [vmem:[%s2406] sm:%s2415]
    %v2417 = vunpack.c.l.bf16 %v2416
    %v2418 = vunpack.c.h.bf16 %v2416
    %s2419 = scalar_lea.vmem [#allocation1], 840
    %2420 = vst [vmem:[%s2419] sm:%s4] %v2417
    %s2421 = smul.addr 4, 104
    %s2422 = scalar_lea.vmem %s0, %s2421
    %s2423 = sshrl.u32 %s4, 1
    %s2424 = sor.u32 %s4, %s2423
    %s2425 = sand.u32 %s2424, 85
    %s2426 = sshrl.u32 %s2425, 1
    %s2427 = sor.u32 %s2425, %s2426
    %s2428 = sand.u32 51, %s2427
    %s2429 = sshrl.u32 %s2428, 2
    %s2430 = sor.u32 %s2428, %s2429
    %s2431 = sand.u32 15, %s2430
    %v2432 = vld [vmem:[%s2422] sm:%s2431]
    %v2433 = vunpack.c.l.bf16 %v2432
    %v2434 = vunpack.c.h.bf16 %v2432
    %s2435 = scalar_lea.vmem [#allocation1], 832
    %2436 = vst [vmem:[%s2435] sm:%s4] %v2433
    %s2437 = smul.addr 4, 103
    %s2438 = scalar_lea.vmem %s0, %s2437
    %s2439 = sshrl.u32 %s4, 1
    %s2440 = sor.u32 %s4, %s2439
    %s2441 = sand.u32 %s2440, 85
    %s2442 = sshrl.u32 %s2441, 1
    %s2443 = sor.u32 %s2441, %s2442
    %s2444 = sand.u32 51, %s2443
    %s2445 = sshrl.u32 %s2444, 2
    %s2446 = sor.u32 %s2444, %s2445
    %s2447 = sand.u32 15, %s2446
    %v2448 = vld [vmem:[%s2438] sm:%s2447]
    %v2449 = vunpack.c.l.bf16 %v2448
    %v2450 = vunpack.c.h.bf16 %v2448
    %s2451 = scalar_lea.vmem [#allocation1], 824
    %2452 = vst [vmem:[%s2451] sm:%s4] %v2449
    %s2453 = smul.addr 4, 102
    %s2454 = scalar_lea.vmem %s0, %s2453
    %s2455 = sshrl.u32 %s4, 1
    %s2456 = sor.u32 %s4, %s2455
    %s2457 = sand.u32 %s2456, 85
    %s2458 = sshrl.u32 %s2457, 1
    %s2459 = sor.u32 %s2457, %s2458
    %s2460 = sand.u32 51, %s2459
    %s2461 = sshrl.u32 %s2460, 2
    %s2462 = sor.u32 %s2460, %s2461
    %s2463 = sand.u32 15, %s2462
    %v2464 = vld [vmem:[%s2454] sm:%s2463]
    %v2465 = vunpack.c.l.bf16 %v2464
    %v2466 = vunpack.c.h.bf16 %v2464
    %s2467 = scalar_lea.vmem [#allocation1], 816
    %2468 = vst [vmem:[%s2467] sm:%s4] %v2465
    %s2469 = smul.addr 4, 101
    %s2470 = scalar_lea.vmem %s0, %s2469
    %s2471 = sshrl.u32 %s4, 1
    %s2472 = sor.u32 %s4, %s2471
    %s2473 = sand.u32 %s2472, 85
    %s2474 = sshrl.u32 %s2473, 1
    %s2475 = sor.u32 %s2473, %s2474
    %s2476 = sand.u32 51, %s2475
    %s2477 = sshrl.u32 %s2476, 2
    %s2478 = sor.u32 %s2476, %s2477
    %s2479 = sand.u32 15, %s2478
    %v2480 = vld [vmem:[%s2470] sm:%s2479]
    %v2481 = vunpack.c.l.bf16 %v2480
    %v2482 = vunpack.c.h.bf16 %v2480
    %s2483 = scalar_lea.vmem [#allocation1], 808
    %2484 = vst [vmem:[%s2483] sm:%s4] %v2481
    %s2485 = smul.addr 4, 100
    %s2486 = scalar_lea.vmem %s0, %s2485
    %s2487 = sshrl.u32 %s4, 1
    %s2488 = sor.u32 %s4, %s2487
    %s2489 = sand.u32 %s2488, 85
    %s2490 = sshrl.u32 %s2489, 1
    %s2491 = sor.u32 %s2489, %s2490
    %s2492 = sand.u32 51, %s2491
    %s2493 = sshrl.u32 %s2492, 2
    %s2494 = sor.u32 %s2492, %s2493
    %s2495 = sand.u32 15, %s2494
    %v2496 = vld [vmem:[%s2486] sm:%s2495]
    %v2497 = vunpack.c.l.bf16 %v2496
    %v2498 = vunpack.c.h.bf16 %v2496
    %s2499 = scalar_lea.vmem [#allocation1], 800
    %2500 = vst [vmem:[%s2499] sm:%s4] %v2497
    %s2501 = smul.addr 4, 99
    %s2502 = scalar_lea.vmem %s0, %s2501
    %s2503 = sshrl.u32 %s4, 1
    %s2504 = sor.u32 %s4, %s2503
    %s2505 = sand.u32 %s2504, 85
    %s2506 = sshrl.u32 %s2505, 1
    %s2507 = sor.u32 %s2505, %s2506
    %s2508 = sand.u32 51, %s2507
    %s2509 = sshrl.u32 %s2508, 2
    %s2510 = sor.u32 %s2508, %s2509
    %s2511 = sand.u32 15, %s2510
    %v2512 = vld [vmem:[%s2502] sm:%s2511]
    %v2513 = vunpack.c.l.bf16 %v2512
    %v2514 = vunpack.c.h.bf16 %v2512
    %s2515 = scalar_lea.vmem [#allocation1], 792
    %2516 = vst [vmem:[%s2515] sm:%s4] %v2513
    %s2517 = smul.addr 4, 98
    %s2518 = scalar_lea.vmem %s0, %s2517
    %s2519 = sshrl.u32 %s4, 1
    %s2520 = sor.u32 %s4, %s2519
    %s2521 = sand.u32 %s2520, 85
    %s2522 = sshrl.u32 %s2521, 1
    %s2523 = sor.u32 %s2521, %s2522
    %s2524 = sand.u32 51, %s2523
    %s2525 = sshrl.u32 %s2524, 2
    %s2526 = sor.u32 %s2524, %s2525
    %s2527 = sand.u32 15, %s2526
    %v2528 = vld [vmem:[%s2518] sm:%s2527]
    %v2529 = vunpack.c.l.bf16 %v2528
    %v2530 = vunpack.c.h.bf16 %v2528
    %s2531 = scalar_lea.vmem [#allocation1], 784
    %2532 = vst [vmem:[%s2531] sm:%s4] %v2529
    %s2533 = smul.addr 4, 97
    %s2534 = scalar_lea.vmem %s0, %s2533
    %s2535 = sshrl.u32 %s4, 1
    %s2536 = sor.u32 %s4, %s2535
    %s2537 = sand.u32 %s2536, 85
    %s2538 = sshrl.u32 %s2537, 1
    %s2539 = sor.u32 %s2537, %s2538
    %s2540 = sand.u32 51, %s2539
    %s2541 = sshrl.u32 %s2540, 2
    %s2542 = sor.u32 %s2540, %s2541
    %s2543 = sand.u32 15, %s2542
    %v2544 = vld [vmem:[%s2534] sm:%s2543]
    %v2545 = vunpack.c.l.bf16 %v2544
    %v2546 = vunpack.c.h.bf16 %v2544
    %s2547 = scalar_lea.vmem [#allocation1], 776
    %2548 = vst [vmem:[%s2547] sm:%s4] %v2545
    %s2549 = smul.addr 4, 96
    %s2550 = scalar_lea.vmem %s0, %s2549
    %s2551 = sshrl.u32 %s4, 1
    %s2552 = sor.u32 %s4, %s2551
    %s2553 = sand.u32 %s2552, 85
    %s2554 = sshrl.u32 %s2553, 1
    %s2555 = sor.u32 %s2553, %s2554
    %s2556 = sand.u32 51, %s2555
    %s2557 = sshrl.u32 %s2556, 2
    %s2558 = sor.u32 %s2556, %s2557
    %s2559 = sand.u32 15, %s2558
    %v2560 = vld [vmem:[%s2550] sm:%s2559]
    %v2561 = vunpack.c.l.bf16 %v2560
    %v2562 = vunpack.c.h.bf16 %v2560
    %s2563 = scalar_lea.vmem [#allocation1], 768
    %2564 = vst [vmem:[%s2563] sm:%s4] %v2561
    %s2565 = smul.addr 4, 95
    %s2566 = scalar_lea.vmem %s0, %s2565
    %s2567 = sshrl.u32 %s4, 1
    %s2568 = sor.u32 %s4, %s2567
    %s2569 = sand.u32 %s2568, 85
    %s2570 = sshrl.u32 %s2569, 1
    %s2571 = sor.u32 %s2569, %s2570
    %s2572 = sand.u32 51, %s2571
    %s2573 = sshrl.u32 %s2572, 2
    %s2574 = sor.u32 %s2572, %s2573
    %s2575 = sand.u32 15, %s2574
    %v2576 = vld [vmem:[%s2566] sm:%s2575]
    %v2577 = vunpack.c.l.bf16 %v2576
    %v2578 = vunpack.c.h.bf16 %v2576
    %s2579 = scalar_lea.vmem [#allocation1], 760
    %2580 = vst [vmem:[%s2579] sm:%s4] %v2577
    %s2581 = smul.addr 4, 94
    %s2582 = scalar_lea.vmem %s0, %s2581
    %s2583 = sshrl.u32 %s4, 1
    %s2584 = sor.u32 %s4, %s2583
    %s2585 = sand.u32 %s2584, 85
    %s2586 = sshrl.u32 %s2585, 1
    %s2587 = sor.u32 %s2585, %s2586
    %s2588 = sand.u32 51, %s2587
    %s2589 = sshrl.u32 %s2588, 2
    %s2590 = sor.u32 %s2588, %s2589
    %s2591 = sand.u32 15, %s2590
    %v2592 = vld [vmem:[%s2582] sm:%s2591]
    %v2593 = vunpack.c.l.bf16 %v2592
    %v2594 = vunpack.c.h.bf16 %v2592
    %s2595 = scalar_lea.vmem [#allocation1], 752
    %2596 = vst [vmem:[%s2595] sm:%s4] %v2593
    %s2597 = smul.addr 4, 93
    %s2598 = scalar_lea.vmem %s0, %s2597
    %s2599 = sshrl.u32 %s4, 1
    %s2600 = sor.u32 %s4, %s2599
    %s2601 = sand.u32 %s2600, 85
    %s2602 = sshrl.u32 %s2601, 1
    %s2603 = sor.u32 %s2601, %s2602
    %s2604 = sand.u32 51, %s2603
    %s2605 = sshrl.u32 %s2604, 2
    %s2606 = sor.u32 %s2604, %s2605
    %s2607 = sand.u32 15, %s2606
    %v2608 = vld [vmem:[%s2598] sm:%s2607]
    %v2609 = vunpack.c.l.bf16 %v2608
    %v2610 = vunpack.c.h.bf16 %v2608
    %s2611 = scalar_lea.vmem [#allocation1], 744
    %2612 = vst [vmem:[%s2611] sm:%s4] %v2609
    %s2613 = smul.addr 4, 92
    %s2614 = scalar_lea.vmem %s0, %s2613
    %s2615 = sshrl.u32 %s4, 1
    %s2616 = sor.u32 %s4, %s2615
    %s2617 = sand.u32 %s2616, 85
    %s2618 = sshrl.u32 %s2617, 1
    %s2619 = sor.u32 %s2617, %s2618
    %s2620 = sand.u32 51, %s2619
    %s2621 = sshrl.u32 %s2620, 2
    %s2622 = sor.u32 %s2620, %s2621
    %s2623 = sand.u32 15, %s2622
    %v2624 = vld [vmem:[%s2614] sm:%s2623]
    %v2625 = vunpack.c.l.bf16 %v2624
    %v2626 = vunpack.c.h.bf16 %v2624
    %s2627 = scalar_lea.vmem [#allocation1], 736
    %2628 = vst [vmem:[%s2627] sm:%s4] %v2625
    %s2629 = smul.addr 4, 91
    %s2630 = scalar_lea.vmem %s0, %s2629
    %s2631 = sshrl.u32 %s4, 1
    %s2632 = sor.u32 %s4, %s2631
    %s2633 = sand.u32 %s2632, 85
    %s2634 = sshrl.u32 %s2633, 1
    %s2635 = sor.u32 %s2633, %s2634
    %s2636 = sand.u32 51, %s2635
    %s2637 = sshrl.u32 %s2636, 2
    %s2638 = sor.u32 %s2636, %s2637
    %s2639 = sand.u32 15, %s2638
    %v2640 = vld [vmem:[%s2630] sm:%s2639]
    %v2641 = vunpack.c.l.bf16 %v2640
    %v2642 = vunpack.c.h.bf16 %v2640
    %s2643 = scalar_lea.vmem [#allocation1], 728
    %2644 = vst [vmem:[%s2643] sm:%s4] %v2641
    %s2645 = smul.addr 4, 90
    %s2646 = scalar_lea.vmem %s0, %s2645
    %s2647 = sshrl.u32 %s4, 1
    %s2648 = sor.u32 %s4, %s2647
    %s2649 = sand.u32 %s2648, 85
    %s2650 = sshrl.u32 %s2649, 1
    %s2651 = sor.u32 %s2649, %s2650
    %s2652 = sand.u32 51, %s2651
    %s2653 = sshrl.u32 %s2652, 2
    %s2654 = sor.u32 %s2652, %s2653
    %s2655 = sand.u32 15, %s2654
    %v2656 = vld [vmem:[%s2646] sm:%s2655]
    %v2657 = vunpack.c.l.bf16 %v2656
    %v2658 = vunpack.c.h.bf16 %v2656
    %s2659 = scalar_lea.vmem [#allocation1], 720
    %2660 = vst [vmem:[%s2659] sm:%s4] %v2657
    %s2661 = smul.addr 4, 89
    %s2662 = scalar_lea.vmem %s0, %s2661
    %s2663 = sshrl.u32 %s4, 1
    %s2664 = sor.u32 %s4, %s2663
    %s2665 = sand.u32 %s2664, 85
    %s2666 = sshrl.u32 %s2665, 1
    %s2667 = sor.u32 %s2665, %s2666
    %s2668 = sand.u32 51, %s2667
    %s2669 = sshrl.u32 %s2668, 2
    %s2670 = sor.u32 %s2668, %s2669
    %s2671 = sand.u32 15, %s2670
    %v2672 = vld [vmem:[%s2662] sm:%s2671]
    %v2673 = vunpack.c.l.bf16 %v2672
    %v2674 = vunpack.c.h.bf16 %v2672
    %s2675 = scalar_lea.vmem [#allocation1], 712
    %2676 = vst [vmem:[%s2675] sm:%s4] %v2673
    %s2677 = smul.addr 4, 88
    %s2678 = scalar_lea.vmem %s0, %s2677
    %s2679 = sshrl.u32 %s4, 1
    %s2680 = sor.u32 %s4, %s2679
    %s2681 = sand.u32 %s2680, 85
    %s2682 = sshrl.u32 %s2681, 1
    %s2683 = sor.u32 %s2681, %s2682
    %s2684 = sand.u32 51, %s2683
    %s2685 = sshrl.u32 %s2684, 2
    %s2686 = sor.u32 %s2684, %s2685
    %s2687 = sand.u32 15, %s2686
    %v2688 = vld [vmem:[%s2678] sm:%s2687]
    %v2689 = vunpack.c.l.bf16 %v2688
    %v2690 = vunpack.c.h.bf16 %v2688
    %s2691 = scalar_lea.vmem [#allocation1], 704
    %2692 = vst [vmem:[%s2691] sm:%s4] %v2689
    %s2693 = smul.addr 4, 87
    %s2694 = scalar_lea.vmem %s0, %s2693
    %s2695 = sshrl.u32 %s4, 1
    %s2696 = sor.u32 %s4, %s2695
    %s2697 = sand.u32 %s2696, 85
    %s2698 = sshrl.u32 %s2697, 1
    %s2699 = sor.u32 %s2697, %s2698
    %s2700 = sand.u32 51, %s2699
    %s2701 = sshrl.u32 %s2700, 2
    %s2702 = sor.u32 %s2700, %s2701
    %s2703 = sand.u32 15, %s2702
    %v2704 = vld [vmem:[%s2694] sm:%s2703]
    %v2705 = vunpack.c.l.bf16 %v2704
    %v2706 = vunpack.c.h.bf16 %v2704
    %s2707 = scalar_lea.vmem [#allocation1], 696
    %2708 = vst [vmem:[%s2707] sm:%s4] %v2705
    %s2709 = smul.addr 4, 86
    %s2710 = scalar_lea.vmem %s0, %s2709
    %s2711 = sshrl.u32 %s4, 1
    %s2712 = sor.u32 %s4, %s2711
    %s2713 = sand.u32 %s2712, 85
    %s2714 = sshrl.u32 %s2713, 1
    %s2715 = sor.u32 %s2713, %s2714
    %s2716 = sand.u32 51, %s2715
    %s2717 = sshrl.u32 %s2716, 2
    %s2718 = sor.u32 %s2716, %s2717
    %s2719 = sand.u32 15, %s2718
    %v2720 = vld [vmem:[%s2710] sm:%s2719]
    %v2721 = vunpack.c.l.bf16 %v2720
    %v2722 = vunpack.c.h.bf16 %v2720
    %s2723 = scalar_lea.vmem [#allocation1], 688
    %2724 = vst [vmem:[%s2723] sm:%s4] %v2721
    %s2725 = smul.addr 4, 85
    %s2726 = scalar_lea.vmem %s0, %s2725
    %s2727 = sshrl.u32 %s4, 1
    %s2728 = sor.u32 %s4, %s2727
    %s2729 = sand.u32 %s2728, 85
    %s2730 = sshrl.u32 %s2729, 1
    %s2731 = sor.u32 %s2729, %s2730
    %s2732 = sand.u32 51, %s2731
    %s2733 = sshrl.u32 %s2732, 2
    %s2734 = sor.u32 %s2732, %s2733
    %s2735 = sand.u32 15, %s2734
    %v2736 = vld [vmem:[%s2726] sm:%s2735]
    %v2737 = vunpack.c.l.bf16 %v2736
    %v2738 = vunpack.c.h.bf16 %v2736
    %s2739 = scalar_lea.vmem [#allocation1], 680
    %2740 = vst [vmem:[%s2739] sm:%s4] %v2737
    %s2741 = smul.addr 4, 84
    %s2742 = scalar_lea.vmem %s0, %s2741
    %s2743 = sshrl.u32 %s4, 1
    %s2744 = sor.u32 %s4, %s2743
    %s2745 = sand.u32 %s2744, 85
    %s2746 = sshrl.u32 %s2745, 1
    %s2747 = sor.u32 %s2745, %s2746
    %s2748 = sand.u32 51, %s2747
    %s2749 = sshrl.u32 %s2748, 2
    %s2750 = sor.u32 %s2748, %s2749
    %s2751 = sand.u32 15, %s2750
    %v2752 = vld [vmem:[%s2742] sm:%s2751]
    %v2753 = vunpack.c.l.bf16 %v2752
    %v2754 = vunpack.c.h.bf16 %v2752
    %s2755 = scalar_lea.vmem [#allocation1], 672
    %2756 = vst [vmem:[%s2755] sm:%s4] %v2753
    %s2757 = smul.addr 4, 83
    %s2758 = scalar_lea.vmem %s0, %s2757
    %s2759 = sshrl.u32 %s4, 1
    %s2760 = sor.u32 %s4, %s2759
    %s2761 = sand.u32 %s2760, 85
    %s2762 = sshrl.u32 %s2761, 1
    %s2763 = sor.u32 %s2761, %s2762
    %s2764 = sand.u32 51, %s2763
    %s2765 = sshrl.u32 %s2764, 2
    %s2766 = sor.u32 %s2764, %s2765
    %s2767 = sand.u32 15, %s2766
    %v2768 = vld [vmem:[%s2758] sm:%s2767]
    %v2769 = vunpack.c.l.bf16 %v2768
    %v2770 = vunpack.c.h.bf16 %v2768
    %s2771 = scalar_lea.vmem [#allocation1], 664
    %2772 = vst [vmem:[%s2771] sm:%s4] %v2769
    %s2773 = smul.addr 4, 82
    %s2774 = scalar_lea.vmem %s0, %s2773
    %s2775 = sshrl.u32 %s4, 1
    %s2776 = sor.u32 %s4, %s2775
    %s2777 = sand.u32 %s2776, 85
    %s2778 = sshrl.u32 %s2777, 1
    %s2779 = sor.u32 %s2777, %s2778
    %s2780 = sand.u32 51, %s2779
    %s2781 = sshrl.u32 %s2780, 2
    %s2782 = sor.u32 %s2780, %s2781
    %s2783 = sand.u32 15, %s2782
    %v2784 = vld [vmem:[%s2774] sm:%s2783]
    %v2785 = vunpack.c.l.bf16 %v2784
    %v2786 = vunpack.c.h.bf16 %v2784
    %s2787 = scalar_lea.vmem [#allocation1], 656
    %2788 = vst [vmem:[%s2787] sm:%s4] %v2785
    %s2789 = smul.addr 4, 81
    %s2790 = scalar_lea.vmem %s0, %s2789
    %s2791 = sshrl.u32 %s4, 1
    %s2792 = sor.u32 %s4, %s2791
    %s2793 = sand.u32 %s2792, 85
    %s2794 = sshrl.u32 %s2793, 1
    %s2795 = sor.u32 %s2793, %s2794
    %s2796 = sand.u32 51, %s2795
    %s2797 = sshrl.u32 %s2796, 2
    %s2798 = sor.u32 %s2796, %s2797
    %s2799 = sand.u32 15, %s2798
    %v2800 = vld [vmem:[%s2790] sm:%s2799]
    %v2801 = vunpack.c.l.bf16 %v2800
    %v2802 = vunpack.c.h.bf16 %v2800
    %s2803 = scalar_lea.vmem [#allocation1], 648
    %2804 = vst [vmem:[%s2803] sm:%s4] %v2801
    %s2805 = smul.addr 4, 80
    %s2806 = scalar_lea.vmem %s0, %s2805
    %s2807 = sshrl.u32 %s4, 1
    %s2808 = sor.u32 %s4, %s2807
    %s2809 = sand.u32 %s2808, 85
    %s2810 = sshrl.u32 %s2809, 1
    %s2811 = sor.u32 %s2809, %s2810
    %s2812 = sand.u32 51, %s2811
    %s2813 = sshrl.u32 %s2812, 2
    %s2814 = sor.u32 %s2812, %s2813
    %s2815 = sand.u32 15, %s2814
    %v2816 = vld [vmem:[%s2806] sm:%s2815]
    %v2817 = vunpack.c.l.bf16 %v2816
    %v2818 = vunpack.c.h.bf16 %v2816
    %s2819 = scalar_lea.vmem [#allocation1], 640
    %2820 = vst [vmem:[%s2819] sm:%s4] %v2817
    %s2821 = smul.addr 4, 79
    %s2822 = scalar_lea.vmem %s0, %s2821
    %s2823 = sshrl.u32 %s4, 1
    %s2824 = sor.u32 %s4, %s2823
    %s2825 = sand.u32 %s2824, 85
    %s2826 = sshrl.u32 %s2825, 1
    %s2827 = sor.u32 %s2825, %s2826
    %s2828 = sand.u32 51, %s2827
    %s2829 = sshrl.u32 %s2828, 2
    %s2830 = sor.u32 %s2828, %s2829
    %s2831 = sand.u32 15, %s2830
    %v2832 = vld [vmem:[%s2822] sm:%s2831]
    %v2833 = vunpack.c.l.bf16 %v2832
    %v2834 = vunpack.c.h.bf16 %v2832
    %s2835 = scalar_lea.vmem [#allocation1], 632
    %2836 = vst [vmem:[%s2835] sm:%s4] %v2833
    %s2837 = smul.addr 4, 78
    %s2838 = scalar_lea.vmem %s0, %s2837
    %s2839 = sshrl.u32 %s4, 1
    %s2840 = sor.u32 %s4, %s2839
    %s2841 = sand.u32 %s2840, 85
    %s2842 = sshrl.u32 %s2841, 1
    %s2843 = sor.u32 %s2841, %s2842
    %s2844 = sand.u32 51, %s2843
    %s2845 = sshrl.u32 %s2844, 2
    %s2846 = sor.u32 %s2844, %s2845
    %s2847 = sand.u32 15, %s2846
    %v2848 = vld [vmem:[%s2838] sm:%s2847]
    %v2849 = vunpack.c.l.bf16 %v2848
    %v2850 = vunpack.c.h.bf16 %v2848
    %s2851 = scalar_lea.vmem [#allocation1], 624
    %2852 = vst [vmem:[%s2851] sm:%s4] %v2849
    %s2853 = smul.addr 4, 77
    %s2854 = scalar_lea.vmem %s0, %s2853
    %s2855 = sshrl.u32 %s4, 1
    %s2856 = sor.u32 %s4, %s2855
    %s2857 = sand.u32 %s2856, 85
    %s2858 = sshrl.u32 %s2857, 1
    %s2859 = sor.u32 %s2857, %s2858
    %s2860 = sand.u32 51, %s2859
    %s2861 = sshrl.u32 %s2860, 2
    %s2862 = sor.u32 %s2860, %s2861
    %s2863 = sand.u32 15, %s2862
    %v2864 = vld [vmem:[%s2854] sm:%s2863]
    %v2865 = vunpack.c.l.bf16 %v2864
    %v2866 = vunpack.c.h.bf16 %v2864
    %s2867 = scalar_lea.vmem [#allocation1], 616
    %2868 = vst [vmem:[%s2867] sm:%s4] %v2865
    %s2869 = smul.addr 4, 76
    %s2870 = scalar_lea.vmem %s0, %s2869
    %s2871 = sshrl.u32 %s4, 1
    %s2872 = sor.u32 %s4, %s2871
    %s2873 = sand.u32 %s2872, 85
    %s2874 = sshrl.u32 %s2873, 1
    %s2875 = sor.u32 %s2873, %s2874
    %s2876 = sand.u32 51, %s2875
    %s2877 = sshrl.u32 %s2876, 2
    %s2878 = sor.u32 %s2876, %s2877
    %s2879 = sand.u32 15, %s2878
    %v2880 = vld [vmem:[%s2870] sm:%s2879]
    %v2881 = vunpack.c.l.bf16 %v2880
    %v2882 = vunpack.c.h.bf16 %v2880
    %s2883 = scalar_lea.vmem [#allocation1], 608
    %2884 = vst [vmem:[%s2883] sm:%s4] %v2881
    %s2885 = smul.addr 4, 75
    %s2886 = scalar_lea.vmem %s0, %s2885
    %s2887 = sshrl.u32 %s4, 1
    %s2888 = sor.u32 %s4, %s2887
    %s2889 = sand.u32 %s2888, 85
    %s2890 = sshrl.u32 %s2889, 1
    %s2891 = sor.u32 %s2889, %s2890
    %s2892 = sand.u32 51, %s2891
    %s2893 = sshrl.u32 %s2892, 2
    %s2894 = sor.u32 %s2892, %s2893
    %s2895 = sand.u32 15, %s2894
    %v2896 = vld [vmem:[%s2886] sm:%s2895]
    %v2897 = vunpack.c.l.bf16 %v2896
    %v2898 = vunpack.c.h.bf16 %v2896
    %s2899 = scalar_lea.vmem [#allocation1], 600
    %2900 = vst [vmem:[%s2899] sm:%s4] %v2897
    %s2901 = smul.addr 4, 74
    %s2902 = scalar_lea.vmem %s0, %s2901
    %s2903 = sshrl.u32 %s4, 1
    %s2904 = sor.u32 %s4, %s2903
    %s2905 = sand.u32 %s2904, 85
    %s2906 = sshrl.u32 %s2905, 1
    %s2907 = sor.u32 %s2905, %s2906
    %s2908 = sand.u32 51, %s2907
    %s2909 = sshrl.u32 %s2908, 2
    %s2910 = sor.u32 %s2908, %s2909
    %s2911 = sand.u32 15, %s2910
    %v2912 = vld [vmem:[%s2902] sm:%s2911]
    %v2913 = vunpack.c.l.bf16 %v2912
    %v2914 = vunpack.c.h.bf16 %v2912
    %s2915 = scalar_lea.vmem [#allocation1], 592
    %2916 = vst [vmem:[%s2915] sm:%s4] %v2913
    %s2917 = smul.addr 4, 73
    %s2918 = scalar_lea.vmem %s0, %s2917
    %s2919 = sshrl.u32 %s4, 1
    %s2920 = sor.u32 %s4, %s2919
    %s2921 = sand.u32 %s2920, 85
    %s2922 = sshrl.u32 %s2921, 1
    %s2923 = sor.u32 %s2921, %s2922
    %s2924 = sand.u32 51, %s2923
    %s2925 = sshrl.u32 %s2924, 2
    %s2926 = sor.u32 %s2924, %s2925
    %s2927 = sand.u32 15, %s2926
    %v2928 = vld [vmem:[%s2918] sm:%s2927]
    %v2929 = vunpack.c.l.bf16 %v2928
    %v2930 = vunpack.c.h.bf16 %v2928
    %s2931 = scalar_lea.vmem [#allocation1], 584
    %2932 = vst [vmem:[%s2931] sm:%s4] %v2929
    %s2933 = smul.addr 4, 72
    %s2934 = scalar_lea.vmem %s0, %s2933
    %s2935 = sshrl.u32 %s4, 1
    %s2936 = sor.u32 %s4, %s2935
    %s2937 = sand.u32 %s2936, 85
    %s2938 = sshrl.u32 %s2937, 1
    %s2939 = sor.u32 %s2937, %s2938
    %s2940 = sand.u32 51, %s2939
    %s2941 = sshrl.u32 %s2940, 2
    %s2942 = sor.u32 %s2940, %s2941
    %s2943 = sand.u32 15, %s2942
    %v2944 = vld [vmem:[%s2934] sm:%s2943]
    %v2945 = vunpack.c.l.bf16 %v2944
    %v2946 = vunpack.c.h.bf16 %v2944
    %s2947 = scalar_lea.vmem [#allocation1], 576
    %2948 = vst [vmem:[%s2947] sm:%s4] %v2945
    %s2949 = smul.addr 4, 71
    %s2950 = scalar_lea.vmem %s0, %s2949
    %s2951 = sshrl.u32 %s4, 1
    %s2952 = sor.u32 %s4, %s2951
    %s2953 = sand.u32 %s2952, 85
    %s2954 = sshrl.u32 %s2953, 1
    %s2955 = sor.u32 %s2953, %s2954
    %s2956 = sand.u32 51, %s2955
    %s2957 = sshrl.u32 %s2956, 2
    %s2958 = sor.u32 %s2956, %s2957
    %s2959 = sand.u32 15, %s2958
    %v2960 = vld [vmem:[%s2950] sm:%s2959]
    %v2961 = vunpack.c.l.bf16 %v2960
    %v2962 = vunpack.c.h.bf16 %v2960
    %s2963 = scalar_lea.vmem [#allocation1], 568
    %2964 = vst [vmem:[%s2963] sm:%s4] %v2961
    %s2965 = smul.addr 4, 70
    %s2966 = scalar_lea.vmem %s0, %s2965
    %s2967 = sshrl.u32 %s4, 1
    %s2968 = sor.u32 %s4, %s2967
    %s2969 = sand.u32 %s2968, 85
    %s2970 = sshrl.u32 %s2969, 1
    %s2971 = sor.u32 %s2969, %s2970
    %s2972 = sand.u32 51, %s2971
    %s2973 = sshrl.u32 %s2972, 2
    %s2974 = sor.u32 %s2972, %s2973
    %s2975 = sand.u32 15, %s2974
    %v2976 = vld [vmem:[%s2966] sm:%s2975]
    %v2977 = vunpack.c.l.bf16 %v2976
    %v2978 = vunpack.c.h.bf16 %v2976
    %s2979 = scalar_lea.vmem [#allocation1], 560
    %2980 = vst [vmem:[%s2979] sm:%s4] %v2977
    %s2981 = smul.addr 4, 69
    %s2982 = scalar_lea.vmem %s0, %s2981
    %s2983 = sshrl.u32 %s4, 1
    %s2984 = sor.u32 %s4, %s2983
    %s2985 = sand.u32 %s2984, 85
    %s2986 = sshrl.u32 %s2985, 1
    %s2987 = sor.u32 %s2985, %s2986
    %s2988 = sand.u32 51, %s2987
    %s2989 = sshrl.u32 %s2988, 2
    %s2990 = sor.u32 %s2988, %s2989
    %s2991 = sand.u32 15, %s2990
    %v2992 = vld [vmem:[%s2982] sm:%s2991]
    %v2993 = vunpack.c.l.bf16 %v2992
    %v2994 = vunpack.c.h.bf16 %v2992
    %s2995 = scalar_lea.vmem [#allocation1], 552
    %2996 = vst [vmem:[%s2995] sm:%s4] %v2993
    %s2997 = smul.addr 4, 68
    %s2998 = scalar_lea.vmem %s0, %s2997
    %s2999 = sshrl.u32 %s4, 1
    %s3000 = sor.u32 %s4, %s2999
    %s3001 = sand.u32 %s3000, 85
    %s3002 = sshrl.u32 %s3001, 1
    %s3003 = sor.u32 %s3001, %s3002
    %s3004 = sand.u32 51, %s3003
    %s3005 = sshrl.u32 %s3004, 2
    %s3006 = sor.u32 %s3004, %s3005
    %s3007 = sand.u32 15, %s3006
    %v3008 = vld [vmem:[%s2998] sm:%s3007]
    %v3009 = vunpack.c.l.bf16 %v3008
    %v3010 = vunpack.c.h.bf16 %v3008
    %s3011 = scalar_lea.vmem [#allocation1], 544
    %3012 = vst [vmem:[%s3011] sm:%s4] %v3009
    %s3013 = smul.addr 4, 67
    %s3014 = scalar_lea.vmem %s0, %s3013
    %s3015 = sshrl.u32 %s4, 1
    %s3016 = sor.u32 %s4, %s3015
    %s3017 = sand.u32 %s3016, 85
    %s3018 = sshrl.u32 %s3017, 1
    %s3019 = sor.u32 %s3017, %s3018
    %s3020 = sand.u32 51, %s3019
    %s3021 = sshrl.u32 %s3020, 2
    %s3022 = sor.u32 %s3020, %s3021
    %s3023 = sand.u32 15, %s3022
    %v3024 = vld [vmem:[%s3014] sm:%s3023]
    %v3025 = vunpack.c.l.bf16 %v3024
    %v3026 = vunpack.c.h.bf16 %v3024
    %s3027 = scalar_lea.vmem [#allocation1], 536
    %3028 = vst [vmem:[%s3027] sm:%s4] %v3025
    %s3029 = smul.addr 4, 66
    %s3030 = scalar_lea.vmem %s0, %s3029
    %s3031 = sshrl.u32 %s4, 1
    %s3032 = sor.u32 %s4, %s3031
    %s3033 = sand.u32 %s3032, 85
    %s3034 = sshrl.u32 %s3033, 1
    %s3035 = sor.u32 %s3033, %s3034
    %s3036 = sand.u32 51, %s3035
    %s3037 = sshrl.u32 %s3036, 2
    %s3038 = sor.u32 %s3036, %s3037
    %s3039 = sand.u32 15, %s3038
    %v3040 = vld [vmem:[%s3030] sm:%s3039]
    %v3041 = vunpack.c.l.bf16 %v3040
    %v3042 = vunpack.c.h.bf16 %v3040
    %s3043 = scalar_lea.vmem [#allocation1], 528
    %3044 = vst [vmem:[%s3043] sm:%s4] %v3041
    %s3045 = smul.addr 4, 65
    %s3046 = scalar_lea.vmem %s0, %s3045
    %s3047 = sshrl.u32 %s4, 1
    %s3048 = sor.u32 %s4, %s3047
    %s3049 = sand.u32 %s3048, 85
    %s3050 = sshrl.u32 %s3049, 1
    %s3051 = sor.u32 %s3049, %s3050
    %s3052 = sand.u32 51, %s3051
    %s3053 = sshrl.u32 %s3052, 2
    %s3054 = sor.u32 %s3052, %s3053
    %s3055 = sand.u32 15, %s3054
    %v3056 = vld [vmem:[%s3046] sm:%s3055]
    %v3057 = vunpack.c.l.bf16 %v3056
    %v3058 = vunpack.c.h.bf16 %v3056
    %s3059 = scalar_lea.vmem [#allocation1], 520
    %3060 = vst [vmem:[%s3059] sm:%s4] %v3057
    %s3061 = smul.addr 4, 64
    %s3062 = scalar_lea.vmem %s0, %s3061
    %s3063 = sshrl.u32 %s4, 1
    %s3064 = sor.u32 %s4, %s3063
    %s3065 = sand.u32 %s3064, 85
    %s3066 = sshrl.u32 %s3065, 1
    %s3067 = sor.u32 %s3065, %s3066
    %s3068 = sand.u32 51, %s3067
    %s3069 = sshrl.u32 %s3068, 2
    %s3070 = sor.u32 %s3068, %s3069
    %s3071 = sand.u32 15, %s3070
    %v3072 = vld [vmem:[%s3062] sm:%s3071]
    %v3073 = vunpack.c.l.bf16 %v3072
    %v3074 = vunpack.c.h.bf16 %v3072
    %s3075 = scalar_lea.vmem [#allocation1], 512
    %3076 = vst [vmem:[%s3075] sm:%s4] %v3073
    %s3077 = smul.addr 4, 63
    %s3078 = scalar_lea.vmem %s0, %s3077
    %s3079 = sshrl.u32 %s4, 1
    %s3080 = sor.u32 %s4, %s3079
    %s3081 = sand.u32 %s3080, 85
    %s3082 = sshrl.u32 %s3081, 1
    %s3083 = sor.u32 %s3081, %s3082
    %s3084 = sand.u32 51, %s3083
    %s3085 = sshrl.u32 %s3084, 2
    %s3086 = sor.u32 %s3084, %s3085
    %s3087 = sand.u32 15, %s3086
    %v3088 = vld [vmem:[%s3078] sm:%s3087]
    %v3089 = vunpack.c.l.bf16 %v3088
    %v3090 = vunpack.c.h.bf16 %v3088
    %s3091 = scalar_lea.vmem [#allocation1], 504
    %3092 = vst [vmem:[%s3091] sm:%s4] %v3089
    %s3093 = smul.addr 4, 62
    %s3094 = scalar_lea.vmem %s0, %s3093
    %s3095 = sshrl.u32 %s4, 1
    %s3096 = sor.u32 %s4, %s3095
    %s3097 = sand.u32 %s3096, 85
    %s3098 = sshrl.u32 %s3097, 1
    %s3099 = sor.u32 %s3097, %s3098
    %s3100 = sand.u32 51, %s3099
    %s3101 = sshrl.u32 %s3100, 2
    %s3102 = sor.u32 %s3100, %s3101
    %s3103 = sand.u32 15, %s3102
    %v3104 = vld [vmem:[%s3094] sm:%s3103]
    %v3105 = vunpack.c.l.bf16 %v3104
    %v3106 = vunpack.c.h.bf16 %v3104
    %s3107 = scalar_lea.vmem [#allocation1], 496
    %3108 = vst [vmem:[%s3107] sm:%s4] %v3105
    %s3109 = smul.addr 4, 61
    %s3110 = scalar_lea.vmem %s0, %s3109
    %s3111 = sshrl.u32 %s4, 1
    %s3112 = sor.u32 %s4, %s3111
    %s3113 = sand.u32 %s3112, 85
    %s3114 = sshrl.u32 %s3113, 1
    %s3115 = sor.u32 %s3113, %s3114
    %s3116 = sand.u32 51, %s3115
    %s3117 = sshrl.u32 %s3116, 2
    %s3118 = sor.u32 %s3116, %s3117
    %s3119 = sand.u32 15, %s3118
    %v3120 = vld [vmem:[%s3110] sm:%s3119]
    %v3121 = vunpack.c.l.bf16 %v3120
    %v3122 = vunpack.c.h.bf16 %v3120
    %s3123 = scalar_lea.vmem [#allocation1], 488
    %3124 = vst [vmem:[%s3123] sm:%s4] %v3121
    %s3125 = smul.addr 4, 60
    %s3126 = scalar_lea.vmem %s0, %s3125
    %s3127 = sshrl.u32 %s4, 1
    %s3128 = sor.u32 %s4, %s3127
    %s3129 = sand.u32 %s3128, 85
    %s3130 = sshrl.u32 %s3129, 1
    %s3131 = sor.u32 %s3129, %s3130
    %s3132 = sand.u32 51, %s3131
    %s3133 = sshrl.u32 %s3132, 2
    %s3134 = sor.u32 %s3132, %s3133
    %s3135 = sand.u32 15, %s3134
    %v3136 = vld [vmem:[%s3126] sm:%s3135]
    %v3137 = vunpack.c.l.bf16 %v3136
    %v3138 = vunpack.c.h.bf16 %v3136
    %s3139 = scalar_lea.vmem [#allocation1], 480
    %3140 = vst [vmem:[%s3139] sm:%s4] %v3137
    %s3141 = smul.addr 4, 59
    %s3142 = scalar_lea.vmem %s0, %s3141
    %s3143 = sshrl.u32 %s4, 1
    %s3144 = sor.u32 %s4, %s3143
    %s3145 = sand.u32 %s3144, 85
    %s3146 = sshrl.u32 %s3145, 1
    %s3147 = sor.u32 %s3145, %s3146
    %s3148 = sand.u32 51, %s3147
    %s3149 = sshrl.u32 %s3148, 2
    %s3150 = sor.u32 %s3148, %s3149
    %s3151 = sand.u32 15, %s3150
    %v3152 = vld [vmem:[%s3142] sm:%s3151]
    %v3153 = vunpack.c.l.bf16 %v3152
    %v3154 = vunpack.c.h.bf16 %v3152
    %s3155 = scalar_lea.vmem [#allocation1], 472
    %3156 = vst [vmem:[%s3155] sm:%s4] %v3153
    %s3157 = smul.addr 4, 58
    %s3158 = scalar_lea.vmem %s0, %s3157
    %s3159 = sshrl.u32 %s4, 1
    %s3160 = sor.u32 %s4, %s3159
    %s3161 = sand.u32 %s3160, 85
    %s3162 = sshrl.u32 %s3161, 1
    %s3163 = sor.u32 %s3161, %s3162
    %s3164 = sand.u32 51, %s3163
    %s3165 = sshrl.u32 %s3164, 2
    %s3166 = sor.u32 %s3164, %s3165
    %s3167 = sand.u32 15, %s3166
    %v3168 = vld [vmem:[%s3158] sm:%s3167]
    %v3169 = vunpack.c.l.bf16 %v3168
    %v3170 = vunpack.c.h.bf16 %v3168
    %s3171 = scalar_lea.vmem [#allocation1], 464
    %3172 = vst [vmem:[%s3171] sm:%s4] %v3169
    %s3173 = smul.addr 4, 57
    %s3174 = scalar_lea.vmem %s0, %s3173
    %s3175 = sshrl.u32 %s4, 1
    %s3176 = sor.u32 %s4, %s3175
    %s3177 = sand.u32 %s3176, 85
    %s3178 = sshrl.u32 %s3177, 1
    %s3179 = sor.u32 %s3177, %s3178
    %s3180 = sand.u32 51, %s3179
    %s3181 = sshrl.u32 %s3180, 2
    %s3182 = sor.u32 %s3180, %s3181
    %s3183 = sand.u32 15, %s3182
    %v3184 = vld [vmem:[%s3174] sm:%s3183]
    %v3185 = vunpack.c.l.bf16 %v3184
    %v3186 = vunpack.c.h.bf16 %v3184
    %s3187 = scalar_lea.vmem [#allocation1], 456
    %3188 = vst [vmem:[%s3187] sm:%s4] %v3185
    %s3189 = smul.addr 4, 56
    %s3190 = scalar_lea.vmem %s0, %s3189
    %s3191 = sshrl.u32 %s4, 1
    %s3192 = sor.u32 %s4, %s3191
    %s3193 = sand.u32 %s3192, 85
    %s3194 = sshrl.u32 %s3193, 1
    %s3195 = sor.u32 %s3193, %s3194
    %s3196 = sand.u32 51, %s3195
    %s3197 = sshrl.u32 %s3196, 2
    %s3198 = sor.u32 %s3196, %s3197
    %s3199 = sand.u32 15, %s3198
    %v3200 = vld [vmem:[%s3190] sm:%s3199]
    %v3201 = vunpack.c.l.bf16 %v3200
    %v3202 = vunpack.c.h.bf16 %v3200
    %s3203 = scalar_lea.vmem [#allocation1], 448
    %3204 = vst [vmem:[%s3203] sm:%s4] %v3201
    %s3205 = smul.addr 4, 55
    %s3206 = scalar_lea.vmem %s0, %s3205
    %s3207 = sshrl.u32 %s4, 1
    %s3208 = sor.u32 %s4, %s3207
    %s3209 = sand.u32 %s3208, 85
    %s3210 = sshrl.u32 %s3209, 1
    %s3211 = sor.u32 %s3209, %s3210
    %s3212 = sand.u32 51, %s3211
    %s3213 = sshrl.u32 %s3212, 2
    %s3214 = sor.u32 %s3212, %s3213
    %s3215 = sand.u32 15, %s3214
    %v3216 = vld [vmem:[%s3206] sm:%s3215]
    %v3217 = vunpack.c.l.bf16 %v3216
    %v3218 = vunpack.c.h.bf16 %v3216
    %s3219 = scalar_lea.vmem [#allocation1], 440
    %3220 = vst [vmem:[%s3219] sm:%s4] %v3217
    %s3221 = smul.addr 4, 54
    %s3222 = scalar_lea.vmem %s0, %s3221
    %s3223 = sshrl.u32 %s4, 1
    %s3224 = sor.u32 %s4, %s3223
    %s3225 = sand.u32 %s3224, 85
    %s3226 = sshrl.u32 %s3225, 1
    %s3227 = sor.u32 %s3225, %s3226
    %s3228 = sand.u32 51, %s3227
    %s3229 = sshrl.u32 %s3228, 2
    %s3230 = sor.u32 %s3228, %s3229
    %s3231 = sand.u32 15, %s3230
    %v3232 = vld [vmem:[%s3222] sm:%s3231]
    %v3233 = vunpack.c.l.bf16 %v3232
    %v3234 = vunpack.c.h.bf16 %v3232
    %s3235 = scalar_lea.vmem [#allocation1], 432
    %3236 = vst [vmem:[%s3235] sm:%s4] %v3233
    %s3237 = smul.addr 4, 53
    %s3238 = scalar_lea.vmem %s0, %s3237
    %s3239 = sshrl.u32 %s4, 1
    %s3240 = sor.u32 %s4, %s3239
    %s3241 = sand.u32 %s3240, 85
    %s3242 = sshrl.u32 %s3241, 1
    %s3243 = sor.u32 %s3241, %s3242
    %s3244 = sand.u32 51, %s3243
    %s3245 = sshrl.u32 %s3244, 2
    %s3246 = sor.u32 %s3244, %s3245
    %s3247 = sand.u32 15, %s3246
    %v3248 = vld [vmem:[%s3238] sm:%s3247]
    %v3249 = vunpack.c.l.bf16 %v3248
    %v3250 = vunpack.c.h.bf16 %v3248
    %s3251 = scalar_lea.vmem [#allocation1], 424
    %3252 = vst [vmem:[%s3251] sm:%s4] %v3249
    %s3253 = smul.addr 4, 52
    %s3254 = scalar_lea.vmem %s0, %s3253
    %s3255 = sshrl.u32 %s4, 1
    %s3256 = sor.u32 %s4, %s3255
    %s3257 = sand.u32 %s3256, 85
    %s3258 = sshrl.u32 %s3257, 1
    %s3259 = sor.u32 %s3257, %s3258
    %s3260 = sand.u32 51, %s3259
    %s3261 = sshrl.u32 %s3260, 2
    %s3262 = sor.u32 %s3260, %s3261
    %s3263 = sand.u32 15, %s3262
    %v3264 = vld [vmem:[%s3254] sm:%s3263]
    %v3265 = vunpack.c.l.bf16 %v3264
    %v3266 = vunpack.c.h.bf16 %v3264
    %s3267 = scalar_lea.vmem [#allocation1], 416
    %3268 = vst [vmem:[%s3267] sm:%s4] %v3265
    %s3269 = smul.addr 4, 51
    %s3270 = scalar_lea.vmem %s0, %s3269
    %s3271 = sshrl.u32 %s4, 1
    %s3272 = sor.u32 %s4, %s3271
    %s3273 = sand.u32 %s3272, 85
    %s3274 = sshrl.u32 %s3273, 1
    %s3275 = sor.u32 %s3273, %s3274
    %s3276 = sand.u32 51, %s3275
    %s3277 = sshrl.u32 %s3276, 2
    %s3278 = sor.u32 %s3276, %s3277
    %s3279 = sand.u32 15, %s3278
    %v3280 = vld [vmem:[%s3270] sm:%s3279]
    %v3281 = vunpack.c.l.bf16 %v3280
    %v3282 = vunpack.c.h.bf16 %v3280
    %s3283 = scalar_lea.vmem [#allocation1], 408
    %3284 = vst [vmem:[%s3283] sm:%s4] %v3281
    %s3285 = smul.addr 4, 50
    %s3286 = scalar_lea.vmem %s0, %s3285
    %s3287 = sshrl.u32 %s4, 1
    %s3288 = sor.u32 %s4, %s3287
    %s3289 = sand.u32 %s3288, 85
    %s3290 = sshrl.u32 %s3289, 1
    %s3291 = sor.u32 %s3289, %s3290
    %s3292 = sand.u32 51, %s3291
    %s3293 = sshrl.u32 %s3292, 2
    %s3294 = sor.u32 %s3292, %s3293
    %s3295 = sand.u32 15, %s3294
    %v3296 = vld [vmem:[%s3286] sm:%s3295]
    %v3297 = vunpack.c.l.bf16 %v3296
    %v3298 = vunpack.c.h.bf16 %v3296
    %s3299 = scalar_lea.vmem [#allocation1], 400
    %3300 = vst [vmem:[%s3299] sm:%s4] %v3297
    %s3301 = smul.addr 4, 49
    %s3302 = scalar_lea.vmem %s0, %s3301
    %s3303 = sshrl.u32 %s4, 1
    %s3304 = sor.u32 %s4, %s3303
    %s3305 = sand.u32 %s3304, 85
    %s3306 = sshrl.u32 %s3305, 1
    %s3307 = sor.u32 %s3305, %s3306
    %s3308 = sand.u32 51, %s3307
    %s3309 = sshrl.u32 %s3308, 2
    %s3310 = sor.u32 %s3308, %s3309
    %s3311 = sand.u32 15, %s3310
    %v3312 = vld [vmem:[%s3302] sm:%s3311]
    %v3313 = vunpack.c.l.bf16 %v3312
    %v3314 = vunpack.c.h.bf16 %v3312
    %s3315 = scalar_lea.vmem [#allocation1], 392
    %3316 = vst [vmem:[%s3315] sm:%s4] %v3313
    %s3317 = smul.addr 4, 48
    %s3318 = scalar_lea.vmem %s0, %s3317
    %s3319 = sshrl.u32 %s4, 1
    %s3320 = sor.u32 %s4, %s3319
    %s3321 = sand.u32 %s3320, 85
    %s3322 = sshrl.u32 %s3321, 1
    %s3323 = sor.u32 %s3321, %s3322
    %s3324 = sand.u32 51, %s3323
    %s3325 = sshrl.u32 %s3324, 2
    %s3326 = sor.u32 %s3324, %s3325
    %s3327 = sand.u32 15, %s3326
    %v3328 = vld [vmem:[%s3318] sm:%s3327]
    %v3329 = vunpack.c.l.bf16 %v3328
    %v3330 = vunpack.c.h.bf16 %v3328
    %s3331 = scalar_lea.vmem [#allocation1], 384
    %3332 = vst [vmem:[%s3331] sm:%s4] %v3329
    %s3333 = smul.addr 4, 47
    %s3334 = scalar_lea.vmem %s0, %s3333
    %s3335 = sshrl.u32 %s4, 1
    %s3336 = sor.u32 %s4, %s3335
    %s3337 = sand.u32 %s3336, 85
    %s3338 = sshrl.u32 %s3337, 1
    %s3339 = sor.u32 %s3337, %s3338
    %s3340 = sand.u32 51, %s3339
    %s3341 = sshrl.u32 %s3340, 2
    %s3342 = sor.u32 %s3340, %s3341
    %s3343 = sand.u32 15, %s3342
    %v3344 = vld [vmem:[%s3334] sm:%s3343]
    %v3345 = vunpack.c.l.bf16 %v3344
    %v3346 = vunpack.c.h.bf16 %v3344
    %s3347 = scalar_lea.vmem [#allocation1], 376
    %3348 = vst [vmem:[%s3347] sm:%s4] %v3345
    %s3349 = smul.addr 4, 46
    %s3350 = scalar_lea.vmem %s0, %s3349
    %s3351 = sshrl.u32 %s4, 1
    %s3352 = sor.u32 %s4, %s3351
    %s3353 = sand.u32 %s3352, 85
    %s3354 = sshrl.u32 %s3353, 1
    %s3355 = sor.u32 %s3353, %s3354
    %s3356 = sand.u32 51, %s3355
    %s3357 = sshrl.u32 %s3356, 2
    %s3358 = sor.u32 %s3356, %s3357
    %s3359 = sand.u32 15, %s3358
    %v3360 = vld [vmem:[%s3350] sm:%s3359]
    %v3361 = vunpack.c.l.bf16 %v3360
    %v3362 = vunpack.c.h.bf16 %v3360
    %s3363 = scalar_lea.vmem [#allocation1], 368
    %3364 = vst [vmem:[%s3363] sm:%s4] %v3361
    %s3365 = smul.addr 4, 45
    %s3366 = scalar_lea.vmem %s0, %s3365
    %s3367 = sshrl.u32 %s4, 1
    %s3368 = sor.u32 %s4, %s3367
    %s3369 = sand.u32 %s3368, 85
    %s3370 = sshrl.u32 %s3369, 1
    %s3371 = sor.u32 %s3369, %s3370
    %s3372 = sand.u32 51, %s3371
    %s3373 = sshrl.u32 %s3372, 2
    %s3374 = sor.u32 %s3372, %s3373
    %s3375 = sand.u32 15, %s3374
    %v3376 = vld [vmem:[%s3366] sm:%s3375]
    %v3377 = vunpack.c.l.bf16 %v3376
    %v3378 = vunpack.c.h.bf16 %v3376
    %s3379 = scalar_lea.vmem [#allocation1], 360
    %3380 = vst [vmem:[%s3379] sm:%s4] %v3377
    %s3381 = smul.addr 4, 44
    %s3382 = scalar_lea.vmem %s0, %s3381
    %s3383 = sshrl.u32 %s4, 1
    %s3384 = sor.u32 %s4, %s3383
    %s3385 = sand.u32 %s3384, 85
    %s3386 = sshrl.u32 %s3385, 1
    %s3387 = sor.u32 %s3385, %s3386
    %s3388 = sand.u32 51, %s3387
    %s3389 = sshrl.u32 %s3388, 2
    %s3390 = sor.u32 %s3388, %s3389
    %s3391 = sand.u32 15, %s3390
    %v3392 = vld [vmem:[%s3382] sm:%s3391]
    %v3393 = vunpack.c.l.bf16 %v3392
    %v3394 = vunpack.c.h.bf16 %v3392
    %s3395 = scalar_lea.vmem [#allocation1], 352
    %3396 = vst [vmem:[%s3395] sm:%s4] %v3393
    %s3397 = smul.addr 4, 43
    %s3398 = scalar_lea.vmem %s0, %s3397
    %s3399 = sshrl.u32 %s4, 1
    %s3400 = sor.u32 %s4, %s3399
    %s3401 = sand.u32 %s3400, 85
    %s3402 = sshrl.u32 %s3401, 1
    %s3403 = sor.u32 %s3401, %s3402
    %s3404 = sand.u32 51, %s3403
    %s3405 = sshrl.u32 %s3404, 2
    %s3406 = sor.u32 %s3404, %s3405
    %s3407 = sand.u32 15, %s3406
    %v3408 = vld [vmem:[%s3398] sm:%s3407]
    %v3409 = vunpack.c.l.bf16 %v3408
    %v3410 = vunpack.c.h.bf16 %v3408
    %s3411 = scalar_lea.vmem [#allocation1], 344
    %3412 = vst [vmem:[%s3411] sm:%s4] %v3409
    %s3413 = smul.addr 4, 42
    %s3414 = scalar_lea.vmem %s0, %s3413
    %s3415 = sshrl.u32 %s4, 1
    %s3416 = sor.u32 %s4, %s3415
    %s3417 = sand.u32 %s3416, 85
    %s3418 = sshrl.u32 %s3417, 1
    %s3419 = sor.u32 %s3417, %s3418
    %s3420 = sand.u32 51, %s3419
    %s3421 = sshrl.u32 %s3420, 2
    %s3422 = sor.u32 %s3420, %s3421
    %s3423 = sand.u32 15, %s3422
    %v3424 = vld [vmem:[%s3414] sm:%s3423]
    %v3425 = vunpack.c.l.bf16 %v3424
    %v3426 = vunpack.c.h.bf16 %v3424
    %s3427 = scalar_lea.vmem [#allocation1], 336
    %3428 = vst [vmem:[%s3427] sm:%s4] %v3425
    %s3429 = smul.addr 4, 41
    %s3430 = scalar_lea.vmem %s0, %s3429
    %s3431 = sshrl.u32 %s4, 1
    %s3432 = sor.u32 %s4, %s3431
    %s3433 = sand.u32 %s3432, 85
    %s3434 = sshrl.u32 %s3433, 1
    %s3435 = sor.u32 %s3433, %s3434
    %s3436 = sand.u32 51, %s3435
    %s3437 = sshrl.u32 %s3436, 2
    %s3438 = sor.u32 %s3436, %s3437
    %s3439 = sand.u32 15, %s3438
    %v3440 = vld [vmem:[%s3430] sm:%s3439]
    %v3441 = vunpack.c.l.bf16 %v3440
    %v3442 = vunpack.c.h.bf16 %v3440
    %s3443 = scalar_lea.vmem [#allocation1], 328
    %3444 = vst [vmem:[%s3443] sm:%s4] %v3441
    %s3445 = smul.addr 4, 40
    %s3446 = scalar_lea.vmem %s0, %s3445
    %s3447 = sshrl.u32 %s4, 1
    %s3448 = sor.u32 %s4, %s3447
    %s3449 = sand.u32 %s3448, 85
    %s3450 = sshrl.u32 %s3449, 1
    %s3451 = sor.u32 %s3449, %s3450
    %s3452 = sand.u32 51, %s3451
    %s3453 = sshrl.u32 %s3452, 2
    %s3454 = sor.u32 %s3452, %s3453
    %s3455 = sand.u32 15, %s3454
    %v3456 = vld [vmem:[%s3446] sm:%s3455]
    %v3457 = vunpack.c.l.bf16 %v3456
    %v3458 = vunpack.c.h.bf16 %v3456
    %s3459 = scalar_lea.vmem [#allocation1], 320
    %3460 = vst [vmem:[%s3459] sm:%s4] %v3457
    %s3461 = smul.addr 4, 39
    %s3462 = scalar_lea.vmem %s0, %s3461
    %s3463 = sshrl.u32 %s4, 1
    %s3464 = sor.u32 %s4, %s3463
    %s3465 = sand.u32 %s3464, 85
    %s3466 = sshrl.u32 %s3465, 1
    %s3467 = sor.u32 %s3465, %s3466
    %s3468 = sand.u32 51, %s3467
    %s3469 = sshrl.u32 %s3468, 2
    %s3470 = sor.u32 %s3468, %s3469
    %s3471 = sand.u32 15, %s3470
    %v3472 = vld [vmem:[%s3462] sm:%s3471]
    %v3473 = vunpack.c.l.bf16 %v3472
    %v3474 = vunpack.c.h.bf16 %v3472
    %s3475 = scalar_lea.vmem [#allocation1], 312
    %3476 = vst [vmem:[%s3475] sm:%s4] %v3473
    %s3477 = smul.addr 4, 38
    %s3478 = scalar_lea.vmem %s0, %s3477
    %s3479 = sshrl.u32 %s4, 1
    %s3480 = sor.u32 %s4, %s3479
    %s3481 = sand.u32 %s3480, 85
    %s3482 = sshrl.u32 %s3481, 1
    %s3483 = sor.u32 %s3481, %s3482
    %s3484 = sand.u32 51, %s3483
    %s3485 = sshrl.u32 %s3484, 2
    %s3486 = sor.u32 %s3484, %s3485
    %s3487 = sand.u32 15, %s3486
    %v3488 = vld [vmem:[%s3478] sm:%s3487]
    %v3489 = vunpack.c.l.bf16 %v3488
    %v3490 = vunpack.c.h.bf16 %v3488
    %s3491 = scalar_lea.vmem [#allocation1], 304
    %3492 = vst [vmem:[%s3491] sm:%s4] %v3489
    %s3493 = smul.addr 4, 37
    %s3494 = scalar_lea.vmem %s0, %s3493
    %s3495 = sshrl.u32 %s4, 1
    %s3496 = sor.u32 %s4, %s3495
    %s3497 = sand.u32 %s3496, 85
    %s3498 = sshrl.u32 %s3497, 1
    %s3499 = sor.u32 %s3497, %s3498
    %s3500 = sand.u32 51, %s3499
    %s3501 = sshrl.u32 %s3500, 2
    %s3502 = sor.u32 %s3500, %s3501
    %s3503 = sand.u32 15, %s3502
    %v3504 = vld [vmem:[%s3494] sm:%s3503]
    %v3505 = vunpack.c.l.bf16 %v3504
    %v3506 = vunpack.c.h.bf16 %v3504
    %s3507 = scalar_lea.vmem [#allocation1], 296
    %3508 = vst [vmem:[%s3507] sm:%s4] %v3505
    %s3509 = smul.addr 4, 36
    %s3510 = scalar_lea.vmem %s0, %s3509
    %s3511 = sshrl.u32 %s4, 1
    %s3512 = sor.u32 %s4, %s3511
    %s3513 = sand.u32 %s3512, 85
    %s3514 = sshrl.u32 %s3513, 1
    %s3515 = sor.u32 %s3513, %s3514
    %s3516 = sand.u32 51, %s3515
    %s3517 = sshrl.u32 %s3516, 2
    %s3518 = sor.u32 %s3516, %s3517
    %s3519 = sand.u32 15, %s3518
    %v3520 = vld [vmem:[%s3510] sm:%s3519]
    %v3521 = vunpack.c.l.bf16 %v3520
    %v3522 = vunpack.c.h.bf16 %v3520
    %s3523 = scalar_lea.vmem [#allocation1], 288
    %3524 = vst [vmem:[%s3523] sm:%s4] %v3521
    %s3525 = smul.addr 4, 35
    %s3526 = scalar_lea.vmem %s0, %s3525
    %s3527 = sshrl.u32 %s4, 1
    %s3528 = sor.u32 %s4, %s3527
    %s3529 = sand.u32 %s3528, 85
    %s3530 = sshrl.u32 %s3529, 1
    %s3531 = sor.u32 %s3529, %s3530
    %s3532 = sand.u32 51, %s3531
    %s3533 = sshrl.u32 %s3532, 2
    %s3534 = sor.u32 %s3532, %s3533
    %s3535 = sand.u32 15, %s3534
    %v3536 = vld [vmem:[%s3526] sm:%s3535]
    %v3537 = vunpack.c.l.bf16 %v3536
    %v3538 = vunpack.c.h.bf16 %v3536
    %s3539 = scalar_lea.vmem [#allocation1], 280
    %3540 = vst [vmem:[%s3539] sm:%s4] %v3537
    %s3541 = smul.addr 4, 34
    %s3542 = scalar_lea.vmem %s0, %s3541
    %s3543 = sshrl.u32 %s4, 1
    %s3544 = sor.u32 %s4, %s3543
    %s3545 = sand.u32 %s3544, 85
    %s3546 = sshrl.u32 %s3545, 1
    %s3547 = sor.u32 %s3545, %s3546
    %s3548 = sand.u32 51, %s3547
    %s3549 = sshrl.u32 %s3548, 2
    %s3550 = sor.u32 %s3548, %s3549
    %s3551 = sand.u32 15, %s3550
    %v3552 = vld [vmem:[%s3542] sm:%s3551]
    %v3553 = vunpack.c.l.bf16 %v3552
    %v3554 = vunpack.c.h.bf16 %v3552
    %s3555 = scalar_lea.vmem [#allocation1], 272
    %3556 = vst [vmem:[%s3555] sm:%s4] %v3553
    %s3557 = smul.addr 4, 33
    %s3558 = scalar_lea.vmem %s0, %s3557
    %s3559 = sshrl.u32 %s4, 1
    %s3560 = sor.u32 %s4, %s3559
    %s3561 = sand.u32 %s3560, 85
    %s3562 = sshrl.u32 %s3561, 1
    %s3563 = sor.u32 %s3561, %s3562
    %s3564 = sand.u32 51, %s3563
    %s3565 = sshrl.u32 %s3564, 2
    %s3566 = sor.u32 %s3564, %s3565
    %s3567 = sand.u32 15, %s3566
    %v3568 = vld [vmem:[%s3558] sm:%s3567]
    %v3569 = vunpack.c.l.bf16 %v3568
    %v3570 = vunpack.c.h.bf16 %v3568
    %s3571 = scalar_lea.vmem [#allocation1], 264
    %3572 = vst [vmem:[%s3571] sm:%s4] %v3569
    %s3573 = smul.addr 4, 32
    %s3574 = scalar_lea.vmem %s0, %s3573
    %s3575 = sshrl.u32 %s4, 1
    %s3576 = sor.u32 %s4, %s3575
    %s3577 = sand.u32 %s3576, 85
    %s3578 = sshrl.u32 %s3577, 1
    %s3579 = sor.u32 %s3577, %s3578
    %s3580 = sand.u32 51, %s3579
    %s3581 = sshrl.u32 %s3580, 2
    %s3582 = sor.u32 %s3580, %s3581
    %s3583 = sand.u32 15, %s3582
    %v3584 = vld [vmem:[%s3574] sm:%s3583]
    %v3585 = vunpack.c.l.bf16 %v3584
    %v3586 = vunpack.c.h.bf16 %v3584
    %s3587 = scalar_lea.vmem [#allocation1], 256
    %3588 = vst [vmem:[%s3587] sm:%s4] %v3585
    %s3589 = smul.addr 4, 31
    %s3590 = scalar_lea.vmem %s0, %s3589
    %s3591 = sshrl.u32 %s4, 1
    %s3592 = sor.u32 %s4, %s3591
    %s3593 = sand.u32 %s3592, 85
    %s3594 = sshrl.u32 %s3593, 1
    %s3595 = sor.u32 %s3593, %s3594
    %s3596 = sand.u32 51, %s3595
    %s3597 = sshrl.u32 %s3596, 2
    %s3598 = sor.u32 %s3596, %s3597
    %s3599 = sand.u32 15, %s3598
    %v3600 = vld [vmem:[%s3590] sm:%s3599]
    %v3601 = vunpack.c.l.bf16 %v3600
    %v3602 = vunpack.c.h.bf16 %v3600
    %s3603 = scalar_lea.vmem [#allocation1], 248
    %3604 = vst [vmem:[%s3603] sm:%s4] %v3601
    %s3605 = smul.addr 4, 30
    %s3606 = scalar_lea.vmem %s0, %s3605
    %s3607 = sshrl.u32 %s4, 1
    %s3608 = sor.u32 %s4, %s3607
    %s3609 = sand.u32 %s3608, 85
    %s3610 = sshrl.u32 %s3609, 1
    %s3611 = sor.u32 %s3609, %s3610
    %s3612 = sand.u32 51, %s3611
    %s3613 = sshrl.u32 %s3612, 2
    %s3614 = sor.u32 %s3612, %s3613
    %s3615 = sand.u32 15, %s3614
    %v3616 = vld [vmem:[%s3606] sm:%s3615]
    %v3617 = vunpack.c.l.bf16 %v3616
    %v3618 = vunpack.c.h.bf16 %v3616
    %s3619 = scalar_lea.vmem [#allocation1], 240
    %3620 = vst [vmem:[%s3619] sm:%s4] %v3617
    %s3621 = smul.addr 4, 29
    %s3622 = scalar_lea.vmem %s0, %s3621
    %s3623 = sshrl.u32 %s4, 1
    %s3624 = sor.u32 %s4, %s3623
    %s3625 = sand.u32 %s3624, 85
    %s3626 = sshrl.u32 %s3625, 1
    %s3627 = sor.u32 %s3625, %s3626
    %s3628 = sand.u32 51, %s3627
    %s3629 = sshrl.u32 %s3628, 2
    %s3630 = sor.u32 %s3628, %s3629
    %s3631 = sand.u32 15, %s3630
    %v3632 = vld [vmem:[%s3622] sm:%s3631]
    %v3633 = vunpack.c.l.bf16 %v3632
    %v3634 = vunpack.c.h.bf16 %v3632
    %s3635 = scalar_lea.vmem [#allocation1], 232
    %3636 = vst [vmem:[%s3635] sm:%s4] %v3633
    %s3637 = smul.addr 4, 28
    %s3638 = scalar_lea.vmem %s0, %s3637
    %s3639 = sshrl.u32 %s4, 1
    %s3640 = sor.u32 %s4, %s3639
    %s3641 = sand.u32 %s3640, 85
    %s3642 = sshrl.u32 %s3641, 1
    %s3643 = sor.u32 %s3641, %s3642
    %s3644 = sand.u32 51, %s3643
    %s3645 = sshrl.u32 %s3644, 2
    %s3646 = sor.u32 %s3644, %s3645
    %s3647 = sand.u32 15, %s3646
    %v3648 = vld [vmem:[%s3638] sm:%s3647]
    %v3649 = vunpack.c.l.bf16 %v3648
    %v3650 = vunpack.c.h.bf16 %v3648
    %s3651 = scalar_lea.vmem [#allocation1], 224
    %3652 = vst [vmem:[%s3651] sm:%s4] %v3649
    %s3653 = smul.addr 4, 27
    %s3654 = scalar_lea.vmem %s0, %s3653
    %s3655 = sshrl.u32 %s4, 1
    %s3656 = sor.u32 %s4, %s3655
    %s3657 = sand.u32 %s3656, 85
    %s3658 = sshrl.u32 %s3657, 1
    %s3659 = sor.u32 %s3657, %s3658
    %s3660 = sand.u32 51, %s3659
    %s3661 = sshrl.u32 %s3660, 2
    %s3662 = sor.u32 %s3660, %s3661
    %s3663 = sand.u32 15, %s3662
    %v3664 = vld [vmem:[%s3654] sm:%s3663]
    %v3665 = vunpack.c.l.bf16 %v3664
    %v3666 = vunpack.c.h.bf16 %v3664
    %s3667 = scalar_lea.vmem [#allocation1], 216
    %3668 = vst [vmem:[%s3667] sm:%s4] %v3665
    %s3669 = smul.addr 4, 26
    %s3670 = scalar_lea.vmem %s0, %s3669
    %s3671 = sshrl.u32 %s4, 1
    %s3672 = sor.u32 %s4, %s3671
    %s3673 = sand.u32 %s3672, 85
    %s3674 = sshrl.u32 %s3673, 1
    %s3675 = sor.u32 %s3673, %s3674
    %s3676 = sand.u32 51, %s3675
    %s3677 = sshrl.u32 %s3676, 2
    %s3678 = sor.u32 %s3676, %s3677
    %s3679 = sand.u32 15, %s3678
    %v3680 = vld [vmem:[%s3670] sm:%s3679]
    %v3681 = vunpack.c.l.bf16 %v3680
    %v3682 = vunpack.c.h.bf16 %v3680
    %s3683 = scalar_lea.vmem [#allocation1], 208
    %3684 = vst [vmem:[%s3683] sm:%s4] %v3681
    %s3685 = smul.addr 4, 25
    %s3686 = scalar_lea.vmem %s0, %s3685
    %s3687 = sshrl.u32 %s4, 1
    %s3688 = sor.u32 %s4, %s3687
    %s3689 = sand.u32 %s3688, 85
    %s3690 = sshrl.u32 %s3689, 1
    %s3691 = sor.u32 %s3689, %s3690
    %s3692 = sand.u32 51, %s3691
    %s3693 = sshrl.u32 %s3692, 2
    %s3694 = sor.u32 %s3692, %s3693
    %s3695 = sand.u32 15, %s3694
    %v3696 = vld [vmem:[%s3686] sm:%s3695]
    %v3697 = vunpack.c.l.bf16 %v3696
    %v3698 = vunpack.c.h.bf16 %v3696
    %s3699 = scalar_lea.vmem [#allocation1], 200
    %3700 = vst [vmem:[%s3699] sm:%s4] %v3697
    %s3701 = smul.addr 4, 24
    %s3702 = scalar_lea.vmem %s0, %s3701
    %s3703 = sshrl.u32 %s4, 1
    %s3704 = sor.u32 %s4, %s3703
    %s3705 = sand.u32 %s3704, 85
    %s3706 = sshrl.u32 %s3705, 1
    %s3707 = sor.u32 %s3705, %s3706
    %s3708 = sand.u32 51, %s3707
    %s3709 = sshrl.u32 %s3708, 2
    %s3710 = sor.u32 %s3708, %s3709
    %s3711 = sand.u32 15, %s3710
    %v3712 = vld [vmem:[%s3702] sm:%s3711]
    %v3713 = vunpack.c.l.bf16 %v3712
    %v3714 = vunpack.c.h.bf16 %v3712
    %s3715 = scalar_lea.vmem [#allocation1], 192
    %3716 = vst [vmem:[%s3715] sm:%s4] %v3713
    %s3717 = smul.addr 4, 23
    %s3718 = scalar_lea.vmem %s0, %s3717
    %s3719 = sshrl.u32 %s4, 1
    %s3720 = sor.u32 %s4, %s3719
    %s3721 = sand.u32 %s3720, 85
    %s3722 = sshrl.u32 %s3721, 1
    %s3723 = sor.u32 %s3721, %s3722
    %s3724 = sand.u32 51, %s3723
    %s3725 = sshrl.u32 %s3724, 2
    %s3726 = sor.u32 %s3724, %s3725
    %s3727 = sand.u32 15, %s3726
    %v3728 = vld [vmem:[%s3718] sm:%s3727]
    %v3729 = vunpack.c.l.bf16 %v3728
    %v3730 = vunpack.c.h.bf16 %v3728
    %s3731 = scalar_lea.vmem [#allocation1], 184
    %3732 = vst [vmem:[%s3731] sm:%s4] %v3729
    %s3733 = smul.addr 4, 22
    %s3734 = scalar_lea.vmem %s0, %s3733
    %s3735 = sshrl.u32 %s4, 1
    %s3736 = sor.u32 %s4, %s3735
    %s3737 = sand.u32 %s3736, 85
    %s3738 = sshrl.u32 %s3737, 1
    %s3739 = sor.u32 %s3737, %s3738
    %s3740 = sand.u32 51, %s3739
    %s3741 = sshrl.u32 %s3740, 2
    %s3742 = sor.u32 %s3740, %s3741
    %s3743 = sand.u32 15, %s3742
    %v3744 = vld [vmem:[%s3734] sm:%s3743]
    %v3745 = vunpack.c.l.bf16 %v3744
    %v3746 = vunpack.c.h.bf16 %v3744
    %s3747 = scalar_lea.vmem [#allocation1], 176
    %3748 = vst [vmem:[%s3747] sm:%s4] %v3745
    %s3749 = smul.addr 4, 21
    %s3750 = scalar_lea.vmem %s0, %s3749
    %s3751 = sshrl.u32 %s4, 1
    %s3752 = sor.u32 %s4, %s3751
    %s3753 = sand.u32 %s3752, 85
    %s3754 = sshrl.u32 %s3753, 1
    %s3755 = sor.u32 %s3753, %s3754
    %s3756 = sand.u32 51, %s3755
    %s3757 = sshrl.u32 %s3756, 2
    %s3758 = sor.u32 %s3756, %s3757
    %s3759 = sand.u32 15, %s3758
    %v3760 = vld [vmem:[%s3750] sm:%s3759]
    %v3761 = vunpack.c.l.bf16 %v3760
    %v3762 = vunpack.c.h.bf16 %v3760
    %s3763 = scalar_lea.vmem [#allocation1], 168
    %3764 = vst [vmem:[%s3763] sm:%s4] %v3761
    %s3765 = smul.addr 4, 20
    %s3766 = scalar_lea.vmem %s0, %s3765
    %s3767 = sshrl.u32 %s4, 1
    %s3768 = sor.u32 %s4, %s3767
    %s3769 = sand.u32 %s3768, 85
    %s3770 = sshrl.u32 %s3769, 1
    %s3771 = sor.u32 %s3769, %s3770
    %s3772 = sand.u32 51, %s3771
    %s3773 = sshrl.u32 %s3772, 2
    %s3774 = sor.u32 %s3772, %s3773
    %s3775 = sand.u32 15, %s3774
    %v3776 = vld [vmem:[%s3766] sm:%s3775]
    %v3777 = vunpack.c.l.bf16 %v3776
    %v3778 = vunpack.c.h.bf16 %v3776
    %s3779 = scalar_lea.vmem [#allocation1], 160
    %3780 = vst [vmem:[%s3779] sm:%s4] %v3777
    %s3781 = smul.addr 4, 19
    %s3782 = scalar_lea.vmem %s0, %s3781
    %s3783 = sshrl.u32 %s4, 1
    %s3784 = sor.u32 %s4, %s3783
    %s3785 = sand.u32 %s3784, 85
    %s3786 = sshrl.u32 %s3785, 1
    %s3787 = sor.u32 %s3785, %s3786
    %s3788 = sand.u32 51, %s3787
    %s3789 = sshrl.u32 %s3788, 2
    %s3790 = sor.u32 %s3788, %s3789
    %s3791 = sand.u32 15, %s3790
    %v3792 = vld [vmem:[%s3782] sm:%s3791]
    %v3793 = vunpack.c.l.bf16 %v3792
    %v3794 = vunpack.c.h.bf16 %v3792
    %s3795 = scalar_lea.vmem [#allocation1], 152
    %3796 = vst [vmem:[%s3795] sm:%s4] %v3793
    %s3797 = smul.addr 4, 18
    %s3798 = scalar_lea.vmem %s0, %s3797
    %s3799 = sshrl.u32 %s4, 1
    %s3800 = sor.u32 %s4, %s3799
    %s3801 = sand.u32 %s3800, 85
    %s3802 = sshrl.u32 %s3801, 1
    %s3803 = sor.u32 %s3801, %s3802
    %s3804 = sand.u32 51, %s3803
    %s3805 = sshrl.u32 %s3804, 2
    %s3806 = sor.u32 %s3804, %s3805
    %s3807 = sand.u32 15, %s3806
    %v3808 = vld [vmem:[%s3798] sm:%s3807]
    %v3809 = vunpack.c.l.bf16 %v3808
    %v3810 = vunpack.c.h.bf16 %v3808
    %s3811 = scalar_lea.vmem [#allocation1], 144
    %3812 = vst [vmem:[%s3811] sm:%s4] %v3809
    %s3813 = smul.addr 4, 17
    %s3814 = scalar_lea.vmem %s0, %s3813
    %s3815 = sshrl.u32 %s4, 1
    %s3816 = sor.u32 %s4, %s3815
    %s3817 = sand.u32 %s3816, 85
    %s3818 = sshrl.u32 %s3817, 1
    %s3819 = sor.u32 %s3817, %s3818
    %s3820 = sand.u32 51, %s3819
    %s3821 = sshrl.u32 %s3820, 2
    %s3822 = sor.u32 %s3820, %s3821
    %s3823 = sand.u32 15, %s3822
    %v3824 = vld [vmem:[%s3814] sm:%s3823]
    %v3825 = vunpack.c.l.bf16 %v3824
    %v3826 = vunpack.c.h.bf16 %v3824
    %s3827 = scalar_lea.vmem [#allocation1], 136
    %3828 = vst [vmem:[%s3827] sm:%s4] %v3825
    %s3829 = smul.addr 4, 16
    %s3830 = scalar_lea.vmem %s0, %s3829
    %s3831 = sshrl.u32 %s4, 1
    %s3832 = sor.u32 %s4, %s3831
    %s3833 = sand.u32 %s3832, 85
    %s3834 = sshrl.u32 %s3833, 1
    %s3835 = sor.u32 %s3833, %s3834
    %s3836 = sand.u32 51, %s3835
    %s3837 = sshrl.u32 %s3836, 2
    %s3838 = sor.u32 %s3836, %s3837
    %s3839 = sand.u32 15, %s3838
    %v3840 = vld [vmem:[%s3830] sm:%s3839]
    %v3841 = vunpack.c.l.bf16 %v3840
    %v3842 = vunpack.c.h.bf16 %v3840
    %s3843 = scalar_lea.vmem [#allocation1], 128
    %3844 = vst [vmem:[%s3843] sm:%s4] %v3841
    %s3845 = smul.addr 4, 15
    %s3846 = scalar_lea.vmem %s0, %s3845
    %s3847 = sshrl.u32 %s4, 1
    %s3848 = sor.u32 %s4, %s3847
    %s3849 = sand.u32 %s3848, 85
    %s3850 = sshrl.u32 %s3849, 1
    %s3851 = sor.u32 %s3849, %s3850
    %s3852 = sand.u32 51, %s3851
    %s3853 = sshrl.u32 %s3852, 2
    %s3854 = sor.u32 %s3852, %s3853
    %s3855 = sand.u32 15, %s3854
    %v3856 = vld [vmem:[%s3846] sm:%s3855]
    %v3857 = vunpack.c.l.bf16 %v3856
    %v3858 = vunpack.c.h.bf16 %v3856
    %s3859 = scalar_lea.vmem [#allocation1], 120
    %3860 = vst [vmem:[%s3859] sm:%s4] %v3857
    %s3861 = smul.addr 4, 14
    %s3862 = scalar_lea.vmem %s0, %s3861
    %s3863 = sshrl.u32 %s4, 1
    %s3864 = sor.u32 %s4, %s3863
    %s3865 = sand.u32 %s3864, 85
    %s3866 = sshrl.u32 %s3865, 1
    %s3867 = sor.u32 %s3865, %s3866
    %s3868 = sand.u32 51, %s3867
    %s3869 = sshrl.u32 %s3868, 2
    %s3870 = sor.u32 %s3868, %s3869
    %s3871 = sand.u32 15, %s3870
    %v3872 = vld [vmem:[%s3862] sm:%s3871]
    %v3873 = vunpack.c.l.bf16 %v3872
    %v3874 = vunpack.c.h.bf16 %v3872
    %s3875 = scalar_lea.vmem [#allocation1], 112
    %3876 = vst [vmem:[%s3875] sm:%s4] %v3873
    %s3877 = smul.addr 4, 13
    %s3878 = scalar_lea.vmem %s0, %s3877
    %s3879 = sshrl.u32 %s4, 1
    %s3880 = sor.u32 %s4, %s3879
    %s3881 = sand.u32 %s3880, 85
    %s3882 = sshrl.u32 %s3881, 1
    %s3883 = sor.u32 %s3881, %s3882
    %s3884 = sand.u32 51, %s3883
    %s3885 = sshrl.u32 %s3884, 2
    %s3886 = sor.u32 %s3884, %s3885
    %s3887 = sand.u32 15, %s3886
    %v3888 = vld [vmem:[%s3878] sm:%s3887]
    %v3889 = vunpack.c.l.bf16 %v3888
    %v3890 = vunpack.c.h.bf16 %v3888
    %s3891 = scalar_lea.vmem [#allocation1], 104
    %3892 = vst [vmem:[%s3891] sm:%s4] %v3889
    %s3893 = smul.addr 4, 12
    %s3894 = scalar_lea.vmem %s0, %s3893
    %s3895 = sshrl.u32 %s4, 1
    %s3896 = sor.u32 %s4, %s3895
    %s3897 = sand.u32 %s3896, 85
    %s3898 = sshrl.u32 %s3897, 1
    %s3899 = sor.u32 %s3897, %s3898
    %s3900 = sand.u32 51, %s3899
    %s3901 = sshrl.u32 %s3900, 2
    %s3902 = sor.u32 %s3900, %s3901
    %s3903 = sand.u32 15, %s3902
    %v3904 = vld [vmem:[%s3894] sm:%s3903]
    %v3905 = vunpack.c.l.bf16 %v3904
    %v3906 = vunpack.c.h.bf16 %v3904
    %s3907 = scalar_lea.vmem [#allocation1], 96
    %3908 = vst [vmem:[%s3907] sm:%s4] %v3905
    %s3909 = smul.addr 4, 11
    %s3910 = scalar_lea.vmem %s0, %s3909
    %s3911 = sshrl.u32 %s4, 1
    %s3912 = sor.u32 %s4, %s3911
    %s3913 = sand.u32 %s3912, 85
    %s3914 = sshrl.u32 %s3913, 1
    %s3915 = sor.u32 %s3913, %s3914
    %s3916 = sand.u32 51, %s3915
    %s3917 = sshrl.u32 %s3916, 2
    %s3918 = sor.u32 %s3916, %s3917
    %s3919 = sand.u32 15, %s3918
    %v3920 = vld [vmem:[%s3910] sm:%s3919]
    %v3921 = vunpack.c.l.bf16 %v3920
    %v3922 = vunpack.c.h.bf16 %v3920
    %s3923 = scalar_lea.vmem [#allocation1], 88
    %3924 = vst [vmem:[%s3923] sm:%s4] %v3921
    %s3925 = smul.addr 4, 10
    %s3926 = scalar_lea.vmem %s0, %s3925
    %s3927 = sshrl.u32 %s4, 1
    %s3928 = sor.u32 %s4, %s3927
    %s3929 = sand.u32 %s3928, 85
    %s3930 = sshrl.u32 %s3929, 1
    %s3931 = sor.u32 %s3929, %s3930
    %s3932 = sand.u32 51, %s3931
    %s3933 = sshrl.u32 %s3932, 2
    %s3934 = sor.u32 %s3932, %s3933
    %s3935 = sand.u32 15, %s3934
    %v3936 = vld [vmem:[%s3926] sm:%s3935]
    %v3937 = vunpack.c.l.bf16 %v3936
    %v3938 = vunpack.c.h.bf16 %v3936
    %s3939 = scalar_lea.vmem [#allocation1], 80
    %3940 = vst [vmem:[%s3939] sm:%s4] %v3937
    %s3941 = smul.addr 4, 9
    %s3942 = scalar_lea.vmem %s0, %s3941
    %s3943 = sshrl.u32 %s4, 1
    %s3944 = sor.u32 %s4, %s3943
    %s3945 = sand.u32 %s3944, 85
    %s3946 = sshrl.u32 %s3945, 1
    %s3947 = sor.u32 %s3945, %s3946
    %s3948 = sand.u32 51, %s3947
    %s3949 = sshrl.u32 %s3948, 2
    %s3950 = sor.u32 %s3948, %s3949
    %s3951 = sand.u32 15, %s3950
    %v3952 = vld [vmem:[%s3942] sm:%s3951]
    %v3953 = vunpack.c.l.bf16 %v3952
    %v3954 = vunpack.c.h.bf16 %v3952
    %s3955 = scalar_lea.vmem [#allocation1], 72
    %3956 = vst [vmem:[%s3955] sm:%s4] %v3953
    %s3957 = smul.addr 4, 8
    %s3958 = scalar_lea.vmem %s0, %s3957
    %s3959 = sshrl.u32 %s4, 1
    %s3960 = sor.u32 %s4, %s3959
    %s3961 = sand.u32 %s3960, 85
    %s3962 = sshrl.u32 %s3961, 1
    %s3963 = sor.u32 %s3961, %s3962
    %s3964 = sand.u32 51, %s3963
    %s3965 = sshrl.u32 %s3964, 2
    %s3966 = sor.u32 %s3964, %s3965
    %s3967 = sand.u32 15, %s3966
    %v3968 = vld [vmem:[%s3958] sm:%s3967]
    %v3969 = vunpack.c.l.bf16 %v3968
    %v3970 = vunpack.c.h.bf16 %v3968
    %s3971 = scalar_lea.vmem [#allocation1], 64
    %3972 = vst [vmem:[%s3971] sm:%s4] %v3969
    %s3973 = smul.addr 4, 7
    %s3974 = scalar_lea.vmem %s0, %s3973
    %s3975 = sshrl.u32 %s4, 1
    %s3976 = sor.u32 %s4, %s3975
    %s3977 = sand.u32 %s3976, 85
    %s3978 = sshrl.u32 %s3977, 1
    %s3979 = sor.u32 %s3977, %s3978
    %s3980 = sand.u32 51, %s3979
    %s3981 = sshrl.u32 %s3980, 2
    %s3982 = sor.u32 %s3980, %s3981
    %s3983 = sand.u32 15, %s3982
    %v3984 = vld [vmem:[%s3974] sm:%s3983]
    %v3985 = vunpack.c.l.bf16 %v3984
    %v3986 = vunpack.c.h.bf16 %v3984
    %s3987 = scalar_lea.vmem [#allocation1], 56
    %3988 = vst [vmem:[%s3987] sm:%s4] %v3985
    %s3989 = smul.addr 4, 6
    %s3990 = scalar_lea.vmem %s0, %s3989
    %s3991 = sshrl.u32 %s4, 1
    %s3992 = sor.u32 %s4, %s3991
    %s3993 = sand.u32 %s3992, 85
    %s3994 = sshrl.u32 %s3993, 1
    %s3995 = sor.u32 %s3993, %s3994
    %s3996 = sand.u32 51, %s3995
    %s3997 = sshrl.u32 %s3996, 2
    %s3998 = sor.u32 %s3996, %s3997
    %s3999 = sand.u32 15, %s3998
    %v4000 = vld [vmem:[%s3990] sm:%s3999]
    %v4001 = vunpack.c.l.bf16 %v4000
    %v4002 = vunpack.c.h.bf16 %v4000
    %s4003 = scalar_lea.vmem [#allocation1], 48
    %4004 = vst [vmem:[%s4003] sm:%s4] %v4001
    %s4005 = smul.addr 4, 5
    %s4006 = scalar_lea.vmem %s0, %s4005
    %s4007 = sshrl.u32 %s4, 1
    %s4008 = sor.u32 %s4, %s4007
    %s4009 = sand.u32 %s4008, 85
    %s4010 = sshrl.u32 %s4009, 1
    %s4011 = sor.u32 %s4009, %s4010
    %s4012 = sand.u32 51, %s4011
    %s4013 = sshrl.u32 %s4012, 2
    %s4014 = sor.u32 %s4012, %s4013
    %s4015 = sand.u32 15, %s4014
    %v4016 = vld [vmem:[%s4006] sm:%s4015]
    %v4017 = vunpack.c.l.bf16 %v4016
    %v4018 = vunpack.c.h.bf16 %v4016
    %s4019 = scalar_lea.vmem [#allocation1], 40
    %4020 = vst [vmem:[%s4019] sm:%s4] %v4017
    %s4021 = smul.addr 4, 4
    %s4022 = scalar_lea.vmem %s0, %s4021
    %s4023 = sshrl.u32 %s4, 1
    %s4024 = sor.u32 %s4, %s4023
    %s4025 = sand.u32 %s4024, 85
    %s4026 = sshrl.u32 %s4025, 1
    %s4027 = sor.u32 %s4025, %s4026
    %s4028 = sand.u32 51, %s4027
    %s4029 = sshrl.u32 %s4028, 2
    %s4030 = sor.u32 %s4028, %s4029
    %s4031 = sand.u32 15, %s4030
    %v4032 = vld [vmem:[%s4022] sm:%s4031]
    %v4033 = vunpack.c.l.bf16 %v4032
    %v4034 = vunpack.c.h.bf16 %v4032
    %s4035 = scalar_lea.vmem [#allocation1], 32
    %4036 = vst [vmem:[%s4035] sm:%s4] %v4033
    %s4037 = smul.addr 4, 3
    %s4038 = scalar_lea.vmem %s0, %s4037
    %s4039 = sshrl.u32 %s4, 1
    %s4040 = sor.u32 %s4, %s4039
    %s4041 = sand.u32 %s4040, 85
    %s4042 = sshrl.u32 %s4041, 1
    %s4043 = sor.u32 %s4041, %s4042
    %s4044 = sand.u32 51, %s4043
    %s4045 = sshrl.u32 %s4044, 2
    %s4046 = sor.u32 %s4044, %s4045
    %s4047 = sand.u32 15, %s4046
    %v4048 = vld [vmem:[%s4038] sm:%s4047]
    %v4049 = vunpack.c.l.bf16 %v4048
    %v4050 = vunpack.c.h.bf16 %v4048
    %s4051 = scalar_lea.vmem [#allocation1], 24
    %4052 = vst [vmem:[%s4051] sm:%s4] %v4049
    %s4053 = smul.addr 4, 2
    %s4054 = scalar_lea.vmem %s0, %s4053
    %s4055 = sshrl.u32 %s4, 1
    %s4056 = sor.u32 %s4, %s4055
    %s4057 = sand.u32 %s4056, 85
    %s4058 = sshrl.u32 %s4057, 1
    %s4059 = sor.u32 %s4057, %s4058
    %s4060 = sand.u32 51, %s4059
    %s4061 = sshrl.u32 %s4060, 2
    %s4062 = sor.u32 %s4060, %s4061
    %s4063 = sand.u32 15, %s4062
    %v4064 = vld [vmem:[%s4054] sm:%s4063]
    %v4065 = vunpack.c.l.bf16 %v4064
    %v4066 = vunpack.c.h.bf16 %v4064
    %s4067 = scalar_lea.vmem [#allocation1], 16
    %4068 = vst [vmem:[%s4067] sm:%s4] %v4065
    %s4069 = scalar_lea.vmem %s0, 4
    %s4070 = sshrl.u32 %s4, 1
    %s4071 = sor.u32 %s4, %s4070
    %s4072 = sand.u32 %s4071, 85
    %s4073 = sshrl.u32 %s4072, 1
    %s4074 = sor.u32 %s4072, %s4073
    %s4075 = sand.u32 51, %s4074
    %s4076 = sshrl.u32 %s4075, 2
    %s4077 = sor.u32 %s4075, %s4076
    %s4078 = sand.u32 15, %s4077
    %v4079 = vld [vmem:[%s4069] sm:%s4078]
    %v4080 = vunpack.c.l.bf16 %v4079
    %v4081 = vunpack.c.h.bf16 %v4079
    %s4082 = scalar_lea.vmem [#allocation1], 8
    %4083 = vst [vmem:[%s4082] sm:%s4] %v4080
    %s4084 = sshrl.u32 %s4, 1
    %s4085 = sor.u32 %s4, %s4084
    %s4086 = sand.u32 %s4085, 85
    %s4087 = sshrl.u32 %s4086, 1
    %s4088 = sor.u32 %s4086, %s4087
    %s4089 = sand.u32 51, %s4088
    %s4090 = sshrl.u32 %s4089, 2
    %s4091 = sor.u32 %s4089, %s4090
    %s4092 = sand.u32 15, %s4091
    %v4093 = vld [vmem:[%s0] sm:%s4092]
    %v4094 = vunpack.c.l.bf16 %v4093
    %v4095 = vunpack.c.h.bf16 %v4093
    %4096 = vst [vmem:[#allocation1] sm:%s4] %v4094
    %s4097 = smov 3
    %v4098 = vld [vmem:[#allocation1] ss:$16 sm:%s4097]
    %s4099 = smov 12
    %v4100 = vld [vmem:[#allocation1] ss:$16 sm:%s4099]
    %vm4101 = vcmask 1043458
    %v4102 = vsel %vm4101, %v4100, %v4098
    %s4103 = smov 48
    %v4104 = vld [vmem:[#allocation1] ss:$16 sm:%s4103]
    %vm4105 = vcmask 1045508
    %v4106 = vsel %vm4105, %v4104, %v4102
    %s4107 = smov 192
    %v4108 = vld [vmem:[#allocation1] ss:$16 sm:%s4107]
    %vm4109 = vcmask 1047558
    %v4110 = vsel %vm4109, %v4108, %v4106
    %vm4111 = vcmask 64512
    %4112 = vst.msk [vmem:[#allocation0] sm:$0xff] %vm4111, %v4110
    %s4113 = scalar_lea.vmem [#allocation1], 128
    %s4114 = smov 3
    %v4115 = vld [vmem:[%s4113] ss:$16 sm:%s4114]
    %s4116 = scalar_lea.vmem [#allocation1], 128
    %s4117 = smov 12
    %v4118 = vld [vmem:[%s4116] ss:$16 sm:%s4117]
    %vm4119 = vcmask 1043458
    %v4120 = vsel %vm4119, %v4118, %v4115
    %s4121 = scalar_lea.vmem [#allocation1], 128
    %s4122 = smov 48
    %v4123 = vld [vmem:[%s4121] ss:$16 sm:%s4122]
    %vm4124 = vcmask 1045508
    %v4125 = vsel %vm4124, %v4123, %v4120
    %s4126 = scalar_lea.vmem [#allocation1], 128
    %s4127 = smov 192
    %v4128 = vld [vmem:[%s4126] ss:$16 sm:%s4127]
    %vm4129 = vcmask 1047558
    %v4130 = vsel %vm4129, %v4128, %v4125
    %vm4131 = vcmask 64512
    %s4132 = scalar_lea.vmem [#allocation0], 8
    %4133 = vst.msk [vmem:[%s4132] sm:$0xff] %vm4131, %v4130
    %s4134 = scalar_lea.vmem [#allocation1], 256
    %s4135 = smov 3
    %v4136 = vld [vmem:[%s4134] ss:$16 sm:%s4135]
    %s4137 = scalar_lea.vmem [#allocation1], 256
    %s4138 = smov 12
    %v4139 = vld [vmem:[%s4137] ss:$16 sm:%s4138]
    %vm4140 = vcmask 1043458
    %v4141 = vsel %vm4140, %v4139, %v4136
    %s4142 = scalar_lea.vmem [#allocation1], 256
    %s4143 = smov 48
    %v4144 = vld [vmem:[%s4142] ss:$16 sm:%s4143]
    %vm4145 = vcmask 1045508
    %v4146 = vsel %vm4145, %v4144, %v4141
    %s4147 = scalar_lea.vmem [#allocation1], 256
    %s4148 = smov 192
    %v4149 = vld [vmem:[%s4147] ss:$16 sm:%s4148]
    %vm4150 = vcmask 1047558
    %v4151 = vsel %vm4150, %v4149, %v4146
    %vm4152 = vcmask 64512
    %s4153 = scalar_lea.vmem [#allocation0], 16
    %4154 = vst.msk [vmem:[%s4153] sm:$0xff] %vm4152, %v4151
    %s4155 = scalar_lea.vmem [#allocation1], 384
    %s4156 = smov 3
    %v4157 = vld [vmem:[%s4155] ss:$16 sm:%s4156]
    %s4158 = scalar_lea.vmem [#allocation1], 384
    %s4159 = smov 12
    %v4160 = vld [vmem:[%s4158] ss:$16 sm:%s4159]
    %vm4161 = vcmask 1043458
    %v4162 = vsel %vm4161, %v4160, %v4157
    %s4163 = scalar_lea.vmem [#allocation1], 384
    %s4164 = smov 48
    %v4165 = vld [vmem:[%s4163] ss:$16 sm:%s4164]
    %vm4166 = vcmask 1045508
    %v4167 = vsel %vm4166, %v4165, %v4162
    %s4168 = scalar_lea.vmem [#allocation1], 384
    %s4169 = smov 192
    %v4170 = vld [vmem:[%s4168] ss:$16 sm:%s4169]
    %vm4171 = vcmask 1047558
    %v4172 = vsel %vm4171, %v4170, %v4167
    %vm4173 = vcmask 64512
    %s4174 = scalar_lea.vmem [#allocation0], 24
    %4175 = vst.msk [vmem:[%s4174] sm:$0xff] %vm4173, %v4172
    %s4176 = scalar_lea.vmem [#allocation1], 512
    %s4177 = smov 3
    %v4178 = vld [vmem:[%s4176] ss:$16 sm:%s4177]
    %s4179 = scalar_lea.vmem [#allocation1], 512
    %s4180 = smov 12
    %v4181 = vld [vmem:[%s4179] ss:$16 sm:%s4180]
    %vm4182 = vcmask 1043458
    %v4183 = vsel %vm4182, %v4181, %v4178
    %s4184 = scalar_lea.vmem [#allocation1], 512
    %s4185 = smov 48
    %v4186 = vld [vmem:[%s4184] ss:$16 sm:%s4185]
    %vm4187 = vcmask 1045508
    %v4188 = vsel %vm4187, %v4186, %v4183
    %s4189 = scalar_lea.vmem [#allocation1], 512
    %s4190 = smov 192
    %v4191 = vld [vmem:[%s4189] ss:$16 sm:%s4190]
    %vm4192 = vcmask 1047558
    %v4193 = vsel %vm4192, %v4191, %v4188
    %vm4194 = vcmask 64512
    %s4195 = scalar_lea.vmem [#allocation0], 32
    %4196 = vst.msk [vmem:[%s4195] sm:$0xff] %vm4194, %v4193
    %s4197 = scalar_lea.vmem [#allocation1], 640
    %s4198 = smov 3
    %v4199 = vld [vmem:[%s4197] ss:$16 sm:%s4198]
    %s4200 = scalar_lea.vmem [#allocation1], 640
    %s4201 = smov 12
    %v4202 = vld [vmem:[%s4200] ss:$16 sm:%s4201]
    %vm4203 = vcmask 1043458
    %v4204 = vsel %vm4203, %v4202, %v4199
    %s4205 = scalar_lea.vmem [#allocation1], 640
    %s4206 = smov 48
    %v4207 = vld [vmem:[%s4205] ss:$16 sm:%s4206]
    %vm4208 = vcmask 1045508
    %v4209 = vsel %vm4208, %v4207, %v4204
    %s4210 = scalar_lea.vmem [#allocation1], 640
    %s4211 = smov 192
    %v4212 = vld [vmem:[%s4210] ss:$16 sm:%s4211]
    %vm4213 = vcmask 1047558
    %v4214 = vsel %vm4213, %v4212, %v4209
    %vm4215 = vcmask 64512
    %s4216 = scalar_lea.vmem [#allocation0], 40
    %4217 = vst.msk [vmem:[%s4216] sm:$0xff] %vm4215, %v4214
    %s4218 = scalar_lea.vmem [#allocation1], 768
    %s4219 = smov 3
    %v4220 = vld [vmem:[%s4218] ss:$16 sm:%s4219]
    %s4221 = scalar_lea.vmem [#allocation1], 768
    %s4222 = smov 12
    %v4223 = vld [vmem:[%s4221] ss:$16 sm:%s4222]
    %vm4224 = vcmask 1043458
    %v4225 = vsel %vm4224, %v4223, %v4220
    %s4226 = scalar_lea.vmem [#allocation1], 768
    %s4227 = smov 48
    %v4228 = vld [vmem:[%s4226] ss:$16 sm:%s4227]
    %vm4229 = vcmask 1045508
    %v4230 = vsel %vm4229, %v4228, %v4225
    %s4231 = scalar_lea.vmem [#allocation1], 768
    %s4232 = smov 192
    %v4233 = vld [vmem:[%s4231] ss:$16 sm:%s4232]
    %vm4234 = vcmask 1047558
    %v4235 = vsel %vm4234, %v4233, %v4230
    %vm4236 = vcmask 64512
    %s4237 = scalar_lea.vmem [#allocation0], 48
    %4238 = vst.msk [vmem:[%s4237] sm:$0xff] %vm4236, %v4235
    %s4239 = scalar_lea.vmem [#allocation1], 896
    %s4240 = smov 3
    %v4241 = vld [vmem:[%s4239] ss:$16 sm:%s4240]
    %s4242 = scalar_lea.vmem [#allocation1], 896
    %s4243 = smov 12
    %v4244 = vld [vmem:[%s4242] ss:$16 sm:%s4243]
    %vm4245 = vcmask 1043458
    %v4246 = vsel %vm4245, %v4244, %v4241
    %s4247 = scalar_lea.vmem [#allocation1], 896
    %s4248 = smov 48
    %v4249 = vld [vmem:[%s4247] ss:$16 sm:%s4248]
    %vm4250 = vcmask 1045508
    %v4251 = vsel %vm4250, %v4249, %v4246
    %s4252 = scalar_lea.vmem [#allocation1], 896
    %s4253 = smov 192
    %v4254 = vld [vmem:[%s4252] ss:$16 sm:%s4253]
    %vm4255 = vcmask 1047558
    %v4256 = vsel %vm4255, %v4254, %v4251
    %vm4257 = vcmask 64512
    %s4258 = scalar_lea.vmem [#allocation0], 56
    %4259 = vst.msk [vmem:[%s4258] sm:$0xff] %vm4257, %v4256
    %s4260 = scalar_lea.vmem [#allocation1], 1024
    %s4261 = smov 3
    %v4262 = vld [vmem:[%s4260] ss:$16 sm:%s4261]
    %s4263 = scalar_lea.vmem [#allocation1], 1024
    %s4264 = smov 12
    %v4265 = vld [vmem:[%s4263] ss:$16 sm:%s4264]
    %vm4266 = vcmask 1043458
    %v4267 = vsel %vm4266, %v4265, %v4262
    %s4268 = scalar_lea.vmem [#allocation1], 1024
    %s4269 = smov 48
    %v4270 = vld [vmem:[%s4268] ss:$16 sm:%s4269]
    %vm4271 = vcmask 1045508
    %v4272 = vsel %vm4271, %v4270, %v4267
    %s4273 = scalar_lea.vmem [#allocation1], 1024
    %s4274 = smov 192
    %v4275 = vld [vmem:[%s4273] ss:$16 sm:%s4274]
    %vm4276 = vcmask 1047558
    %v4277 = vsel %vm4276, %v4275, %v4272
    %vm4278 = vcmask 64512
    %s4279 = scalar_lea.vmem [#allocation0], 64
    %4280 = vst.msk [vmem:[%s4279] sm:$0xff] %vm4278, %v4277
    %s4281 = scalar_lea.vmem [#allocation1], 1152
    %s4282 = smov 3
    %v4283 = vld [vmem:[%s4281] ss:$16 sm:%s4282]
    %s4284 = scalar_lea.vmem [#allocation1], 1152
    %s4285 = smov 12
    %v4286 = vld [vmem:[%s4284] ss:$16 sm:%s4285]
    %vm4287 = vcmask 1043458
    %v4288 = vsel %vm4287, %v4286, %v4283
    %s4289 = scalar_lea.vmem [#allocation1], 1152
    %s4290 = smov 48
    %v4291 = vld [vmem:[%s4289] ss:$16 sm:%s4290]
    %vm4292 = vcmask 1045508
    %v4293 = vsel %vm4292, %v4291, %v4288
    %s4294 = scalar_lea.vmem [#allocation1], 1152
    %s4295 = smov 192
    %v4296 = vld [vmem:[%s4294] ss:$16 sm:%s4295]
    %vm4297 = vcmask 1047558
    %v4298 = vsel %vm4297, %v4296, %v4293
    %vm4299 = vcmask 64512
    %s4300 = scalar_lea.vmem [#allocation0], 72
    %4301 = vst.msk [vmem:[%s4300] sm:$0xff] %vm4299, %v4298
    %s4302 = scalar_lea.vmem [#allocation1], 1280
    %s4303 = smov 3
    %v4304 = vld [vmem:[%s4302] ss:$16 sm:%s4303]
    %s4305 = scalar_lea.vmem [#allocation1], 1280
    %s4306 = smov 12
    %v4307 = vld [vmem:[%s4305] ss:$16 sm:%s4306]
    %vm4308 = vcmask 1043458
    %v4309 = vsel %vm4308, %v4307, %v4304
    %s4310 = scalar_lea.vmem [#allocation1], 1280
    %s4311 = smov 48
    %v4312 = vld [vmem:[%s4310] ss:$16 sm:%s4311]
    %vm4313 = vcmask 1045508
    %v4314 = vsel %vm4313, %v4312, %v4309
    %s4315 = scalar_lea.vmem [#allocation1], 1280
    %s4316 = smov 192
    %v4317 = vld [vmem:[%s4315] ss:$16 sm:%s4316]
    %vm4318 = vcmask 1047558
    %v4319 = vsel %vm4318, %v4317, %v4314
    %vm4320 = vcmask 64512
    %s4321 = scalar_lea.vmem [#allocation0], 80
    %4322 = vst.msk [vmem:[%s4321] sm:$0xff] %vm4320, %v4319
    %s4323 = scalar_lea.vmem [#allocation1], 1408
    %s4324 = smov 3
    %v4325 = vld [vmem:[%s4323] ss:$16 sm:%s4324]
    %s4326 = scalar_lea.vmem [#allocation1], 1408
    %s4327 = smov 12
    %v4328 = vld [vmem:[%s4326] ss:$16 sm:%s4327]
    %vm4329 = vcmask 1043458
    %v4330 = vsel %vm4329, %v4328, %v4325
    %s4331 = scalar_lea.vmem [#allocation1], 1408
    %s4332 = smov 48
    %v4333 = vld [vmem:[%s4331] ss:$16 sm:%s4332]
    %vm4334 = vcmask 1045508
    %v4335 = vsel %vm4334, %v4333, %v4330
    %s4336 = scalar_lea.vmem [#allocation1], 1408
    %s4337 = smov 192
    %v4338 = vld [vmem:[%s4336] ss:$16 sm:%s4337]
    %vm4339 = vcmask 1047558
    %v4340 = vsel %vm4339, %v4338, %v4335
    %vm4341 = vcmask 64512
    %s4342 = scalar_lea.vmem [#allocation0], 88
    %4343 = vst.msk [vmem:[%s4342] sm:$0xff] %vm4341, %v4340
    %s4344 = scalar_lea.vmem [#allocation1], 1536
    %s4345 = smov 3
    %v4346 = vld [vmem:[%s4344] ss:$16 sm:%s4345]
    %s4347 = scalar_lea.vmem [#allocation1], 1536
    %s4348 = smov 12
    %v4349 = vld [vmem:[%s4347] ss:$16 sm:%s4348]
    %vm4350 = vcmask 1043458
    %v4351 = vsel %vm4350, %v4349, %v4346
    %s4352 = scalar_lea.vmem [#allocation1], 1536
    %s4353 = smov 48
    %v4354 = vld [vmem:[%s4352] ss:$16 sm:%s4353]
    %vm4355 = vcmask 1045508
    %v4356 = vsel %vm4355, %v4354, %v4351
    %s4357 = scalar_lea.vmem [#allocation1], 1536
    %s4358 = smov 192
    %v4359 = vld [vmem:[%s4357] ss:$16 sm:%s4358]
    %vm4360 = vcmask 1047558
    %v4361 = vsel %vm4360, %v4359, %v4356
    %vm4362 = vcmask 64512
    %s4363 = scalar_lea.vmem [#allocation0], 96
    %4364 = vst.msk [vmem:[%s4363] sm:$0xff] %vm4362, %v4361
    %s4365 = scalar_lea.vmem [#allocation1], 1664
    %s4366 = smov 3
    %v4367 = vld [vmem:[%s4365] ss:$16 sm:%s4366]
    %s4368 = scalar_lea.vmem [#allocation1], 1664
    %s4369 = smov 12
    %v4370 = vld [vmem:[%s4368] ss:$16 sm:%s4369]
    %vm4371 = vcmask 1043458
    %v4372 = vsel %vm4371, %v4370, %v4367
    %s4373 = scalar_lea.vmem [#allocation1], 1664
    %s4374 = smov 48
    %v4375 = vld [vmem:[%s4373] ss:$16 sm:%s4374]
    %vm4376 = vcmask 1045508
    %v4377 = vsel %vm4376, %v4375, %v4372
    %s4378 = scalar_lea.vmem [#allocation1], 1664
    %s4379 = smov 192
    %v4380 = vld [vmem:[%s4378] ss:$16 sm:%s4379]
    %vm4381 = vcmask 1047558
    %v4382 = vsel %vm4381, %v4380, %v4377
    %vm4383 = vcmask 64512
    %s4384 = scalar_lea.vmem [#allocation0], 104
    %4385 = vst.msk [vmem:[%s4384] sm:$0xff] %vm4383, %v4382
    %s4386 = scalar_lea.vmem [#allocation1], 1792
    %s4387 = smov 3
    %v4388 = vld [vmem:[%s4386] ss:$16 sm:%s4387]
    %s4389 = scalar_lea.vmem [#allocation1], 1792
    %s4390 = smov 12
    %v4391 = vld [vmem:[%s4389] ss:$16 sm:%s4390]
    %vm4392 = vcmask 1043458
    %v4393 = vsel %vm4392, %v4391, %v4388
    %s4394 = scalar_lea.vmem [#allocation1], 1792
    %s4395 = smov 48
    %v4396 = vld [vmem:[%s4394] ss:$16 sm:%s4395]
    %vm4397 = vcmask 1045508
    %v4398 = vsel %vm4397, %v4396, %v4393
    %s4399 = scalar_lea.vmem [#allocation1], 1792
    %s4400 = smov 192
    %v4401 = vld [vmem:[%s4399] ss:$16 sm:%s4400]
    %vm4402 = vcmask 1047558
    %v4403 = vsel %vm4402, %v4401, %v4398
    %vm4404 = vcmask 64512
    %s4405 = scalar_lea.vmem [#allocation0], 112
    %4406 = vst.msk [vmem:[%s4405] sm:$0xff] %vm4404, %v4403
    %s4407 = scalar_lea.vmem [#allocation1], 1920
    %s4408 = smov 3
    %v4409 = vld [vmem:[%s4407] ss:$16 sm:%s4408]
    %s4410 = scalar_lea.vmem [#allocation1], 1920
    %s4411 = smov 12
    %v4412 = vld [vmem:[%s4410] ss:$16 sm:%s4411]
    %vm4413 = vcmask 1043458
    %v4414 = vsel %vm4413, %v4412, %v4409
    %s4415 = scalar_lea.vmem [#allocation1], 1920
    %s4416 = smov 48
    %v4417 = vld [vmem:[%s4415] ss:$16 sm:%s4416]
    %vm4418 = vcmask 1045508
    %v4419 = vsel %vm4418, %v4417, %v4414
    %s4420 = scalar_lea.vmem [#allocation1], 1920
    %s4421 = smov 192
    %v4422 = vld [vmem:[%s4420] ss:$16 sm:%s4421]
    %vm4423 = vcmask 1047558
    %v4424 = vsel %vm4423, %v4422, %v4419
    %vm4425 = vcmask 64512
    %s4426 = scalar_lea.vmem [#allocation0], 120
    %4427 = vst.msk [vmem:[%s4426] sm:$0xff] %vm4425, %v4424
    %s4428 = scalar_lea.vmem [#allocation1], 15
    %s4429 = smov 3
    %v4430 = vld [vmem:[%s4428] ss:$16 sm:%s4429]
    %s4431 = scalar_lea.vmem [#allocation1], 15
    %s4432 = smov 12
    %v4433 = vld [vmem:[%s4431] ss:$16 sm:%s4432]
    %vm4434 = vcmask 1043458
    %v4435 = vsel %vm4434, %v4433, %v4430
    %s4436 = scalar_lea.vmem [#allocation1], 15
    %s4437 = smov 48
    %v4438 = vld [vmem:[%s4436] ss:$16 sm:%s4437]
    %vm4439 = vcmask 1045508
    %v4440 = vsel %vm4439, %v4438, %v4435
    %s4441 = scalar_lea.vmem [#allocation1], 15
    %s4442 = smov 192
    %v4443 = vld [vmem:[%s4441] ss:$16 sm:%s4442]
    %vm4444 = vcmask 1047558
    %v4445 = vsel %vm4444, %v4443, %v4440
    %4446 = vrot.lane.b32.xlu0 %v4445, 120
    %v4447 = vpop.permute.xlu0 %4446
    %vm4448 = vcmask 1048512
    %4449 = vst.msk [vmem:[#allocation0] sm:$0xff] %vm4448, %v4447
    %s4450 = scalar_lea.vmem [#allocation1], 527
    %s4451 = smov 3
    %v4452 = vld [vmem:[%s4450] ss:$16 sm:%s4451]
    %s4453 = scalar_lea.vmem [#allocation1], 527
    %s4454 = smov 12
    %v4455 = vld [vmem:[%s4453] ss:$16 sm:%s4454]
    %vm4456 = vcmask 1043458
    %v4457 = vsel %vm4456, %v4455, %v4452
    %s4458 = scalar_lea.vmem [#allocation1], 527
    %s4459 = smov 48
    %v4460 = vld [vmem:[%s4458] ss:$16 sm:%s4459]
    %vm4461 = vcmask 1045508
    %v4462 = vsel %vm4461, %v4460, %v4457
    %s4463 = scalar_lea.vmem [#allocation1], 527
    %s4464 = smov 192
    %v4465 = vld [vmem:[%s4463] ss:$16 sm:%s4464]
    %vm4466 = vcmask 1047558
    %v4467 = vsel %vm4466, %v4465, %v4462
    %4468 = vrot.lane.b32.xlu0 %v4467, 120
    %v4469 = vpop.permute.xlu0 %4468
    %vm4470 = vcmask 1048512
    %s4471 = scalar_lea.vmem [#allocation0], 32
    %4472 = vst.msk [vmem:[%s4471] sm:$0xff] %vm4470, %v4469
    %s4473 = scalar_lea.vmem [#allocation1], 1039
    %s4474 = smov 3
    %v4475 = vld [vmem:[%s4473] ss:$16 sm:%s4474]
    %s4476 = scalar_lea.vmem [#allocation1], 1039
    %s4477 = smov 12
    %v4478 = vld [vmem:[%s4476] ss:$16 sm:%s4477]
    %vm4479 = vcmask 1043458
    %v4480 = vsel %vm4479, %v4478, %v4475
    %s4481 = scalar_lea.vmem [#allocation1], 1039
    %s4482 = smov 48
    %v4483 = vld [vmem:[%s4481] ss:$16 sm:%s4482]
    %vm4484 = vcmask 1045508
    %v4485 = vsel %vm4484, %v4483, %v4480
    %s4486 = scalar_lea.vmem [#allocation1], 1039
    %s4487 = smov 192
    %v4488 = vld [vmem:[%s4486] ss:$16 sm:%s4487]
    %vm4489 = vcmask 1047558
    %v4490 = vsel %vm4489, %v4488, %v4485
    %4491 = vrot.lane.b32.xlu0 %v4490, 120
    %v4492 = vpop.permute.xlu0 %4491
    %vm4493 = vcmask 1048512
    %s4494 = scalar_lea.vmem [#allocation0], 64
    %4495 = vst.msk [vmem:[%s4494] sm:$0xff] %vm4493, %v4492
    %s4496 = scalar_lea.vmem [#allocation1], 1551
    %s4497 = smov 3
    %v4498 = vld [vmem:[%s4496] ss:$16 sm:%s4497]
    %s4499 = scalar_lea.vmem [#allocation1], 1551
    %s4500 = smov 12
    %v4501 = vld [vmem:[%s4499] ss:$16 sm:%s4500]
    %vm4502 = vcmask 1043458
    %v4503 = vsel %vm4502, %v4501, %v4498
    %s4504 = scalar_lea.vmem [#allocation1], 1551
    %s4505 = smov 48
    %v4506 = vld [vmem:[%s4504] ss:$16 sm:%s4505]
    %vm4507 = vcmask 1045508
    %v4508 = vsel %vm4507, %v4506, %v4503
    %s4509 = scalar_lea.vmem [#allocation1], 1551
    %s4510 = smov 192
    %v4511 = vld [vmem:[%s4509] ss:$16 sm:%s4510]
    %vm4512 = vcmask 1047558
    %v4513 = vsel %vm4512, %v4511, %v4508
    %4514 = vrot.lane.b32.xlu0 %v4513, 120
    %v4515 = vpop.permute.xlu0 %4514
    %vm4516 = vcmask 1048512
    %s4517 = scalar_lea.vmem [#allocation0], 96
    %4518 = vst.msk [vmem:[%s4517] sm:$0xff] %vm4516, %v4515
    %s4519 = scalar_lea.vmem [#allocation1], 143
    %s4520 = smov 3
    %v4521 = vld [vmem:[%s4519] ss:$16 sm:%s4520]
    %s4522 = scalar_lea.vmem [#allocation1], 143
    %s4523 = smov 12
    %v4524 = vld [vmem:[%s4522] ss:$16 sm:%s4523]
    %vm4525 = vcmask 1043458
    %v4526 = vsel %vm4525, %v4524, %v4521
    %s4527 = scalar_lea.vmem [#allocation1], 143
    %s4528 = smov 48
    %v4529 = vld [vmem:[%s4527] ss:$16 sm:%s4528]
    %vm4530 = vcmask 1045508
    %v4531 = vsel %vm4530, %v4529, %v4526
    %s4532 = scalar_lea.vmem [#allocation1], 143
    %s4533 = smov 192
    %v4534 = vld [vmem:[%s4532] ss:$16 sm:%s4533]
    %vm4535 = vcmask 1047558
    %v4536 = vsel %vm4535, %v4534, %v4531
    %4537 = vrot.lane.b32.xlu0 %v4536, 120
    %v4538 = vpop.permute.xlu0 %4537
    %vm4539 = vcmask 1048512
    %s4540 = scalar_lea.vmem [#allocation0], 8
    %4541 = vst.msk [vmem:[%s4540] sm:$0xff] %vm4539, %v4538
    %s4542 = scalar_lea.vmem [#allocation1], 655
    %s4543 = smov 3
    %v4544 = vld [vmem:[%s4542] ss:$16 sm:%s4543]
    %s4545 = scalar_lea.vmem [#allocation1], 655
    %s4546 = smov 12
    %v4547 = vld [vmem:[%s4545] ss:$16 sm:%s4546]
    %vm4548 = vcmask 1043458
    %v4549 = vsel %vm4548, %v4547, %v4544
    %s4550 = scalar_lea.vmem [#allocation1], 655
    %s4551 = smov 48
    %v4552 = vld [vmem:[%s4550] ss:$16 sm:%s4551]
    %vm4553 = vcmask 1045508
    %v4554 = vsel %vm4553, %v4552, %v4549
    %s4555 = scalar_lea.vmem [#allocation1], 655
    %s4556 = smov 192
    %v4557 = vld [vmem:[%s4555] ss:$16 sm:%s4556]
    %vm4558 = vcmask 1047558
    %v4559 = vsel %vm4558, %v4557, %v4554
    %4560 = vrot.lane.b32.xlu0 %v4559, 120
    %v4561 = vpop.permute.xlu0 %4560
    %vm4562 = vcmask 1048512
    %s4563 = scalar_lea.vmem [#allocation0], 40
    %4564 = vst.msk [vmem:[%s4563] sm:$0xff] %vm4562, %v4561
    %s4565 = scalar_lea.vmem [#allocation1], 1167
    %s4566 = smov 3
    %v4567 = vld [vmem:[%s4565] ss:$16 sm:%s4566]
    %s4568 = scalar_lea.vmem [#allocation1], 1167
    %s4569 = smov 12
    %v4570 = vld [vmem:[%s4568] ss:$16 sm:%s4569]
    %vm4571 = vcmask 1043458
    %v4572 = vsel %vm4571, %v4570, %v4567
    %s4573 = scalar_lea.vmem [#allocation1], 1167
    %s4574 = smov 48
    %v4575 = vld [vmem:[%s4573] ss:$16 sm:%s4574]
    %vm4576 = vcmask 1045508
    %v4577 = vsel %vm4576, %v4575, %v4572
    %s4578 = scalar_lea.vmem [#allocation1], 1167
    %s4579 = smov 192
    %v4580 = vld [vmem:[%s4578] ss:$16 sm:%s4579]
    %vm4581 = vcmask 1047558
    %v4582 = vsel %vm4581, %v4580, %v4577
    %4583 = vrot.lane.b32.xlu0 %v4582, 120
    %v4584 = vpop.permute.xlu0 %4583
    %vm4585 = vcmask 1048512
    %s4586 = scalar_lea.vmem [#allocation0], 72
    %4587 = vst.msk [vmem:[%s4586] sm:$0xff] %vm4585, %v4584
    %s4588 = scalar_lea.vmem [#allocation1], 1679
    %s4589 = smov 3
    %v4590 = vld [vmem:[%s4588] ss:$16 sm:%s4589]
    %s4591 = scalar_lea.vmem [#allocation1], 1679
    %s4592 = smov 12
    %v4593 = vld [vmem:[%s4591] ss:$16 sm:%s4592]
    %vm4594 = vcmask 1043458
    %v4595 = vsel %vm4594, %v4593, %v4590
    %s4596 = scalar_lea.vmem [#allocation1], 1679
    %s4597 = smov 48
    %v4598 = vld [vmem:[%s4596] ss:$16 sm:%s4597]
    %vm4599 = vcmask 1045508
    %v4600 = vsel %vm4599, %v4598, %v4595
    %s4601 = scalar_lea.vmem [#allocation1], 1679
    %s4602 = smov 192
    %v4603 = vld [vmem:[%s4601] ss:$16 sm:%s4602]
    %vm4604 = vcmask 1047558
    %v4605 = vsel %vm4604, %v4603, %v4600
    %4606 = vrot.lane.b32.xlu0 %v4605, 120
    %v4607 = vpop.permute.xlu0 %4606
    %vm4608 = vcmask 1048512
    %s4609 = scalar_lea.vmem [#allocation0], 104
    %4610 = vst.msk [vmem:[%s4609] sm:$0xff] %vm4608, %v4607
    %s4611 = scalar_lea.vmem [#allocation1], 271
    %s4612 = smov 3
    %v4613 = vld [vmem:[%s4611] ss:$16 sm:%s4612]
    %s4614 = scalar_lea.vmem [#allocation1], 271
    %s4615 = smov 12
    %v4616 = vld [vmem:[%s4614] ss:$16 sm:%s4615]
    %vm4617 = vcmask 1043458
    %v4618 = vsel %vm4617, %v4616, %v4613
    %s4619 = scalar_lea.vmem [#allocation1], 271
    %s4620 = smov 48
    %v4621 = vld [vmem:[%s4619] ss:$16 sm:%s4620]
    %vm4622 = vcmask 1045508
    %v4623 = vsel %vm4622, %v4621, %v4618
    %s4624 = scalar_lea.vmem [#allocation1], 271
    %s4625 = smov 192
    %v4626 = vld [vmem:[%s4624] ss:$16 sm:%s4625]
    %vm4627 = vcmask 1047558
    %v4628 = vsel %vm4627, %v4626, %v4623
    %4629 = vrot.lane.b32.xlu0 %v4628, 120
    %v4630 = vpop.permute.xlu0 %4629
    %vm4631 = vcmask 1048512
    %s4632 = scalar_lea.vmem [#allocation0], 16
    %4633 = vst.msk [vmem:[%s4632] sm:$0xff] %vm4631, %v4630
    %s4634 = scalar_lea.vmem [#allocation1], 783
    %s4635 = smov 3
    %v4636 = vld [vmem:[%s4634] ss:$16 sm:%s4635]
    %s4637 = scalar_lea.vmem [#allocation1], 783
    %s4638 = smov 12
    %v4639 = vld [vmem:[%s4637] ss:$16 sm:%s4638]
    %vm4640 = vcmask 1043458
    %v4641 = vsel %vm4640, %v4639, %v4636
    %s4642 = scalar_lea.vmem [#allocation1], 783
    %s4643 = smov 48
    %v4644 = vld [vmem:[%s4642] ss:$16 sm:%s4643]
    %vm4645 = vcmask 1045508
    %v4646 = vsel %vm4645, %v4644, %v4641
    %s4647 = scalar_lea.vmem [#allocation1], 783
    %s4648 = smov 192
    %v4649 = vld [vmem:[%s4647] ss:$16 sm:%s4648]
    %vm4650 = vcmask 1047558
    %v4651 = vsel %vm4650, %v4649, %v4646
    %4652 = vrot.lane.b32.xlu0 %v4651, 120
    %v4653 = vpop.permute.xlu0 %4652
    %vm4654 = vcmask 1048512
    %s4655 = scalar_lea.vmem [#allocation0], 48
    %4656 = vst.msk [vmem:[%s4655] sm:$0xff] %vm4654, %v4653
    %s4657 = scalar_lea.vmem [#allocation1], 1295
    %s4658 = smov 3
    %v4659 = vld [vmem:[%s4657] ss:$16 sm:%s4658]
    %s4660 = scalar_lea.vmem [#allocation1], 1295
    %s4661 = smov 12
    %v4662 = vld [vmem:[%s4660] ss:$16 sm:%s4661]
    %vm4663 = vcmask 1043458
    %v4664 = vsel %vm4663, %v4662, %v4659
    %s4665 = scalar_lea.vmem [#allocation1], 1295
    %s4666 = smov 48
    %v4667 = vld [vmem:[%s4665] ss:$16 sm:%s4666]
    %vm4668 = vcmask 1045508
    %v4669 = vsel %vm4668, %v4667, %v4664
    %s4670 = scalar_lea.vmem [#allocation1], 1295
    %s4671 = smov 192
    %v4672 = vld [vmem:[%s4670] ss:$16 sm:%s4671]
    %vm4673 = vcmask 1047558
    %v4674 = vsel %vm4673, %v4672, %v4669
    %4675 = vrot.lane.b32.xlu0 %v4674, 120
    %v4676 = vpop.permute.xlu0 %4675
    %vm4677 = vcmask 1048512
    %s4678 = scalar_lea.vmem [#allocation0], 80
    %4679 = vst.msk [vmem:[%s4678] sm:$0xff] %vm4677, %v4676
    %s4680 = scalar_lea.vmem [#allocation1], 1807
    %s4681 = smov 3
    %v4682 = vld [vmem:[%s4680] ss:$16 sm:%s4681]
    %s4683 = scalar_lea.vmem [#allocation1], 1807
    %s4684 = smov 12
    %v4685 = vld [vmem:[%s4683] ss:$16 sm:%s4684]
    %vm4686 = vcmask 1043458
    %v4687 = vsel %vm4686, %v4685, %v4682
    %s4688 = scalar_lea.vmem [#allocation1], 1807
    %s4689 = smov 48
    %v4690 = vld [vmem:[%s4688] ss:$16 sm:%s4689]
    %vm4691 = vcmask 1045508
    %v4692 = vsel %vm4691, %v4690, %v4687
    %s4693 = scalar_lea.vmem [#allocation1], 1807
    %s4694 = smov 192
    %v4695 = vld [vmem:[%s4693] ss:$16 sm:%s4694]
    %vm4696 = vcmask 1047558
    %v4697 = vsel %vm4696, %v4695, %v4692
    %4698 = vrot.lane.b32.xlu0 %v4697, 120
    %v4699 = vpop.permute.xlu0 %4698
    %vm4700 = vcmask 1048512
    %s4701 = scalar_lea.vmem [#allocation0], 112
    %4702 = vst.msk [vmem:[%s4701] sm:$0xff] %vm4700, %v4699
    %s4703 = scalar_lea.vmem [#allocation1], 399
    %s4704 = smov 3
    %v4705 = vld [vmem:[%s4703] ss:$16 sm:%s4704]
    %s4706 = scalar_lea.vmem [#allocation1], 399
    %s4707 = smov 12
    %v4708 = vld [vmem:[%s4706] ss:$16 sm:%s4707]
    %vm4709 = vcmask 1043458
    %v4710 = vsel %vm4709, %v4708, %v4705
    %s4711 = scalar_lea.vmem [#allocation1], 399
    %s4712 = smov 48
    %v4713 = vld [vmem:[%s4711] ss:$16 sm:%s4712]
    %vm4714 = vcmask 1045508
    %v4715 = vsel %vm4714, %v4713, %v4710
    %s4716 = scalar_lea.vmem [#allocation1], 399
    %s4717 = smov 192
    %v4718 = vld [vmem:[%s4716] ss:$16 sm:%s4717]
    %vm4719 = vcmask 1047558
    %v4720 = vsel %vm4719, %v4718, %v4715
    %4721 = vrot.lane.b32.xlu0 %v4720, 120
    %v4722 = vpop.permute.xlu0 %4721
    %vm4723 = vcmask 1048512
    %s4724 = scalar_lea.vmem [#allocation0], 24
    %4725 = vst.msk [vmem:[%s4724] sm:$0xff] %vm4723, %v4722
    %s4726 = scalar_lea.vmem [#allocation1], 911
    %s4727 = smov 3
    %v4728 = vld [vmem:[%s4726] ss:$16 sm:%s4727]
    %s4729 = scalar_lea.vmem [#allocation1], 911
    %s4730 = smov 12
    %v4731 = vld [vmem:[%s4729] ss:$16 sm:%s4730]
    %vm4732 = vcmask 1043458
    %v4733 = vsel %vm4732, %v4731, %v4728
    %s4734 = scalar_lea.vmem [#allocation1], 911
    %s4735 = smov 48
    %v4736 = vld [vmem:[%s4734] ss:$16 sm:%s4735]
    %vm4737 = vcmask 1045508
    %v4738 = vsel %vm4737, %v4736, %v4733
    %s4739 = scalar_lea.vmem [#allocation1], 911
    %s4740 = smov 192
    %v4741 = vld [vmem:[%s4739] ss:$16 sm:%s4740]
    %vm4742 = vcmask 1047558
    %v4743 = vsel %vm4742, %v4741, %v4738
    %4744 = vrot.lane.b32.xlu0 %v4743, 120
    %v4745 = vpop.permute.xlu0 %4744
    %vm4746 = vcmask 1048512
    %s4747 = scalar_lea.vmem [#allocation0], 56
    %4748 = vst.msk [vmem:[%s4747] sm:$0xff] %vm4746, %v4745
    %s4749 = scalar_lea.vmem [#allocation1], 1423
    %s4750 = smov 3
    %v4751 = vld [vmem:[%s4749] ss:$16 sm:%s4750]
    %s4752 = scalar_lea.vmem [#allocation1], 1423
    %s4753 = smov 12
    %v4754 = vld [vmem:[%s4752] ss:$16 sm:%s4753]
    %vm4755 = vcmask 1043458
    %v4756 = vsel %vm4755, %v4754, %v4751
    %s4757 = scalar_lea.vmem [#allocation1], 1423
    %s4758 = smov 48
    %v4759 = vld [vmem:[%s4757] ss:$16 sm:%s4758]
    %vm4760 = vcmask 1045508
    %v4761 = vsel %vm4760, %v4759, %v4756
    %s4762 = scalar_lea.vmem [#allocation1], 1423
    %s4763 = smov 192
    %v4764 = vld [vmem:[%s4762] ss:$16 sm:%s4763]
    %vm4765 = vcmask 1047558
    %v4766 = vsel %vm4765, %v4764, %v4761
    %4767 = vrot.lane.b32.xlu0 %v4766, 120
    %v4768 = vpop.permute.xlu0 %4767
    %vm4769 = vcmask 1048512
    %s4770 = scalar_lea.vmem [#allocation0], 88
    %4771 = vst.msk [vmem:[%s4770] sm:$0xff] %vm4769, %v4768
    %s4772 = scalar_lea.vmem [#allocation1], 1935
    %s4773 = smov 3
    %v4774 = vld [vmem:[%s4772] ss:$16 sm:%s4773]
    %s4775 = scalar_lea.vmem [#allocation1], 1935
    %s4776 = smov 12
    %v4777 = vld [vmem:[%s4775] ss:$16 sm:%s4776]
    %vm4778 = vcmask 1043458
    %v4779 = vsel %vm4778, %v4777, %v4774
    %s4780 = scalar_lea.vmem [#allocation1], 1935
    %s4781 = smov 48
    %v4782 = vld [vmem:[%s4780] ss:$16 sm:%s4781]
    %vm4783 = vcmask 1045508
    %v4784 = vsel %vm4783, %v4782, %v4779
    %s4785 = scalar_lea.vmem [#allocation1], 1935
    %s4786 = smov 192
    %v4787 = vld [vmem:[%s4785] ss:$16 sm:%s4786]
    %vm4788 = vcmask 1047558
    %v4789 = vsel %vm4788, %v4787, %v4784
    %4790 = vrot.lane.b32.xlu0 %v4789, 120
    %v4791 = vpop.permute.xlu0 %4790
    %vm4792 = vcmask 1048512
    %s4793 = scalar_lea.vmem [#allocation0], 120
    %4794 = vst.msk [vmem:[%s4793] sm:$0xff] %vm4792, %v4791
    %s4795 = scalar_lea.vmem [#allocation1], 14
    %s4796 = smov 3
    %v4797 = vld [vmem:[%s4795] ss:$16 sm:%s4796]
    %s4798 = scalar_lea.vmem [#allocation1], 14
    %s4799 = smov 12
    %v4800 = vld [vmem:[%s4798] ss:$16 sm:%s4799]
    %vm4801 = vcmask 1043458
    %v4802 = vsel %vm4801, %v4800, %v4797
    %s4803 = scalar_lea.vmem [#allocation1], 14
    %s4804 = smov 48
    %v4805 = vld [vmem:[%s4803] ss:$16 sm:%s4804]
    %vm4806 = vcmask 1045508
    %v4807 = vsel %vm4806, %v4805, %v4802
    %s4808 = scalar_lea.vmem [#allocation1], 14
    %s4809 = smov 192
    %v4810 = vld [vmem:[%s4808] ss:$16 sm:%s4809]
    %vm4811 = vcmask 1047558
    %v4812 = vsel %vm4811, %v4810, %v4807
    %4813 = vrot.lane.b32.xlu0 %v4812, 112
    %v4814 = vpop.permute.xlu0 %4813
    %vm4815 = vcmask 982912
    %4816 = vst.msk [vmem:[#allocation0] sm:$0xff] %vm4815, %v4814
    %s4817 = scalar_lea.vmem [#allocation1], 526
    %s4818 = smov 3
    %v4819 = vld [vmem:[%s4817] ss:$16 sm:%s4818]
    %s4820 = scalar_lea.vmem [#allocation1], 526
    %s4821 = smov 12
    %v4822 = vld [vmem:[%s4820] ss:$16 sm:%s4821]
    %vm4823 = vcmask 1043458
    %v4824 = vsel %vm4823, %v4822, %v4819
    %s4825 = scalar_lea.vmem [#allocation1], 526
    %s4826 = smov 48
    %v4827 = vld [vmem:[%s4825] ss:$16 sm:%s4826]
    %vm4828 = vcmask 1045508
    %v4829 = vsel %vm4828, %v4827, %v4824
    %s4830 = scalar_lea.vmem [#allocation1], 526
    %s4831 = smov 192
    %v4832 = vld [vmem:[%s4830] ss:$16 sm:%s4831]
    %vm4833 = vcmask 1047558
    %v4834 = vsel %vm4833, %v4832, %v4829
    %4835 = vrot.lane.b32.xlu0 %v4834, 112
    %v4836 = vpop.permute.xlu0 %4835
    %vm4837 = vcmask 982912
    %s4838 = scalar_lea.vmem [#allocation0], 32
    %4839 = vst.msk [vmem:[%s4838] sm:$0xff] %vm4837, %v4836
    %s4840 = scalar_lea.vmem [#allocation1], 1038
    %s4841 = smov 3
    %v4842 = vld [vmem:[%s4840] ss:$16 sm:%s4841]
    %s4843 = scalar_lea.vmem [#allocation1], 1038
    %s4844 = smov 12
    %v4845 = vld [vmem:[%s4843] ss:$16 sm:%s4844]
    %vm4846 = vcmask 1043458
    %v4847 = vsel %vm4846, %v4845, %v4842
    %s4848 = scalar_lea.vmem [#allocation1], 1038
    %s4849 = smov 48
    %v4850 = vld [vmem:[%s4848] ss:$16 sm:%s4849]
    %vm4851 = vcmask 1045508
    %v4852 = vsel %vm4851, %v4850, %v4847
    %s4853 = scalar_lea.vmem [#allocation1], 1038
    %s4854 = smov 192
    %v4855 = vld [vmem:[%s4853] ss:$16 sm:%s4854]
    %vm4856 = vcmask 1047558
    %v4857 = vsel %vm4856, %v4855, %v4852
    %4858 = vrot.lane.b32.xlu0 %v4857, 112
    %v4859 = vpop.permute.xlu0 %4858
    %vm4860 = vcmask 982912
    %s4861 = scalar_lea.vmem [#allocation0], 64
    %4862 = vst.msk [vmem:[%s4861] sm:$0xff] %vm4860, %v4859
    %s4863 = scalar_lea.vmem [#allocation1], 1550
    %s4864 = smov 3
    %v4865 = vld [vmem:[%s4863] ss:$16 sm:%s4864]
    %s4866 = scalar_lea.vmem [#allocation1], 1550
    %s4867 = smov 12
    %v4868 = vld [vmem:[%s4866] ss:$16 sm:%s4867]
    %vm4869 = vcmask 1043458
    %v4870 = vsel %vm4869, %v4868, %v4865
    %s4871 = scalar_lea.vmem [#allocation1], 1550
    %s4872 = smov 48
    %v4873 = vld [vmem:[%s4871] ss:$16 sm:%s4872]
    %vm4874 = vcmask 1045508
    %v4875 = vsel %vm4874, %v4873, %v4870
    %s4876 = scalar_lea.vmem [#allocation1], 1550
    %s4877 = smov 192
    %v4878 = vld [vmem:[%s4876] ss:$16 sm:%s4877]
    %vm4879 = vcmask 1047558
    %v4880 = vsel %vm4879, %v4878, %v4875
    %4881 = vrot.lane.b32.xlu0 %v4880, 112
    %v4882 = vpop.permute.xlu0 %4881
    %vm4883 = vcmask 982912
    %s4884 = scalar_lea.vmem [#allocation0], 96
    %4885 = vst.msk [vmem:[%s4884] sm:$0xff] %vm4883, %v4882
    %s4886 = scalar_lea.vmem [#allocation1], 142
    %s4887 = smov 3
    %v4888 = vld [vmem:[%s4886] ss:$16 sm:%s4887]
    %s4889 = scalar_lea.vmem [#allocation1], 142
    %s4890 = smov 12
    %v4891 = vld [vmem:[%s4889] ss:$16 sm:%s4890]
    %vm4892 = vcmask 1043458
    %v4893 = vsel %vm4892, %v4891, %v4888
    %s4894 = scalar_lea.vmem [#allocation1], 142
    %s4895 = smov 48
    %v4896 = vld [vmem:[%s4894] ss:$16 sm:%s4895]
    %vm4897 = vcmask 1045508
    %v4898 = vsel %vm4897, %v4896, %v4893
    %s4899 = scalar_lea.vmem [#allocation1], 142
    %s4900 = smov 192
    %v4901 = vld [vmem:[%s4899] ss:$16 sm:%s4900]
    %vm4902 = vcmask 1047558
    %v4903 = vsel %vm4902, %v4901, %v4898
    %4904 = vrot.lane.b32.xlu0 %v4903, 112
    %v4905 = vpop.permute.xlu0 %4904
    %vm4906 = vcmask 982912
    %s4907 = scalar_lea.vmem [#allocation0], 8
    %4908 = vst.msk [vmem:[%s4907] sm:$0xff] %vm4906, %v4905
    %s4909 = scalar_lea.vmem [#allocation1], 654
    %s4910 = smov 3
    %v4911 = vld [vmem:[%s4909] ss:$16 sm:%s4910]
    %s4912 = scalar_lea.vmem [#allocation1], 654
    %s4913 = smov 12
    %v4914 = vld [vmem:[%s4912] ss:$16 sm:%s4913]
    %vm4915 = vcmask 1043458
    %v4916 = vsel %vm4915, %v4914, %v4911
    %s4917 = scalar_lea.vmem [#allocation1], 654
    %s4918 = smov 48
    %v4919 = vld [vmem:[%s4917] ss:$16 sm:%s4918]
    %vm4920 = vcmask 1045508
    %v4921 = vsel %vm4920, %v4919, %v4916
    %s4922 = scalar_lea.vmem [#allocation1], 654
    %s4923 = smov 192
    %v4924 = vld [vmem:[%s4922] ss:$16 sm:%s4923]
    %vm4925 = vcmask 1047558
    %v4926 = vsel %vm4925, %v4924, %v4921
    %4927 = vrot.lane.b32.xlu0 %v4926, 112
    %v4928 = vpop.permute.xlu0 %4927
    %vm4929 = vcmask 982912
    %s4930 = scalar_lea.vmem [#allocation0], 40
    %4931 = vst.msk [vmem:[%s4930] sm:$0xff] %vm4929, %v4928
    %s4932 = scalar_lea.vmem [#allocation1], 1166
    %s4933 = smov 3
    %v4934 = vld [vmem:[%s4932] ss:$16 sm:%s4933]
    %s4935 = scalar_lea.vmem [#allocation1], 1166
    %s4936 = smov 12
    %v4937 = vld [vmem:[%s4935] ss:$16 sm:%s4936]
    %vm4938 = vcmask 1043458
    %v4939 = vsel %vm4938, %v4937, %v4934
    %s4940 = scalar_lea.vmem [#allocation1], 1166
    %s4941 = smov 48
    %v4942 = vld [vmem:[%s4940] ss:$16 sm:%s4941]
    %vm4943 = vcmask 1045508
    %v4944 = vsel %vm4943, %v4942, %v4939
    %s4945 = scalar_lea.vmem [#allocation1], 1166
    %s4946 = smov 192
    %v4947 = vld [vmem:[%s4945] ss:$16 sm:%s4946]
    %vm4948 = vcmask 1047558
    %v4949 = vsel %vm4948, %v4947, %v4944
    %4950 = vrot.lane.b32.xlu0 %v4949, 112
    %v4951 = vpop.permute.xlu0 %4950
    %vm4952 = vcmask 982912
    %s4953 = scalar_lea.vmem [#allocation0], 72
    %4954 = vst.msk [vmem:[%s4953] sm:$0xff] %vm4952, %v4951
    %s4955 = scalar_lea.vmem [#allocation1], 1678
    %s4956 = smov 3
    %v4957 = vld [vmem:[%s4955] ss:$16 sm:%s4956]
    %s4958 = scalar_lea.vmem [#allocation1], 1678
    %s4959 = smov 12
    %v4960 = vld [vmem:[%s4958] ss:$16 sm:%s4959]
    %vm4961 = vcmask 1043458
    %v4962 = vsel %vm4961, %v4960, %v4957
    %s4963 = scalar_lea.vmem [#allocation1], 1678
    %s4964 = smov 48
    %v4965 = vld [vmem:[%s4963] ss:$16 sm:%s4964]
    %vm4966 = vcmask 1045508
    %v4967 = vsel %vm4966, %v4965, %v4962
    %s4968 = scalar_lea.vmem [#allocation1], 1678
    %s4969 = smov 192
    %v4970 = vld [vmem:[%s4968] ss:$16 sm:%s4969]
    %vm4971 = vcmask 1047558
    %v4972 = vsel %vm4971, %v4970, %v4967
    %4973 = vrot.lane.b32.xlu0 %v4972, 112
    %v4974 = vpop.permute.xlu0 %4973
    %vm4975 = vcmask 982912
    %s4976 = scalar_lea.vmem [#allocation0], 104
    %4977 = vst.msk [vmem:[%s4976] sm:$0xff] %vm4975, %v4974
    %s4978 = scalar_lea.vmem [#allocation1], 270
    %s4979 = smov 3
    %v4980 = vld [vmem:[%s4978] ss:$16 sm:%s4979]
    %s4981 = scalar_lea.vmem [#allocation1], 270
    %s4982 = smov 12
    %v4983 = vld [vmem:[%s4981] ss:$16 sm:%s4982]
    %vm4984 = vcmask 1043458
    %v4985 = vsel %vm4984, %v4983, %v4980
    %s4986 = scalar_lea.vmem [#allocation1], 270
    %s4987 = smov 48
    %v4988 = vld [vmem:[%s4986] ss:$16 sm:%s4987]
    %vm4989 = vcmask 1045508
    %v4990 = vsel %vm4989, %v4988, %v4985
    %s4991 = scalar_lea.vmem [#allocation1], 270
    %s4992 = smov 192
    %v4993 = vld [vmem:[%s4991] ss:$16 sm:%s4992]
    %vm4994 = vcmask 1047558
    %v4995 = vsel %vm4994, %v4993, %v4990
    %4996 = vrot.lane.b32.xlu0 %v4995, 112
    %v4997 = vpop.permute.xlu0 %4996
    %vm4998 = vcmask 982912
    %s4999 = scalar_lea.vmem [#allocation0], 16
    %5000 = vst.msk [vmem:[%s4999] sm:$0xff] %vm4998, %v4997
    %s5001 = scalar_lea.vmem [#allocation1], 782
    %s5002 = smov 3
    %v5003 = vld [vmem:[%s5001] ss:$16 sm:%s5002]
    %s5004 = scalar_lea.vmem [#allocation1], 782
    %s5005 = smov 12
    %v5006 = vld [vmem:[%s5004] ss:$16 sm:%s5005]
    %vm5007 = vcmask 1043458
    %v5008 = vsel %vm5007, %v5006, %v5003
    %s5009 = scalar_lea.vmem [#allocation1], 782
    %s5010 = smov 48
    %v5011 = vld [vmem:[%s5009] ss:$16 sm:%s5010]
    %vm5012 = vcmask 1045508
    %v5013 = vsel %vm5012, %v5011, %v5008
    %s5014 = scalar_lea.vmem [#allocation1], 782
    %s5015 = smov 192
    %v5016 = vld [vmem:[%s5014] ss:$16 sm:%s5015]
    %vm5017 = vcmask 1047558
    %v5018 = vsel %vm5017, %v5016, %v5013
    %5019 = vrot.lane.b32.xlu0 %v5018, 112
    %v5020 = vpop.permute.xlu0 %5019
    %vm5021 = vcmask 982912
    %s5022 = scalar_lea.vmem [#allocation0], 48
    %5023 = vst.msk [vmem:[%s5022] sm:$0xff] %vm5021, %v5020
    %s5024 = scalar_lea.vmem [#allocation1], 1294
    %s5025 = smov 3
    %v5026 = vld [vmem:[%s5024] ss:$16 sm:%s5025]
    %s5027 = scalar_lea.vmem [#allocation1], 1294
    %s5028 = smov 12
    %v5029 = vld [vmem:[%s5027] ss:$16 sm:%s5028]
    %vm5030 = vcmask 1043458
    %v5031 = vsel %vm5030, %v5029, %v5026
    %s5032 = scalar_lea.vmem [#allocation1], 1294
    %s5033 = smov 48
    %v5034 = vld [vmem:[%s5032] ss:$16 sm:%s5033]
    %vm5035 = vcmask 1045508
    %v5036 = vsel %vm5035, %v5034, %v5031
    %s5037 = scalar_lea.vmem [#allocation1], 1294
    %s5038 = smov 192
    %v5039 = vld [vmem:[%s5037] ss:$16 sm:%s5038]
    %vm5040 = vcmask 1047558
    %v5041 = vsel %vm5040, %v5039, %v5036
    %5042 = vrot.lane.b32.xlu0 %v5041, 112
    %v5043 = vpop.permute.xlu0 %5042
    %vm5044 = vcmask 982912
    %s5045 = scalar_lea.vmem [#allocation0], 80
    %5046 = vst.msk [vmem:[%s5045] sm:$0xff] %vm5044, %v5043
    %s5047 = scalar_lea.vmem [#allocation1], 1806
    %s5048 = smov 3
    %v5049 = vld [vmem:[%s5047] ss:$16 sm:%s5048]
    %s5050 = scalar_lea.vmem [#allocation1], 1806
    %s5051 = smov 12
    %v5052 = vld [vmem:[%s5050] ss:$16 sm:%s5051]
    %vm5053 = vcmask 1043458
    %v5054 = vsel %vm5053, %v5052, %v5049
    %s5055 = scalar_lea.vmem [#allocation1], 1806
    %s5056 = smov 48
    %v5057 = vld [vmem:[%s5055] ss:$16 sm:%s5056]
    %vm5058 = vcmask 1045508
    %v5059 = vsel %vm5058, %v5057, %v5054
    %s5060 = scalar_lea.vmem [#allocation1], 1806
    %s5061 = smov 192
    %v5062 = vld [vmem:[%s5060] ss:$16 sm:%s5061]
    %vm5063 = vcmask 1047558
    %v5064 = vsel %vm5063, %v5062, %v5059
    %5065 = vrot.lane.b32.xlu0 %v5064, 112
    %v5066 = vpop.permute.xlu0 %5065
    %vm5067 = vcmask 982912
    %s5068 = scalar_lea.vmem [#allocation0], 112
    %5069 = vst.msk [vmem:[%s5068] sm:$0xff] %vm5067, %v5066
    %s5070 = scalar_lea.vmem [#allocation1], 398
    %s5071 = smov 3
    %v5072 = vld [vmem:[%s5070] ss:$16 sm:%s5071]
    %s5073 = scalar_lea.vmem [#allocation1], 398
    %s5074 = smov 12
    %v5075 = vld [vmem:[%s5073] ss:$16 sm:%s5074]
    %vm5076 = vcmask 1043458
    %v5077 = vsel %vm5076, %v5075, %v5072
    %s5078 = scalar_lea.vmem [#allocation1], 398
    %s5079 = smov 48
    %v5080 = vld [vmem:[%s5078] ss:$16 sm:%s5079]
    %vm5081 = vcmask 1045508
    %v5082 = vsel %vm5081, %v5080, %v5077
    %s5083 = scalar_lea.vmem [#allocation1], 398
    %s5084 = smov 192
    %v5085 = vld [vmem:[%s5083] ss:$16 sm:%s5084]
    %vm5086 = vcmask 1047558
    %v5087 = vsel %vm5086, %v5085, %v5082
    %5088 = vrot.lane.b32.xlu0 %v5087, 112
    %v5089 = vpop.permute.xlu0 %5088
    %vm5090 = vcmask 982912
    %s5091 = scalar_lea.vmem [#allocation0], 24
    %5092 = vst.msk [vmem:[%s5091] sm:$0xff] %vm5090, %v5089
    %s5093 = scalar_lea.vmem [#allocation1], 910
    %s5094 = smov 3
    %v5095 = vld [vmem:[%s5093] ss:$16 sm:%s5094]
    %s5096 = scalar_lea.vmem [#allocation1], 910
    %s5097 = smov 12
    %v5098 = vld [vmem:[%s5096] ss:$16 sm:%s5097]
    %vm5099 = vcmask 1043458
    %v5100 = vsel %vm5099, %v5098, %v5095
    %s5101 = scalar_lea.vmem [#allocation1], 910
    %s5102 = smov 48
    %v5103 = vld [vmem:[%s5101] ss:$16 sm:%s5102]
    %vm5104 = vcmask 1045508
    %v5105 = vsel %vm5104, %v5103, %v5100
    %s5106 = scalar_lea.vmem [#allocation1], 910
    %s5107 = smov 192
    %v5108 = vld [vmem:[%s5106] ss:$16 sm:%s5107]
    %vm5109 = vcmask 1047558
    %v5110 = vsel %vm5109, %v5108, %v5105
    %5111 = vrot.lane.b32.xlu0 %v5110, 112
    %v5112 = vpop.permute.xlu0 %5111
    %vm5113 = vcmask 982912
    %s5114 = scalar_lea.vmem [#allocation0], 56
    %5115 = vst.msk [vmem:[%s5114] sm:$0xff] %vm5113, %v5112
    %s5116 = scalar_lea.vmem [#allocation1], 1422
    %s5117 = smov 3
    %v5118 = vld [vmem:[%s5116] ss:$16 sm:%s5117]
    %s5119 = scalar_lea.vmem [#allocation1], 1422
    %s5120 = smov 12
    %v5121 = vld [vmem:[%s5119] ss:$16 sm:%s5120]
    %vm5122 = vcmask 1043458
    %v5123 = vsel %vm5122, %v5121, %v5118
    %s5124 = scalar_lea.vmem [#allocation1], 1422
    %s5125 = smov 48
    %v5126 = vld [vmem:[%s5124] ss:$16 sm:%s5125]
    %vm5127 = vcmask 1045508
    %v5128 = vsel %vm5127, %v5126, %v5123
    %s5129 = scalar_lea.vmem [#allocation1], 1422
    %s5130 = smov 192
    %v5131 = vld [vmem:[%s5129] ss:$16 sm:%s5130]
    %vm5132 = vcmask 1047558
    %v5133 = vsel %vm5132, %v5131, %v5128
    %5134 = vrot.lane.b32.xlu0 %v5133, 112
    %v5135 = vpop.permute.xlu0 %5134
    %vm5136 = vcmask 982912
    %s5137 = scalar_lea.vmem [#allocation0], 88
    %5138 = vst.msk [vmem:[%s5137] sm:$0xff] %vm5136, %v5135
    %s5139 = scalar_lea.vmem [#allocation1], 1934
    %s5140 = smov 3
    %v5141 = vld [vmem:[%s5139] ss:$16 sm:%s5140]
    %s5142 = scalar_lea.vmem [#allocation1], 1934
    %s5143 = smov 12
    %v5144 = vld [vmem:[%s5142] ss:$16 sm:%s5143]
    %vm5145 = vcmask 1043458
    %v5146 = vsel %vm5145, %v5144, %v5141
    %s5147 = scalar_lea.vmem [#allocation1], 1934
    %s5148 = smov 48
    %v5149 = vld [vmem:[%s5147] ss:$16 sm:%s5148]
    %vm5150 = vcmask 1045508
    %v5151 = vsel %vm5150, %v5149, %v5146
    %s5152 = scalar_lea.vmem [#allocation1], 1934
    %s5153 = smov 192
    %v5154 = vld [vmem:[%s5152] ss:$16 sm:%s5153]
    %vm5155 = vcmask 1047558
    %v5156 = vsel %vm5155, %v5154, %v5151
    %5157 = vrot.lane.b32.xlu0 %v5156, 112
    %v5158 = vpop.permute.xlu0 %5157
    %vm5159 = vcmask 982912
    %s5160 = scalar_lea.vmem [#allocation0], 120
    %5161 = vst.msk [vmem:[%s5160] sm:$0xff] %vm5159, %v5158
    %s5162 = scalar_lea.vmem [#allocation1], 13
    %s5163 = smov 3
    %v5164 = vld [vmem:[%s5162] ss:$16 sm:%s5163]
    %s5165 = scalar_lea.vmem [#allocation1], 13
    %s5166 = smov 12
    %v5167 = vld [vmem:[%s5165] ss:$16 sm:%s5166]
    %vm5168 = vcmask 1043458
    %v5169 = vsel %vm5168, %v5167, %v5164
    %s5170 = scalar_lea.vmem [#allocation1], 13
    %s5171 = smov 48
    %v5172 = vld [vmem:[%s5170] ss:$16 sm:%s5171]
    %vm5173 = vcmask 1045508
    %v5174 = vsel %vm5173, %v5172, %v5169
    %s5175 = scalar_lea.vmem [#allocation1], 13
    %s5176 = smov 192
    %v5177 = vld [vmem:[%s5175] ss:$16 sm:%s5176]
    %vm5178 = vcmask 1047558
    %v5179 = vsel %vm5178, %v5177, %v5174
    %5180 = vrot.lane.b32.xlu0 %v5179, 104
    %v5181 = vpop.permute.xlu0 %5180
    %vm5182 = vcmask 917312
    %5183 = vst.msk [vmem:[#allocation0] sm:$0xff] %vm5182, %v5181
    %s5184 = scalar_lea.vmem [#allocation1], 525
    %s5185 = smov 3
    %v5186 = vld [vmem:[%s5184] ss:$16 sm:%s5185]
    %s5187 = scalar_lea.vmem [#allocation1], 525
    %s5188 = smov 12
    %v5189 = vld [vmem:[%s5187] ss:$16 sm:%s5188]
    %vm5190 = vcmask 1043458
    %v5191 = vsel %vm5190, %v5189, %v5186
    %s5192 = scalar_lea.vmem [#allocation1], 525
    %s5193 = smov 48
    %v5194 = vld [vmem:[%s5192] ss:$16 sm:%s5193]
    %vm5195 = vcmask 1045508
    %v5196 = vsel %vm5195, %v5194, %v5191
    %s5197 = scalar_lea.vmem [#allocation1], 525
    %s5198 = smov 192
    %v5199 = vld [vmem:[%s5197] ss:$16 sm:%s5198]
    %vm5200 = vcmask 1047558
    %v5201 = vsel %vm5200, %v5199, %v5196
    %5202 = vrot.lane.b32.xlu0 %v5201, 104
    %v5203 = vpop.permute.xlu0 %5202
    %vm5204 = vcmask 917312
    %s5205 = scalar_lea.vmem [#allocation0], 32
    %5206 = vst.msk [vmem:[%s5205] sm:$0xff] %vm5204, %v5203
    %s5207 = scalar_lea.vmem [#allocation1], 1037
    %s5208 = smov 3
    %v5209 = vld [vmem:[%s5207] ss:$16 sm:%s5208]
    %s5210 = scalar_lea.vmem [#allocation1], 1037
    %s5211 = smov 12
    %v5212 = vld [vmem:[%s5210] ss:$16 sm:%s5211]
    %vm5213 = vcmask 1043458
    %v5214 = vsel %vm5213, %v5212, %v5209
    %s5215 = scalar_lea.vmem [#allocation1], 1037
    %s5216 = smov 48
    %v5217 = vld [vmem:[%s5215] ss:$16 sm:%s5216]
    %vm5218 = vcmask 1045508
    %v5219 = vsel %vm5218, %v5217, %v5214
    %s5220 = scalar_lea.vmem [#allocation1], 1037
    %s5221 = smov 192
    %v5222 = vld [vmem:[%s5220] ss:$16 sm:%s5221]
    %vm5223 = vcmask 1047558
    %v5224 = vsel %vm5223, %v5222, %v5219
    %5225 = vrot.lane.b32.xlu0 %v5224, 104
    %v5226 = vpop.permute.xlu0 %5225
    %vm5227 = vcmask 917312
    %s5228 = scalar_lea.vmem [#allocation0], 64
    %5229 = vst.msk [vmem:[%s5228] sm:$0xff] %vm5227, %v5226
    %s5230 = scalar_lea.vmem [#allocation1], 1549
    %s5231 = smov 3
    %v5232 = vld [vmem:[%s5230] ss:$16 sm:%s5231]
    %s5233 = scalar_lea.vmem [#allocation1], 1549
    %s5234 = smov 12
    %v5235 = vld [vmem:[%s5233] ss:$16 sm:%s5234]
    %vm5236 = vcmask 1043458
    %v5237 = vsel %vm5236, %v5235, %v5232
    %s5238 = scalar_lea.vmem [#allocation1], 1549
    %s5239 = smov 48
    %v5240 = vld [vmem:[%s5238] ss:$16 sm:%s5239]
    %vm5241 = vcmask 1045508
    %v5242 = vsel %vm5241, %v5240, %v5237
    %s5243 = scalar_lea.vmem [#allocation1], 1549
    %s5244 = smov 192
    %v5245 = vld [vmem:[%s5243] ss:$16 sm:%s5244]
    %vm5246 = vcmask 1047558
    %v5247 = vsel %vm5246, %v5245, %v5242
    %5248 = vrot.lane.b32.xlu0 %v5247, 104
    %v5249 = vpop.permute.xlu0 %5248
    %vm5250 = vcmask 917312
    %s5251 = scalar_lea.vmem [#allocation0], 96
    %5252 = vst.msk [vmem:[%s5251] sm:$0xff] %vm5250, %v5249
    %s5253 = scalar_lea.vmem [#allocation1], 141
    %s5254 = smov 3
    %v5255 = vld [vmem:[%s5253] ss:$16 sm:%s5254]
    %s5256 = scalar_lea.vmem [#allocation1], 141
    %s5257 = smov 12
    %v5258 = vld [vmem:[%s5256] ss:$16 sm:%s5257]
    %vm5259 = vcmask 1043458
    %v5260 = vsel %vm5259, %v5258, %v5255
    %s5261 = scalar_lea.vmem [#allocation1], 141
    %s5262 = smov 48
    %v5263 = vld [vmem:[%s5261] ss:$16 sm:%s5262]
    %vm5264 = vcmask 1045508
    %v5265 = vsel %vm5264, %v5263, %v5260
    %s5266 = scalar_lea.vmem [#allocation1], 141
    %s5267 = smov 192
    %v5268 = vld [vmem:[%s5266] ss:$16 sm:%s5267]
    %vm5269 = vcmask 1047558
    %v5270 = vsel %vm5269, %v5268, %v5265
    %5271 = vrot.lane.b32.xlu0 %v5270, 104
    %v5272 = vpop.permute.xlu0 %5271
    %vm5273 = vcmask 917312
    %s5274 = scalar_lea.vmem [#allocation0], 8
    %5275 = vst.msk [vmem:[%s5274] sm:$0xff] %vm5273, %v5272
    %s5276 = scalar_lea.vmem [#allocation1], 653
    %s5277 = smov 3
    %v5278 = vld [vmem:[%s5276] ss:$16 sm:%s5277]
    %s5279 = scalar_lea.vmem [#allocation1], 653
    %s5280 = smov 12
    %v5281 = vld [vmem:[%s5279] ss:$16 sm:%s5280]
    %vm5282 = vcmask 1043458
    %v5283 = vsel %vm5282, %v5281, %v5278
    %s5284 = scalar_lea.vmem [#allocation1], 653
    %s5285 = smov 48
    %v5286 = vld [vmem:[%s5284] ss:$16 sm:%s5285]
    %vm5287 = vcmask 1045508
    %v5288 = vsel %vm5287, %v5286, %v5283
    %s5289 = scalar_lea.vmem [#allocation1], 653
    %s5290 = smov 192
    %v5291 = vld [vmem:[%s5289] ss:$16 sm:%s5290]
    %vm5292 = vcmask 1047558
    %v5293 = vsel %vm5292, %v5291, %v5288
    %5294 = vrot.lane.b32.xlu0 %v5293, 104
    %v5295 = vpop.permute.xlu0 %5294
    %vm5296 = vcmask 917312
    %s5297 = scalar_lea.vmem [#allocation0], 40
    %5298 = vst.msk [vmem:[%s5297] sm:$0xff] %vm5296, %v5295
    %s5299 = scalar_lea.vmem [#allocation1], 1165
    %s5300 = smov 3
    %v5301 = vld [vmem:[%s5299] ss:$16 sm:%s5300]
    %s5302 = scalar_lea.vmem [#allocation1], 1165
    %s5303 = smov 12
    %v5304 = vld [vmem:[%s5302] ss:$16 sm:%s5303]
    %vm5305 = vcmask 1043458
    %v5306 = vsel %vm5305, %v5304, %v5301
    %s5307 = scalar_lea.vmem [#allocation1], 1165
    %s5308 = smov 48
    %v5309 = vld [vmem:[%s5307] ss:$16 sm:%s5308]
    %vm5310 = vcmask 1045508
    %v5311 = vsel %vm5310, %v5309, %v5306
    %s5312 = scalar_lea.vmem [#allocation1], 1165
    %s5313 = smov 192
    %v5314 = vld [vmem:[%s5312] ss:$16 sm:%s5313]
    %vm5315 = vcmask 1047558
    %v5316 = vsel %vm5315, %v5314, %v5311
    %5317 = vrot.lane.b32.xlu0 %v5316, 104
    %v5318 = vpop.permute.xlu0 %5317
    %vm5319 = vcmask 917312
    %s5320 = scalar_lea.vmem [#allocation0], 72
    %5321 = vst.msk [vmem:[%s5320] sm:$0xff] %vm5319, %v5318
    %s5322 = scalar_lea.vmem [#allocation1], 1677
    %s5323 = smov 3
    %v5324 = vld [vmem:[%s5322] ss:$16 sm:%s5323]
    %s5325 = scalar_lea.vmem [#allocation1], 1677
    %s5326 = smov 12
    %v5327 = vld [vmem:[%s5325] ss:$16 sm:%s5326]
    %vm5328 = vcmask 1043458
    %v5329 = vsel %vm5328, %v5327, %v5324
    %s5330 = scalar_lea.vmem [#allocation1], 1677
    %s5331 = smov 48
    %v5332 = vld [vmem:[%s5330] ss:$16 sm:%s5331]
    %vm5333 = vcmask 1045508
    %v5334 = vsel %vm5333, %v5332, %v5329
    %s5335 = scalar_lea.vmem [#allocation1], 1677
    %s5336 = smov 192
    %v5337 = vld [vmem:[%s5335] ss:$16 sm:%s5336]
    %vm5338 = vcmask 1047558
    %v5339 = vsel %vm5338, %v5337, %v5334
    %5340 = vrot.lane.b32.xlu0 %v5339, 104
    %v5341 = vpop.permute.xlu0 %5340
    %vm5342 = vcmask 917312
    %s5343 = scalar_lea.vmem [#allocation0], 104
    %5344 = vst.msk [vmem:[%s5343] sm:$0xff] %vm5342, %v5341
    %s5345 = scalar_lea.vmem [#allocation1], 269
    %s5346 = smov 3
    %v5347 = vld [vmem:[%s5345] ss:$16 sm:%s5346]
    %s5348 = scalar_lea.vmem [#allocation1], 269
    %s5349 = smov 12
    %v5350 = vld [vmem:[%s5348] ss:$16 sm:%s5349]
    %vm5351 = vcmask 1043458
    %v5352 = vsel %vm5351, %v5350, %v5347
    %s5353 = scalar_lea.vmem [#allocation1], 269
    %s5354 = smov 48
    %v5355 = vld [vmem:[%s5353] ss:$16 sm:%s5354]
    %vm5356 = vcmask 1045508
    %v5357 = vsel %vm5356, %v5355, %v5352
    %s5358 = scalar_lea.vmem [#allocation1], 269
    %s5359 = smov 192
    %v5360 = vld [vmem:[%s5358] ss:$16 sm:%s5359]
    %vm5361 = vcmask 1047558
    %v5362 = vsel %vm5361, %v5360, %v5357
    %5363 = vrot.lane.b32.xlu0 %v5362, 104
    %v5364 = vpop.permute.xlu0 %5363
    %vm5365 = vcmask 917312
    %s5366 = scalar_lea.vmem [#allocation0], 16
    %5367 = vst.msk [vmem:[%s5366] sm:$0xff] %vm5365, %v5364
    %s5368 = scalar_lea.vmem [#allocation1], 781
    %s5369 = smov 3
    %v5370 = vld [vmem:[%s5368] ss:$16 sm:%s5369]
    %s5371 = scalar_lea.vmem [#allocation1], 781
    %s5372 = smov 12
    %v5373 = vld [vmem:[%s5371] ss:$16 sm:%s5372]
    %vm5374 = vcmask 1043458
    %v5375 = vsel %vm5374, %v5373, %v5370
    %s5376 = scalar_lea.vmem [#allocation1], 781
    %s5377 = smov 48
    %v5378 = vld [vmem:[%s5376] ss:$16 sm:%s5377]
    %vm5379 = vcmask 1045508
    %v5380 = vsel %vm5379, %v5378, %v5375
    %s5381 = scalar_lea.vmem [#allocation1], 781
    %s5382 = smov 192
    %v5383 = vld [vmem:[%s5381] ss:$16 sm:%s5382]
    %vm5384 = vcmask 1047558
    %v5385 = vsel %vm5384, %v5383, %v5380
    %5386 = vrot.lane.b32.xlu0 %v5385, 104
    %v5387 = vpop.permute.xlu0 %5386
    %vm5388 = vcmask 917312
    %s5389 = scalar_lea.vmem [#allocation0], 48
    %5390 = vst.msk [vmem:[%s5389] sm:$0xff] %vm5388, %v5387
    %s5391 = scalar_lea.vmem [#allocation1], 1293
    %s5392 = smov 3
    %v5393 = vld [vmem:[%s5391] ss:$16 sm:%s5392]
    %s5394 = scalar_lea.vmem [#allocation1], 1293
    %s5395 = smov 12
    %v5396 = vld [vmem:[%s5394] ss:$16 sm:%s5395]
    %vm5397 = vcmask 1043458
    %v5398 = vsel %vm5397, %v5396, %v5393
    %s5399 = scalar_lea.vmem [#allocation1], 1293
    %s5400 = smov 48
    %v5401 = vld [vmem:[%s5399] ss:$16 sm:%s5400]
    %vm5402 = vcmask 1045508
    %v5403 = vsel %vm5402, %v5401, %v5398
    %s5404 = scalar_lea.vmem [#allocation1], 1293
    %s5405 = smov 192
    %v5406 = vld [vmem:[%s5404] ss:$16 sm:%s5405]
    %vm5407 = vcmask 1047558
    %v5408 = vsel %vm5407, %v5406, %v5403
    %5409 = vrot.lane.b32.xlu0 %v5408, 104
    %v5410 = vpop.permute.xlu0 %5409
    %vm5411 = vcmask 917312
    %s5412 = scalar_lea.vmem [#allocation0], 80
    %5413 = vst.msk [vmem:[%s5412] sm:$0xff] %vm5411, %v5410
    %s5414 = scalar_lea.vmem [#allocation1], 1805
    %s5415 = smov 3
    %v5416 = vld [vmem:[%s5414] ss:$16 sm:%s5415]
    %s5417 = scalar_lea.vmem [#allocation1], 1805
    %s5418 = smov 12
    %v5419 = vld [vmem:[%s5417] ss:$16 sm:%s5418]
    %vm5420 = vcmask 1043458
    %v5421 = vsel %vm5420, %v5419, %v5416
    %s5422 = scalar_lea.vmem [#allocation1], 1805
    %s5423 = smov 48
    %v5424 = vld [vmem:[%s5422] ss:$16 sm:%s5423]
    %vm5425 = vcmask 1045508
    %v5426 = vsel %vm5425, %v5424, %v5421
    %s5427 = scalar_lea.vmem [#allocation1], 1805
    %s5428 = smov 192
    %v5429 = vld [vmem:[%s5427] ss:$16 sm:%s5428]
    %vm5430 = vcmask 1047558
    %v5431 = vsel %vm5430, %v5429, %v5426
    %5432 = vrot.lane.b32.xlu0 %v5431, 104
    %v5433 = vpop.permute.xlu0 %5432
    %vm5434 = vcmask 917312
    %s5435 = scalar_lea.vmem [#allocation0], 112
    %5436 = vst.msk [vmem:[%s5435] sm:$0xff] %vm5434, %v5433
    %s5437 = scalar_lea.vmem [#allocation1], 397
    %s5438 = smov 3
    %v5439 = vld [vmem:[%s5437] ss:$16 sm:%s5438]
    %s5440 = scalar_lea.vmem [#allocation1], 397
    %s5441 = smov 12
    %v5442 = vld [vmem:[%s5440] ss:$16 sm:%s5441]
    %vm5443 = vcmask 1043458
    %v5444 = vsel %vm5443, %v5442, %v5439
    %s5445 = scalar_lea.vmem [#allocation1], 397
    %s5446 = smov 48
    %v5447 = vld [vmem:[%s5445] ss:$16 sm:%s5446]
    %vm5448 = vcmask 1045508
    %v5449 = vsel %vm5448, %v5447, %v5444
    %s5450 = scalar_lea.vmem [#allocation1], 397
    %s5451 = smov 192
    %v5452 = vld [vmem:[%s5450] ss:$16 sm:%s5451]
    %vm5453 = vcmask 1047558
    %v5454 = vsel %vm5453, %v5452, %v5449
    %5455 = vrot.lane.b32.xlu0 %v5454, 104
    %v5456 = vpop.permute.xlu0 %5455
    %vm5457 = vcmask 917312
    %s5458 = scalar_lea.vmem [#allocation0], 24
    %5459 = vst.msk [vmem:[%s5458] sm:$0xff] %vm5457, %v5456
    %s5460 = scalar_lea.vmem [#allocation1], 909
    %s5461 = smov 3
    %v5462 = vld [vmem:[%s5460] ss:$16 sm:%s5461]
    %s5463 = scalar_lea.vmem [#allocation1], 909
    %s5464 = smov 12
    %v5465 = vld [vmem:[%s5463] ss:$16 sm:%s5464]
    %vm5466 = vcmask 1043458
    %v5467 = vsel %vm5466, %v5465, %v5462
    %s5468 = scalar_lea.vmem [#allocation1], 909
    %s5469 = smov 48
    %v5470 = vld [vmem:[%s5468] ss:$16 sm:%s5469]
    %vm5471 = vcmask 1045508
    %v5472 = vsel %vm5471, %v5470, %v5467
    %s5473 = scalar_lea.vmem [#allocation1], 909
    %s5474 = smov 192
    %v5475 = vld [vmem:[%s5473] ss:$16 sm:%s5474]
    %vm5476 = vcmask 1047558
    %v5477 = vsel %vm5476, %v5475, %v5472
    %5478 = vrot.lane.b32.xlu0 %v5477, 104
    %v5479 = vpop.permute.xlu0 %5478
    %vm5480 = vcmask 917312
    %s5481 = scalar_lea.vmem [#allocation0], 56
    %5482 = vst.msk [vmem:[%s5481] sm:$0xff] %vm5480, %v5479
    %s5483 = scalar_lea.vmem [#allocation1], 1421
    %s5484 = smov 3
    %v5485 = vld [vmem:[%s5483] ss:$16 sm:%s5484]
    %s5486 = scalar_lea.vmem [#allocation1], 1421
    %s5487 = smov 12
    %v5488 = vld [vmem:[%s5486] ss:$16 sm:%s5487]
    %vm5489 = vcmask 1043458
    %v5490 = vsel %vm5489, %v5488, %v5485
    %s5491 = scalar_lea.vmem [#allocation1], 1421
    %s5492 = smov 48
    %v5493 = vld [vmem:[%s5491] ss:$16 sm:%s5492]
    %vm5494 = vcmask 1045508
    %v5495 = vsel %vm5494, %v5493, %v5490
    %s5496 = scalar_lea.vmem [#allocation1], 1421
    %s5497 = smov 192
    %v5498 = vld [vmem:[%s5496] ss:$16 sm:%s5497]
    %vm5499 = vcmask 1047558
    %v5500 = vsel %vm5499, %v5498, %v5495
    %5501 = vrot.lane.b32.xlu0 %v5500, 104
    %v5502 = vpop.permute.xlu0 %5501
    %vm5503 = vcmask 917312
    %s5504 = scalar_lea.vmem [#allocation0], 88
    %5505 = vst.msk [vmem:[%s5504] sm:$0xff] %vm5503, %v5502
    %s5506 = scalar_lea.vmem [#allocation1], 1933
    %s5507 = smov 3
    %v5508 = vld [vmem:[%s5506] ss:$16 sm:%s5507]
    %s5509 = scalar_lea.vmem [#allocation1], 1933
    %s5510 = smov 12
    %v5511 = vld [vmem:[%s5509] ss:$16 sm:%s5510]
    %vm5512 = vcmask 1043458
    %v5513 = vsel %vm5512, %v5511, %v5508
    %s5514 = scalar_lea.vmem [#allocation1], 1933
    %s5515 = smov 48
    %v5516 = vld [vmem:[%s5514] ss:$16 sm:%s5515]
    %vm5517 = vcmask 1045508
    %v5518 = vsel %vm5517, %v5516, %v5513
    %s5519 = scalar_lea.vmem [#allocation1], 1933
    %s5520 = smov 192
    %v5521 = vld [vmem:[%s5519] ss:$16 sm:%s5520]
    %vm5522 = vcmask 1047558
    %v5523 = vsel %vm5522, %v5521, %v5518
    %5524 = vrot.lane.b32.xlu0 %v5523, 104
    %v5525 = vpop.permute.xlu0 %5524
    %vm5526 = vcmask 917312
    %s5527 = scalar_lea.vmem [#allocation0], 120
    %5528 = vst.msk [vmem:[%s5527] sm:$0xff] %vm5526, %v5525
    %s5529 = scalar_lea.vmem [#allocation1], 12
    %s5530 = smov 3
    %v5531 = vld [vmem:[%s5529] ss:$16 sm:%s5530]
    %s5532 = scalar_lea.vmem [#allocation1], 12
    %s5533 = smov 12
    %v5534 = vld [vmem:[%s5532] ss:$16 sm:%s5533]
    %vm5535 = vcmask 1043458
    %v5536 = vsel %vm5535, %v5534, %v5531
    %s5537 = scalar_lea.vmem [#allocation1], 12
    %s5538 = smov 48
    %v5539 = vld [vmem:[%s5537] ss:$16 sm:%s5538]
    %vm5540 = vcmask 1045508
    %v5541 = vsel %vm5540, %v5539, %v5536
    %s5542 = scalar_lea.vmem [#allocation1], 12
    %s5543 = smov 192
    %v5544 = vld [vmem:[%s5542] ss:$16 sm:%s5543]
    %vm5545 = vcmask 1047558
    %v5546 = vsel %vm5545, %v5544, %v5541
    %5547 = vrot.lane.b32.xlu0 %v5546, 96
    %v5548 = vpop.permute.xlu0 %5547
    %vm5549 = vcmask 851712
    %5550 = vst.msk [vmem:[#allocation0] sm:$0xff] %vm5549, %v5548
    %s5551 = scalar_lea.vmem [#allocation1], 524
    %s5552 = smov 3
    %v5553 = vld [vmem:[%s5551] ss:$16 sm:%s5552]
    %s5554 = scalar_lea.vmem [#allocation1], 524
    %s5555 = smov 12
    %v5556 = vld [vmem:[%s5554] ss:$16 sm:%s5555]
    %vm5557 = vcmask 1043458
    %v5558 = vsel %vm5557, %v5556, %v5553
    %s5559 = scalar_lea.vmem [#allocation1], 524
    %s5560 = smov 48
    %v5561 = vld [vmem:[%s5559] ss:$16 sm:%s5560]
    %vm5562 = vcmask 1045508
    %v5563 = vsel %vm5562, %v5561, %v5558
    %s5564 = scalar_lea.vmem [#allocation1], 524
    %s5565 = smov 192
    %v5566 = vld [vmem:[%s5564] ss:$16 sm:%s5565]
    %vm5567 = vcmask 1047558
    %v5568 = vsel %vm5567, %v5566, %v5563
    %5569 = vrot.lane.b32.xlu0 %v5568, 96
    %v5570 = vpop.permute.xlu0 %5569
    %vm5571 = vcmask 851712
    %s5572 = scalar_lea.vmem [#allocation0], 32
    %5573 = vst.msk [vmem:[%s5572] sm:$0xff] %vm5571, %v5570
    %s5574 = scalar_lea.vmem [#allocation1], 1036
    %s5575 = smov 3
    %v5576 = vld [vmem:[%s5574] ss:$16 sm:%s5575]
    %s5577 = scalar_lea.vmem [#allocation1], 1036
    %s5578 = smov 12
    %v5579 = vld [vmem:[%s5577] ss:$16 sm:%s5578]
    %vm5580 = vcmask 1043458
    %v5581 = vsel %vm5580, %v5579, %v5576
    %s5582 = scalar_lea.vmem [#allocation1], 1036
    %s5583 = smov 48
    %v5584 = vld [vmem:[%s5582] ss:$16 sm:%s5583]
    %vm5585 = vcmask 1045508
    %v5586 = vsel %vm5585, %v5584, %v5581
    %s5587 = scalar_lea.vmem [#allocation1], 1036
    %s5588 = smov 192
    %v5589 = vld [vmem:[%s5587] ss:$16 sm:%s5588]
    %vm5590 = vcmask 1047558
    %v5591 = vsel %vm5590, %v5589, %v5586
    %5592 = vrot.lane.b32.xlu0 %v5591, 96
    %v5593 = vpop.permute.xlu0 %5592
    %vm5594 = vcmask 851712
    %s5595 = scalar_lea.vmem [#allocation0], 64
    %5596 = vst.msk [vmem:[%s5595] sm:$0xff] %vm5594, %v5593
    %s5597 = scalar_lea.vmem [#allocation1], 1548
    %s5598 = smov 3
    %v5599 = vld [vmem:[%s5597] ss:$16 sm:%s5598]
    %s5600 = scalar_lea.vmem [#allocation1], 1548
    %s5601 = smov 12
    %v5602 = vld [vmem:[%s5600] ss:$16 sm:%s5601]
    %vm5603 = vcmask 1043458
    %v5604 = vsel %vm5603, %v5602, %v5599
    %s5605 = scalar_lea.vmem [#allocation1], 1548
    %s5606 = smov 48
    %v5607 = vld [vmem:[%s5605] ss:$16 sm:%s5606]
    %vm5608 = vcmask 1045508
    %v5609 = vsel %vm5608, %v5607, %v5604
    %s5610 = scalar_lea.vmem [#allocation1], 1548
    %s5611 = smov 192
    %v5612 = vld [vmem:[%s5610] ss:$16 sm:%s5611]
    %vm5613 = vcmask 1047558
    %v5614 = vsel %vm5613, %v5612, %v5609
    %5615 = vrot.lane.b32.xlu0 %v5614, 96
    %v5616 = vpop.permute.xlu0 %5615
    %vm5617 = vcmask 851712
    %s5618 = scalar_lea.vmem [#allocation0], 96
    %5619 = vst.msk [vmem:[%s5618] sm:$0xff] %vm5617, %v5616
    %s5620 = scalar_lea.vmem [#allocation1], 140
    %s5621 = smov 3
    %v5622 = vld [vmem:[%s5620] ss:$16 sm:%s5621]
    %s5623 = scalar_lea.vmem [#allocation1], 140
    %s5624 = smov 12
    %v5625 = vld [vmem:[%s5623] ss:$16 sm:%s5624]
    %vm5626 = vcmask 1043458
    %v5627 = vsel %vm5626, %v5625, %v5622
    %s5628 = scalar_lea.vmem [#allocation1], 140
    %s5629 = smov 48
    %v5630 = vld [vmem:[%s5628] ss:$16 sm:%s5629]
    %vm5631 = vcmask 1045508
    %v5632 = vsel %vm5631, %v5630, %v5627
    %s5633 = scalar_lea.vmem [#allocation1], 140
    %s5634 = smov 192
    %v5635 = vld [vmem:[%s5633] ss:$16 sm:%s5634]
    %vm5636 = vcmask 1047558
    %v5637 = vsel %vm5636, %v5635, %v5632
    %5638 = vrot.lane.b32.xlu0 %v5637, 96
    %v5639 = vpop.permute.xlu0 %5638
    %vm5640 = vcmask 851712
    %s5641 = scalar_lea.vmem [#allocation0], 8
    %5642 = vst.msk [vmem:[%s5641] sm:$0xff] %vm5640, %v5639
    %s5643 = scalar_lea.vmem [#allocation1], 652
    %s5644 = smov 3
    %v5645 = vld [vmem:[%s5643] ss:$16 sm:%s5644]
    %s5646 = scalar_lea.vmem [#allocation1], 652
    %s5647 = smov 12
    %v5648 = vld [vmem:[%s5646] ss:$16 sm:%s5647]
    %vm5649 = vcmask 1043458
    %v5650 = vsel %vm5649, %v5648, %v5645
    %s5651 = scalar_lea.vmem [#allocation1], 652
    %s5652 = smov 48
    %v5653 = vld [vmem:[%s5651] ss:$16 sm:%s5652]
    %vm5654 = vcmask 1045508
    %v5655 = vsel %vm5654, %v5653, %v5650
    %s5656 = scalar_lea.vmem [#allocation1], 652
    %s5657 = smov 192
    %v5658 = vld [vmem:[%s5656] ss:$16 sm:%s5657]
    %vm5659 = vcmask 1047558
    %v5660 = vsel %vm5659, %v5658, %v5655
    %5661 = vrot.lane.b32.xlu0 %v5660, 96
    %v5662 = vpop.permute.xlu0 %5661
    %vm5663 = vcmask 851712
    %s5664 = scalar_lea.vmem [#allocation0], 40
    %5665 = vst.msk [vmem:[%s5664] sm:$0xff] %vm5663, %v5662
    %s5666 = scalar_lea.vmem [#allocation1], 1164
    %s5667 = smov 3
    %v5668 = vld [vmem:[%s5666] ss:$16 sm:%s5667]
    %s5669 = scalar_lea.vmem [#allocation1], 1164
    %s5670 = smov 12
    %v5671 = vld [vmem:[%s5669] ss:$16 sm:%s5670]
    %vm5672 = vcmask 1043458
    %v5673 = vsel %vm5672, %v5671, %v5668
    %s5674 = scalar_lea.vmem [#allocation1], 1164
    %s5675 = smov 48
    %v5676 = vld [vmem:[%s5674] ss:$16 sm:%s5675]
    %vm5677 = vcmask 1045508
    %v5678 = vsel %vm5677, %v5676, %v5673
    %s5679 = scalar_lea.vmem [#allocation1], 1164
    %s5680 = smov 192
    %v5681 = vld [vmem:[%s5679] ss:$16 sm:%s5680]
    %vm5682 = vcmask 1047558
    %v5683 = vsel %vm5682, %v5681, %v5678
    %5684 = vrot.lane.b32.xlu0 %v5683, 96
    %v5685 = vpop.permute.xlu0 %5684
    %vm5686 = vcmask 851712
    %s5687 = scalar_lea.vmem [#allocation0], 72
    %5688 = vst.msk [vmem:[%s5687] sm:$0xff] %vm5686, %v5685
    %s5689 = scalar_lea.vmem [#allocation1], 1676
    %s5690 = smov 3
    %v5691 = vld [vmem:[%s5689] ss:$16 sm:%s5690]
    %s5692 = scalar_lea.vmem [#allocation1], 1676
    %s5693 = smov 12
    %v5694 = vld [vmem:[%s5692] ss:$16 sm:%s5693]
    %vm5695 = vcmask 1043458
    %v5696 = vsel %vm5695, %v5694, %v5691
    %s5697 = scalar_lea.vmem [#allocation1], 1676
    %s5698 = smov 48
    %v5699 = vld [vmem:[%s5697] ss:$16 sm:%s5698]
    %vm5700 = vcmask 1045508
    %v5701 = vsel %vm5700, %v5699, %v5696
    %s5702 = scalar_lea.vmem [#allocation1], 1676
    %s5703 = smov 192
    %v5704 = vld [vmem:[%s5702] ss:$16 sm:%s5703]
    %vm5705 = vcmask 1047558
    %v5706 = vsel %vm5705, %v5704, %v5701
    %5707 = vrot.lane.b32.xlu0 %v5706, 96
    %v5708 = vpop.permute.xlu0 %5707
    %vm5709 = vcmask 851712
    %s5710 = scalar_lea.vmem [#allocation0], 104
    %5711 = vst.msk [vmem:[%s5710] sm:$0xff] %vm5709, %v5708
    %s5712 = scalar_lea.vmem [#allocation1], 268
    %s5713 = smov 3
    %v5714 = vld [vmem:[%s5712] ss:$16 sm:%s5713]
    %s5715 = scalar_lea.vmem [#allocation1], 268
    %s5716 = smov 12
    %v5717 = vld [vmem:[%s5715] ss:$16 sm:%s5716]
    %vm5718 = vcmask 1043458
    %v5719 = vsel %vm5718, %v5717, %v5714
    %s5720 = scalar_lea.vmem [#allocation1], 268
    %s5721 = smov 48
    %v5722 = vld [vmem:[%s5720] ss:$16 sm:%s5721]
    %vm5723 = vcmask 1045508
    %v5724 = vsel %vm5723, %v5722, %v5719
    %s5725 = scalar_lea.vmem [#allocation1], 268
    %s5726 = smov 192
    %v5727 = vld [vmem:[%s5725] ss:$16 sm:%s5726]
    %vm5728 = vcmask 1047558
    %v5729 = vsel %vm5728, %v5727, %v5724
    %5730 = vrot.lane.b32.xlu0 %v5729, 96
    %v5731 = vpop.permute.xlu0 %5730
    %vm5732 = vcmask 851712
    %s5733 = scalar_lea.vmem [#allocation0], 16
    %5734 = vst.msk [vmem:[%s5733] sm:$0xff] %vm5732, %v5731
    %s5735 = scalar_lea.vmem [#allocation1], 780
    %s5736 = smov 3
    %v5737 = vld [vmem:[%s5735] ss:$16 sm:%s5736]
    %s5738 = scalar_lea.vmem [#allocation1], 780
    %s5739 = smov 12
    %v5740 = vld [vmem:[%s5738] ss:$16 sm:%s5739]
    %vm5741 = vcmask 1043458
    %v5742 = vsel %vm5741, %v5740, %v5737
    %s5743 = scalar_lea.vmem [#allocation1], 780
    %s5744 = smov 48
    %v5745 = vld [vmem:[%s5743] ss:$16 sm:%s5744]
    %vm5746 = vcmask 1045508
    %v5747 = vsel %vm5746, %v5745, %v5742
    %s5748 = scalar_lea.vmem [#allocation1], 780
    %s5749 = smov 192
    %v5750 = vld [vmem:[%s5748] ss:$16 sm:%s5749]
    %vm5751 = vcmask 1047558
    %v5752 = vsel %vm5751, %v5750, %v5747
    %5753 = vrot.lane.b32.xlu0 %v5752, 96
    %v5754 = vpop.permute.xlu0 %5753
    %vm5755 = vcmask 851712
    %s5756 = scalar_lea.vmem [#allocation0], 48
    %5757 = vst.msk [vmem:[%s5756] sm:$0xff] %vm5755, %v5754
    %s5758 = scalar_lea.vmem [#allocation1], 1292
    %s5759 = smov 3
    %v5760 = vld [vmem:[%s5758] ss:$16 sm:%s5759]
    %s5761 = scalar_lea.vmem [#allocation1], 1292
    %s5762 = smov 12
    %v5763 = vld [vmem:[%s5761] ss:$16 sm:%s5762]
    %vm5764 = vcmask 1043458
    %v5765 = vsel %vm5764, %v5763, %v5760
    %s5766 = scalar_lea.vmem [#allocation1], 1292
    %s5767 = smov 48
    %v5768 = vld [vmem:[%s5766] ss:$16 sm:%s5767]
    %vm5769 = vcmask 1045508
    %v5770 = vsel %vm5769, %v5768, %v5765
    %s5771 = scalar_lea.vmem [#allocation1], 1292
    %s5772 = smov 192
    %v5773 = vld [vmem:[%s5771] ss:$16 sm:%s5772]
    %vm5774 = vcmask 1047558
    %v5775 = vsel %vm5774, %v5773, %v5770
    %5776 = vrot.lane.b32.xlu0 %v5775, 96
    %v5777 = vpop.permute.xlu0 %5776
    %vm5778 = vcmask 851712
    %s5779 = scalar_lea.vmem [#allocation0], 80
    %5780 = vst.msk [vmem:[%s5779] sm:$0xff] %vm5778, %v5777
    %s5781 = scalar_lea.vmem [#allocation1], 1804
    %s5782 = smov 3
    %v5783 = vld [vmem:[%s5781] ss:$16 sm:%s5782]
    %s5784 = scalar_lea.vmem [#allocation1], 1804
    %s5785 = smov 12
    %v5786 = vld [vmem:[%s5784] ss:$16 sm:%s5785]
    %vm5787 = vcmask 1043458
    %v5788 = vsel %vm5787, %v5786, %v5783
    %s5789 = scalar_lea.vmem [#allocation1], 1804
    %s5790 = smov 48
    %v5791 = vld [vmem:[%s5789] ss:$16 sm:%s5790]
    %vm5792 = vcmask 1045508
    %v5793 = vsel %vm5792, %v5791, %v5788
    %s5794 = scalar_lea.vmem [#allocation1], 1804
    %s5795 = smov 192
    %v5796 = vld [vmem:[%s5794] ss:$16 sm:%s5795]
    %vm5797 = vcmask 1047558
    %v5798 = vsel %vm5797, %v5796, %v5793
    %5799 = vrot.lane.b32.xlu0 %v5798, 96
    %v5800 = vpop.permute.xlu0 %5799
    %vm5801 = vcmask 851712
    %s5802 = scalar_lea.vmem [#allocation0], 112
    %5803 = vst.msk [vmem:[%s5802] sm:$0xff] %vm5801, %v5800
    %s5804 = scalar_lea.vmem [#allocation1], 396
    %s5805 = smov 3
    %v5806 = vld [vmem:[%s5804] ss:$16 sm:%s5805]
    %s5807 = scalar_lea.vmem [#allocation1], 396
    %s5808 = smov 12
    %v5809 = vld [vmem:[%s5807] ss:$16 sm:%s5808]
    %vm5810 = vcmask 1043458
    %v5811 = vsel %vm5810, %v5809, %v5806
    %s5812 = scalar_lea.vmem [#allocation1], 396
    %s5813 = smov 48
    %v5814 = vld [vmem:[%s5812] ss:$16 sm:%s5813]
    %vm5815 = vcmask 1045508
    %v5816 = vsel %vm5815, %v5814, %v5811
    %s5817 = scalar_lea.vmem [#allocation1], 396
    %s5818 = smov 192
    %v5819 = vld [vmem:[%s5817] ss:$16 sm:%s5818]
    %vm5820 = vcmask 1047558
    %v5821 = vsel %vm5820, %v5819, %v5816
    %5822 = vrot.lane.b32.xlu0 %v5821, 96
    %v5823 = vpop.permute.xlu0 %5822
    %vm5824 = vcmask 851712
    %s5825 = scalar_lea.vmem [#allocation0], 24
    %5826 = vst.msk [vmem:[%s5825] sm:$0xff] %vm5824, %v5823
    %s5827 = scalar_lea.vmem [#allocation1], 908
    %s5828 = smov 3
    %v5829 = vld [vmem:[%s5827] ss:$16 sm:%s5828]
    %s5830 = scalar_lea.vmem [#allocation1], 908
    %s5831 = smov 12
    %v5832 = vld [vmem:[%s5830] ss:$16 sm:%s5831]
    %vm5833 = vcmask 1043458
    %v5834 = vsel %vm5833, %v5832, %v5829
    %s5835 = scalar_lea.vmem [#allocation1], 908
    %s5836 = smov 48
    %v5837 = vld [vmem:[%s5835] ss:$16 sm:%s5836]
    %vm5838 = vcmask 1045508
    %v5839 = vsel %vm5838, %v5837, %v5834
    %s5840 = scalar_lea.vmem [#allocation1], 908
    %s5841 = smov 192
    %v5842 = vld [vmem:[%s5840] ss:$16 sm:%s5841]
    %vm5843 = vcmask 1047558
    %v5844 = vsel %vm5843, %v5842, %v5839
    %5845 = vrot.lane.b32.xlu0 %v5844, 96
    %v5846 = vpop.permute.xlu0 %5845
    %vm5847 = vcmask 851712
    %s5848 = scalar_lea.vmem [#allocation0], 56
    %5849 = vst.msk [vmem:[%s5848] sm:$0xff] %vm5847, %v5846
    %s5850 = scalar_lea.vmem [#allocation1], 1420
    %s5851 = smov 3
    %v5852 = vld [vmem:[%s5850] ss:$16 sm:%s5851]
    %s5853 = scalar_lea.vmem [#allocation1], 1420
    %s5854 = smov 12
    %v5855 = vld [vmem:[%s5853] ss:$16 sm:%s5854]
    %vm5856 = vcmask 1043458
    %v5857 = vsel %vm5856, %v5855, %v5852
    %s5858 = scalar_lea.vmem [#allocation1], 1420
    %s5859 = smov 48
    %v5860 = vld [vmem:[%s5858] ss:$16 sm:%s5859]
    %vm5861 = vcmask 1045508
    %v5862 = vsel %vm5861, %v5860, %v5857
    %s5863 = scalar_lea.vmem [#allocation1], 1420
    %s5864 = smov 192
    %v5865 = vld [vmem:[%s5863] ss:$16 sm:%s5864]
    %vm5866 = vcmask 1047558
    %v5867 = vsel %vm5866, %v5865, %v5862
    %5868 = vrot.lane.b32.xlu0 %v5867, 96
    %v5869 = vpop.permute.xlu0 %5868
    %vm5870 = vcmask 851712
    %s5871 = scalar_lea.vmem [#allocation0], 88
    %5872 = vst.msk [vmem:[%s5871] sm:$0xff] %vm5870, %v5869
    %s5873 = scalar_lea.vmem [#allocation1], 1932
    %s5874 = smov 3
    %v5875 = vld [vmem:[%s5873] ss:$16 sm:%s5874]
    %s5876 = scalar_lea.vmem [#allocation1], 1932
    %s5877 = smov 12
    %v5878 = vld [vmem:[%s5876] ss:$16 sm:%s5877]
    %vm5879 = vcmask 1043458
    %v5880 = vsel %vm5879, %v5878, %v5875
    %s5881 = scalar_lea.vmem [#allocation1], 1932
    %s5882 = smov 48
    %v5883 = vld [vmem:[%s5881] ss:$16 sm:%s5882]
    %vm5884 = vcmask 1045508
    %v5885 = vsel %vm5884, %v5883, %v5880
    %s5886 = scalar_lea.vmem [#allocation1], 1932
    %s5887 = smov 192
    %v5888 = vld [vmem:[%s5886] ss:$16 sm:%s5887]
    %vm5889 = vcmask 1047558
    %v5890 = vsel %vm5889, %v5888, %v5885
    %5891 = vrot.lane.b32.xlu0 %v5890, 96
    %v5892 = vpop.permute.xlu0 %5891
    %vm5893 = vcmask 851712
    %s5894 = scalar_lea.vmem [#allocation0], 120
    %5895 = vst.msk [vmem:[%s5894] sm:$0xff] %vm5893, %v5892
    %s5896 = scalar_lea.vmem [#allocation1], 11
    %s5897 = smov 3
    %v5898 = vld [vmem:[%s5896] ss:$16 sm:%s5897]
    %s5899 = scalar_lea.vmem [#allocation1], 11
    %s5900 = smov 12
    %v5901 = vld [vmem:[%s5899] ss:$16 sm:%s5900]
    %vm5902 = vcmask 1043458
    %v5903 = vsel %vm5902, %v5901, %v5898
    %s5904 = scalar_lea.vmem [#allocation1], 11
    %s5905 = smov 48
    %v5906 = vld [vmem:[%s5904] ss:$16 sm:%s5905]
    %vm5907 = vcmask 1045508
    %v5908 = vsel %vm5907, %v5906, %v5903
    %s5909 = scalar_lea.vmem [#allocation1], 11
    %s5910 = smov 192
    %v5911 = vld [vmem:[%s5909] ss:$16 sm:%s5910]
    %vm5912 = vcmask 1047558
    %v5913 = vsel %vm5912, %v5911, %v5908
    %5914 = vrot.lane.b32.xlu0 %v5913, 88
    %v5915 = vpop.permute.xlu0 %5914
    %vm5916 = vcmask 786112
    %5917 = vst.msk [vmem:[#allocation0] sm:$0xff] %vm5916, %v5915
    %s5918 = scalar_lea.vmem [#allocation1], 523
    %s5919 = smov 3
    %v5920 = vld [vmem:[%s5918] ss:$16 sm:%s5919]
    %s5921 = scalar_lea.vmem [#allocation1], 523
    %s5922 = smov 12
    %v5923 = vld [vmem:[%s5921] ss:$16 sm:%s5922]
    %vm5924 = vcmask 1043458
    %v5925 = vsel %vm5924, %v5923, %v5920
    %s5926 = scalar_lea.vmem [#allocation1], 523
    %s5927 = smov 48
    %v5928 = vld [vmem:[%s5926] ss:$16 sm:%s5927]
    %vm5929 = vcmask 1045508
    %v5930 = vsel %vm5929, %v5928, %v5925
    %s5931 = scalar_lea.vmem [#allocation1], 523
    %s5932 = smov 192
    %v5933 = vld [vmem:[%s5931] ss:$16 sm:%s5932]
    %vm5934 = vcmask 1047558
    %v5935 = vsel %vm5934, %v5933, %v5930
    %5936 = vrot.lane.b32.xlu0 %v5935, 88
    %v5937 = vpop.permute.xlu0 %5936
    %vm5938 = vcmask 786112
    %s5939 = scalar_lea.vmem [#allocation0], 32
    %5940 = vst.msk [vmem:[%s5939] sm:$0xff] %vm5938, %v5937
    %s5941 = scalar_lea.vmem [#allocation1], 1035
    %s5942 = smov 3
    %v5943 = vld [vmem:[%s5941] ss:$16 sm:%s5942]
    %s5944 = scalar_lea.vmem [#allocation1], 1035
    %s5945 = smov 12
    %v5946 = vld [vmem:[%s5944] ss:$16 sm:%s5945]
    %vm5947 = vcmask 1043458
    %v5948 = vsel %vm5947, %v5946, %v5943
    %s5949 = scalar_lea.vmem [#allocation1], 1035
    %s5950 = smov 48
    %v5951 = vld [vmem:[%s5949] ss:$16 sm:%s5950]
    %vm5952 = vcmask 1045508
    %v5953 = vsel %vm5952, %v5951, %v5948
    %s5954 = scalar_lea.vmem [#allocation1], 1035
    %s5955 = smov 192
    %v5956 = vld [vmem:[%s5954] ss:$16 sm:%s5955]
    %vm5957 = vcmask 1047558
    %v5958 = vsel %vm5957, %v5956, %v5953
    %5959 = vrot.lane.b32.xlu0 %v5958, 88
    %v5960 = vpop.permute.xlu0 %5959
    %vm5961 = vcmask 786112
    %s5962 = scalar_lea.vmem [#allocation0], 64
    %5963 = vst.msk [vmem:[%s5962] sm:$0xff] %vm5961, %v5960
    %s5964 = scalar_lea.vmem [#allocation1], 1547
    %s5965 = smov 3
    %v5966 = vld [vmem:[%s5964] ss:$16 sm:%s5965]
    %s5967 = scalar_lea.vmem [#allocation1], 1547
    %s5968 = smov 12
    %v5969 = vld [vmem:[%s5967] ss:$16 sm:%s5968]
    %vm5970 = vcmask 1043458
    %v5971 = vsel %vm5970, %v5969, %v5966
    %s5972 = scalar_lea.vmem [#allocation1], 1547
    %s5973 = smov 48
    %v5974 = vld [vmem:[%s5972] ss:$16 sm:%s5973]
    %vm5975 = vcmask 1045508
    %v5976 = vsel %vm5975, %v5974, %v5971
    %s5977 = scalar_lea.vmem [#allocation1], 1547
    %s5978 = smov 192
    %v5979 = vld [vmem:[%s5977] ss:$16 sm:%s5978]
    %vm5980 = vcmask 1047558
    %v5981 = vsel %vm5980, %v5979, %v5976
    %5982 = vrot.lane.b32.xlu0 %v5981, 88
    %v5983 = vpop.permute.xlu0 %5982
    %vm5984 = vcmask 786112
    %s5985 = scalar_lea.vmem [#allocation0], 96
    %5986 = vst.msk [vmem:[%s5985] sm:$0xff] %vm5984, %v5983
    %s5987 = scalar_lea.vmem [#allocation1], 139
    %s5988 = smov 3
    %v5989 = vld [vmem:[%s5987] ss:$16 sm:%s5988]
    %s5990 = scalar_lea.vmem [#allocation1], 139
    %s5991 = smov 12
    %v5992 = vld [vmem:[%s5990] ss:$16 sm:%s5991]
    %vm5993 = vcmask 1043458
    %v5994 = vsel %vm5993, %v5992, %v5989
    %s5995 = scalar_lea.vmem [#allocation1], 139
    %s5996 = smov 48
    %v5997 = vld [vmem:[%s5995] ss:$16 sm:%s5996]
    %vm5998 = vcmask 1045508
    %v5999 = vsel %vm5998, %v5997, %v5994
    %s6000 = scalar_lea.vmem [#allocation1], 139
    %s6001 = smov 192
    %v6002 = vld [vmem:[%s6000] ss:$16 sm:%s6001]
    %vm6003 = vcmask 1047558
    %v6004 = vsel %vm6003, %v6002, %v5999
    %6005 = vrot.lane.b32.xlu0 %v6004, 88
    %v6006 = vpop.permute.xlu0 %6005
    %vm6007 = vcmask 786112
    %s6008 = scalar_lea.vmem [#allocation0], 8
    %6009 = vst.msk [vmem:[%s6008] sm:$0xff] %vm6007, %v6006
    %s6010 = scalar_lea.vmem [#allocation1], 651
    %s6011 = smov 3
    %v6012 = vld [vmem:[%s6010] ss:$16 sm:%s6011]
    %s6013 = scalar_lea.vmem [#allocation1], 651
    %s6014 = smov 12
    %v6015 = vld [vmem:[%s6013] ss:$16 sm:%s6014]
    %vm6016 = vcmask 1043458
    %v6017 = vsel %vm6016, %v6015, %v6012
    %s6018 = scalar_lea.vmem [#allocation1], 651
    %s6019 = smov 48
    %v6020 = vld [vmem:[%s6018] ss:$16 sm:%s6019]
    %vm6021 = vcmask 1045508
    %v6022 = vsel %vm6021, %v6020, %v6017
    %s6023 = scalar_lea.vmem [#allocation1], 651
    %s6024 = smov 192
    %v6025 = vld [vmem:[%s6023] ss:$16 sm:%s6024]
    %vm6026 = vcmask 1047558
    %v6027 = vsel %vm6026, %v6025, %v6022
    %6028 = vrot.lane.b32.xlu0 %v6027, 88
    %v6029 = vpop.permute.xlu0 %6028
    %vm6030 = vcmask 786112
    %s6031 = scalar_lea.vmem [#allocation0], 40
    %6032 = vst.msk [vmem:[%s6031] sm:$0xff] %vm6030, %v6029
    %s6033 = scalar_lea.vmem [#allocation1], 1163
    %s6034 = smov 3
    %v6035 = vld [vmem:[%s6033] ss:$16 sm:%s6034]
    %s6036 = scalar_lea.vmem [#allocation1], 1163
    %s6037 = smov 12
    %v6038 = vld [vmem:[%s6036] ss:$16 sm:%s6037]
    %vm6039 = vcmask 1043458
    %v6040 = vsel %vm6039, %v6038, %v6035
    %s6041 = scalar_lea.vmem [#allocation1], 1163
    %s6042 = smov 48
    %v6043 = vld [vmem:[%s6041] ss:$16 sm:%s6042]
    %vm6044 = vcmask 1045508
    %v6045 = vsel %vm6044, %v6043, %v6040
    %s6046 = scalar_lea.vmem [#allocation1], 1163
    %s6047 = smov 192
    %v6048 = vld [vmem:[%s6046] ss:$16 sm:%s6047]
    %vm6049 = vcmask 1047558
    %v6050 = vsel %vm6049, %v6048, %v6045
    %6051 = vrot.lane.b32.xlu0 %v6050, 88
    %v6052 = vpop.permute.xlu0 %6051
    %vm6053 = vcmask 786112
    %s6054 = scalar_lea.vmem [#allocation0], 72
    %6055 = vst.msk [vmem:[%s6054] sm:$0xff] %vm6053, %v6052
    %s6056 = scalar_lea.vmem [#allocation1], 1675
    %s6057 = smov 3
    %v6058 = vld [vmem:[%s6056] ss:$16 sm:%s6057]
    %s6059 = scalar_lea.vmem [#allocation1], 1675
    %s6060 = smov 12
    %v6061 = vld [vmem:[%s6059] ss:$16 sm:%s6060]
    %vm6062 = vcmask 1043458
    %v6063 = vsel %vm6062, %v6061, %v6058
    %s6064 = scalar_lea.vmem [#allocation1], 1675
    %s6065 = smov 48
    %v6066 = vld [vmem:[%s6064] ss:$16 sm:%s6065]
    %vm6067 = vcmask 1045508
    %v6068 = vsel %vm6067, %v6066, %v6063
    %s6069 = scalar_lea.vmem [#allocation1], 1675
    %s6070 = smov 192
    %v6071 = vld [vmem:[%s6069] ss:$16 sm:%s6070]
    %vm6072 = vcmask 1047558
    %v6073 = vsel %vm6072, %v6071, %v6068
    %6074 = vrot.lane.b32.xlu0 %v6073, 88
    %v6075 = vpop.permute.xlu0 %6074
    %vm6076 = vcmask 786112
    %s6077 = scalar_lea.vmem [#allocation0], 104
    %6078 = vst.msk [vmem:[%s6077] sm:$0xff] %vm6076, %v6075
    %s6079 = scalar_lea.vmem [#allocation1], 267
    %s6080 = smov 3
    %v6081 = vld [vmem:[%s6079] ss:$16 sm:%s6080]
    %s6082 = scalar_lea.vmem [#allocation1], 267
    %s6083 = smov 12
    %v6084 = vld [vmem:[%s6082] ss:$16 sm:%s6083]
    %vm6085 = vcmask 1043458
    %v6086 = vsel %vm6085, %v6084, %v6081
    %s6087 = scalar_lea.vmem [#allocation1], 267
    %s6088 = smov 48
    %v6089 = vld [vmem:[%s6087] ss:$16 sm:%s6088]
    %vm6090 = vcmask 1045508
    %v6091 = vsel %vm6090, %v6089, %v6086
    %s6092 = scalar_lea.vmem [#allocation1], 267
    %s6093 = smov 192
    %v6094 = vld [vmem:[%s6092] ss:$16 sm:%s6093]
    %vm6095 = vcmask 1047558
    %v6096 = vsel %vm6095, %v6094, %v6091
    %6097 = vrot.lane.b32.xlu0 %v6096, 88
    %v6098 = vpop.permute.xlu0 %6097
    %vm6099 = vcmask 786112
    %s6100 = scalar_lea.vmem [#allocation0], 16
    %6101 = vst.msk [vmem:[%s6100] sm:$0xff] %vm6099, %v6098
    %s6102 = scalar_lea.vmem [#allocation1], 779
    %s6103 = smov 3
    %v6104 = vld [vmem:[%s6102] ss:$16 sm:%s6103]
    %s6105 = scalar_lea.vmem [#allocation1], 779
    %s6106 = smov 12
    %v6107 = vld [vmem:[%s6105] ss:$16 sm:%s6106]
    %vm6108 = vcmask 1043458
    %v6109 = vsel %vm6108, %v6107, %v6104
    %s6110 = scalar_lea.vmem [#allocation1], 779
    %s6111 = smov 48
    %v6112 = vld [vmem:[%s6110] ss:$16 sm:%s6111]
    %vm6113 = vcmask 1045508
    %v6114 = vsel %vm6113, %v6112, %v6109
    %s6115 = scalar_lea.vmem [#allocation1], 779
    %s6116 = smov 192
    %v6117 = vld [vmem:[%s6115] ss:$16 sm:%s6116]
    %vm6118 = vcmask 1047558
    %v6119 = vsel %vm6118, %v6117, %v6114
    %6120 = vrot.lane.b32.xlu0 %v6119, 88
    %v6121 = vpop.permute.xlu0 %6120
    %vm6122 = vcmask 786112
    %s6123 = scalar_lea.vmem [#allocation0], 48
    %6124 = vst.msk [vmem:[%s6123] sm:$0xff] %vm6122, %v6121
    %s6125 = scalar_lea.vmem [#allocation1], 1291
    %s6126 = smov 3
    %v6127 = vld [vmem:[%s6125] ss:$16 sm:%s6126]
    %s6128 = scalar_lea.vmem [#allocation1], 1291
    %s6129 = smov 12
    %v6130 = vld [vmem:[%s6128] ss:$16 sm:%s6129]
    %vm6131 = vcmask 1043458
    %v6132 = vsel %vm6131, %v6130, %v6127
    %s6133 = scalar_lea.vmem [#allocation1], 1291
    %s6134 = smov 48
    %v6135 = vld [vmem:[%s6133] ss:$16 sm:%s6134]
    %vm6136 = vcmask 1045508
    %v6137 = vsel %vm6136, %v6135, %v6132
    %s6138 = scalar_lea.vmem [#allocation1], 1291
    %s6139 = smov 192
    %v6140 = vld [vmem:[%s6138] ss:$16 sm:%s6139]
    %vm6141 = vcmask 1047558
    %v6142 = vsel %vm6141, %v6140, %v6137
    %6143 = vrot.lane.b32.xlu0 %v6142, 88
    %v6144 = vpop.permute.xlu0 %6143
    %vm6145 = vcmask 786112
    %s6146 = scalar_lea.vmem [#allocation0], 80
    %6147 = vst.msk [vmem:[%s6146] sm:$0xff] %vm6145, %v6144
    %s6148 = scalar_lea.vmem [#allocation1], 1803
    %s6149 = smov 3
    %v6150 = vld [vmem:[%s6148] ss:$16 sm:%s6149]
    %s6151 = scalar_lea.vmem [#allocation1], 1803
    %s6152 = smov 12
    %v6153 = vld [vmem:[%s6151] ss:$16 sm:%s6152]
    %vm6154 = vcmask 1043458
    %v6155 = vsel %vm6154, %v6153, %v6150
    %s6156 = scalar_lea.vmem [#allocation1], 1803
    %s6157 = smov 48
    %v6158 = vld [vmem:[%s6156] ss:$16 sm:%s6157]
    %vm6159 = vcmask 1045508
    %v6160 = vsel %vm6159, %v6158, %v6155
    %s6161 = scalar_lea.vmem [#allocation1], 1803
    %s6162 = smov 192
    %v6163 = vld [vmem:[%s6161] ss:$16 sm:%s6162]
    %vm6164 = vcmask 1047558
    %v6165 = vsel %vm6164, %v6163, %v6160
    %6166 = vrot.lane.b32.xlu0 %v6165, 88
    %v6167 = vpop.permute.xlu0 %6166
    %vm6168 = vcmask 786112
    %s6169 = scalar_lea.vmem [#allocation0], 112
    %6170 = vst.msk [vmem:[%s6169] sm:$0xff] %vm6168, %v6167
    %s6171 = scalar_lea.vmem [#allocation1], 395
    %s6172 = smov 3
    %v6173 = vld [vmem:[%s6171] ss:$16 sm:%s6172]
    %s6174 = scalar_lea.vmem [#allocation1], 395
    %s6175 = smov 12
    %v6176 = vld [vmem:[%s6174] ss:$16 sm:%s6175]
    %vm6177 = vcmask 1043458
    %v6178 = vsel %vm6177, %v6176, %v6173
    %s6179 = scalar_lea.vmem [#allocation1], 395
    %s6180 = smov 48
    %v6181 = vld [vmem:[%s6179] ss:$16 sm:%s6180]
    %vm6182 = vcmask 1045508
    %v6183 = vsel %vm6182, %v6181, %v6178
    %s6184 = scalar_lea.vmem [#allocation1], 395
    %s6185 = smov 192
    %v6186 = vld [vmem:[%s6184] ss:$16 sm:%s6185]
    %vm6187 = vcmask 1047558
    %v6188 = vsel %vm6187, %v6186, %v6183
    %6189 = vrot.lane.b32.xlu0 %v6188, 88
    %v6190 = vpop.permute.xlu0 %6189
    %vm6191 = vcmask 786112
    %s6192 = scalar_lea.vmem [#allocation0], 24
    %6193 = vst.msk [vmem:[%s6192] sm:$0xff] %vm6191, %v6190
    %s6194 = scalar_lea.vmem [#allocation1], 907
    %s6195 = smov 3
    %v6196 = vld [vmem:[%s6194] ss:$16 sm:%s6195]
    %s6197 = scalar_lea.vmem [#allocation1], 907
    %s6198 = smov 12
    %v6199 = vld [vmem:[%s6197] ss:$16 sm:%s6198]
    %vm6200 = vcmask 1043458
    %v6201 = vsel %vm6200, %v6199, %v6196
    %s6202 = scalar_lea.vmem [#allocation1], 907
    %s6203 = smov 48
    %v6204 = vld [vmem:[%s6202] ss:$16 sm:%s6203]
    %vm6205 = vcmask 1045508
    %v6206 = vsel %vm6205, %v6204, %v6201
    %s6207 = scalar_lea.vmem [#allocation1], 907
    %s6208 = smov 192
    %v6209 = vld [vmem:[%s6207] ss:$16 sm:%s6208]
    %vm6210 = vcmask 1047558
    %v6211 = vsel %vm6210, %v6209, %v6206
    %6212 = vrot.lane.b32.xlu0 %v6211, 88
    %v6213 = vpop.permute.xlu0 %6212
    %vm6214 = vcmask 786112
    %s6215 = scalar_lea.vmem [#allocation0], 56
    %6216 = vst.msk [vmem:[%s6215] sm:$0xff] %vm6214, %v6213
    %s6217 = scalar_lea.vmem [#allocation1], 1419
    %s6218 = smov 3
    %v6219 = vld [vmem:[%s6217] ss:$16 sm:%s6218]
    %s6220 = scalar_lea.vmem [#allocation1], 1419
    %s6221 = smov 12
    %v6222 = vld [vmem:[%s6220] ss:$16 sm:%s6221]
    %vm6223 = vcmask 1043458
    %v6224 = vsel %vm6223, %v6222, %v6219
    %s6225 = scalar_lea.vmem [#allocation1], 1419
    %s6226 = smov 48
    %v6227 = vld [vmem:[%s6225] ss:$16 sm:%s6226]
    %vm6228 = vcmask 1045508
    %v6229 = vsel %vm6228, %v6227, %v6224
    %s6230 = scalar_lea.vmem [#allocation1], 1419
    %s6231 = smov 192
    %v6232 = vld [vmem:[%s6230] ss:$16 sm:%s6231]
    %vm6233 = vcmask 1047558
    %v6234 = vsel %vm6233, %v6232, %v6229
    %6235 = vrot.lane.b32.xlu0 %v6234, 88
    %v6236 = vpop.permute.xlu0 %6235
    %vm6237 = vcmask 786112
    %s6238 = scalar_lea.vmem [#allocation0], 88
    %6239 = vst.msk [vmem:[%s6238] sm:$0xff] %vm6237, %v6236
    %s6240 = scalar_lea.vmem [#allocation1], 1931
    %s6241 = smov 3
    %v6242 = vld [vmem:[%s6240] ss:$16 sm:%s6241]
    %s6243 = scalar_lea.vmem [#allocation1], 1931
    %s6244 = smov 12
    %v6245 = vld [vmem:[%s6243] ss:$16 sm:%s6244]
    %vm6246 = vcmask 1043458
    %v6247 = vsel %vm6246, %v6245, %v6242
    %s6248 = scalar_lea.vmem [#allocation1], 1931
    %s6249 = smov 48
    %v6250 = vld [vmem:[%s6248] ss:$16 sm:%s6249]
    %vm6251 = vcmask 1045508
    %v6252 = vsel %vm6251, %v6250, %v6247
    %s6253 = scalar_lea.vmem [#allocation1], 1931
    %s6254 = smov 192
    %v6255 = vld [vmem:[%s6253] ss:$16 sm:%s6254]
    %vm6256 = vcmask 1047558
    %v6257 = vsel %vm6256, %v6255, %v6252
    %6258 = vrot.lane.b32.xlu0 %v6257, 88
    %v6259 = vpop.permute.xlu0 %6258
    %vm6260 = vcmask 786112
    %s6261 = scalar_lea.vmem [#allocation0], 120
    %6262 = vst.msk [vmem:[%s6261] sm:$0xff] %vm6260, %v6259
    %s6263 = scalar_lea.vmem [#allocation1], 10
    %s6264 = smov 3
    %v6265 = vld [vmem:[%s6263] ss:$16 sm:%s6264]
    %s6266 = scalar_lea.vmem [#allocation1], 10
    %s6267 = smov 12
    %v6268 = vld [vmem:[%s6266] ss:$16 sm:%s6267]
    %vm6269 = vcmask 1043458
    %v6270 = vsel %vm6269, %v6268, %v6265
    %s6271 = scalar_lea.vmem [#allocation1], 10
    %s6272 = smov 48
    %v6273 = vld [vmem:[%s6271] ss:$16 sm:%s6272]
    %vm6274 = vcmask 1045508
    %v6275 = vsel %vm6274, %v6273, %v6270
    %s6276 = scalar_lea.vmem [#allocation1], 10
    %s6277 = smov 192
    %v6278 = vld [vmem:[%s6276] ss:$16 sm:%s6277]
    %vm6279 = vcmask 1047558
    %v6280 = vsel %vm6279, %v6278, %v6275
    %6281 = vrot.lane.b32.xlu0 %v6280, 80
    %v6282 = vpop.permute.xlu0 %6281
    %vm6283 = vcmask 720512
    %6284 = vst.msk [vmem:[#allocation0] sm:$0xff] %vm6283, %v6282
    %s6285 = scalar_lea.vmem [#allocation1], 522
    %s6286 = smov 3
    %v6287 = vld [vmem:[%s6285] ss:$16 sm:%s6286]
    %s6288 = scalar_lea.vmem [#allocation1], 522
    %s6289 = smov 12
    %v6290 = vld [vmem:[%s6288] ss:$16 sm:%s6289]
    %vm6291 = vcmask 1043458
    %v6292 = vsel %vm6291, %v6290, %v6287
    %s6293 = scalar_lea.vmem [#allocation1], 522
    %s6294 = smov 48
    %v6295 = vld [vmem:[%s6293] ss:$16 sm:%s6294]
    %vm6296 = vcmask 1045508
    %v6297 = vsel %vm6296, %v6295, %v6292
    %s6298 = scalar_lea.vmem [#allocation1], 522
    %s6299 = smov 192
    %v6300 = vld [vmem:[%s6298] ss:$16 sm:%s6299]
    %vm6301 = vcmask 1047558
    %v6302 = vsel %vm6301, %v6300, %v6297
    %6303 = vrot.lane.b32.xlu0 %v6302, 80
    %v6304 = vpop.permute.xlu0 %6303
    %vm6305 = vcmask 720512
    %s6306 = scalar_lea.vmem [#allocation0], 32
    %6307 = vst.msk [vmem:[%s6306] sm:$0xff] %vm6305, %v6304
    %s6308 = scalar_lea.vmem [#allocation1], 1034
    %s6309 = smov 3
    %v6310 = vld [vmem:[%s6308] ss:$16 sm:%s6309]
    %s6311 = scalar_lea.vmem [#allocation1], 1034
    %s6312 = smov 12
    %v6313 = vld [vmem:[%s6311] ss:$16 sm:%s6312]
    %vm6314 = vcmask 1043458
    %v6315 = vsel %vm6314, %v6313, %v6310
    %s6316 = scalar_lea.vmem [#allocation1], 1034
    %s6317 = smov 48
    %v6318 = vld [vmem:[%s6316] ss:$16 sm:%s6317]
    %vm6319 = vcmask 1045508
    %v6320 = vsel %vm6319, %v6318, %v6315
    %s6321 = scalar_lea.vmem [#allocation1], 1034
    %s6322 = smov 192
    %v6323 = vld [vmem:[%s6321] ss:$16 sm:%s6322]
    %vm6324 = vcmask 1047558
    %v6325 = vsel %vm6324, %v6323, %v6320
    %6326 = vrot.lane.b32.xlu0 %v6325, 80
    %v6327 = vpop.permute.xlu0 %6326
    %vm6328 = vcmask 720512
    %s6329 = scalar_lea.vmem [#allocation0], 64
    %6330 = vst.msk [vmem:[%s6329] sm:$0xff] %vm6328, %v6327
    %s6331 = scalar_lea.vmem [#allocation1], 1546
    %s6332 = smov 3
    %v6333 = vld [vmem:[%s6331] ss:$16 sm:%s6332]
    %s6334 = scalar_lea.vmem [#allocation1], 1546
    %s6335 = smov 12
    %v6336 = vld [vmem:[%s6334] ss:$16 sm:%s6335]
    %vm6337 = vcmask 1043458
    %v6338 = vsel %vm6337, %v6336, %v6333
    %s6339 = scalar_lea.vmem [#allocation1], 1546
    %s6340 = smov 48
    %v6341 = vld [vmem:[%s6339] ss:$16 sm:%s6340]
    %vm6342 = vcmask 1045508
    %v6343 = vsel %vm6342, %v6341, %v6338
    %s6344 = scalar_lea.vmem [#allocation1], 1546
    %s6345 = smov 192
    %v6346 = vld [vmem:[%s6344] ss:$16 sm:%s6345]
    %vm6347 = vcmask 1047558
    %v6348 = vsel %vm6347, %v6346, %v6343
    %6349 = vrot.lane.b32.xlu0 %v6348, 80
    %v6350 = vpop.permute.xlu0 %6349
    %vm6351 = vcmask 720512
    %s6352 = scalar_lea.vmem [#allocation0], 96
    %6353 = vst.msk [vmem:[%s6352] sm:$0xff] %vm6351, %v6350
    %s6354 = scalar_lea.vmem [#allocation1], 138
    %s6355 = smov 3
    %v6356 = vld [vmem:[%s6354] ss:$16 sm:%s6355]
    %s6357 = scalar_lea.vmem [#allocation1], 138
    %s6358 = smov 12
    %v6359 = vld [vmem:[%s6357] ss:$16 sm:%s6358]
    %vm6360 = vcmask 1043458
    %v6361 = vsel %vm6360, %v6359, %v6356
    %s6362 = scalar_lea.vmem [#allocation1], 138
    %s6363 = smov 48
    %v6364 = vld [vmem:[%s6362] ss:$16 sm:%s6363]
    %vm6365 = vcmask 1045508
    %v6366 = vsel %vm6365, %v6364, %v6361
    %s6367 = scalar_lea.vmem [#allocation1], 138
    %s6368 = smov 192
    %v6369 = vld [vmem:[%s6367] ss:$16 sm:%s6368]
    %vm6370 = vcmask 1047558
    %v6371 = vsel %vm6370, %v6369, %v6366
    %6372 = vrot.lane.b32.xlu0 %v6371, 80
    %v6373 = vpop.permute.xlu0 %6372
    %vm6374 = vcmask 720512
    %s6375 = scalar_lea.vmem [#allocation0], 8
    %6376 = vst.msk [vmem:[%s6375] sm:$0xff] %vm6374, %v6373
    %s6377 = scalar_lea.vmem [#allocation1], 650
    %s6378 = smov 3
    %v6379 = vld [vmem:[%s6377] ss:$16 sm:%s6378]
    %s6380 = scalar_lea.vmem [#allocation1], 650
    %s6381 = smov 12
    %v6382 = vld [vmem:[%s6380] ss:$16 sm:%s6381]
    %vm6383 = vcmask 1043458
    %v6384 = vsel %vm6383, %v6382, %v6379
    %s6385 = scalar_lea.vmem [#allocation1], 650
    %s6386 = smov 48
    %v6387 = vld [vmem:[%s6385] ss:$16 sm:%s6386]
    %vm6388 = vcmask 1045508
    %v6389 = vsel %vm6388, %v6387, %v6384
    %s6390 = scalar_lea.vmem [#allocation1], 650
    %s6391 = smov 192
    %v6392 = vld [vmem:[%s6390] ss:$16 sm:%s6391]
    %vm6393 = vcmask 1047558
    %v6394 = vsel %vm6393, %v6392, %v6389
    %6395 = vrot.lane.b32.xlu0 %v6394, 80
    %v6396 = vpop.permute.xlu0 %6395
    %vm6397 = vcmask 720512
    %s6398 = scalar_lea.vmem [#allocation0], 40
    %6399 = vst.msk [vmem:[%s6398] sm:$0xff] %vm6397, %v6396
    %s6400 = scalar_lea.vmem [#allocation1], 1162
    %s6401 = smov 3
    %v6402 = vld [vmem:[%s6400] ss:$16 sm:%s6401]
    %s6403 = scalar_lea.vmem [#allocation1], 1162
    %s6404 = smov 12
    %v6405 = vld [vmem:[%s6403] ss:$16 sm:%s6404]
    %vm6406 = vcmask 1043458
    %v6407 = vsel %vm6406, %v6405, %v6402
    %s6408 = scalar_lea.vmem [#allocation1], 1162
    %s6409 = smov 48
    %v6410 = vld [vmem:[%s6408] ss:$16 sm:%s6409]
    %vm6411 = vcmask 1045508
    %v6412 = vsel %vm6411, %v6410, %v6407
    %s6413 = scalar_lea.vmem [#allocation1], 1162
    %s6414 = smov 192
    %v6415 = vld [vmem:[%s6413] ss:$16 sm:%s6414]
    %vm6416 = vcmask 1047558
    %v6417 = vsel %vm6416, %v6415, %v6412
    %6418 = vrot.lane.b32.xlu0 %v6417, 80
    %v6419 = vpop.permute.xlu0 %6418
    %vm6420 = vcmask 720512
    %s6421 = scalar_lea.vmem [#allocation0], 72
    %6422 = vst.msk [vmem:[%s6421] sm:$0xff] %vm6420, %v6419
    %s6423 = scalar_lea.vmem [#allocation1], 1674
    %s6424 = smov 3
    %v6425 = vld [vmem:[%s6423] ss:$16 sm:%s6424]
    %s6426 = scalar_lea.vmem [#allocation1], 1674
    %s6427 = smov 12
    %v6428 = vld [vmem:[%s6426] ss:$16 sm:%s6427]
    %vm6429 = vcmask 1043458
    %v6430 = vsel %vm6429, %v6428, %v6425
    %s6431 = scalar_lea.vmem [#allocation1], 1674
    %s6432 = smov 48
    %v6433 = vld [vmem:[%s6431] ss:$16 sm:%s6432]
    %vm6434 = vcmask 1045508
    %v6435 = vsel %vm6434, %v6433, %v6430
    %s6436 = scalar_lea.vmem [#allocation1], 1674
    %s6437 = smov 192
    %v6438 = vld [vmem:[%s6436] ss:$16 sm:%s6437]
    %vm6439 = vcmask 1047558
    %v6440 = vsel %vm6439, %v6438, %v6435
    %6441 = vrot.lane.b32.xlu0 %v6440, 80
    %v6442 = vpop.permute.xlu0 %6441
    %vm6443 = vcmask 720512
    %s6444 = scalar_lea.vmem [#allocation0], 104
    %6445 = vst.msk [vmem:[%s6444] sm:$0xff] %vm6443, %v6442
    %s6446 = scalar_lea.vmem [#allocation1], 266
    %s6447 = smov 3
    %v6448 = vld [vmem:[%s6446] ss:$16 sm:%s6447]
    %s6449 = scalar_lea.vmem [#allocation1], 266
    %s6450 = smov 12
    %v6451 = vld [vmem:[%s6449] ss:$16 sm:%s6450]
    %vm6452 = vcmask 1043458
    %v6453 = vsel %vm6452, %v6451, %v6448
    %s6454 = scalar_lea.vmem [#allocation1], 266
    %s6455 = smov 48
    %v6456 = vld [vmem:[%s6454] ss:$16 sm:%s6455]
    %vm6457 = vcmask 1045508
    %v6458 = vsel %vm6457, %v6456, %v6453
    %s6459 = scalar_lea.vmem [#allocation1], 266
    %s6460 = smov 192
    %v6461 = vld [vmem:[%s6459] ss:$16 sm:%s6460]
    %vm6462 = vcmask 1047558
    %v6463 = vsel %vm6462, %v6461, %v6458
    %6464 = vrot.lane.b32.xlu0 %v6463, 80
    %v6465 = vpop.permute.xlu0 %6464
    %vm6466 = vcmask 720512
    %s6467 = scalar_lea.vmem [#allocation0], 16
    %6468 = vst.msk [vmem:[%s6467] sm:$0xff] %vm6466, %v6465
    %s6469 = scalar_lea.vmem [#allocation1], 778
    %s6470 = smov 3
    %v6471 = vld [vmem:[%s6469] ss:$16 sm:%s6470]
    %s6472 = scalar_lea.vmem [#allocation1], 778
    %s6473 = smov 12
    %v6474 = vld [vmem:[%s6472] ss:$16 sm:%s6473]
    %vm6475 = vcmask 1043458
    %v6476 = vsel %vm6475, %v6474, %v6471
    %s6477 = scalar_lea.vmem [#allocation1], 778
    %s6478 = smov 48
    %v6479 = vld [vmem:[%s6477] ss:$16 sm:%s6478]
    %vm6480 = vcmask 1045508
    %v6481 = vsel %vm6480, %v6479, %v6476
    %s6482 = scalar_lea.vmem [#allocation1], 778
    %s6483 = smov 192
    %v6484 = vld [vmem:[%s6482] ss:$16 sm:%s6483]
    %vm6485 = vcmask 1047558
    %v6486 = vsel %vm6485, %v6484, %v6481
    %6487 = vrot.lane.b32.xlu0 %v6486, 80
    %v6488 = vpop.permute.xlu0 %6487
    %vm6489 = vcmask 720512
    %s6490 = scalar_lea.vmem [#allocation0], 48
    %6491 = vst.msk [vmem:[%s6490] sm:$0xff] %vm6489, %v6488
    %s6492 = scalar_lea.vmem [#allocation1], 1290
    %s6493 = smov 3
    %v6494 = vld [vmem:[%s6492] ss:$16 sm:%s6493]
    %s6495 = scalar_lea.vmem [#allocation1], 1290
    %s6496 = smov 12
    %v6497 = vld [vmem:[%s6495] ss:$16 sm:%s6496]
    %vm6498 = vcmask 1043458
    %v6499 = vsel %vm6498, %v6497, %v6494
    %s6500 = scalar_lea.vmem [#allocation1], 1290
    %s6501 = smov 48
    %v6502 = vld [vmem:[%s6500] ss:$16 sm:%s6501]
    %vm6503 = vcmask 1045508
    %v6504 = vsel %vm6503, %v6502, %v6499
    %s6505 = scalar_lea.vmem [#allocation1], 1290
    %s6506 = smov 192
    %v6507 = vld [vmem:[%s6505] ss:$16 sm:%s6506]
    %vm6508 = vcmask 1047558
    %v6509 = vsel %vm6508, %v6507, %v6504
    %6510 = vrot.lane.b32.xlu0 %v6509, 80
    %v6511 = vpop.permute.xlu0 %6510
    %vm6512 = vcmask 720512
    %s6513 = scalar_lea.vmem [#allocation0], 80
    %6514 = vst.msk [vmem:[%s6513] sm:$0xff] %vm6512, %v6511
    %s6515 = scalar_lea.vmem [#allocation1], 1802
    %s6516 = smov 3
    %v6517 = vld [vmem:[%s6515] ss:$16 sm:%s6516]
    %s6518 = scalar_lea.vmem [#allocation1], 1802
    %s6519 = smov 12
    %v6520 = vld [vmem:[%s6518] ss:$16 sm:%s6519]
    %vm6521 = vcmask 1043458
    %v6522 = vsel %vm6521, %v6520, %v6517
    %s6523 = scalar_lea.vmem [#allocation1], 1802
    %s6524 = smov 48
    %v6525 = vld [vmem:[%s6523] ss:$16 sm:%s6524]
    %vm6526 = vcmask 1045508
    %v6527 = vsel %vm6526, %v6525, %v6522
    %s6528 = scalar_lea.vmem [#allocation1], 1802
    %s6529 = smov 192
    %v6530 = vld [vmem:[%s6528] ss:$16 sm:%s6529]
    %vm6531 = vcmask 1047558
    %v6532 = vsel %vm6531, %v6530, %v6527
    %6533 = vrot.lane.b32.xlu0 %v6532, 80
    %v6534 = vpop.permute.xlu0 %6533
    %vm6535 = vcmask 720512
    %s6536 = scalar_lea.vmem [#allocation0], 112
    %6537 = vst.msk [vmem:[%s6536] sm:$0xff] %vm6535, %v6534
    %s6538 = scalar_lea.vmem [#allocation1], 394
    %s6539 = smov 3
    %v6540 = vld [vmem:[%s6538] ss:$16 sm:%s6539]
    %s6541 = scalar_lea.vmem [#allocation1], 394
    %s6542 = smov 12
    %v6543 = vld [vmem:[%s6541] ss:$16 sm:%s6542]
    %vm6544 = vcmask 1043458
    %v6545 = vsel %vm6544, %v6543, %v6540
    %s6546 = scalar_lea.vmem [#allocation1], 394
    %s6547 = smov 48
    %v6548 = vld [vmem:[%s6546] ss:$16 sm:%s6547]
    %vm6549 = vcmask 1045508
    %v6550 = vsel %vm6549, %v6548, %v6545
    %s6551 = scalar_lea.vmem [#allocation1], 394
    %s6552 = smov 192
    %v6553 = vld [vmem:[%s6551] ss:$16 sm:%s6552]
    %vm6554 = vcmask 1047558
    %v6555 = vsel %vm6554, %v6553, %v6550
    %6556 = vrot.lane.b32.xlu0 %v6555, 80
    %v6557 = vpop.permute.xlu0 %6556
    %vm6558 = vcmask 720512
    %s6559 = scalar_lea.vmem [#allocation0], 24
    %6560 = vst.msk [vmem:[%s6559] sm:$0xff] %vm6558, %v6557
    %s6561 = scalar_lea.vmem [#allocation1], 906
    %s6562 = smov 3
    %v6563 = vld [vmem:[%s6561] ss:$16 sm:%s6562]
    %s6564 = scalar_lea.vmem [#allocation1], 906
    %s6565 = smov 12
    %v6566 = vld [vmem:[%s6564] ss:$16 sm:%s6565]
    %vm6567 = vcmask 1043458
    %v6568 = vsel %vm6567, %v6566, %v6563
    %s6569 = scalar_lea.vmem [#allocation1], 906
    %s6570 = smov 48
    %v6571 = vld [vmem:[%s6569] ss:$16 sm:%s6570]
    %vm6572 = vcmask 1045508
    %v6573 = vsel %vm6572, %v6571, %v6568
    %s6574 = scalar_lea.vmem [#allocation1], 906
    %s6575 = smov 192
    %v6576 = vld [vmem:[%s6574] ss:$16 sm:%s6575]
    %vm6577 = vcmask 1047558
    %v6578 = vsel %vm6577, %v6576, %v6573
    %6579 = vrot.lane.b32.xlu0 %v6578, 80
    %v6580 = vpop.permute.xlu0 %6579
    %vm6581 = vcmask 720512
    %s6582 = scalar_lea.vmem [#allocation0], 56
    %6583 = vst.msk [vmem:[%s6582] sm:$0xff] %vm6581, %v6580
    %s6584 = scalar_lea.vmem [#allocation1], 1418
    %s6585 = smov 3
    %v6586 = vld [vmem:[%s6584] ss:$16 sm:%s6585]
    %s6587 = scalar_lea.vmem [#allocation1], 1418
    %s6588 = smov 12
    %v6589 = vld [vmem:[%s6587] ss:$16 sm:%s6588]
    %vm6590 = vcmask 1043458
    %v6591 = vsel %vm6590, %v6589, %v6586
    %s6592 = scalar_lea.vmem [#allocation1], 1418
    %s6593 = smov 48
    %v6594 = vld [vmem:[%s6592] ss:$16 sm:%s6593]
    %vm6595 = vcmask 1045508
    %v6596 = vsel %vm6595, %v6594, %v6591
    %s6597 = scalar_lea.vmem [#allocation1], 1418
    %s6598 = smov 192
    %v6599 = vld [vmem:[%s6597] ss:$16 sm:%s6598]
    %vm6600 = vcmask 1047558
    %v6601 = vsel %vm6600, %v6599, %v6596
    %6602 = vrot.lane.b32.xlu0 %v6601, 80
    %v6603 = vpop.permute.xlu0 %6602
    %vm6604 = vcmask 720512
    %s6605 = scalar_lea.vmem [#allocation0], 88
    %6606 = vst.msk [vmem:[%s6605] sm:$0xff] %vm6604, %v6603
    %s6607 = scalar_lea.vmem [#allocation1], 1930
    %s6608 = smov 3
    %v6609 = vld [vmem:[%s6607] ss:$16 sm:%s6608]
    %s6610 = scalar_lea.vmem [#allocation1], 1930
    %s6611 = smov 12
    %v6612 = vld [vmem:[%s6610] ss:$16 sm:%s6611]
    %vm6613 = vcmask 1043458
    %v6614 = vsel %vm6613, %v6612, %v6609
    %s6615 = scalar_lea.vmem [#allocation1], 1930
    %s6616 = smov 48
    %v6617 = vld [vmem:[%s6615] ss:$16 sm:%s6616]
    %vm6618 = vcmask 1045508
    %v6619 = vsel %vm6618, %v6617, %v6614
    %s6620 = scalar_lea.vmem [#allocation1], 1930
    %s6621 = smov 192
    %v6622 = vld [vmem:[%s6620] ss:$16 sm:%s6621]
    %vm6623 = vcmask 1047558
    %v6624 = vsel %vm6623, %v6622, %v6619
    %6625 = vrot.lane.b32.xlu0 %v6624, 80
    %v6626 = vpop.permute.xlu0 %6625
    %vm6627 = vcmask 720512
    %s6628 = scalar_lea.vmem [#allocation0], 120
    %6629 = vst.msk [vmem:[%s6628] sm:$0xff] %vm6627, %v6626
    %s6630 = scalar_lea.vmem [#allocation1], 9
    %s6631 = smov 3
    %v6632 = vld [vmem:[%s6630] ss:$16 sm:%s6631]
    %s6633 = scalar_lea.vmem [#allocation1], 9
    %s6634 = smov 12
    %v6635 = vld [vmem:[%s6633] ss:$16 sm:%s6634]
    %vm6636 = vcmask 1043458
    %v6637 = vsel %vm6636, %v6635, %v6632
    %s6638 = scalar_lea.vmem [#allocation1], 9
    %s6639 = smov 48
    %v6640 = vld [vmem:[%s6638] ss:$16 sm:%s6639]
    %vm6641 = vcmask 1045508
    %v6642 = vsel %vm6641, %v6640, %v6637
    %s6643 = scalar_lea.vmem [#allocation1], 9
    %s6644 = smov 192
    %v6645 = vld [vmem:[%s6643] ss:$16 sm:%s6644]
    %vm6646 = vcmask 1047558
    %v6647 = vsel %vm6646, %v6645, %v6642
    %6648 = vrot.lane.b32.xlu0 %v6647, 72
    %v6649 = vpop.permute.xlu0 %6648
    %vm6650 = vcmask 654912
    %6651 = vst.msk [vmem:[#allocation0] sm:$0xff] %vm6650, %v6649
    %s6652 = scalar_lea.vmem [#allocation1], 521
    %s6653 = smov 3
    %v6654 = vld [vmem:[%s6652] ss:$16 sm:%s6653]
    %s6655 = scalar_lea.vmem [#allocation1], 521
    %s6656 = smov 12
    %v6657 = vld [vmem:[%s6655] ss:$16 sm:%s6656]
    %vm6658 = vcmask 1043458
    %v6659 = vsel %vm6658, %v6657, %v6654
    %s6660 = scalar_lea.vmem [#allocation1], 521
    %s6661 = smov 48
    %v6662 = vld [vmem:[%s6660] ss:$16 sm:%s6661]
    %vm6663 = vcmask 1045508
    %v6664 = vsel %vm6663, %v6662, %v6659
    %s6665 = scalar_lea.vmem [#allocation1], 521
    %s6666 = smov 192
    %v6667 = vld [vmem:[%s6665] ss:$16 sm:%s6666]
    %vm6668 = vcmask 1047558
    %v6669 = vsel %vm6668, %v6667, %v6664
    %6670 = vrot.lane.b32.xlu0 %v6669, 72
    %v6671 = vpop.permute.xlu0 %6670
    %vm6672 = vcmask 654912
    %s6673 = scalar_lea.vmem [#allocation0], 32
    %6674 = vst.msk [vmem:[%s6673] sm:$0xff] %vm6672, %v6671
    %s6675 = scalar_lea.vmem [#allocation1], 1033
    %s6676 = smov 3
    %v6677 = vld [vmem:[%s6675] ss:$16 sm:%s6676]
    %s6678 = scalar_lea.vmem [#allocation1], 1033
    %s6679 = smov 12
    %v6680 = vld [vmem:[%s6678] ss:$16 sm:%s6679]
    %vm6681 = vcmask 1043458
    %v6682 = vsel %vm6681, %v6680, %v6677
    %s6683 = scalar_lea.vmem [#allocation1], 1033
    %s6684 = smov 48
    %v6685 = vld [vmem:[%s6683] ss:$16 sm:%s6684]
    %vm6686 = vcmask 1045508
    %v6687 = vsel %vm6686, %v6685, %v6682
    %s6688 = scalar_lea.vmem [#allocation1], 1033
    %s6689 = smov 192
    %v6690 = vld [vmem:[%s6688] ss:$16 sm:%s6689]
    %vm6691 = vcmask 1047558
    %v6692 = vsel %vm6691, %v6690, %v6687
    %6693 = vrot.lane.b32.xlu0 %v6692, 72
    %v6694 = vpop.permute.xlu0 %6693
    %vm6695 = vcmask 654912
    %s6696 = scalar_lea.vmem [#allocation0], 64
    %6697 = vst.msk [vmem:[%s6696] sm:$0xff] %vm6695, %v6694
    %s6698 = scalar_lea.vmem [#allocation1], 1545
    %s6699 = smov 3
    %v6700 = vld [vmem:[%s6698] ss:$16 sm:%s6699]
    %s6701 = scalar_lea.vmem [#allocation1], 1545
    %s6702 = smov 12
    %v6703 = vld [vmem:[%s6701] ss:$16 sm:%s6702]
    %vm6704 = vcmask 1043458
    %v6705 = vsel %vm6704, %v6703, %v6700
    %s6706 = scalar_lea.vmem [#allocation1], 1545
    %s6707 = smov 48
    %v6708 = vld [vmem:[%s6706] ss:$16 sm:%s6707]
    %vm6709 = vcmask 1045508
    %v6710 = vsel %vm6709, %v6708, %v6705
    %s6711 = scalar_lea.vmem [#allocation1], 1545
    %s6712 = smov 192
    %v6713 = vld [vmem:[%s6711] ss:$16 sm:%s6712]
    %vm6714 = vcmask 1047558
    %v6715 = vsel %vm6714, %v6713, %v6710
    %6716 = vrot.lane.b32.xlu0 %v6715, 72
    %v6717 = vpop.permute.xlu0 %6716
    %vm6718 = vcmask 654912
    %s6719 = scalar_lea.vmem [#allocation0], 96
    %6720 = vst.msk [vmem:[%s6719] sm:$0xff] %vm6718, %v6717
    %s6721 = scalar_lea.vmem [#allocation1], 137
    %s6722 = smov 3
    %v6723 = vld [vmem:[%s6721] ss:$16 sm:%s6722]
    %s6724 = scalar_lea.vmem [#allocation1], 137
    %s6725 = smov 12
    %v6726 = vld [vmem:[%s6724] ss:$16 sm:%s6725]
    %vm6727 = vcmask 1043458
    %v6728 = vsel %vm6727, %v6726, %v6723
    %s6729 = scalar_lea.vmem [#allocation1], 137
    %s6730 = smov 48
    %v6731 = vld [vmem:[%s6729] ss:$16 sm:%s6730]
    %vm6732 = vcmask 1045508
    %v6733 = vsel %vm6732, %v6731, %v6728
    %s6734 = scalar_lea.vmem [#allocation1], 137
    %s6735 = smov 192
    %v6736 = vld [vmem:[%s6734] ss:$16 sm:%s6735]
    %vm6737 = vcmask 1047558
    %v6738 = vsel %vm6737, %v6736, %v6733
    %6739 = vrot.lane.b32.xlu0 %v6738, 72
    %v6740 = vpop.permute.xlu0 %6739
    %vm6741 = vcmask 654912
    %s6742 = scalar_lea.vmem [#allocation0], 8
    %6743 = vst.msk [vmem:[%s6742] sm:$0xff] %vm6741, %v6740
    %s6744 = scalar_lea.vmem [#allocation1], 649
    %s6745 = smov 3
    %v6746 = vld [vmem:[%s6744] ss:$16 sm:%s6745]
    %s6747 = scalar_lea.vmem [#allocation1], 649
    %s6748 = smov 12
    %v6749 = vld [vmem:[%s6747] ss:$16 sm:%s6748]
    %vm6750 = vcmask 1043458
    %v6751 = vsel %vm6750, %v6749, %v6746
    %s6752 = scalar_lea.vmem [#allocation1], 649
    %s6753 = smov 48
    %v6754 = vld [vmem:[%s6752] ss:$16 sm:%s6753]
    %vm6755 = vcmask 1045508
    %v6756 = vsel %vm6755, %v6754, %v6751
    %s6757 = scalar_lea.vmem [#allocation1], 649
    %s6758 = smov 192
    %v6759 = vld [vmem:[%s6757] ss:$16 sm:%s6758]
    %vm6760 = vcmask 1047558
    %v6761 = vsel %vm6760, %v6759, %v6756
    %6762 = vrot.lane.b32.xlu0 %v6761, 72
    %v6763 = vpop.permute.xlu0 %6762
    %vm6764 = vcmask 654912
    %s6765 = scalar_lea.vmem [#allocation0], 40
    %6766 = vst.msk [vmem:[%s6765] sm:$0xff] %vm6764, %v6763
    %s6767 = scalar_lea.vmem [#allocation1], 1161
    %s6768 = smov 3
    %v6769 = vld [vmem:[%s6767] ss:$16 sm:%s6768]
    %s6770 = scalar_lea.vmem [#allocation1], 1161
    %s6771 = smov 12
    %v6772 = vld [vmem:[%s6770] ss:$16 sm:%s6771]
    %vm6773 = vcmask 1043458
    %v6774 = vsel %vm6773, %v6772, %v6769
    %s6775 = scalar_lea.vmem [#allocation1], 1161
    %s6776 = smov 48
    %v6777 = vld [vmem:[%s6775] ss:$16 sm:%s6776]
    %vm6778 = vcmask 1045508
    %v6779 = vsel %vm6778, %v6777, %v6774
    %s6780 = scalar_lea.vmem [#allocation1], 1161
    %s6781 = smov 192
    %v6782 = vld [vmem:[%s6780] ss:$16 sm:%s6781]
    %vm6783 = vcmask 1047558
    %v6784 = vsel %vm6783, %v6782, %v6779
    %6785 = vrot.lane.b32.xlu0 %v6784, 72
    %v6786 = vpop.permute.xlu0 %6785
    %vm6787 = vcmask 654912
    %s6788 = scalar_lea.vmem [#allocation0], 72
    %6789 = vst.msk [vmem:[%s6788] sm:$0xff] %vm6787, %v6786
    %s6790 = scalar_lea.vmem [#allocation1], 1673
    %s6791 = smov 3
    %v6792 = vld [vmem:[%s6790] ss:$16 sm:%s6791]
    %s6793 = scalar_lea.vmem [#allocation1], 1673
    %s6794 = smov 12
    %v6795 = vld [vmem:[%s6793] ss:$16 sm:%s6794]
    %vm6796 = vcmask 1043458
    %v6797 = vsel %vm6796, %v6795, %v6792
    %s6798 = scalar_lea.vmem [#allocation1], 1673
    %s6799 = smov 48
    %v6800 = vld [vmem:[%s6798] ss:$16 sm:%s6799]
    %vm6801 = vcmask 1045508
    %v6802 = vsel %vm6801, %v6800, %v6797
    %s6803 = scalar_lea.vmem [#allocation1], 1673
    %s6804 = smov 192
    %v6805 = vld [vmem:[%s6803] ss:$16 sm:%s6804]
    %vm6806 = vcmask 1047558
    %v6807 = vsel %vm6806, %v6805, %v6802
    %6808 = vrot.lane.b32.xlu0 %v6807, 72
    %v6809 = vpop.permute.xlu0 %6808
    %vm6810 = vcmask 654912
    %s6811 = scalar_lea.vmem [#allocation0], 104
    %6812 = vst.msk [vmem:[%s6811] sm:$0xff] %vm6810, %v6809
    %s6813 = scalar_lea.vmem [#allocation1], 265
    %s6814 = smov 3
    %v6815 = vld [vmem:[%s6813] ss:$16 sm:%s6814]
    %s6816 = scalar_lea.vmem [#allocation1], 265
    %s6817 = smov 12
    %v6818 = vld [vmem:[%s6816] ss:$16 sm:%s6817]
    %vm6819 = vcmask 1043458
    %v6820 = vsel %vm6819, %v6818, %v6815
    %s6821 = scalar_lea.vmem [#allocation1], 265
    %s6822 = smov 48
    %v6823 = vld [vmem:[%s6821] ss:$16 sm:%s6822]
    %vm6824 = vcmask 1045508
    %v6825 = vsel %vm6824, %v6823, %v6820
    %s6826 = scalar_lea.vmem [#allocation1], 265
    %s6827 = smov 192
    %v6828 = vld [vmem:[%s6826] ss:$16 sm:%s6827]
    %vm6829 = vcmask 1047558
    %v6830 = vsel %vm6829, %v6828, %v6825
    %6831 = vrot.lane.b32.xlu0 %v6830, 72
    %v6832 = vpop.permute.xlu0 %6831
    %vm6833 = vcmask 654912
    %s6834 = scalar_lea.vmem [#allocation0], 16
    %6835 = vst.msk [vmem:[%s6834] sm:$0xff] %vm6833, %v6832
    %s6836 = scalar_lea.vmem [#allocation1], 777
    %s6837 = smov 3
    %v6838 = vld [vmem:[%s6836] ss:$16 sm:%s6837]
    %s6839 = scalar_lea.vmem [#allocation1], 777
    %s6840 = smov 12
    %v6841 = vld [vmem:[%s6839] ss:$16 sm:%s6840]
    %vm6842 = vcmask 1043458
    %v6843 = vsel %vm6842, %v6841, %v6838
    %s6844 = scalar_lea.vmem [#allocation1], 777
    %s6845 = smov 48
    %v6846 = vld [vmem:[%s6844] ss:$16 sm:%s6845]
    %vm6847 = vcmask 1045508
    %v6848 = vsel %vm6847, %v6846, %v6843
    %s6849 = scalar_lea.vmem [#allocation1], 777
    %s6850 = smov 192
    %v6851 = vld [vmem:[%s6849] ss:$16 sm:%s6850]
    %vm6852 = vcmask 1047558
    %v6853 = vsel %vm6852, %v6851, %v6848
    %6854 = vrot.lane.b32.xlu0 %v6853, 72
    %v6855 = vpop.permute.xlu0 %6854
    %vm6856 = vcmask 654912
    %s6857 = scalar_lea.vmem [#allocation0], 48
    %6858 = vst.msk [vmem:[%s6857] sm:$0xff] %vm6856, %v6855
    %s6859 = scalar_lea.vmem [#allocation1], 1289
    %s6860 = smov 3
    %v6861 = vld [vmem:[%s6859] ss:$16 sm:%s6860]
    %s6862 = scalar_lea.vmem [#allocation1], 1289
    %s6863 = smov 12
    %v6864 = vld [vmem:[%s6862] ss:$16 sm:%s6863]
    %vm6865 = vcmask 1043458
    %v6866 = vsel %vm6865, %v6864, %v6861
    %s6867 = scalar_lea.vmem [#allocation1], 1289
    %s6868 = smov 48
    %v6869 = vld [vmem:[%s6867] ss:$16 sm:%s6868]
    %vm6870 = vcmask 1045508
    %v6871 = vsel %vm6870, %v6869, %v6866
    %s6872 = scalar_lea.vmem [#allocation1], 1289
    %s6873 = smov 192
    %v6874 = vld [vmem:[%s6872] ss:$16 sm:%s6873]
    %vm6875 = vcmask 1047558
    %v6876 = vsel %vm6875, %v6874, %v6871
    %6877 = vrot.lane.b32.xlu0 %v6876, 72
    %v6878 = vpop.permute.xlu0 %6877
    %vm6879 = vcmask 654912
    %s6880 = scalar_lea.vmem [#allocation0], 80
    %6881 = vst.msk [vmem:[%s6880] sm:$0xff] %vm6879, %v6878
    %s6882 = scalar_lea.vmem [#allocation1], 1801
    %s6883 = smov 3
    %v6884 = vld [vmem:[%s6882] ss:$16 sm:%s6883]
    %s6885 = scalar_lea.vmem [#allocation1], 1801
    %s6886 = smov 12
    %v6887 = vld [vmem:[%s6885] ss:$16 sm:%s6886]
    %vm6888 = vcmask 1043458
    %v6889 = vsel %vm6888, %v6887, %v6884
    %s6890 = scalar_lea.vmem [#allocation1], 1801
    %s6891 = smov 48
    %v6892 = vld [vmem:[%s6890] ss:$16 sm:%s6891]
    %vm6893 = vcmask 1045508
    %v6894 = vsel %vm6893, %v6892, %v6889
    %s6895 = scalar_lea.vmem [#allocation1], 1801
    %s6896 = smov 192
    %v6897 = vld [vmem:[%s6895] ss:$16 sm:%s6896]
    %vm6898 = vcmask 1047558
    %v6899 = vsel %vm6898, %v6897, %v6894
    %6900 = vrot.lane.b32.xlu0 %v6899, 72
    %v6901 = vpop.permute.xlu0 %6900
    %vm6902 = vcmask 654912
    %s6903 = scalar_lea.vmem [#allocation0], 112
    %6904 = vst.msk [vmem:[%s6903] sm:$0xff] %vm6902, %v6901
    %s6905 = scalar_lea.vmem [#allocation1], 393
    %s6906 = smov 3
    %v6907 = vld [vmem:[%s6905] ss:$16 sm:%s6906]
    %s6908 = scalar_lea.vmem [#allocation1], 393
    %s6909 = smov 12
    %v6910 = vld [vmem:[%s6908] ss:$16 sm:%s6909]
    %vm6911 = vcmask 1043458
    %v6912 = vsel %vm6911, %v6910, %v6907
    %s6913 = scalar_lea.vmem [#allocation1], 393
    %s6914 = smov 48
    %v6915 = vld [vmem:[%s6913] ss:$16 sm:%s6914]
    %vm6916 = vcmask 1045508
    %v6917 = vsel %vm6916, %v6915, %v6912
    %s6918 = scalar_lea.vmem [#allocation1], 393
    %s6919 = smov 192
    %v6920 = vld [vmem:[%s6918] ss:$16 sm:%s6919]
    %vm6921 = vcmask 1047558
    %v6922 = vsel %vm6921, %v6920, %v6917
    %6923 = vrot.lane.b32.xlu0 %v6922, 72
    %v6924 = vpop.permute.xlu0 %6923
    %vm6925 = vcmask 654912
    %s6926 = scalar_lea.vmem [#allocation0], 24
    %6927 = vst.msk [vmem:[%s6926] sm:$0xff] %vm6925, %v6924
    %s6928 = scalar_lea.vmem [#allocation1], 905
    %s6929 = smov 3
    %v6930 = vld [vmem:[%s6928] ss:$16 sm:%s6929]
    %s6931 = scalar_lea.vmem [#allocation1], 905
    %s6932 = smov 12
    %v6933 = vld [vmem:[%s6931] ss:$16 sm:%s6932]
    %vm6934 = vcmask 1043458
    %v6935 = vsel %vm6934, %v6933, %v6930
    %s6936 = scalar_lea.vmem [#allocation1], 905
    %s6937 = smov 48
    %v6938 = vld [vmem:[%s6936] ss:$16 sm:%s6937]
    %vm6939 = vcmask 1045508
    %v6940 = vsel %vm6939, %v6938, %v6935
    %s6941 = scalar_lea.vmem [#allocation1], 905
    %s6942 = smov 192
    %v6943 = vld [vmem:[%s6941] ss:$16 sm:%s6942]
    %vm6944 = vcmask 1047558
    %v6945 = vsel %vm6944, %v6943, %v6940
    %6946 = vrot.lane.b32.xlu0 %v6945, 72
    %v6947 = vpop.permute.xlu0 %6946
    %vm6948 = vcmask 654912
    %s6949 = scalar_lea.vmem [#allocation0], 56
    %6950 = vst.msk [vmem:[%s6949] sm:$0xff] %vm6948, %v6947
    %s6951 = scalar_lea.vmem [#allocation1], 1417
    %s6952 = smov 3
    %v6953 = vld [vmem:[%s6951] ss:$16 sm:%s6952]
    %s6954 = scalar_lea.vmem [#allocation1], 1417
    %s6955 = smov 12
    %v6956 = vld [vmem:[%s6954] ss:$16 sm:%s6955]
    %vm6957 = vcmask 1043458
    %v6958 = vsel %vm6957, %v6956, %v6953
    %s6959 = scalar_lea.vmem [#allocation1], 1417
    %s6960 = smov 48
    %v6961 = vld [vmem:[%s6959] ss:$16 sm:%s6960]
    %vm6962 = vcmask 1045508
    %v6963 = vsel %vm6962, %v6961, %v6958
    %s6964 = scalar_lea.vmem [#allocation1], 1417
    %s6965 = smov 192
    %v6966 = vld [vmem:[%s6964] ss:$16 sm:%s6965]
    %vm6967 = vcmask 1047558
    %v6968 = vsel %vm6967, %v6966, %v6963
    %6969 = vrot.lane.b32.xlu0 %v6968, 72
    %v6970 = vpop.permute.xlu0 %6969
    %vm6971 = vcmask 654912
    %s6972 = scalar_lea.vmem [#allocation0], 88
    %6973 = vst.msk [vmem:[%s6972] sm:$0xff] %vm6971, %v6970
    %s6974 = scalar_lea.vmem [#allocation1], 1929
    %s6975 = smov 3
    %v6976 = vld [vmem:[%s6974] ss:$16 sm:%s6975]
    %s6977 = scalar_lea.vmem [#allocation1], 1929
    %s6978 = smov 12
    %v6979 = vld [vmem:[%s6977] ss:$16 sm:%s6978]
    %vm6980 = vcmask 1043458
    %v6981 = vsel %vm6980, %v6979, %v6976
    %s6982 = scalar_lea.vmem [#allocation1], 1929
    %s6983 = smov 48
    %v6984 = vld [vmem:[%s6982] ss:$16 sm:%s6983]
    %vm6985 = vcmask 1045508
    %v6986 = vsel %vm6985, %v6984, %v6981
    %s6987 = scalar_lea.vmem [#allocation1], 1929
    %s6988 = smov 192
    %v6989 = vld [vmem:[%s6987] ss:$16 sm:%s6988]
    %vm6990 = vcmask 1047558
    %v6991 = vsel %vm6990, %v6989, %v6986
    %6992 = vrot.lane.b32.xlu0 %v6991, 72
    %v6993 = vpop.permute.xlu0 %6992
    %vm6994 = vcmask 654912
    %s6995 = scalar_lea.vmem [#allocation0], 120
    %6996 = vst.msk [vmem:[%s6995] sm:$0xff] %vm6994, %v6993
    %s6997 = scalar_lea.vmem [#allocation1], 8
    %s6998 = smov 3
    %v6999 = vld [vmem:[%s6997] ss:$16 sm:%s6998]
    %s7000 = scalar_lea.vmem [#allocation1], 8
    %s7001 = smov 12
    %v7002 = vld [vmem:[%s7000] ss:$16 sm:%s7001]
    %vm7003 = vcmask 1043458
    %v7004 = vsel %vm7003, %v7002, %v6999
    %s7005 = scalar_lea.vmem [#allocation1], 8
    %s7006 = smov 48
    %v7007 = vld [vmem:[%s7005] ss:$16 sm:%s7006]
    %vm7008 = vcmask 1045508
    %v7009 = vsel %vm7008, %v7007, %v7004
    %s7010 = scalar_lea.vmem [#allocation1], 8
    %s7011 = smov 192
    %v7012 = vld [vmem:[%s7010] ss:$16 sm:%s7011]
    %vm7013 = vcmask 1047558
    %v7014 = vsel %vm7013, %v7012, %v7009
    %7015 = vrot.lane.b32.xlu0 %v7014, 64
    %v7016 = vpop.permute.xlu0 %7015
    %vm7017 = vcmask 589312
    %7018 = vst.msk [vmem:[#allocation0] sm:$0xff] %vm7017, %v7016
    %s7019 = scalar_lea.vmem [#allocation1], 520
    %s7020 = smov 3
    %v7021 = vld [vmem:[%s7019] ss:$16 sm:%s7020]
    %s7022 = scalar_lea.vmem [#allocation1], 520
    %s7023 = smov 12
    %v7024 = vld [vmem:[%s7022] ss:$16 sm:%s7023]
    %vm7025 = vcmask 1043458
    %v7026 = vsel %vm7025, %v7024, %v7021
    %s7027 = scalar_lea.vmem [#allocation1], 520
    %s7028 = smov 48
    %v7029 = vld [vmem:[%s7027] ss:$16 sm:%s7028]
    %vm7030 = vcmask 1045508
    %v7031 = vsel %vm7030, %v7029, %v7026
    %s7032 = scalar_lea.vmem [#allocation1], 520
    %s7033 = smov 192
    %v7034 = vld [vmem:[%s7032] ss:$16 sm:%s7033]
    %vm7035 = vcmask 1047558
    %v7036 = vsel %vm7035, %v7034, %v7031
    %7037 = vrot.lane.b32.xlu0 %v7036, 64
    %v7038 = vpop.permute.xlu0 %7037
    %vm7039 = vcmask 589312
    %s7040 = scalar_lea.vmem [#allocation0], 32
    %7041 = vst.msk [vmem:[%s7040] sm:$0xff] %vm7039, %v7038
    %s7042 = scalar_lea.vmem [#allocation1], 1032
    %s7043 = smov 3
    %v7044 = vld [vmem:[%s7042] ss:$16 sm:%s7043]
    %s7045 = scalar_lea.vmem [#allocation1], 1032
    %s7046 = smov 12
    %v7047 = vld [vmem:[%s7045] ss:$16 sm:%s7046]
    %vm7048 = vcmask 1043458
    %v7049 = vsel %vm7048, %v7047, %v7044
    %s7050 = scalar_lea.vmem [#allocation1], 1032
    %s7051 = smov 48
    %v7052 = vld [vmem:[%s7050] ss:$16 sm:%s7051]
    %vm7053 = vcmask 1045508
    %v7054 = vsel %vm7053, %v7052, %v7049
    %s7055 = scalar_lea.vmem [#allocation1], 1032
    %s7056 = smov 192
    %v7057 = vld [vmem:[%s7055] ss:$16 sm:%s7056]
    %vm7058 = vcmask 1047558
    %v7059 = vsel %vm7058, %v7057, %v7054
    %7060 = vrot.lane.b32.xlu0 %v7059, 64
    %v7061 = vpop.permute.xlu0 %7060
    %vm7062 = vcmask 589312
    %s7063 = scalar_lea.vmem [#allocation0], 64
    %7064 = vst.msk [vmem:[%s7063] sm:$0xff] %vm7062, %v7061
    %s7065 = scalar_lea.vmem [#allocation1], 1544
    %s7066 = smov 3
    %v7067 = vld [vmem:[%s7065] ss:$16 sm:%s7066]
    %s7068 = scalar_lea.vmem [#allocation1], 1544
    %s7069 = smov 12
    %v7070 = vld [vmem:[%s7068] ss:$16 sm:%s7069]
    %vm7071 = vcmask 1043458
    %v7072 = vsel %vm7071, %v7070, %v7067
    %s7073 = scalar_lea.vmem [#allocation1], 1544
    %s7074 = smov 48
    %v7075 = vld [vmem:[%s7073] ss:$16 sm:%s7074]
    %vm7076 = vcmask 1045508
    %v7077 = vsel %vm7076, %v7075, %v7072
    %s7078 = scalar_lea.vmem [#allocation1], 1544
    %s7079 = smov 192
    %v7080 = vld [vmem:[%s7078] ss:$16 sm:%s7079]
    %vm7081 = vcmask 1047558
    %v7082 = vsel %vm7081, %v7080, %v7077
    %7083 = vrot.lane.b32.xlu0 %v7082, 64
    %v7084 = vpop.permute.xlu0 %7083
    %vm7085 = vcmask 589312
    %s7086 = scalar_lea.vmem [#allocation0], 96
    %7087 = vst.msk [vmem:[%s7086] sm:$0xff] %vm7085, %v7084
    %s7088 = scalar_lea.vmem [#allocation1], 136
    %s7089 = smov 3
    %v7090 = vld [vmem:[%s7088] ss:$16 sm:%s7089]
    %s7091 = scalar_lea.vmem [#allocation1], 136
    %s7092 = smov 12
    %v7093 = vld [vmem:[%s7091] ss:$16 sm:%s7092]
    %vm7094 = vcmask 1043458
    %v7095 = vsel %vm7094, %v7093, %v7090
    %s7096 = scalar_lea.vmem [#allocation1], 136
    %s7097 = smov 48
    %v7098 = vld [vmem:[%s7096] ss:$16 sm:%s7097]
    %vm7099 = vcmask 1045508
    %v7100 = vsel %vm7099, %v7098, %v7095
    %s7101 = scalar_lea.vmem [#allocation1], 136
    %s7102 = smov 192
    %v7103 = vld [vmem:[%s7101] ss:$16 sm:%s7102]
    %vm7104 = vcmask 1047558
    %v7105 = vsel %vm7104, %v7103, %v7100
    %7106 = vrot.lane.b32.xlu0 %v7105, 64
    %v7107 = vpop.permute.xlu0 %7106
    %vm7108 = vcmask 589312
    %s7109 = scalar_lea.vmem [#allocation0], 8
    %7110 = vst.msk [vmem:[%s7109] sm:$0xff] %vm7108, %v7107
    %s7111 = scalar_lea.vmem [#allocation1], 648
    %s7112 = smov 3
    %v7113 = vld [vmem:[%s7111] ss:$16 sm:%s7112]
    %s7114 = scalar_lea.vmem [#allocation1], 648
    %s7115 = smov 12
    %v7116 = vld [vmem:[%s7114] ss:$16 sm:%s7115]
    %vm7117 = vcmask 1043458
    %v7118 = vsel %vm7117, %v7116, %v7113
    %s7119 = scalar_lea.vmem [#allocation1], 648
    %s7120 = smov 48
    %v7121 = vld [vmem:[%s7119] ss:$16 sm:%s7120]
    %vm7122 = vcmask 1045508
    %v7123 = vsel %vm7122, %v7121, %v7118
    %s7124 = scalar_lea.vmem [#allocation1], 648
    %s7125 = smov 192
    %v7126 = vld [vmem:[%s7124] ss:$16 sm:%s7125]
    %vm7127 = vcmask 1047558
    %v7128 = vsel %vm7127, %v7126, %v7123
    %7129 = vrot.lane.b32.xlu0 %v7128, 64
    %v7130 = vpop.permute.xlu0 %7129
    %vm7131 = vcmask 589312
    %s7132 = scalar_lea.vmem [#allocation0], 40
    %7133 = vst.msk [vmem:[%s7132] sm:$0xff] %vm7131, %v7130
    %s7134 = scalar_lea.vmem [#allocation1], 1160
    %s7135 = smov 3
    %v7136 = vld [vmem:[%s7134] ss:$16 sm:%s7135]
    %s7137 = scalar_lea.vmem [#allocation1], 1160
    %s7138 = smov 12
    %v7139 = vld [vmem:[%s7137] ss:$16 sm:%s7138]
    %vm7140 = vcmask 1043458
    %v7141 = vsel %vm7140, %v7139, %v7136
    %s7142 = scalar_lea.vmem [#allocation1], 1160
    %s7143 = smov 48
    %v7144 = vld [vmem:[%s7142] ss:$16 sm:%s7143]
    %vm7145 = vcmask 1045508
    %v7146 = vsel %vm7145, %v7144, %v7141
    %s7147 = scalar_lea.vmem [#allocation1], 1160
    %s7148 = smov 192
    %v7149 = vld [vmem:[%s7147] ss:$16 sm:%s7148]
    %vm7150 = vcmask 1047558
    %v7151 = vsel %vm7150, %v7149, %v7146
    %7152 = vrot.lane.b32.xlu0 %v7151, 64
    %v7153 = vpop.permute.xlu0 %7152
    %vm7154 = vcmask 589312
    %s7155 = scalar_lea.vmem [#allocation0], 72
    %7156 = vst.msk [vmem:[%s7155] sm:$0xff] %vm7154, %v7153
    %s7157 = scalar_lea.vmem [#allocation1], 1672
    %s7158 = smov 3
    %v7159 = vld [vmem:[%s7157] ss:$16 sm:%s7158]
    %s7160 = scalar_lea.vmem [#allocation1], 1672
    %s7161 = smov 12
    %v7162 = vld [vmem:[%s7160] ss:$16 sm:%s7161]
    %vm7163 = vcmask 1043458
    %v7164 = vsel %vm7163, %v7162, %v7159
    %s7165 = scalar_lea.vmem [#allocation1], 1672
    %s7166 = smov 48
    %v7167 = vld [vmem:[%s7165] ss:$16 sm:%s7166]
    %vm7168 = vcmask 1045508
    %v7169 = vsel %vm7168, %v7167, %v7164
    %s7170 = scalar_lea.vmem [#allocation1], 1672
    %s7171 = smov 192
    %v7172 = vld [vmem:[%s7170] ss:$16 sm:%s7171]
    %vm7173 = vcmask 1047558
    %v7174 = vsel %vm7173, %v7172, %v7169
    %7175 = vrot.lane.b32.xlu0 %v7174, 64
    %v7176 = vpop.permute.xlu0 %7175
    %vm7177 = vcmask 589312
    %s7178 = scalar_lea.vmem [#allocation0], 104
    %7179 = vst.msk [vmem:[%s7178] sm:$0xff] %vm7177, %v7176
    %s7180 = scalar_lea.vmem [#allocation1], 264
    %s7181 = smov 3
    %v7182 = vld [vmem:[%s7180] ss:$16 sm:%s7181]
    %s7183 = scalar_lea.vmem [#allocation1], 264
    %s7184 = smov 12
    %v7185 = vld [vmem:[%s7183] ss:$16 sm:%s7184]
    %vm7186 = vcmask 1043458
    %v7187 = vsel %vm7186, %v7185, %v7182
    %s7188 = scalar_lea.vmem [#allocation1], 264
    %s7189 = smov 48
    %v7190 = vld [vmem:[%s7188] ss:$16 sm:%s7189]
    %vm7191 = vcmask 1045508
    %v7192 = vsel %vm7191, %v7190, %v7187
    %s7193 = scalar_lea.vmem [#allocation1], 264
    %s7194 = smov 192
    %v7195 = vld [vmem:[%s7193] ss:$16 sm:%s7194]
    %vm7196 = vcmask 1047558
    %v7197 = vsel %vm7196, %v7195, %v7192
    %7198 = vrot.lane.b32.xlu0 %v7197, 64
    %v7199 = vpop.permute.xlu0 %7198
    %vm7200 = vcmask 589312
    %s7201 = scalar_lea.vmem [#allocation0], 16
    %7202 = vst.msk [vmem:[%s7201] sm:$0xff] %vm7200, %v7199
    %s7203 = scalar_lea.vmem [#allocation1], 776
    %s7204 = smov 3
    %v7205 = vld [vmem:[%s7203] ss:$16 sm:%s7204]
    %s7206 = scalar_lea.vmem [#allocation1], 776
    %s7207 = smov 12
    %v7208 = vld [vmem:[%s7206] ss:$16 sm:%s7207]
    %vm7209 = vcmask 1043458
    %v7210 = vsel %vm7209, %v7208, %v7205
    %s7211 = scalar_lea.vmem [#allocation1], 776
    %s7212 = smov 48
    %v7213 = vld [vmem:[%s7211] ss:$16 sm:%s7212]
    %vm7214 = vcmask 1045508
    %v7215 = vsel %vm7214, %v7213, %v7210
    %s7216 = scalar_lea.vmem [#allocation1], 776
    %s7217 = smov 192
    %v7218 = vld [vmem:[%s7216] ss:$16 sm:%s7217]
    %vm7219 = vcmask 1047558
    %v7220 = vsel %vm7219, %v7218, %v7215
    %7221 = vrot.lane.b32.xlu0 %v7220, 64
    %v7222 = vpop.permute.xlu0 %7221
    %vm7223 = vcmask 589312
    %s7224 = scalar_lea.vmem [#allocation0], 48
    %7225 = vst.msk [vmem:[%s7224] sm:$0xff] %vm7223, %v7222
    %s7226 = scalar_lea.vmem [#allocation1], 1288
    %s7227 = smov 3
    %v7228 = vld [vmem:[%s7226] ss:$16 sm:%s7227]
    %s7229 = scalar_lea.vmem [#allocation1], 1288
    %s7230 = smov 12
    %v7231 = vld [vmem:[%s7229] ss:$16 sm:%s7230]
    %vm7232 = vcmask 1043458
    %v7233 = vsel %vm7232, %v7231, %v7228
    %s7234 = scalar_lea.vmem [#allocation1], 1288
    %s7235 = smov 48
    %v7236 = vld [vmem:[%s7234] ss:$16 sm:%s7235]
    %vm7237 = vcmask 1045508
    %v7238 = vsel %vm7237, %v7236, %v7233
    %s7239 = scalar_lea.vmem [#allocation1], 1288
    %s7240 = smov 192
    %v7241 = vld [vmem:[%s7239] ss:$16 sm:%s7240]
    %vm7242 = vcmask 1047558
    %v7243 = vsel %vm7242, %v7241, %v7238
    %7244 = vrot.lane.b32.xlu0 %v7243, 64
    %v7245 = vpop.permute.xlu0 %7244
    %vm7246 = vcmask 589312
    %s7247 = scalar_lea.vmem [#allocation0], 80
    %7248 = vst.msk [vmem:[%s7247] sm:$0xff] %vm7246, %v7245
    %s7249 = scalar_lea.vmem [#allocation1], 1800
    %s7250 = smov 3
    %v7251 = vld [vmem:[%s7249] ss:$16 sm:%s7250]
    %s7252 = scalar_lea.vmem [#allocation1], 1800
    %s7253 = smov 12
    %v7254 = vld [vmem:[%s7252] ss:$16 sm:%s7253]
    %vm7255 = vcmask 1043458
    %v7256 = vsel %vm7255, %v7254, %v7251
    %s7257 = scalar_lea.vmem [#allocation1], 1800
    %s7258 = smov 48
    %v7259 = vld [vmem:[%s7257] ss:$16 sm:%s7258]
    %vm7260 = vcmask 1045508
    %v7261 = vsel %vm7260, %v7259, %v7256
    %s7262 = scalar_lea.vmem [#allocation1], 1800
    %s7263 = smov 192
    %v7264 = vld [vmem:[%s7262] ss:$16 sm:%s7263]
    %vm7265 = vcmask 1047558
    %v7266 = vsel %vm7265, %v7264, %v7261
    %7267 = vrot.lane.b32.xlu0 %v7266, 64
    %v7268 = vpop.permute.xlu0 %7267
    %vm7269 = vcmask 589312
    %s7270 = scalar_lea.vmem [#allocation0], 112
    %7271 = vst.msk [vmem:[%s7270] sm:$0xff] %vm7269, %v7268
    %s7272 = scalar_lea.vmem [#allocation1], 392
    %s7273 = smov 3
    %v7274 = vld [vmem:[%s7272] ss:$16 sm:%s7273]
    %s7275 = scalar_lea.vmem [#allocation1], 392
    %s7276 = smov 12
    %v7277 = vld [vmem:[%s7275] ss:$16 sm:%s7276]
    %vm7278 = vcmask 1043458
    %v7279 = vsel %vm7278, %v7277, %v7274
    %s7280 = scalar_lea.vmem [#allocation1], 392
    %s7281 = smov 48
    %v7282 = vld [vmem:[%s7280] ss:$16 sm:%s7281]
    %vm7283 = vcmask 1045508
    %v7284 = vsel %vm7283, %v7282, %v7279
    %s7285 = scalar_lea.vmem [#allocation1], 392
    %s7286 = smov 192
    %v7287 = vld [vmem:[%s7285] ss:$16 sm:%s7286]
    %vm7288 = vcmask 1047558
    %v7289 = vsel %vm7288, %v7287, %v7284
    %7290 = vrot.lane.b32.xlu0 %v7289, 64
    %v7291 = vpop.permute.xlu0 %7290
    %vm7292 = vcmask 589312
    %s7293 = scalar_lea.vmem [#allocation0], 24
    %7294 = vst.msk [vmem:[%s7293] sm:$0xff] %vm7292, %v7291
    %s7295 = scalar_lea.vmem [#allocation1], 904
    %s7296 = smov 3
    %v7297 = vld [vmem:[%s7295] ss:$16 sm:%s7296]
    %s7298 = scalar_lea.vmem [#allocation1], 904
    %s7299 = smov 12
    %v7300 = vld [vmem:[%s7298] ss:$16 sm:%s7299]
    %vm7301 = vcmask 1043458
    %v7302 = vsel %vm7301, %v7300, %v7297
    %s7303 = scalar_lea.vmem [#allocation1], 904
    %s7304 = smov 48
    %v7305 = vld [vmem:[%s7303] ss:$16 sm:%s7304]
    %vm7306 = vcmask 1045508
    %v7307 = vsel %vm7306, %v7305, %v7302
    %s7308 = scalar_lea.vmem [#allocation1], 904
    %s7309 = smov 192
    %v7310 = vld [vmem:[%s7308] ss:$16 sm:%s7309]
    %vm7311 = vcmask 1047558
    %v7312 = vsel %vm7311, %v7310, %v7307
    %7313 = vrot.lane.b32.xlu0 %v7312, 64
    %v7314 = vpop.permute.xlu0 %7313
    %vm7315 = vcmask 589312
    %s7316 = scalar_lea.vmem [#allocation0], 56
    %7317 = vst.msk [vmem:[%s7316] sm:$0xff] %vm7315, %v7314
    %s7318 = scalar_lea.vmem [#allocation1], 1416
    %s7319 = smov 3
    %v7320 = vld [vmem:[%s7318] ss:$16 sm:%s7319]
    %s7321 = scalar_lea.vmem [#allocation1], 1416
    %s7322 = smov 12
    %v7323 = vld [vmem:[%s7321] ss:$16 sm:%s7322]
    %vm7324 = vcmask 1043458
    %v7325 = vsel %vm7324, %v7323, %v7320
    %s7326 = scalar_lea.vmem [#allocation1], 1416
    %s7327 = smov 48
    %v7328 = vld [vmem:[%s7326] ss:$16 sm:%s7327]
    %vm7329 = vcmask 1045508
    %v7330 = vsel %vm7329, %v7328, %v7325
    %s7331 = scalar_lea.vmem [#allocation1], 1416
    %s7332 = smov 192
    %v7333 = vld [vmem:[%s7331] ss:$16 sm:%s7332]
    %vm7334 = vcmask 1047558
    %v7335 = vsel %vm7334, %v7333, %v7330
    %7336 = vrot.lane.b32.xlu0 %v7335, 64
    %v7337 = vpop.permute.xlu0 %7336
    %vm7338 = vcmask 589312
    %s7339 = scalar_lea.vmem [#allocation0], 88
    %7340 = vst.msk [vmem:[%s7339] sm:$0xff] %vm7338, %v7337
    %s7341 = scalar_lea.vmem [#allocation1], 1928
    %s7342 = smov 3
    %v7343 = vld [vmem:[%s7341] ss:$16 sm:%s7342]
    %s7344 = scalar_lea.vmem [#allocation1], 1928
    %s7345 = smov 12
    %v7346 = vld [vmem:[%s7344] ss:$16 sm:%s7345]
    %vm7347 = vcmask 1043458
    %v7348 = vsel %vm7347, %v7346, %v7343
    %s7349 = scalar_lea.vmem [#allocation1], 1928
    %s7350 = smov 48
    %v7351 = vld [vmem:[%s7349] ss:$16 sm:%s7350]
    %vm7352 = vcmask 1045508
    %v7353 = vsel %vm7352, %v7351, %v7348
    %s7354 = scalar_lea.vmem [#allocation1], 1928
    %s7355 = smov 192
    %v7356 = vld [vmem:[%s7354] ss:$16 sm:%s7355]
    %vm7357 = vcmask 1047558
    %v7358 = vsel %vm7357, %v7356, %v7353
    %7359 = vrot.lane.b32.xlu0 %v7358, 64
    %v7360 = vpop.permute.xlu0 %7359
    %vm7361 = vcmask 589312
    %s7362 = scalar_lea.vmem [#allocation0], 120
    %7363 = vst.msk [vmem:[%s7362] sm:$0xff] %vm7361, %v7360
    %s7364 = scalar_lea.vmem [#allocation1], 7
    %s7365 = smov 3
    %v7366 = vld [vmem:[%s7364] ss:$16 sm:%s7365]
    %s7367 = scalar_lea.vmem [#allocation1], 7
    %s7368 = smov 12
    %v7369 = vld [vmem:[%s7367] ss:$16 sm:%s7368]
    %vm7370 = vcmask 1043458
    %v7371 = vsel %vm7370, %v7369, %v7366
    %s7372 = scalar_lea.vmem [#allocation1], 7
    %s7373 = smov 48
    %v7374 = vld [vmem:[%s7372] ss:$16 sm:%s7373]
    %vm7375 = vcmask 1045508
    %v7376 = vsel %vm7375, %v7374, %v7371
    %s7377 = scalar_lea.vmem [#allocation1], 7
    %s7378 = smov 192
    %v7379 = vld [vmem:[%s7377] ss:$16 sm:%s7378]
    %vm7380 = vcmask 1047558
    %v7381 = vsel %vm7380, %v7379, %v7376
    %7382 = vrot.lane.b32.xlu0 %v7381, 56
    %v7383 = vpop.permute.xlu0 %7382
    %vm7384 = vcmask 523712
    %7385 = vst.msk [vmem:[#allocation0] sm:$0xff] %vm7384, %v7383
    %s7386 = scalar_lea.vmem [#allocation1], 519
    %s7387 = smov 3
    %v7388 = vld [vmem:[%s7386] ss:$16 sm:%s7387]
    %s7389 = scalar_lea.vmem [#allocation1], 519
    %s7390 = smov 12
    %v7391 = vld [vmem:[%s7389] ss:$16 sm:%s7390]
    %vm7392 = vcmask 1043458
    %v7393 = vsel %vm7392, %v7391, %v7388
    %s7394 = scalar_lea.vmem [#allocation1], 519
    %s7395 = smov 48
    %v7396 = vld [vmem:[%s7394] ss:$16 sm:%s7395]
    %vm7397 = vcmask 1045508
    %v7398 = vsel %vm7397, %v7396, %v7393
    %s7399 = scalar_lea.vmem [#allocation1], 519
    %s7400 = smov 192
    %v7401 = vld [vmem:[%s7399] ss:$16 sm:%s7400]
    %vm7402 = vcmask 1047558
    %v7403 = vsel %vm7402, %v7401, %v7398
    %7404 = vrot.lane.b32.xlu0 %v7403, 56
    %v7405 = vpop.permute.xlu0 %7404
    %vm7406 = vcmask 523712
    %s7407 = scalar_lea.vmem [#allocation0], 32
    %7408 = vst.msk [vmem:[%s7407] sm:$0xff] %vm7406, %v7405
    %s7409 = scalar_lea.vmem [#allocation1], 1031
    %s7410 = smov 3
    %v7411 = vld [vmem:[%s7409] ss:$16 sm:%s7410]
    %s7412 = scalar_lea.vmem [#allocation1], 1031
    %s7413 = smov 12
    %v7414 = vld [vmem:[%s7412] ss:$16 sm:%s7413]
    %vm7415 = vcmask 1043458
    %v7416 = vsel %vm7415, %v7414, %v7411
    %s7417 = scalar_lea.vmem [#allocation1], 1031
    %s7418 = smov 48
    %v7419 = vld [vmem:[%s7417] ss:$16 sm:%s7418]
    %vm7420 = vcmask 1045508
    %v7421 = vsel %vm7420, %v7419, %v7416
    %s7422 = scalar_lea.vmem [#allocation1], 1031
    %s7423 = smov 192
    %v7424 = vld [vmem:[%s7422] ss:$16 sm:%s7423]
    %vm7425 = vcmask 1047558
    %v7426 = vsel %vm7425, %v7424, %v7421
    %7427 = vrot.lane.b32.xlu0 %v7426, 56
    %v7428 = vpop.permute.xlu0 %7427
    %vm7429 = vcmask 523712
    %s7430 = scalar_lea.vmem [#allocation0], 64
    %7431 = vst.msk [vmem:[%s7430] sm:$0xff] %vm7429, %v7428
    %s7432 = scalar_lea.vmem [#allocation1], 1543
    %s7433 = smov 3
    %v7434 = vld [vmem:[%s7432] ss:$16 sm:%s7433]
    %s7435 = scalar_lea.vmem [#allocation1], 1543
    %s7436 = smov 12
    %v7437 = vld [vmem:[%s7435] ss:$16 sm:%s7436]
    %vm7438 = vcmask 1043458
    %v7439 = vsel %vm7438, %v7437, %v7434
    %s7440 = scalar_lea.vmem [#allocation1], 1543
    %s7441 = smov 48
    %v7442 = vld [vmem:[%s7440] ss:$16 sm:%s7441]
    %vm7443 = vcmask 1045508
    %v7444 = vsel %vm7443, %v7442, %v7439
    %s7445 = scalar_lea.vmem [#allocation1], 1543
    %s7446 = smov 192
    %v7447 = vld [vmem:[%s7445] ss:$16 sm:%s7446]
    %vm7448 = vcmask 1047558
    %v7449 = vsel %vm7448, %v7447, %v7444
    %7450 = vrot.lane.b32.xlu0 %v7449, 56
    %v7451 = vpop.permute.xlu0 %7450
    %vm7452 = vcmask 523712
    %s7453 = scalar_lea.vmem [#allocation0], 96
    %7454 = vst.msk [vmem:[%s7453] sm:$0xff] %vm7452, %v7451
    %s7455 = scalar_lea.vmem [#allocation1], 135
    %s7456 = smov 3
    %v7457 = vld [vmem:[%s7455] ss:$16 sm:%s7456]
    %s7458 = scalar_lea.vmem [#allocation1], 135
    %s7459 = smov 12
    %v7460 = vld [vmem:[%s7458] ss:$16 sm:%s7459]
    %vm7461 = vcmask 1043458
    %v7462 = vsel %vm7461, %v7460, %v7457
    %s7463 = scalar_lea.vmem [#allocation1], 135
    %s7464 = smov 48
    %v7465 = vld [vmem:[%s7463] ss:$16 sm:%s7464]
    %vm7466 = vcmask 1045508
    %v7467 = vsel %vm7466, %v7465, %v7462
    %s7468 = scalar_lea.vmem [#allocation1], 135
    %s7469 = smov 192
    %v7470 = vld [vmem:[%s7468] ss:$16 sm:%s7469]
    %vm7471 = vcmask 1047558
    %v7472 = vsel %vm7471, %v7470, %v7467
    %7473 = vrot.lane.b32.xlu0 %v7472, 56
    %v7474 = vpop.permute.xlu0 %7473
    %vm7475 = vcmask 523712
    %s7476 = scalar_lea.vmem [#allocation0], 8
    %7477 = vst.msk [vmem:[%s7476] sm:$0xff] %vm7475, %v7474
    %s7478 = scalar_lea.vmem [#allocation1], 647
    %s7479 = smov 3
    %v7480 = vld [vmem:[%s7478] ss:$16 sm:%s7479]
    %s7481 = scalar_lea.vmem [#allocation1], 647
    %s7482 = smov 12
    %v7483 = vld [vmem:[%s7481] ss:$16 sm:%s7482]
    %vm7484 = vcmask 1043458
    %v7485 = vsel %vm7484, %v7483, %v7480
    %s7486 = scalar_lea.vmem [#allocation1], 647
    %s7487 = smov 48
    %v7488 = vld [vmem:[%s7486] ss:$16 sm:%s7487]
    %vm7489 = vcmask 1045508
    %v7490 = vsel %vm7489, %v7488, %v7485
    %s7491 = scalar_lea.vmem [#allocation1], 647
    %s7492 = smov 192
    %v7493 = vld [vmem:[%s7491] ss:$16 sm:%s7492]
    %vm7494 = vcmask 1047558
    %v7495 = vsel %vm7494, %v7493, %v7490
    %7496 = vrot.lane.b32.xlu0 %v7495, 56
    %v7497 = vpop.permute.xlu0 %7496
    %vm7498 = vcmask 523712
    %s7499 = scalar_lea.vmem [#allocation0], 40
    %7500 = vst.msk [vmem:[%s7499] sm:$0xff] %vm7498, %v7497
    %s7501 = scalar_lea.vmem [#allocation1], 1159
    %s7502 = smov 3
    %v7503 = vld [vmem:[%s7501] ss:$16 sm:%s7502]
    %s7504 = scalar_lea.vmem [#allocation1], 1159
    %s7505 = smov 12
    %v7506 = vld [vmem:[%s7504] ss:$16 sm:%s7505]
    %vm7507 = vcmask 1043458
    %v7508 = vsel %vm7507, %v7506, %v7503
    %s7509 = scalar_lea.vmem [#allocation1], 1159
    %s7510 = smov 48
    %v7511 = vld [vmem:[%s7509] ss:$16 sm:%s7510]
    %vm7512 = vcmask 1045508
    %v7513 = vsel %vm7512, %v7511, %v7508
    %s7514 = scalar_lea.vmem [#allocation1], 1159
    %s7515 = smov 192
    %v7516 = vld [vmem:[%s7514] ss:$16 sm:%s7515]
    %vm7517 = vcmask 1047558
    %v7518 = vsel %vm7517, %v7516, %v7513
    %7519 = vrot.lane.b32.xlu0 %v7518, 56
    %v7520 = vpop.permute.xlu0 %7519
    %vm7521 = vcmask 523712
    %s7522 = scalar_lea.vmem [#allocation0], 72
    %7523 = vst.msk [vmem:[%s7522] sm:$0xff] %vm7521, %v7520
    %s7524 = scalar_lea.vmem [#allocation1], 1671
    %s7525 = smov 3
    %v7526 = vld [vmem:[%s7524] ss:$16 sm:%s7525]
    %s7527 = scalar_lea.vmem [#allocation1], 1671
    %s7528 = smov 12
    %v7529 = vld [vmem:[%s7527] ss:$16 sm:%s7528]
    %vm7530 = vcmask 1043458
    %v7531 = vsel %vm7530, %v7529, %v7526
    %s7532 = scalar_lea.vmem [#allocation1], 1671
    %s7533 = smov 48
    %v7534 = vld [vmem:[%s7532] ss:$16 sm:%s7533]
    %vm7535 = vcmask 1045508
    %v7536 = vsel %vm7535, %v7534, %v7531
    %s7537 = scalar_lea.vmem [#allocation1], 1671
    %s7538 = smov 192
    %v7539 = vld [vmem:[%s7537] ss:$16 sm:%s7538]
    %vm7540 = vcmask 1047558
    %v7541 = vsel %vm7540, %v7539, %v7536
    %7542 = vrot.lane.b32.xlu0 %v7541, 56
    %v7543 = vpop.permute.xlu0 %7542
    %vm7544 = vcmask 523712
    %s7545 = scalar_lea.vmem [#allocation0], 104
    %7546 = vst.msk [vmem:[%s7545] sm:$0xff] %vm7544, %v7543
    %s7547 = scalar_lea.vmem [#allocation1], 263
    %s7548 = smov 3
    %v7549 = vld [vmem:[%s7547] ss:$16 sm:%s7548]
    %s7550 = scalar_lea.vmem [#allocation1], 263
    %s7551 = smov 12
    %v7552 = vld [vmem:[%s7550] ss:$16 sm:%s7551]
    %vm7553 = vcmask 1043458
    %v7554 = vsel %vm7553, %v7552, %v7549
    %s7555 = scalar_lea.vmem [#allocation1], 263
    %s7556 = smov 48
    %v7557 = vld [vmem:[%s7555] ss:$16 sm:%s7556]
    %vm7558 = vcmask 1045508
    %v7559 = vsel %vm7558, %v7557, %v7554
    %s7560 = scalar_lea.vmem [#allocation1], 263
    %s7561 = smov 192
    %v7562 = vld [vmem:[%s7560] ss:$16 sm:%s7561]
    %vm7563 = vcmask 1047558
    %v7564 = vsel %vm7563, %v7562, %v7559
    %7565 = vrot.lane.b32.xlu0 %v7564, 56
    %v7566 = vpop.permute.xlu0 %7565
    %vm7567 = vcmask 523712
    %s7568 = scalar_lea.vmem [#allocation0], 16
    %7569 = vst.msk [vmem:[%s7568] sm:$0xff] %vm7567, %v7566
    %s7570 = scalar_lea.vmem [#allocation1], 775
    %s7571 = smov 3
    %v7572 = vld [vmem:[%s7570] ss:$16 sm:%s7571]
    %s7573 = scalar_lea.vmem [#allocation1], 775
    %s7574 = smov 12
    %v7575 = vld [vmem:[%s7573] ss:$16 sm:%s7574]
    %vm7576 = vcmask 1043458
    %v7577 = vsel %vm7576, %v7575, %v7572
    %s7578 = scalar_lea.vmem [#allocation1], 775
    %s7579 = smov 48
    %v7580 = vld [vmem:[%s7578] ss:$16 sm:%s7579]
    %vm7581 = vcmask 1045508
    %v7582 = vsel %vm7581, %v7580, %v7577
    %s7583 = scalar_lea.vmem [#allocation1], 775
    %s7584 = smov 192
    %v7585 = vld [vmem:[%s7583] ss:$16 sm:%s7584]
    %vm7586 = vcmask 1047558
    %v7587 = vsel %vm7586, %v7585, %v7582
    %7588 = vrot.lane.b32.xlu0 %v7587, 56
    %v7589 = vpop.permute.xlu0 %7588
    %vm7590 = vcmask 523712
    %s7591 = scalar_lea.vmem [#allocation0], 48
    %7592 = vst.msk [vmem:[%s7591] sm:$0xff] %vm7590, %v7589
    %s7593 = scalar_lea.vmem [#allocation1], 1287
    %s7594 = smov 3
    %v7595 = vld [vmem:[%s7593] ss:$16 sm:%s7594]
    %s7596 = scalar_lea.vmem [#allocation1], 1287
    %s7597 = smov 12
    %v7598 = vld [vmem:[%s7596] ss:$16 sm:%s7597]
    %vm7599 = vcmask 1043458
    %v7600 = vsel %vm7599, %v7598, %v7595
    %s7601 = scalar_lea.vmem [#allocation1], 1287
    %s7602 = smov 48
    %v7603 = vld [vmem:[%s7601] ss:$16 sm:%s7602]
    %vm7604 = vcmask 1045508
    %v7605 = vsel %vm7604, %v7603, %v7600
    %s7606 = scalar_lea.vmem [#allocation1], 1287
    %s7607 = smov 192
    %v7608 = vld [vmem:[%s7606] ss:$16 sm:%s7607]
    %vm7609 = vcmask 1047558
    %v7610 = vsel %vm7609, %v7608, %v7605
    %7611 = vrot.lane.b32.xlu0 %v7610, 56
    %v7612 = vpop.permute.xlu0 %7611
    %vm7613 = vcmask 523712
    %s7614 = scalar_lea.vmem [#allocation0], 80
    %7615 = vst.msk [vmem:[%s7614] sm:$0xff] %vm7613, %v7612
    %s7616 = scalar_lea.vmem [#allocation1], 1799
    %s7617 = smov 3
    %v7618 = vld [vmem:[%s7616] ss:$16 sm:%s7617]
    %s7619 = scalar_lea.vmem [#allocation1], 1799
    %s7620 = smov 12
    %v7621 = vld [vmem:[%s7619] ss:$16 sm:%s7620]
    %vm7622 = vcmask 1043458
    %v7623 = vsel %vm7622, %v7621, %v7618
    %s7624 = scalar_lea.vmem [#allocation1], 1799
    %s7625 = smov 48
    %v7626 = vld [vmem:[%s7624] ss:$16 sm:%s7625]
    %vm7627 = vcmask 1045508
    %v7628 = vsel %vm7627, %v7626, %v7623
    %s7629 = scalar_lea.vmem [#allocation1], 1799
    %s7630 = smov 192
    %v7631 = vld [vmem:[%s7629] ss:$16 sm:%s7630]
    %vm7632 = vcmask 1047558
    %v7633 = vsel %vm7632, %v7631, %v7628
    %7634 = vrot.lane.b32.xlu0 %v7633, 56
    %v7635 = vpop.permute.xlu0 %7634
    %vm7636 = vcmask 523712
    %s7637 = scalar_lea.vmem [#allocation0], 112
    %7638 = vst.msk [vmem:[%s7637] sm:$0xff] %vm7636, %v7635
    %s7639 = scalar_lea.vmem [#allocation1], 391
    %s7640 = smov 3
    %v7641 = vld [vmem:[%s7639] ss:$16 sm:%s7640]
    %s7642 = scalar_lea.vmem [#allocation1], 391
    %s7643 = smov 12
    %v7644 = vld [vmem:[%s7642] ss:$16 sm:%s7643]
    %vm7645 = vcmask 1043458
    %v7646 = vsel %vm7645, %v7644, %v7641
    %s7647 = scalar_lea.vmem [#allocation1], 391
    %s7648 = smov 48
    %v7649 = vld [vmem:[%s7647] ss:$16 sm:%s7648]
    %vm7650 = vcmask 1045508
    %v7651 = vsel %vm7650, %v7649, %v7646
    %s7652 = scalar_lea.vmem [#allocation1], 391
    %s7653 = smov 192
    %v7654 = vld [vmem:[%s7652] ss:$16 sm:%s7653]
    %vm7655 = vcmask 1047558
    %v7656 = vsel %vm7655, %v7654, %v7651
    %7657 = vrot.lane.b32.xlu0 %v7656, 56
    %v7658 = vpop.permute.xlu0 %7657
    %vm7659 = vcmask 523712
    %s7660 = scalar_lea.vmem [#allocation0], 24
    %7661 = vst.msk [vmem:[%s7660] sm:$0xff] %vm7659, %v7658
    %s7662 = scalar_lea.vmem [#allocation1], 903
    %s7663 = smov 3
    %v7664 = vld [vmem:[%s7662] ss:$16 sm:%s7663]
    %s7665 = scalar_lea.vmem [#allocation1], 903
    %s7666 = smov 12
    %v7667 = vld [vmem:[%s7665] ss:$16 sm:%s7666]
    %vm7668 = vcmask 1043458
    %v7669 = vsel %vm7668, %v7667, %v7664
    %s7670 = scalar_lea.vmem [#allocation1], 903
    %s7671 = smov 48
    %v7672 = vld [vmem:[%s7670] ss:$16 sm:%s7671]
    %vm7673 = vcmask 1045508
    %v7674 = vsel %vm7673, %v7672, %v7669
    %s7675 = scalar_lea.vmem [#allocation1], 903
    %s7676 = smov 192
    %v7677 = vld [vmem:[%s7675] ss:$16 sm:%s7676]
    %vm7678 = vcmask 1047558
    %v7679 = vsel %vm7678, %v7677, %v7674
    %7680 = vrot.lane.b32.xlu0 %v7679, 56
    %v7681 = vpop.permute.xlu0 %7680
    %vm7682 = vcmask 523712
    %s7683 = scalar_lea.vmem [#allocation0], 56
    %7684 = vst.msk [vmem:[%s7683] sm:$0xff] %vm7682, %v7681
    %s7685 = scalar_lea.vmem [#allocation1], 1415
    %s7686 = smov 3
    %v7687 = vld [vmem:[%s7685] ss:$16 sm:%s7686]
    %s7688 = scalar_lea.vmem [#allocation1], 1415
    %s7689 = smov 12
    %v7690 = vld [vmem:[%s7688] ss:$16 sm:%s7689]
    %vm7691 = vcmask 1043458
    %v7692 = vsel %vm7691, %v7690, %v7687
    %s7693 = scalar_lea.vmem [#allocation1], 1415
    %s7694 = smov 48
    %v7695 = vld [vmem:[%s7693] ss:$16 sm:%s7694]
    %vm7696 = vcmask 1045508
    %v7697 = vsel %vm7696, %v7695, %v7692
    %s7698 = scalar_lea.vmem [#allocation1], 1415
    %s7699 = smov 192
    %v7700 = vld [vmem:[%s7698] ss:$16 sm:%s7699]
    %vm7701 = vcmask 1047558
    %v7702 = vsel %vm7701, %v7700, %v7697
    %7703 = vrot.lane.b32.xlu0 %v7702, 56
    %v7704 = vpop.permute.xlu0 %7703
    %vm7705 = vcmask 523712
    %s7706 = scalar_lea.vmem [#allocation0], 88
    %7707 = vst.msk [vmem:[%s7706] sm:$0xff] %vm7705, %v7704
    %s7708 = scalar_lea.vmem [#allocation1], 1927
    %s7709 = smov 3
    %v7710 = vld [vmem:[%s7708] ss:$16 sm:%s7709]
    %s7711 = scalar_lea.vmem [#allocation1], 1927
    %s7712 = smov 12
    %v7713 = vld [vmem:[%s7711] ss:$16 sm:%s7712]
    %vm7714 = vcmask 1043458
    %v7715 = vsel %vm7714, %v7713, %v7710
    %s7716 = scalar_lea.vmem [#allocation1], 1927
    %s7717 = smov 48
    %v7718 = vld [vmem:[%s7716] ss:$16 sm:%s7717]
    %vm7719 = vcmask 1045508
    %v7720 = vsel %vm7719, %v7718, %v7715
    %s7721 = scalar_lea.vmem [#allocation1], 1927
    %s7722 = smov 192
    %v7723 = vld [vmem:[%s7721] ss:$16 sm:%s7722]
    %vm7724 = vcmask 1047558
    %v7725 = vsel %vm7724, %v7723, %v7720
    %7726 = vrot.lane.b32.xlu0 %v7725, 56
    %v7727 = vpop.permute.xlu0 %7726
    %vm7728 = vcmask 523712
    %s7729 = scalar_lea.vmem [#allocation0], 120
    %7730 = vst.msk [vmem:[%s7729] sm:$0xff] %vm7728, %v7727
    %s7731 = scalar_lea.vmem [#allocation1], 6
    %s7732 = smov 3
    %v7733 = vld [vmem:[%s7731] ss:$16 sm:%s7732]
    %s7734 = scalar_lea.vmem [#allocation1], 6
    %s7735 = smov 12
    %v7736 = vld [vmem:[%s7734] ss:$16 sm:%s7735]
    %vm7737 = vcmask 1043458
    %v7738 = vsel %vm7737, %v7736, %v7733
    %s7739 = scalar_lea.vmem [#allocation1], 6
    %s7740 = smov 48
    %v7741 = vld [vmem:[%s7739] ss:$16 sm:%s7740]
    %vm7742 = vcmask 1045508
    %v7743 = vsel %vm7742, %v7741, %v7738
    %s7744 = scalar_lea.vmem [#allocation1], 6
    %s7745 = smov 192
    %v7746 = vld [vmem:[%s7744] ss:$16 sm:%s7745]
    %vm7747 = vcmask 1047558
    %v7748 = vsel %vm7747, %v7746, %v7743
    %7749 = vrot.lane.b32.xlu0 %v7748, 48
    %v7750 = vpop.permute.xlu0 %7749
    %vm7751 = vcmask 458112
    %7752 = vst.msk [vmem:[#allocation0] sm:$0xff] %vm7751, %v7750
    %s7753 = scalar_lea.vmem [#allocation1], 518
    %s7754 = smov 3
    %v7755 = vld [vmem:[%s7753] ss:$16 sm:%s7754]
    %s7756 = scalar_lea.vmem [#allocation1], 518
    %s7757 = smov 12
    %v7758 = vld [vmem:[%s7756] ss:$16 sm:%s7757]
    %vm7759 = vcmask 1043458
    %v7760 = vsel %vm7759, %v7758, %v7755
    %s7761 = scalar_lea.vmem [#allocation1], 518
    %s7762 = smov 48
    %v7763 = vld [vmem:[%s7761] ss:$16 sm:%s7762]
    %vm7764 = vcmask 1045508
    %v7765 = vsel %vm7764, %v7763, %v7760
    %s7766 = scalar_lea.vmem [#allocation1], 518
    %s7767 = smov 192
    %v7768 = vld [vmem:[%s7766] ss:$16 sm:%s7767]
    %vm7769 = vcmask 1047558
    %v7770 = vsel %vm7769, %v7768, %v7765
    %7771 = vrot.lane.b32.xlu0 %v7770, 48
    %v7772 = vpop.permute.xlu0 %7771
    %vm7773 = vcmask 458112
    %s7774 = scalar_lea.vmem [#allocation0], 32
    %7775 = vst.msk [vmem:[%s7774] sm:$0xff] %vm7773, %v7772
    %s7776 = scalar_lea.vmem [#allocation1], 1030
    %s7777 = smov 3
    %v7778 = vld [vmem:[%s7776] ss:$16 sm:%s7777]
    %s7779 = scalar_lea.vmem [#allocation1], 1030
    %s7780 = smov 12
    %v7781 = vld [vmem:[%s7779] ss:$16 sm:%s7780]
    %vm7782 = vcmask 1043458
    %v7783 = vsel %vm7782, %v7781, %v7778
    %s7784 = scalar_lea.vmem [#allocation1], 1030
    %s7785 = smov 48
    %v7786 = vld [vmem:[%s7784] ss:$16 sm:%s7785]
    %vm7787 = vcmask 1045508
    %v7788 = vsel %vm7787, %v7786, %v7783
    %s7789 = scalar_lea.vmem [#allocation1], 1030
    %s7790 = smov 192
    %v7791 = vld [vmem:[%s7789] ss:$16 sm:%s7790]
    %vm7792 = vcmask 1047558
    %v7793 = vsel %vm7792, %v7791, %v7788
    %7794 = vrot.lane.b32.xlu0 %v7793, 48
    %v7795 = vpop.permute.xlu0 %7794
    %vm7796 = vcmask 458112
    %s7797 = scalar_lea.vmem [#allocation0], 64
    %7798 = vst.msk [vmem:[%s7797] sm:$0xff] %vm7796, %v7795
    %s7799 = scalar_lea.vmem [#allocation1], 1542
    %s7800 = smov 3
    %v7801 = vld [vmem:[%s7799] ss:$16 sm:%s7800]
    %s7802 = scalar_lea.vmem [#allocation1], 1542
    %s7803 = smov 12
    %v7804 = vld [vmem:[%s7802] ss:$16 sm:%s7803]
    %vm7805 = vcmask 1043458
    %v7806 = vsel %vm7805, %v7804, %v7801
    %s7807 = scalar_lea.vmem [#allocation1], 1542
    %s7808 = smov 48
    %v7809 = vld [vmem:[%s7807] ss:$16 sm:%s7808]
    %vm7810 = vcmask 1045508
    %v7811 = vsel %vm7810, %v7809, %v7806
    %s7812 = scalar_lea.vmem [#allocation1], 1542
    %s7813 = smov 192
    %v7814 = vld [vmem:[%s7812] ss:$16 sm:%s7813]
    %vm7815 = vcmask 1047558
    %v7816 = vsel %vm7815, %v7814, %v7811
    %7817 = vrot.lane.b32.xlu0 %v7816, 48
    %v7818 = vpop.permute.xlu0 %7817
    %vm7819 = vcmask 458112
    %s7820 = scalar_lea.vmem [#allocation0], 96
    %7821 = vst.msk [vmem:[%s7820] sm:$0xff] %vm7819, %v7818
    %s7822 = scalar_lea.vmem [#allocation1], 134
    %s7823 = smov 3
    %v7824 = vld [vmem:[%s7822] ss:$16 sm:%s7823]
    %s7825 = scalar_lea.vmem [#allocation1], 134
    %s7826 = smov 12
    %v7827 = vld [vmem:[%s7825] ss:$16 sm:%s7826]
    %vm7828 = vcmask 1043458
    %v7829 = vsel %vm7828, %v7827, %v7824
    %s7830 = scalar_lea.vmem [#allocation1], 134
    %s7831 = smov 48
    %v7832 = vld [vmem:[%s7830] ss:$16 sm:%s7831]
    %vm7833 = vcmask 1045508
    %v7834 = vsel %vm7833, %v7832, %v7829
    %s7835 = scalar_lea.vmem [#allocation1], 134
    %s7836 = smov 192
    %v7837 = vld [vmem:[%s7835] ss:$16 sm:%s7836]
    %vm7838 = vcmask 1047558
    %v7839 = vsel %vm7838, %v7837, %v7834
    %7840 = vrot.lane.b32.xlu0 %v7839, 48
    %v7841 = vpop.permute.xlu0 %7840
    %vm7842 = vcmask 458112
    %s7843 = scalar_lea.vmem [#allocation0], 8
    %7844 = vst.msk [vmem:[%s7843] sm:$0xff] %vm7842, %v7841
    %s7845 = scalar_lea.vmem [#allocation1], 646
    %s7846 = smov 3
    %v7847 = vld [vmem:[%s7845] ss:$16 sm:%s7846]
    %s7848 = scalar_lea.vmem [#allocation1], 646
    %s7849 = smov 12
    %v7850 = vld [vmem:[%s7848] ss:$16 sm:%s7849]
    %vm7851 = vcmask 1043458
    %v7852 = vsel %vm7851, %v7850, %v7847
    %s7853 = scalar_lea.vmem [#allocation1], 646
    %s7854 = smov 48
    %v7855 = vld [vmem:[%s7853] ss:$16 sm:%s7854]
    %vm7856 = vcmask 1045508
    %v7857 = vsel %vm7856, %v7855, %v7852
    %s7858 = scalar_lea.vmem [#allocation1], 646
    %s7859 = smov 192
    %v7860 = vld [vmem:[%s7858] ss:$16 sm:%s7859]
    %vm7861 = vcmask 1047558
    %v7862 = vsel %vm7861, %v7860, %v7857
    %7863 = vrot.lane.b32.xlu0 %v7862, 48
    %v7864 = vpop.permute.xlu0 %7863
    %vm7865 = vcmask 458112
    %s7866 = scalar_lea.vmem [#allocation0], 40
    %7867 = vst.msk [vmem:[%s7866] sm:$0xff] %vm7865, %v7864
    %s7868 = scalar_lea.vmem [#allocation1], 1158
    %s7869 = smov 3
    %v7870 = vld [vmem:[%s7868] ss:$16 sm:%s7869]
    %s7871 = scalar_lea.vmem [#allocation1], 1158
    %s7872 = smov 12
    %v7873 = vld [vmem:[%s7871] ss:$16 sm:%s7872]
    %vm7874 = vcmask 1043458
    %v7875 = vsel %vm7874, %v7873, %v7870
    %s7876 = scalar_lea.vmem [#allocation1], 1158
    %s7877 = smov 48
    %v7878 = vld [vmem:[%s7876] ss:$16 sm:%s7877]
    %vm7879 = vcmask 1045508
    %v7880 = vsel %vm7879, %v7878, %v7875
    %s7881 = scalar_lea.vmem [#allocation1], 1158
    %s7882 = smov 192
    %v7883 = vld [vmem:[%s7881] ss:$16 sm:%s7882]
    %vm7884 = vcmask 1047558
    %v7885 = vsel %vm7884, %v7883, %v7880
    %7886 = vrot.lane.b32.xlu0 %v7885, 48
    %v7887 = vpop.permute.xlu0 %7886
    %vm7888 = vcmask 458112
    %s7889 = scalar_lea.vmem [#allocation0], 72
    %7890 = vst.msk [vmem:[%s7889] sm:$0xff] %vm7888, %v7887
    %s7891 = scalar_lea.vmem [#allocation1], 1670
    %s7892 = smov 3
    %v7893 = vld [vmem:[%s7891] ss:$16 sm:%s7892]
    %s7894 = scalar_lea.vmem [#allocation1], 1670
    %s7895 = smov 12
    %v7896 = vld [vmem:[%s7894] ss:$16 sm:%s7895]
    %vm7897 = vcmask 1043458
    %v7898 = vsel %vm7897, %v7896, %v7893
    %s7899 = scalar_lea.vmem [#allocation1], 1670
    %s7900 = smov 48
    %v7901 = vld [vmem:[%s7899] ss:$16 sm:%s7900]
    %vm7902 = vcmask 1045508
    %v7903 = vsel %vm7902, %v7901, %v7898
    %s7904 = scalar_lea.vmem [#allocation1], 1670
    %s7905 = smov 192
    %v7906 = vld [vmem:[%s7904] ss:$16 sm:%s7905]
    %vm7907 = vcmask 1047558
    %v7908 = vsel %vm7907, %v7906, %v7903
    %7909 = vrot.lane.b32.xlu0 %v7908, 48
    %v7910 = vpop.permute.xlu0 %7909
    %vm7911 = vcmask 458112
    %s7912 = scalar_lea.vmem [#allocation0], 104
    %7913 = vst.msk [vmem:[%s7912] sm:$0xff] %vm7911, %v7910
    %s7914 = scalar_lea.vmem [#allocation1], 262
    %s7915 = smov 3
    %v7916 = vld [vmem:[%s7914] ss:$16 sm:%s7915]
    %s7917 = scalar_lea.vmem [#allocation1], 262
    %s7918 = smov 12
    %v7919 = vld [vmem:[%s7917] ss:$16 sm:%s7918]
    %vm7920 = vcmask 1043458
    %v7921 = vsel %vm7920, %v7919, %v7916
    %s7922 = scalar_lea.vmem [#allocation1], 262
    %s7923 = smov 48
    %v7924 = vld [vmem:[%s7922] ss:$16 sm:%s7923]
    %vm7925 = vcmask 1045508
    %v7926 = vsel %vm7925, %v7924, %v7921
    %s7927 = scalar_lea.vmem [#allocation1], 262
    %s7928 = smov 192
    %v7929 = vld [vmem:[%s7927] ss:$16 sm:%s7928]
    %vm7930 = vcmask 1047558
    %v7931 = vsel %vm7930, %v7929, %v7926
    %7932 = vrot.lane.b32.xlu0 %v7931, 48
    %v7933 = vpop.permute.xlu0 %7932
    %vm7934 = vcmask 458112
    %s7935 = scalar_lea.vmem [#allocation0], 16
    %7936 = vst.msk [vmem:[%s7935] sm:$0xff] %vm7934, %v7933
    %s7937 = scalar_lea.vmem [#allocation1], 774
    %s7938 = smov 3
    %v7939 = vld [vmem:[%s7937] ss:$16 sm:%s7938]
    %s7940 = scalar_lea.vmem [#allocation1], 774
    %s7941 = smov 12
    %v7942 = vld [vmem:[%s7940] ss:$16 sm:%s7941]
    %vm7943 = vcmask 1043458
    %v7944 = vsel %vm7943, %v7942, %v7939
    %s7945 = scalar_lea.vmem [#allocation1], 774
    %s7946 = smov 48
    %v7947 = vld [vmem:[%s7945] ss:$16 sm:%s7946]
    %vm7948 = vcmask 1045508
    %v7949 = vsel %vm7948, %v7947, %v7944
    %s7950 = scalar_lea.vmem [#allocation1], 774
    %s7951 = smov 192
    %v7952 = vld [vmem:[%s7950] ss:$16 sm:%s7951]
    %vm7953 = vcmask 1047558
    %v7954 = vsel %vm7953, %v7952, %v7949
    %7955 = vrot.lane.b32.xlu0 %v7954, 48
    %v7956 = vpop.permute.xlu0 %7955
    %vm7957 = vcmask 458112
    %s7958 = scalar_lea.vmem [#allocation0], 48
    %7959 = vst.msk [vmem:[%s7958] sm:$0xff] %vm7957, %v7956
    %s7960 = scalar_lea.vmem [#allocation1], 1286
    %s7961 = smov 3
    %v7962 = vld [vmem:[%s7960] ss:$16 sm:%s7961]
    %s7963 = scalar_lea.vmem [#allocation1], 1286
    %s7964 = smov 12
    %v7965 = vld [vmem:[%s7963] ss:$16 sm:%s7964]
    %vm7966 = vcmask 1043458
    %v7967 = vsel %vm7966, %v7965, %v7962
    %s7968 = scalar_lea.vmem [#allocation1], 1286
    %s7969 = smov 48
    %v7970 = vld [vmem:[%s7968] ss:$16 sm:%s7969]
    %vm7971 = vcmask 1045508
    %v7972 = vsel %vm7971, %v7970, %v7967
    %s7973 = scalar_lea.vmem [#allocation1], 1286
    %s7974 = smov 192
    %v7975 = vld [vmem:[%s7973] ss:$16 sm:%s7974]
    %vm7976 = vcmask 1047558
    %v7977 = vsel %vm7976, %v7975, %v7972
    %7978 = vrot.lane.b32.xlu0 %v7977, 48
    %v7979 = vpop.permute.xlu0 %7978
    %vm7980 = vcmask 458112
    %s7981 = scalar_lea.vmem [#allocation0], 80
    %7982 = vst.msk [vmem:[%s7981] sm:$0xff] %vm7980, %v7979
    %s7983 = scalar_lea.vmem [#allocation1], 1798
    %s7984 = smov 3
    %v7985 = vld [vmem:[%s7983] ss:$16 sm:%s7984]
    %s7986 = scalar_lea.vmem [#allocation1], 1798
    %s7987 = smov 12
    %v7988 = vld [vmem:[%s7986] ss:$16 sm:%s7987]
    %vm7989 = vcmask 1043458
    %v7990 = vsel %vm7989, %v7988, %v7985
    %s7991 = scalar_lea.vmem [#allocation1], 1798
    %s7992 = smov 48
    %v7993 = vld [vmem:[%s7991] ss:$16 sm:%s7992]
    %vm7994 = vcmask 1045508
    %v7995 = vsel %vm7994, %v7993, %v7990
    %s7996 = scalar_lea.vmem [#allocation1], 1798
    %s7997 = smov 192
    %v7998 = vld [vmem:[%s7996] ss:$16 sm:%s7997]
    %vm7999 = vcmask 1047558
    %v8000 = vsel %vm7999, %v7998, %v7995
    %8001 = vrot.lane.b32.xlu0 %v8000, 48
    %v8002 = vpop.permute.xlu0 %8001
    %vm8003 = vcmask 458112
    %s8004 = scalar_lea.vmem [#allocation0], 112
    %8005 = vst.msk [vmem:[%s8004] sm:$0xff] %vm8003, %v8002
    %s8006 = scalar_lea.vmem [#allocation1], 390
    %s8007 = smov 3
    %v8008 = vld [vmem:[%s8006] ss:$16 sm:%s8007]
    %s8009 = scalar_lea.vmem [#allocation1], 390
    %s8010 = smov 12
    %v8011 = vld [vmem:[%s8009] ss:$16 sm:%s8010]
    %vm8012 = vcmask 1043458
    %v8013 = vsel %vm8012, %v8011, %v8008
    %s8014 = scalar_lea.vmem [#allocation1], 390
    %s8015 = smov 48
    %v8016 = vld [vmem:[%s8014] ss:$16 sm:%s8015]
    %vm8017 = vcmask 1045508
    %v8018 = vsel %vm8017, %v8016, %v8013
    %s8019 = scalar_lea.vmem [#allocation1], 390
    %s8020 = smov 192
    %v8021 = vld [vmem:[%s8019] ss:$16 sm:%s8020]
    %vm8022 = vcmask 1047558
    %v8023 = vsel %vm8022, %v8021, %v8018
    %8024 = vrot.lane.b32.xlu0 %v8023, 48
    %v8025 = vpop.permute.xlu0 %8024
    %vm8026 = vcmask 458112
    %s8027 = scalar_lea.vmem [#allocation0], 24
    %8028 = vst.msk [vmem:[%s8027] sm:$0xff] %vm8026, %v8025
    %s8029 = scalar_lea.vmem [#allocation1], 902
    %s8030 = smov 3
    %v8031 = vld [vmem:[%s8029] ss:$16 sm:%s8030]
    %s8032 = scalar_lea.vmem [#allocation1], 902
    %s8033 = smov 12
    %v8034 = vld [vmem:[%s8032] ss:$16 sm:%s8033]
    %vm8035 = vcmask 1043458
    %v8036 = vsel %vm8035, %v8034, %v8031
    %s8037 = scalar_lea.vmem [#allocation1], 902
    %s8038 = smov 48
    %v8039 = vld [vmem:[%s8037] ss:$16 sm:%s8038]
    %vm8040 = vcmask 1045508
    %v8041 = vsel %vm8040, %v8039, %v8036
    %s8042 = scalar_lea.vmem [#allocation1], 902
    %s8043 = smov 192
    %v8044 = vld [vmem:[%s8042] ss:$16 sm:%s8043]
    %vm8045 = vcmask 1047558
    %v8046 = vsel %vm8045, %v8044, %v8041
    %8047 = vrot.lane.b32.xlu0 %v8046, 48
    %v8048 = vpop.permute.xlu0 %8047
    %vm8049 = vcmask 458112
    %s8050 = scalar_lea.vmem [#allocation0], 56
    %8051 = vst.msk [vmem:[%s8050] sm:$0xff] %vm8049, %v8048
    %s8052 = scalar_lea.vmem [#allocation1], 1414
    %s8053 = smov 3
    %v8054 = vld [vmem:[%s8052] ss:$16 sm:%s8053]
    %s8055 = scalar_lea.vmem [#allocation1], 1414
    %s8056 = smov 12
    %v8057 = vld [vmem:[%s8055] ss:$16 sm:%s8056]
    %vm8058 = vcmask 1043458
    %v8059 = vsel %vm8058, %v8057, %v8054
    %s8060 = scalar_lea.vmem [#allocation1], 1414
    %s8061 = smov 48
    %v8062 = vld [vmem:[%s8060] ss:$16 sm:%s8061]
    %vm8063 = vcmask 1045508
    %v8064 = vsel %vm8063, %v8062, %v8059
    %s8065 = scalar_lea.vmem [#allocation1], 1414
    %s8066 = smov 192
    %v8067 = vld [vmem:[%s8065] ss:$16 sm:%s8066]
    %vm8068 = vcmask 1047558
    %v8069 = vsel %vm8068, %v8067, %v8064
    %8070 = vrot.lane.b32.xlu0 %v8069, 48
    %v8071 = vpop.permute.xlu0 %8070
    %vm8072 = vcmask 458112
    %s8073 = scalar_lea.vmem [#allocation0], 88
    %8074 = vst.msk [vmem:[%s8073] sm:$0xff] %vm8072, %v8071
    %s8075 = scalar_lea.vmem [#allocation1], 1926
    %s8076 = smov 3
    %v8077 = vld [vmem:[%s8075] ss:$16 sm:%s8076]
    %s8078 = scalar_lea.vmem [#allocation1], 1926
    %s8079 = smov 12
    %v8080 = vld [vmem:[%s8078] ss:$16 sm:%s8079]
    %vm8081 = vcmask 1043458
    %v8082 = vsel %vm8081, %v8080, %v8077
    %s8083 = scalar_lea.vmem [#allocation1], 1926
    %s8084 = smov 48
    %v8085 = vld [vmem:[%s8083] ss:$16 sm:%s8084]
    %vm8086 = vcmask 1045508
    %v8087 = vsel %vm8086, %v8085, %v8082
    %s8088 = scalar_lea.vmem [#allocation1], 1926
    %s8089 = smov 192
    %v8090 = vld [vmem:[%s8088] ss:$16 sm:%s8089]
    %vm8091 = vcmask 1047558
    %v8092 = vsel %vm8091, %v8090, %v8087
    %8093 = vrot.lane.b32.xlu0 %v8092, 48
    %v8094 = vpop.permute.xlu0 %8093
    %vm8095 = vcmask 458112
    %s8096 = scalar_lea.vmem [#allocation0], 120
    %8097 = vst.msk [vmem:[%s8096] sm:$0xff] %vm8095, %v8094
    %s8098 = scalar_lea.vmem [#allocation1], 5
    %s8099 = smov 3
    %v8100 = vld [vmem:[%s8098] ss:$16 sm:%s8099]
    %s8101 = scalar_lea.vmem [#allocation1], 5
    %s8102 = smov 12
    %v8103 = vld [vmem:[%s8101] ss:$16 sm:%s8102]
    %vm8104 = vcmask 1043458
    %v8105 = vsel %vm8104, %v8103, %v8100
    %s8106 = scalar_lea.vmem [#allocation1], 5
    %s8107 = smov 48
    %v8108 = vld [vmem:[%s8106] ss:$16 sm:%s8107]
    %vm8109 = vcmask 1045508
    %v8110 = vsel %vm8109, %v8108, %v8105
    %s8111 = scalar_lea.vmem [#allocation1], 5
    %s8112 = smov 192
    %v8113 = vld [vmem:[%s8111] ss:$16 sm:%s8112]
    %vm8114 = vcmask 1047558
    %v8115 = vsel %vm8114, %v8113, %v8110
    %8116 = vrot.lane.b32.xlu0 %v8115, 40
    %v8117 = vpop.permute.xlu0 %8116
    %vm8118 = vcmask 392512
    %8119 = vst.msk [vmem:[#allocation0] sm:$0xff] %vm8118, %v8117
    %s8120 = scalar_lea.vmem [#allocation1], 517
    %s8121 = smov 3
    %v8122 = vld [vmem:[%s8120] ss:$16 sm:%s8121]
    %s8123 = scalar_lea.vmem [#allocation1], 517
    %s8124 = smov 12
    %v8125 = vld [vmem:[%s8123] ss:$16 sm:%s8124]
    %vm8126 = vcmask 1043458
    %v8127 = vsel %vm8126, %v8125, %v8122
    %s8128 = scalar_lea.vmem [#allocation1], 517
    %s8129 = smov 48
    %v8130 = vld [vmem:[%s8128] ss:$16 sm:%s8129]
    %vm8131 = vcmask 1045508
    %v8132 = vsel %vm8131, %v8130, %v8127
    %s8133 = scalar_lea.vmem [#allocation1], 517
    %s8134 = smov 192
    %v8135 = vld [vmem:[%s8133] ss:$16 sm:%s8134]
    %vm8136 = vcmask 1047558
    %v8137 = vsel %vm8136, %v8135, %v8132
    %8138 = vrot.lane.b32.xlu0 %v8137, 40
    %v8139 = vpop.permute.xlu0 %8138
    %vm8140 = vcmask 392512
    %s8141 = scalar_lea.vmem [#allocation0], 32
    %8142 = vst.msk [vmem:[%s8141] sm:$0xff] %vm8140, %v8139
    %s8143 = scalar_lea.vmem [#allocation1], 1029
    %s8144 = smov 3
    %v8145 = vld [vmem:[%s8143] ss:$16 sm:%s8144]
    %s8146 = scalar_lea.vmem [#allocation1], 1029
    %s8147 = smov 12
    %v8148 = vld [vmem:[%s8146] ss:$16 sm:%s8147]
    %vm8149 = vcmask 1043458
    %v8150 = vsel %vm8149, %v8148, %v8145
    %s8151 = scalar_lea.vmem [#allocation1], 1029
    %s8152 = smov 48
    %v8153 = vld [vmem:[%s8151] ss:$16 sm:%s8152]
    %vm8154 = vcmask 1045508
    %v8155 = vsel %vm8154, %v8153, %v8150
    %s8156 = scalar_lea.vmem [#allocation1], 1029
    %s8157 = smov 192
    %v8158 = vld [vmem:[%s8156] ss:$16 sm:%s8157]
    %vm8159 = vcmask 1047558
    %v8160 = vsel %vm8159, %v8158, %v8155
    %8161 = vrot.lane.b32.xlu0 %v8160, 40
    %v8162 = vpop.permute.xlu0 %8161
    %vm8163 = vcmask 392512
    %s8164 = scalar_lea.vmem [#allocation0], 64
    %8165 = vst.msk [vmem:[%s8164] sm:$0xff] %vm8163, %v8162
    %s8166 = scalar_lea.vmem [#allocation1], 1541
    %s8167 = smov 3
    %v8168 = vld [vmem:[%s8166] ss:$16 sm:%s8167]
    %s8169 = scalar_lea.vmem [#allocation1], 1541
    %s8170 = smov 12
    %v8171 = vld [vmem:[%s8169] ss:$16 sm:%s8170]
    %vm8172 = vcmask 1043458
    %v8173 = vsel %vm8172, %v8171, %v8168
    %s8174 = scalar_lea.vmem [#allocation1], 1541
    %s8175 = smov 48
    %v8176 = vld [vmem:[%s8174] ss:$16 sm:%s8175]
    %vm8177 = vcmask 1045508
    %v8178 = vsel %vm8177, %v8176, %v8173
    %s8179 = scalar_lea.vmem [#allocation1], 1541
    %s8180 = smov 192
    %v8181 = vld [vmem:[%s8179] ss:$16 sm:%s8180]
    %vm8182 = vcmask 1047558
    %v8183 = vsel %vm8182, %v8181, %v8178
    %8184 = vrot.lane.b32.xlu0 %v8183, 40
    %v8185 = vpop.permute.xlu0 %8184
    %vm8186 = vcmask 392512
    %s8187 = scalar_lea.vmem [#allocation0], 96
    %8188 = vst.msk [vmem:[%s8187] sm:$0xff] %vm8186, %v8185
    %s8189 = scalar_lea.vmem [#allocation1], 133
    %s8190 = smov 3
    %v8191 = vld [vmem:[%s8189] ss:$16 sm:%s8190]
    %s8192 = scalar_lea.vmem [#allocation1], 133
    %s8193 = smov 12
    %v8194 = vld [vmem:[%s8192] ss:$16 sm:%s8193]
    %vm8195 = vcmask 1043458
    %v8196 = vsel %vm8195, %v8194, %v8191
    %s8197 = scalar_lea.vmem [#allocation1], 133
    %s8198 = smov 48
    %v8199 = vld [vmem:[%s8197] ss:$16 sm:%s8198]
    %vm8200 = vcmask 1045508
    %v8201 = vsel %vm8200, %v8199, %v8196
    %s8202 = scalar_lea.vmem [#allocation1], 133
    %s8203 = smov 192
    %v8204 = vld [vmem:[%s8202] ss:$16 sm:%s8203]
    %vm8205 = vcmask 1047558
    %v8206 = vsel %vm8205, %v8204, %v8201
    %8207 = vrot.lane.b32.xlu0 %v8206, 40
    %v8208 = vpop.permute.xlu0 %8207
    %vm8209 = vcmask 392512
    %s8210 = scalar_lea.vmem [#allocation0], 8
    %8211 = vst.msk [vmem:[%s8210] sm:$0xff] %vm8209, %v8208
    %s8212 = scalar_lea.vmem [#allocation1], 645
    %s8213 = smov 3
    %v8214 = vld [vmem:[%s8212] ss:$16 sm:%s8213]
    %s8215 = scalar_lea.vmem [#allocation1], 645
    %s8216 = smov 12
    %v8217 = vld [vmem:[%s8215] ss:$16 sm:%s8216]
    %vm8218 = vcmask 1043458
    %v8219 = vsel %vm8218, %v8217, %v8214
    %s8220 = scalar_lea.vmem [#allocation1], 645
    %s8221 = smov 48
    %v8222 = vld [vmem:[%s8220] ss:$16 sm:%s8221]
    %vm8223 = vcmask 1045508
    %v8224 = vsel %vm8223, %v8222, %v8219
    %s8225 = scalar_lea.vmem [#allocation1], 645
    %s8226 = smov 192
    %v8227 = vld [vmem:[%s8225] ss:$16 sm:%s8226]
    %vm8228 = vcmask 1047558
    %v8229 = vsel %vm8228, %v8227, %v8224
    %8230 = vrot.lane.b32.xlu0 %v8229, 40
    %v8231 = vpop.permute.xlu0 %8230
    %vm8232 = vcmask 392512
    %s8233 = scalar_lea.vmem [#allocation0], 40
    %8234 = vst.msk [vmem:[%s8233] sm:$0xff] %vm8232, %v8231
    %s8235 = scalar_lea.vmem [#allocation1], 1157
    %s8236 = smov 3
    %v8237 = vld [vmem:[%s8235] ss:$16 sm:%s8236]
    %s8238 = scalar_lea.vmem [#allocation1], 1157
    %s8239 = smov 12
    %v8240 = vld [vmem:[%s8238] ss:$16 sm:%s8239]
    %vm8241 = vcmask 1043458
    %v8242 = vsel %vm8241, %v8240, %v8237
    %s8243 = scalar_lea.vmem [#allocation1], 1157
    %s8244 = smov 48
    %v8245 = vld [vmem:[%s8243] ss:$16 sm:%s8244]
    %vm8246 = vcmask 1045508
    %v8247 = vsel %vm8246, %v8245, %v8242
    %s8248 = scalar_lea.vmem [#allocation1], 1157
    %s8249 = smov 192
    %v8250 = vld [vmem:[%s8248] ss:$16 sm:%s8249]
    %vm8251 = vcmask 1047558
    %v8252 = vsel %vm8251, %v8250, %v8247
    %8253 = vrot.lane.b32.xlu0 %v8252, 40
    %v8254 = vpop.permute.xlu0 %8253
    %vm8255 = vcmask 392512
    %s8256 = scalar_lea.vmem [#allocation0], 72
    %8257 = vst.msk [vmem:[%s8256] sm:$0xff] %vm8255, %v8254
    %s8258 = scalar_lea.vmem [#allocation1], 1669
    %s8259 = smov 3
    %v8260 = vld [vmem:[%s8258] ss:$16 sm:%s8259]
    %s8261 = scalar_lea.vmem [#allocation1], 1669
    %s8262 = smov 12
    %v8263 = vld [vmem:[%s8261] ss:$16 sm:%s8262]
    %vm8264 = vcmask 1043458
    %v8265 = vsel %vm8264, %v8263, %v8260
    %s8266 = scalar_lea.vmem [#allocation1], 1669
    %s8267 = smov 48
    %v8268 = vld [vmem:[%s8266] ss:$16 sm:%s8267]
    %vm8269 = vcmask 1045508
    %v8270 = vsel %vm8269, %v8268, %v8265
    %s8271 = scalar_lea.vmem [#allocation1], 1669
    %s8272 = smov 192
    %v8273 = vld [vmem:[%s8271] ss:$16 sm:%s8272]
    %vm8274 = vcmask 1047558
    %v8275 = vsel %vm8274, %v8273, %v8270
    %8276 = vrot.lane.b32.xlu0 %v8275, 40
    %v8277 = vpop.permute.xlu0 %8276
    %vm8278 = vcmask 392512
    %s8279 = scalar_lea.vmem [#allocation0], 104
    %8280 = vst.msk [vmem:[%s8279] sm:$0xff] %vm8278, %v8277
    %s8281 = scalar_lea.vmem [#allocation1], 261
    %s8282 = smov 3
    %v8283 = vld [vmem:[%s8281] ss:$16 sm:%s8282]
    %s8284 = scalar_lea.vmem [#allocation1], 261
    %s8285 = smov 12
    %v8286 = vld [vmem:[%s8284] ss:$16 sm:%s8285]
    %vm8287 = vcmask 1043458
    %v8288 = vsel %vm8287, %v8286, %v8283
    %s8289 = scalar_lea.vmem [#allocation1], 261
    %s8290 = smov 48
    %v8291 = vld [vmem:[%s8289] ss:$16 sm:%s8290]
    %vm8292 = vcmask 1045508
    %v8293 = vsel %vm8292, %v8291, %v8288
    %s8294 = scalar_lea.vmem [#allocation1], 261
    %s8295 = smov 192
    %v8296 = vld [vmem:[%s8294] ss:$16 sm:%s8295]
    %vm8297 = vcmask 1047558
    %v8298 = vsel %vm8297, %v8296, %v8293
    %8299 = vrot.lane.b32.xlu0 %v8298, 40
    %v8300 = vpop.permute.xlu0 %8299
    %vm8301 = vcmask 392512
    %s8302 = scalar_lea.vmem [#allocation0], 16
    %8303 = vst.msk [vmem:[%s8302] sm:$0xff] %vm8301, %v8300
    %s8304 = scalar_lea.vmem [#allocation1], 773
    %s8305 = smov 3
    %v8306 = vld [vmem:[%s8304] ss:$16 sm:%s8305]
    %s8307 = scalar_lea.vmem [#allocation1], 773
    %s8308 = smov 12
    %v8309 = vld [vmem:[%s8307] ss:$16 sm:%s8308]
    %vm8310 = vcmask 1043458
    %v8311 = vsel %vm8310, %v8309, %v8306
    %s8312 = scalar_lea.vmem [#allocation1], 773
    %s8313 = smov 48
    %v8314 = vld [vmem:[%s8312] ss:$16 sm:%s8313]
    %vm8315 = vcmask 1045508
    %v8316 = vsel %vm8315, %v8314, %v8311
    %s8317 = scalar_lea.vmem [#allocation1], 773
    %s8318 = smov 192
    %v8319 = vld [vmem:[%s8317] ss:$16 sm:%s8318]
    %vm8320 = vcmask 1047558
    %v8321 = vsel %vm8320, %v8319, %v8316
    %8322 = vrot.lane.b32.xlu0 %v8321, 40
    %v8323 = vpop.permute.xlu0 %8322
    %vm8324 = vcmask 392512
    %s8325 = scalar_lea.vmem [#allocation0], 48
    %8326 = vst.msk [vmem:[%s8325] sm:$0xff] %vm8324, %v8323
    %s8327 = scalar_lea.vmem [#allocation1], 1285
    %s8328 = smov 3
    %v8329 = vld [vmem:[%s8327] ss:$16 sm:%s8328]
    %s8330 = scalar_lea.vmem [#allocation1], 1285
    %s8331 = smov 12
    %v8332 = vld [vmem:[%s8330] ss:$16 sm:%s8331]
    %vm8333 = vcmask 1043458
    %v8334 = vsel %vm8333, %v8332, %v8329
    %s8335 = scalar_lea.vmem [#allocation1], 1285
    %s8336 = smov 48
    %v8337 = vld [vmem:[%s8335] ss:$16 sm:%s8336]
    %vm8338 = vcmask 1045508
    %v8339 = vsel %vm8338, %v8337, %v8334
    %s8340 = scalar_lea.vmem [#allocation1], 1285
    %s8341 = smov 192
    %v8342 = vld [vmem:[%s8340] ss:$16 sm:%s8341]
    %vm8343 = vcmask 1047558
    %v8344 = vsel %vm8343, %v8342, %v8339
    %8345 = vrot.lane.b32.xlu0 %v8344, 40
    %v8346 = vpop.permute.xlu0 %8345
    %vm8347 = vcmask 392512
    %s8348 = scalar_lea.vmem [#allocation0], 80
    %8349 = vst.msk [vmem:[%s8348] sm:$0xff] %vm8347, %v8346
    %s8350 = scalar_lea.vmem [#allocation1], 1797
    %s8351 = smov 3
    %v8352 = vld [vmem:[%s8350] ss:$16 sm:%s8351]
    %s8353 = scalar_lea.vmem [#allocation1], 1797
    %s8354 = smov 12
    %v8355 = vld [vmem:[%s8353] ss:$16 sm:%s8354]
    %vm8356 = vcmask 1043458
    %v8357 = vsel %vm8356, %v8355, %v8352
    %s8358 = scalar_lea.vmem [#allocation1], 1797
    %s8359 = smov 48
    %v8360 = vld [vmem:[%s8358] ss:$16 sm:%s8359]
    %vm8361 = vcmask 1045508
    %v8362 = vsel %vm8361, %v8360, %v8357
    %s8363 = scalar_lea.vmem [#allocation1], 1797
    %s8364 = smov 192
    %v8365 = vld [vmem:[%s8363] ss:$16 sm:%s8364]
    %vm8366 = vcmask 1047558
    %v8367 = vsel %vm8366, %v8365, %v8362
    %8368 = vrot.lane.b32.xlu0 %v8367, 40
    %v8369 = vpop.permute.xlu0 %8368
    %vm8370 = vcmask 392512
    %s8371 = scalar_lea.vmem [#allocation0], 112
    %8372 = vst.msk [vmem:[%s8371] sm:$0xff] %vm8370, %v8369
    %s8373 = scalar_lea.vmem [#allocation1], 389
    %s8374 = smov 3
    %v8375 = vld [vmem:[%s8373] ss:$16 sm:%s8374]
    %s8376 = scalar_lea.vmem [#allocation1], 389
    %s8377 = smov 12
    %v8378 = vld [vmem:[%s8376] ss:$16 sm:%s8377]
    %vm8379 = vcmask 1043458
    %v8380 = vsel %vm8379, %v8378, %v8375
    %s8381 = scalar_lea.vmem [#allocation1], 389
    %s8382 = smov 48
    %v8383 = vld [vmem:[%s8381] ss:$16 sm:%s8382]
    %vm8384 = vcmask 1045508
    %v8385 = vsel %vm8384, %v8383, %v8380
    %s8386 = scalar_lea.vmem [#allocation1], 389
    %s8387 = smov 192
    %v8388 = vld [vmem:[%s8386] ss:$16 sm:%s8387]
    %vm8389 = vcmask 1047558
    %v8390 = vsel %vm8389, %v8388, %v8385
    %8391 = vrot.lane.b32.xlu0 %v8390, 40
    %v8392 = vpop.permute.xlu0 %8391
    %vm8393 = vcmask 392512
    %s8394 = scalar_lea.vmem [#allocation0], 24
    %8395 = vst.msk [vmem:[%s8394] sm:$0xff] %vm8393, %v8392
    %s8396 = scalar_lea.vmem [#allocation1], 901
    %s8397 = smov 3
    %v8398 = vld [vmem:[%s8396] ss:$16 sm:%s8397]
    %s8399 = scalar_lea.vmem [#allocation1], 901
    %s8400 = smov 12
    %v8401 = vld [vmem:[%s8399] ss:$16 sm:%s8400]
    %vm8402 = vcmask 1043458
    %v8403 = vsel %vm8402, %v8401, %v8398
    %s8404 = scalar_lea.vmem [#allocation1], 901
    %s8405 = smov 48
    %v8406 = vld [vmem:[%s8404] ss:$16 sm:%s8405]
    %vm8407 = vcmask 1045508
    %v8408 = vsel %vm8407, %v8406, %v8403
    %s8409 = scalar_lea.vmem [#allocation1], 901
    %s8410 = smov 192
    %v8411 = vld [vmem:[%s8409] ss:$16 sm:%s8410]
    %vm8412 = vcmask 1047558
    %v8413 = vsel %vm8412, %v8411, %v8408
    %8414 = vrot.lane.b32.xlu0 %v8413, 40
    %v8415 = vpop.permute.xlu0 %8414
    %vm8416 = vcmask 392512
    %s8417 = scalar_lea.vmem [#allocation0], 56
    %8418 = vst.msk [vmem:[%s8417] sm:$0xff] %vm8416, %v8415
    %s8419 = scalar_lea.vmem [#allocation1], 1413
    %s8420 = smov 3
    %v8421 = vld [vmem:[%s8419] ss:$16 sm:%s8420]
    %s8422 = scalar_lea.vmem [#allocation1], 1413
    %s8423 = smov 12
    %v8424 = vld [vmem:[%s8422] ss:$16 sm:%s8423]
    %vm8425 = vcmask 1043458
    %v8426 = vsel %vm8425, %v8424, %v8421
    %s8427 = scalar_lea.vmem [#allocation1], 1413
    %s8428 = smov 48
    %v8429 = vld [vmem:[%s8427] ss:$16 sm:%s8428]
    %vm8430 = vcmask 1045508
    %v8431 = vsel %vm8430, %v8429, %v8426
    %s8432 = scalar_lea.vmem [#allocation1], 1413
    %s8433 = smov 192
    %v8434 = vld [vmem:[%s8432] ss:$16 sm:%s8433]
    %vm8435 = vcmask 1047558
    %v8436 = vsel %vm8435, %v8434, %v8431
    %8437 = vrot.lane.b32.xlu0 %v8436, 40
    %v8438 = vpop.permute.xlu0 %8437
    %vm8439 = vcmask 392512
    %s8440 = scalar_lea.vmem [#allocation0], 88
    %8441 = vst.msk [vmem:[%s8440] sm:$0xff] %vm8439, %v8438
    %s8442 = scalar_lea.vmem [#allocation1], 1925
    %s8443 = smov 3
    %v8444 = vld [vmem:[%s8442] ss:$16 sm:%s8443]
    %s8445 = scalar_lea.vmem [#allocation1], 1925
    %s8446 = smov 12
    %v8447 = vld [vmem:[%s8445] ss:$16 sm:%s8446]
    %vm8448 = vcmask 1043458
    %v8449 = vsel %vm8448, %v8447, %v8444
    %s8450 = scalar_lea.vmem [#allocation1], 1925
    %s8451 = smov 48
    %v8452 = vld [vmem:[%s8450] ss:$16 sm:%s8451]
    %vm8453 = vcmask 1045508
    %v8454 = vsel %vm8453, %v8452, %v8449
    %s8455 = scalar_lea.vmem [#allocation1], 1925
    %s8456 = smov 192
    %v8457 = vld [vmem:[%s8455] ss:$16 sm:%s8456]
    %vm8458 = vcmask 1047558
    %v8459 = vsel %vm8458, %v8457, %v8454
    %8460 = vrot.lane.b32.xlu0 %v8459, 40
    %v8461 = vpop.permute.xlu0 %8460
    %vm8462 = vcmask 392512
    %s8463 = scalar_lea.vmem [#allocation0], 120
    %8464 = vst.msk [vmem:[%s8463] sm:$0xff] %vm8462, %v8461
    %s8465 = scalar_lea.vmem [#allocation1], 4
    %s8466 = smov 3
    %v8467 = vld [vmem:[%s8465] ss:$16 sm:%s8466]
    %s8468 = scalar_lea.vmem [#allocation1], 4
    %s8469 = smov 12
    %v8470 = vld [vmem:[%s8468] ss:$16 sm:%s8469]
    %vm8471 = vcmask 1043458
    %v8472 = vsel %vm8471, %v8470, %v8467
    %s8473 = scalar_lea.vmem [#allocation1], 4
    %s8474 = smov 48
    %v8475 = vld [vmem:[%s8473] ss:$16 sm:%s8474]
    %vm8476 = vcmask 1045508
    %v8477 = vsel %vm8476, %v8475, %v8472
    %s8478 = scalar_lea.vmem [#allocation1], 4
    %s8479 = smov 192
    %v8480 = vld [vmem:[%s8478] ss:$16 sm:%s8479]
    %vm8481 = vcmask 1047558
    %v8482 = vsel %vm8481, %v8480, %v8477
    %8483 = vrot.lane.b32.xlu0 %v8482, 32
    %v8484 = vpop.permute.xlu0 %8483
    %vm8485 = vcmask 326912
    %8486 = vst.msk [vmem:[#allocation0] sm:$0xff] %vm8485, %v8484
    %s8487 = scalar_lea.vmem [#allocation1], 516
    %s8488 = smov 3
    %v8489 = vld [vmem:[%s8487] ss:$16 sm:%s8488]
    %s8490 = scalar_lea.vmem [#allocation1], 516
    %s8491 = smov 12
    %v8492 = vld [vmem:[%s8490] ss:$16 sm:%s8491]
    %vm8493 = vcmask 1043458
    %v8494 = vsel %vm8493, %v8492, %v8489
    %s8495 = scalar_lea.vmem [#allocation1], 516
    %s8496 = smov 48
    %v8497 = vld [vmem:[%s8495] ss:$16 sm:%s8496]
    %vm8498 = vcmask 1045508
    %v8499 = vsel %vm8498, %v8497, %v8494
    %s8500 = scalar_lea.vmem [#allocation1], 516
    %s8501 = smov 192
    %v8502 = vld [vmem:[%s8500] ss:$16 sm:%s8501]
    %vm8503 = vcmask 1047558
    %v8504 = vsel %vm8503, %v8502, %v8499
    %8505 = vrot.lane.b32.xlu0 %v8504, 32
    %v8506 = vpop.permute.xlu0 %8505
    %vm8507 = vcmask 326912
    %s8508 = scalar_lea.vmem [#allocation0], 32
    %8509 = vst.msk [vmem:[%s8508] sm:$0xff] %vm8507, %v8506
    %s8510 = scalar_lea.vmem [#allocation1], 1028
    %s8511 = smov 3
    %v8512 = vld [vmem:[%s8510] ss:$16 sm:%s8511]
    %s8513 = scalar_lea.vmem [#allocation1], 1028
    %s8514 = smov 12
    %v8515 = vld [vmem:[%s8513] ss:$16 sm:%s8514]
    %vm8516 = vcmask 1043458
    %v8517 = vsel %vm8516, %v8515, %v8512
    %s8518 = scalar_lea.vmem [#allocation1], 1028
    %s8519 = smov 48
    %v8520 = vld [vmem:[%s8518] ss:$16 sm:%s8519]
    %vm8521 = vcmask 1045508
    %v8522 = vsel %vm8521, %v8520, %v8517
    %s8523 = scalar_lea.vmem [#allocation1], 1028
    %s8524 = smov 192
    %v8525 = vld [vmem:[%s8523] ss:$16 sm:%s8524]
    %vm8526 = vcmask 1047558
    %v8527 = vsel %vm8526, %v8525, %v8522
    %8528 = vrot.lane.b32.xlu0 %v8527, 32
    %v8529 = vpop.permute.xlu0 %8528
    %vm8530 = vcmask 326912
    %s8531 = scalar_lea.vmem [#allocation0], 64
    %8532 = vst.msk [vmem:[%s8531] sm:$0xff] %vm8530, %v8529
    %s8533 = scalar_lea.vmem [#allocation1], 1540
    %s8534 = smov 3
    %v8535 = vld [vmem:[%s8533] ss:$16 sm:%s8534]
    %s8536 = scalar_lea.vmem [#allocation1], 1540
    %s8537 = smov 12
    %v8538 = vld [vmem:[%s8536] ss:$16 sm:%s8537]
    %vm8539 = vcmask 1043458
    %v8540 = vsel %vm8539, %v8538, %v8535
    %s8541 = scalar_lea.vmem [#allocation1], 1540
    %s8542 = smov 48
    %v8543 = vld [vmem:[%s8541] ss:$16 sm:%s8542]
    %vm8544 = vcmask 1045508
    %v8545 = vsel %vm8544, %v8543, %v8540
    %s8546 = scalar_lea.vmem [#allocation1], 1540
    %s8547 = smov 192
    %v8548 = vld [vmem:[%s8546] ss:$16 sm:%s8547]
    %vm8549 = vcmask 1047558
    %v8550 = vsel %vm8549, %v8548, %v8545
    %8551 = vrot.lane.b32.xlu0 %v8550, 32
    %v8552 = vpop.permute.xlu0 %8551
    %vm8553 = vcmask 326912
    %s8554 = scalar_lea.vmem [#allocation0], 96
    %8555 = vst.msk [vmem:[%s8554] sm:$0xff] %vm8553, %v8552
    %s8556 = scalar_lea.vmem [#allocation1], 132
    %s8557 = smov 3
    %v8558 = vld [vmem:[%s8556] ss:$16 sm:%s8557]
    %s8559 = scalar_lea.vmem [#allocation1], 132
    %s8560 = smov 12
    %v8561 = vld [vmem:[%s8559] ss:$16 sm:%s8560]
    %vm8562 = vcmask 1043458
    %v8563 = vsel %vm8562, %v8561, %v8558
    %s8564 = scalar_lea.vmem [#allocation1], 132
    %s8565 = smov 48
    %v8566 = vld [vmem:[%s8564] ss:$16 sm:%s8565]
    %vm8567 = vcmask 1045508
    %v8568 = vsel %vm8567, %v8566, %v8563
    %s8569 = scalar_lea.vmem [#allocation1], 132
    %s8570 = smov 192
    %v8571 = vld [vmem:[%s8569] ss:$16 sm:%s8570]
    %vm8572 = vcmask 1047558
    %v8573 = vsel %vm8572, %v8571, %v8568
    %8574 = vrot.lane.b32.xlu0 %v8573, 32
    %v8575 = vpop.permute.xlu0 %8574
    %vm8576 = vcmask 326912
    %s8577 = scalar_lea.vmem [#allocation0], 8
    %8578 = vst.msk [vmem:[%s8577] sm:$0xff] %vm8576, %v8575
    %s8579 = scalar_lea.vmem [#allocation1], 644
    %s8580 = smov 3
    %v8581 = vld [vmem:[%s8579] ss:$16 sm:%s8580]
    %s8582 = scalar_lea.vmem [#allocation1], 644
    %s8583 = smov 12
    %v8584 = vld [vmem:[%s8582] ss:$16 sm:%s8583]
    %vm8585 = vcmask 1043458
    %v8586 = vsel %vm8585, %v8584, %v8581
    %s8587 = scalar_lea.vmem [#allocation1], 644
    %s8588 = smov 48
    %v8589 = vld [vmem:[%s8587] ss:$16 sm:%s8588]
    %vm8590 = vcmask 1045508
    %v8591 = vsel %vm8590, %v8589, %v8586
    %s8592 = scalar_lea.vmem [#allocation1], 644
    %s8593 = smov 192
    %v8594 = vld [vmem:[%s8592] ss:$16 sm:%s8593]
    %vm8595 = vcmask 1047558
    %v8596 = vsel %vm8595, %v8594, %v8591
    %8597 = vrot.lane.b32.xlu0 %v8596, 32
    %v8598 = vpop.permute.xlu0 %8597
    %vm8599 = vcmask 326912
    %s8600 = scalar_lea.vmem [#allocation0], 40
    %8601 = vst.msk [vmem:[%s8600] sm:$0xff] %vm8599, %v8598
    %s8602 = scalar_lea.vmem [#allocation1], 1156
    %s8603 = smov 3
    %v8604 = vld [vmem:[%s8602] ss:$16 sm:%s8603]
    %s8605 = scalar_lea.vmem [#allocation1], 1156
    %s8606 = smov 12
    %v8607 = vld [vmem:[%s8605] ss:$16 sm:%s8606]
    %vm8608 = vcmask 1043458
    %v8609 = vsel %vm8608, %v8607, %v8604
    %s8610 = scalar_lea.vmem [#allocation1], 1156
    %s8611 = smov 48
    %v8612 = vld [vmem:[%s8610] ss:$16 sm:%s8611]
    %vm8613 = vcmask 1045508
    %v8614 = vsel %vm8613, %v8612, %v8609
    %s8615 = scalar_lea.vmem [#allocation1], 1156
    %s8616 = smov 192
    %v8617 = vld [vmem:[%s8615] ss:$16 sm:%s8616]
    %vm8618 = vcmask 1047558
    %v8619 = vsel %vm8618, %v8617, %v8614
    %8620 = vrot.lane.b32.xlu0 %v8619, 32
    %v8621 = vpop.permute.xlu0 %8620
    %vm8622 = vcmask 326912
    %s8623 = scalar_lea.vmem [#allocation0], 72
    %8624 = vst.msk [vmem:[%s8623] sm:$0xff] %vm8622, %v8621
    %s8625 = scalar_lea.vmem [#allocation1], 1668
    %s8626 = smov 3
    %v8627 = vld [vmem:[%s8625] ss:$16 sm:%s8626]
    %s8628 = scalar_lea.vmem [#allocation1], 1668
    %s8629 = smov 12
    %v8630 = vld [vmem:[%s8628] ss:$16 sm:%s8629]
    %vm8631 = vcmask 1043458
    %v8632 = vsel %vm8631, %v8630, %v8627
    %s8633 = scalar_lea.vmem [#allocation1], 1668
    %s8634 = smov 48
    %v8635 = vld [vmem:[%s8633] ss:$16 sm:%s8634]
    %vm8636 = vcmask 1045508
    %v8637 = vsel %vm8636, %v8635, %v8632
    %s8638 = scalar_lea.vmem [#allocation1], 1668
    %s8639 = smov 192
    %v8640 = vld [vmem:[%s8638] ss:$16 sm:%s8639]
    %vm8641 = vcmask 1047558
    %v8642 = vsel %vm8641, %v8640, %v8637
    %8643 = vrot.lane.b32.xlu0 %v8642, 32
    %v8644 = vpop.permute.xlu0 %8643
    %vm8645 = vcmask 326912
    %s8646 = scalar_lea.vmem [#allocation0], 104
    %8647 = vst.msk [vmem:[%s8646] sm:$0xff] %vm8645, %v8644
    %s8648 = scalar_lea.vmem [#allocation1], 260
    %s8649 = smov 3
    %v8650 = vld [vmem:[%s8648] ss:$16 sm:%s8649]
    %s8651 = scalar_lea.vmem [#allocation1], 260
    %s8652 = smov 12
    %v8653 = vld [vmem:[%s8651] ss:$16 sm:%s8652]
    %vm8654 = vcmask 1043458
    %v8655 = vsel %vm8654, %v8653, %v8650
    %s8656 = scalar_lea.vmem [#allocation1], 260
    %s8657 = smov 48
    %v8658 = vld [vmem:[%s8656] ss:$16 sm:%s8657]
    %vm8659 = vcmask 1045508
    %v8660 = vsel %vm8659, %v8658, %v8655
    %s8661 = scalar_lea.vmem [#allocation1], 260
    %s8662 = smov 192
    %v8663 = vld [vmem:[%s8661] ss:$16 sm:%s8662]
    %vm8664 = vcmask 1047558
    %v8665 = vsel %vm8664, %v8663, %v8660
    %8666 = vrot.lane.b32.xlu0 %v8665, 32
    %v8667 = vpop.permute.xlu0 %8666
    %vm8668 = vcmask 326912
    %s8669 = scalar_lea.vmem [#allocation0], 16
    %8670 = vst.msk [vmem:[%s8669] sm:$0xff] %vm8668, %v8667
    %s8671 = scalar_lea.vmem [#allocation1], 772
    %s8672 = smov 3
    %v8673 = vld [vmem:[%s8671] ss:$16 sm:%s8672]
    %s8674 = scalar_lea.vmem [#allocation1], 772
    %s8675 = smov 12
    %v8676 = vld [vmem:[%s8674] ss:$16 sm:%s8675]
    %vm8677 = vcmask 1043458
    %v8678 = vsel %vm8677, %v8676, %v8673
    %s8679 = scalar_lea.vmem [#allocation1], 772
    %s8680 = smov 48
    %v8681 = vld [vmem:[%s8679] ss:$16 sm:%s8680]
    %vm8682 = vcmask 1045508
    %v8683 = vsel %vm8682, %v8681, %v8678
    %s8684 = scalar_lea.vmem [#allocation1], 772
    %s8685 = smov 192
    %v8686 = vld [vmem:[%s8684] ss:$16 sm:%s8685]
    %vm8687 = vcmask 1047558
    %v8688 = vsel %vm8687, %v8686, %v8683
    %8689 = vrot.lane.b32.xlu0 %v8688, 32
    %v8690 = vpop.permute.xlu0 %8689
    %vm8691 = vcmask 326912
    %s8692 = scalar_lea.vmem [#allocation0], 48
    %8693 = vst.msk [vmem:[%s8692] sm:$0xff] %vm8691, %v8690
    %s8694 = scalar_lea.vmem [#allocation1], 1284
    %s8695 = smov 3
    %v8696 = vld [vmem:[%s8694] ss:$16 sm:%s8695]
    %s8697 = scalar_lea.vmem [#allocation1], 1284
    %s8698 = smov 12
    %v8699 = vld [vmem:[%s8697] ss:$16 sm:%s8698]
    %vm8700 = vcmask 1043458
    %v8701 = vsel %vm8700, %v8699, %v8696
    %s8702 = scalar_lea.vmem [#allocation1], 1284
    %s8703 = smov 48
    %v8704 = vld [vmem:[%s8702] ss:$16 sm:%s8703]
    %vm8705 = vcmask 1045508
    %v8706 = vsel %vm8705, %v8704, %v8701
    %s8707 = scalar_lea.vmem [#allocation1], 1284
    %s8708 = smov 192
    %v8709 = vld [vmem:[%s8707] ss:$16 sm:%s8708]
    %vm8710 = vcmask 1047558
    %v8711 = vsel %vm8710, %v8709, %v8706
    %8712 = vrot.lane.b32.xlu0 %v8711, 32
    %v8713 = vpop.permute.xlu0 %8712
    %vm8714 = vcmask 326912
    %s8715 = scalar_lea.vmem [#allocation0], 80
    %8716 = vst.msk [vmem:[%s8715] sm:$0xff] %vm8714, %v8713
    %s8717 = scalar_lea.vmem [#allocation1], 1796
    %s8718 = smov 3
    %v8719 = vld [vmem:[%s8717] ss:$16 sm:%s8718]
    %s8720 = scalar_lea.vmem [#allocation1], 1796
    %s8721 = smov 12
    %v8722 = vld [vmem:[%s8720] ss:$16 sm:%s8721]
    %vm8723 = vcmask 1043458
    %v8724 = vsel %vm8723, %v8722, %v8719
    %s8725 = scalar_lea.vmem [#allocation1], 1796
    %s8726 = smov 48
    %v8727 = vld [vmem:[%s8725] ss:$16 sm:%s8726]
    %vm8728 = vcmask 1045508
    %v8729 = vsel %vm8728, %v8727, %v8724
    %s8730 = scalar_lea.vmem [#allocation1], 1796
    %s8731 = smov 192
    %v8732 = vld [vmem:[%s8730] ss:$16 sm:%s8731]
    %vm8733 = vcmask 1047558
    %v8734 = vsel %vm8733, %v8732, %v8729
    %8735 = vrot.lane.b32.xlu0 %v8734, 32
    %v8736 = vpop.permute.xlu0 %8735
    %vm8737 = vcmask 326912
    %s8738 = scalar_lea.vmem [#allocation0], 112
    %8739 = vst.msk [vmem:[%s8738] sm:$0xff] %vm8737, %v8736
    %s8740 = scalar_lea.vmem [#allocation1], 388
    %s8741 = smov 3
    %v8742 = vld [vmem:[%s8740] ss:$16 sm:%s8741]
    %s8743 = scalar_lea.vmem [#allocation1], 388
    %s8744 = smov 12
    %v8745 = vld [vmem:[%s8743] ss:$16 sm:%s8744]
    %vm8746 = vcmask 1043458
    %v8747 = vsel %vm8746, %v8745, %v8742
    %s8748 = scalar_lea.vmem [#allocation1], 388
    %s8749 = smov 48
    %v8750 = vld [vmem:[%s8748] ss:$16 sm:%s8749]
    %vm8751 = vcmask 1045508
    %v8752 = vsel %vm8751, %v8750, %v8747
    %s8753 = scalar_lea.vmem [#allocation1], 388
    %s8754 = smov 192
    %v8755 = vld [vmem:[%s8753] ss:$16 sm:%s8754]
    %vm8756 = vcmask 1047558
    %v8757 = vsel %vm8756, %v8755, %v8752
    %8758 = vrot.lane.b32.xlu0 %v8757, 32
    %v8759 = vpop.permute.xlu0 %8758
    %vm8760 = vcmask 326912
    %s8761 = scalar_lea.vmem [#allocation0], 24
    %8762 = vst.msk [vmem:[%s8761] sm:$0xff] %vm8760, %v8759
    %s8763 = scalar_lea.vmem [#allocation1], 900
    %s8764 = smov 3
    %v8765 = vld [vmem:[%s8763] ss:$16 sm:%s8764]
    %s8766 = scalar_lea.vmem [#allocation1], 900
    %s8767 = smov 12
    %v8768 = vld [vmem:[%s8766] ss:$16 sm:%s8767]
    %vm8769 = vcmask 1043458
    %v8770 = vsel %vm8769, %v8768, %v8765
    %s8771 = scalar_lea.vmem [#allocation1], 900
    %s8772 = smov 48
    %v8773 = vld [vmem:[%s8771] ss:$16 sm:%s8772]
    %vm8774 = vcmask 1045508
    %v8775 = vsel %vm8774, %v8773, %v8770
    %s8776 = scalar_lea.vmem [#allocation1], 900
    %s8777 = smov 192
    %v8778 = vld [vmem:[%s8776] ss:$16 sm:%s8777]
    %vm8779 = vcmask 1047558
    %v8780 = vsel %vm8779, %v8778, %v8775
    %8781 = vrot.lane.b32.xlu0 %v8780, 32
    %v8782 = vpop.permute.xlu0 %8781
    %vm8783 = vcmask 326912
    %s8784 = scalar_lea.vmem [#allocation0], 56
    %8785 = vst.msk [vmem:[%s8784] sm:$0xff] %vm8783, %v8782
    %s8786 = scalar_lea.vmem [#allocation1], 1412
    %s8787 = smov 3
    %v8788 = vld [vmem:[%s8786] ss:$16 sm:%s8787]
    %s8789 = scalar_lea.vmem [#allocation1], 1412
    %s8790 = smov 12
    %v8791 = vld [vmem:[%s8789] ss:$16 sm:%s8790]
    %vm8792 = vcmask 1043458
    %v8793 = vsel %vm8792, %v8791, %v8788
    %s8794 = scalar_lea.vmem [#allocation1], 1412
    %s8795 = smov 48
    %v8796 = vld [vmem:[%s8794] ss:$16 sm:%s8795]
    %vm8797 = vcmask 1045508
    %v8798 = vsel %vm8797, %v8796, %v8793
    %s8799 = scalar_lea.vmem [#allocation1], 1412
    %s8800 = smov 192
    %v8801 = vld [vmem:[%s8799] ss:$16 sm:%s8800]
    %vm8802 = vcmask 1047558
    %v8803 = vsel %vm8802, %v8801, %v8798
    %8804 = vrot.lane.b32.xlu0 %v8803, 32
    %v8805 = vpop.permute.xlu0 %8804
    %vm8806 = vcmask 326912
    %s8807 = scalar_lea.vmem [#allocation0], 88
    %8808 = vst.msk [vmem:[%s8807] sm:$0xff] %vm8806, %v8805
    %s8809 = scalar_lea.vmem [#allocation1], 1924
    %s8810 = smov 3
    %v8811 = vld [vmem:[%s8809] ss:$16 sm:%s8810]
    %s8812 = scalar_lea.vmem [#allocation1], 1924
    %s8813 = smov 12
    %v8814 = vld [vmem:[%s8812] ss:$16 sm:%s8813]
    %vm8815 = vcmask 1043458
    %v8816 = vsel %vm8815, %v8814, %v8811
    %s8817 = scalar_lea.vmem [#allocation1], 1924
    %s8818 = smov 48
    %v8819 = vld [vmem:[%s8817] ss:$16 sm:%s8818]
    %vm8820 = vcmask 1045508
    %v8821 = vsel %vm8820, %v8819, %v8816
    %s8822 = scalar_lea.vmem [#allocation1], 1924
    %s8823 = smov 192
    %v8824 = vld [vmem:[%s8822] ss:$16 sm:%s8823]
    %vm8825 = vcmask 1047558
    %v8826 = vsel %vm8825, %v8824, %v8821
    %8827 = vrot.lane.b32.xlu0 %v8826, 32
    %v8828 = vpop.permute.xlu0 %8827
    %vm8829 = vcmask 326912
    %s8830 = scalar_lea.vmem [#allocation0], 120
    %8831 = vst.msk [vmem:[%s8830] sm:$0xff] %vm8829, %v8828
    %s8832 = scalar_lea.vmem [#allocation1], 3
    %s8833 = smov 3
    %v8834 = vld [vmem:[%s8832] ss:$16 sm:%s8833]
    %s8835 = scalar_lea.vmem [#allocation1], 3
    %s8836 = smov 12
    %v8837 = vld [vmem:[%s8835] ss:$16 sm:%s8836]
    %vm8838 = vcmask 1043458
    %v8839 = vsel %vm8838, %v8837, %v8834
    %s8840 = scalar_lea.vmem [#allocation1], 3
    %s8841 = smov 48
    %v8842 = vld [vmem:[%s8840] ss:$16 sm:%s8841]
    %vm8843 = vcmask 1045508
    %v8844 = vsel %vm8843, %v8842, %v8839
    %s8845 = scalar_lea.vmem [#allocation1], 3
    %s8846 = smov 192
    %v8847 = vld [vmem:[%s8845] ss:$16 sm:%s8846]
    %vm8848 = vcmask 1047558
    %v8849 = vsel %vm8848, %v8847, %v8844
    %8850 = vrot.lane.b32.xlu0 %v8849, 24
    %v8851 = vpop.permute.xlu0 %8850
    %vm8852 = vcmask 261312
    %8853 = vst.msk [vmem:[#allocation0] sm:$0xff] %vm8852, %v8851
    %s8854 = scalar_lea.vmem [#allocation1], 515
    %s8855 = smov 3
    %v8856 = vld [vmem:[%s8854] ss:$16 sm:%s8855]
    %s8857 = scalar_lea.vmem [#allocation1], 515
    %s8858 = smov 12
    %v8859 = vld [vmem:[%s8857] ss:$16 sm:%s8858]
    %vm8860 = vcmask 1043458
    %v8861 = vsel %vm8860, %v8859, %v8856
    %s8862 = scalar_lea.vmem [#allocation1], 515
    %s8863 = smov 48
    %v8864 = vld [vmem:[%s8862] ss:$16 sm:%s8863]
    %vm8865 = vcmask 1045508
    %v8866 = vsel %vm8865, %v8864, %v8861
    %s8867 = scalar_lea.vmem [#allocation1], 515
    %s8868 = smov 192
    %v8869 = vld [vmem:[%s8867] ss:$16 sm:%s8868]
    %vm8870 = vcmask 1047558
    %v8871 = vsel %vm8870, %v8869, %v8866
    %8872 = vrot.lane.b32.xlu0 %v8871, 24
    %v8873 = vpop.permute.xlu0 %8872
    %vm8874 = vcmask 261312
    %s8875 = scalar_lea.vmem [#allocation0], 32
    %8876 = vst.msk [vmem:[%s8875] sm:$0xff] %vm8874, %v8873
    %s8877 = scalar_lea.vmem [#allocation1], 1027
    %s8878 = smov 3
    %v8879 = vld [vmem:[%s8877] ss:$16 sm:%s8878]
    %s8880 = scalar_lea.vmem [#allocation1], 1027
    %s8881 = smov 12
    %v8882 = vld [vmem:[%s8880] ss:$16 sm:%s8881]
    %vm8883 = vcmask 1043458
    %v8884 = vsel %vm8883, %v8882, %v8879
    %s8885 = scalar_lea.vmem [#allocation1], 1027
    %s8886 = smov 48
    %v8887 = vld [vmem:[%s8885] ss:$16 sm:%s8886]
    %vm8888 = vcmask 1045508
    %v8889 = vsel %vm8888, %v8887, %v8884
    %s8890 = scalar_lea.vmem [#allocation1], 1027
    %s8891 = smov 192
    %v8892 = vld [vmem:[%s8890] ss:$16 sm:%s8891]
    %vm8893 = vcmask 1047558
    %v8894 = vsel %vm8893, %v8892, %v8889
    %8895 = vrot.lane.b32.xlu0 %v8894, 24
    %v8896 = vpop.permute.xlu0 %8895
    %vm8897 = vcmask 261312
    %s8898 = scalar_lea.vmem [#allocation0], 64
    %8899 = vst.msk [vmem:[%s8898] sm:$0xff] %vm8897, %v8896
    %s8900 = scalar_lea.vmem [#allocation1], 1539
    %s8901 = smov 3
    %v8902 = vld [vmem:[%s8900] ss:$16 sm:%s8901]
    %s8903 = scalar_lea.vmem [#allocation1], 1539
    %s8904 = smov 12
    %v8905 = vld [vmem:[%s8903] ss:$16 sm:%s8904]
    %vm8906 = vcmask 1043458
    %v8907 = vsel %vm8906, %v8905, %v8902
    %s8908 = scalar_lea.vmem [#allocation1], 1539
    %s8909 = smov 48
    %v8910 = vld [vmem:[%s8908] ss:$16 sm:%s8909]
    %vm8911 = vcmask 1045508
    %v8912 = vsel %vm8911, %v8910, %v8907
    %s8913 = scalar_lea.vmem [#allocation1], 1539
    %s8914 = smov 192
    %v8915 = vld [vmem:[%s8913] ss:$16 sm:%s8914]
    %vm8916 = vcmask 1047558
    %v8917 = vsel %vm8916, %v8915, %v8912
    %8918 = vrot.lane.b32.xlu0 %v8917, 24
    %v8919 = vpop.permute.xlu0 %8918
    %vm8920 = vcmask 261312
    %s8921 = scalar_lea.vmem [#allocation0], 96
    %8922 = vst.msk [vmem:[%s8921] sm:$0xff] %vm8920, %v8919
    %s8923 = scalar_lea.vmem [#allocation1], 131
    %s8924 = smov 3
    %v8925 = vld [vmem:[%s8923] ss:$16 sm:%s8924]
    %s8926 = scalar_lea.vmem [#allocation1], 131
    %s8927 = smov 12
    %v8928 = vld [vmem:[%s8926] ss:$16 sm:%s8927]
    %vm8929 = vcmask 1043458
    %v8930 = vsel %vm8929, %v8928, %v8925
    %s8931 = scalar_lea.vmem [#allocation1], 131
    %s8932 = smov 48
    %v8933 = vld [vmem:[%s8931] ss:$16 sm:%s8932]
    %vm8934 = vcmask 1045508
    %v8935 = vsel %vm8934, %v8933, %v8930
    %s8936 = scalar_lea.vmem [#allocation1], 131
    %s8937 = smov 192
    %v8938 = vld [vmem:[%s8936] ss:$16 sm:%s8937]
    %vm8939 = vcmask 1047558
    %v8940 = vsel %vm8939, %v8938, %v8935
    %8941 = vrot.lane.b32.xlu0 %v8940, 24
    %v8942 = vpop.permute.xlu0 %8941
    %vm8943 = vcmask 261312
    %s8944 = scalar_lea.vmem [#allocation0], 8
    %8945 = vst.msk [vmem:[%s8944] sm:$0xff] %vm8943, %v8942
    %s8946 = scalar_lea.vmem [#allocation1], 643
    %s8947 = smov 3
    %v8948 = vld [vmem:[%s8946] ss:$16 sm:%s8947]
    %s8949 = scalar_lea.vmem [#allocation1], 643
    %s8950 = smov 12
    %v8951 = vld [vmem:[%s8949] ss:$16 sm:%s8950]
    %vm8952 = vcmask 1043458
    %v8953 = vsel %vm8952, %v8951, %v8948
    %s8954 = scalar_lea.vmem [#allocation1], 643
    %s8955 = smov 48
    %v8956 = vld [vmem:[%s8954] ss:$16 sm:%s8955]
    %vm8957 = vcmask 1045508
    %v8958 = vsel %vm8957, %v8956, %v8953
    %s8959 = scalar_lea.vmem [#allocation1], 643
    %s8960 = smov 192
    %v8961 = vld [vmem:[%s8959] ss:$16 sm:%s8960]
    %vm8962 = vcmask 1047558
    %v8963 = vsel %vm8962, %v8961, %v8958
    %8964 = vrot.lane.b32.xlu0 %v8963, 24
    %v8965 = vpop.permute.xlu0 %8964
    %vm8966 = vcmask 261312
    %s8967 = scalar_lea.vmem [#allocation0], 40
    %8968 = vst.msk [vmem:[%s8967] sm:$0xff] %vm8966, %v8965
    %s8969 = scalar_lea.vmem [#allocation1], 1155
    %s8970 = smov 3
    %v8971 = vld [vmem:[%s8969] ss:$16 sm:%s8970]
    %s8972 = scalar_lea.vmem [#allocation1], 1155
    %s8973 = smov 12
    %v8974 = vld [vmem:[%s8972] ss:$16 sm:%s8973]
    %vm8975 = vcmask 1043458
    %v8976 = vsel %vm8975, %v8974, %v8971
    %s8977 = scalar_lea.vmem [#allocation1], 1155
    %s8978 = smov 48
    %v8979 = vld [vmem:[%s8977] ss:$16 sm:%s8978]
    %vm8980 = vcmask 1045508
    %v8981 = vsel %vm8980, %v8979, %v8976
    %s8982 = scalar_lea.vmem [#allocation1], 1155
    %s8983 = smov 192
    %v8984 = vld [vmem:[%s8982] ss:$16 sm:%s8983]
    %vm8985 = vcmask 1047558
    %v8986 = vsel %vm8985, %v8984, %v8981
    %8987 = vrot.lane.b32.xlu0 %v8986, 24
    %v8988 = vpop.permute.xlu0 %8987
    %vm8989 = vcmask 261312
    %s8990 = scalar_lea.vmem [#allocation0], 72
    %8991 = vst.msk [vmem:[%s8990] sm:$0xff] %vm8989, %v8988
    %s8992 = scalar_lea.vmem [#allocation1], 1667
    %s8993 = smov 3
    %v8994 = vld [vmem:[%s8992] ss:$16 sm:%s8993]
    %s8995 = scalar_lea.vmem [#allocation1], 1667
    %s8996 = smov 12
    %v8997 = vld [vmem:[%s8995] ss:$16 sm:%s8996]
    %vm8998 = vcmask 1043458
    %v8999 = vsel %vm8998, %v8997, %v8994
    %s9000 = scalar_lea.vmem [#allocation1], 1667
    %s9001 = smov 48
    %v9002 = vld [vmem:[%s9000] ss:$16 sm:%s9001]
    %vm9003 = vcmask 1045508
    %v9004 = vsel %vm9003, %v9002, %v8999
    %s9005 = scalar_lea.vmem [#allocation1], 1667
    %s9006 = smov 192
    %v9007 = vld [vmem:[%s9005] ss:$16 sm:%s9006]
    %vm9008 = vcmask 1047558
    %v9009 = vsel %vm9008, %v9007, %v9004
    %9010 = vrot.lane.b32.xlu0 %v9009, 24
    %v9011 = vpop.permute.xlu0 %9010
    %vm9012 = vcmask 261312
    %s9013 = scalar_lea.vmem [#allocation0], 104
    %9014 = vst.msk [vmem:[%s9013] sm:$0xff] %vm9012, %v9011
    %s9015 = scalar_lea.vmem [#allocation1], 259
    %s9016 = smov 3
    %v9017 = vld [vmem:[%s9015] ss:$16 sm:%s9016]
    %s9018 = scalar_lea.vmem [#allocation1], 259
    %s9019 = smov 12
    %v9020 = vld [vmem:[%s9018] ss:$16 sm:%s9019]
    %vm9021 = vcmask 1043458
    %v9022 = vsel %vm9021, %v9020, %v9017
    %s9023 = scalar_lea.vmem [#allocation1], 259
    %s9024 = smov 48
    %v9025 = vld [vmem:[%s9023] ss:$16 sm:%s9024]
    %vm9026 = vcmask 1045508
    %v9027 = vsel %vm9026, %v9025, %v9022
    %s9028 = scalar_lea.vmem [#allocation1], 259
    %s9029 = smov 192
    %v9030 = vld [vmem:[%s9028] ss:$16 sm:%s9029]
    %vm9031 = vcmask 1047558
    %v9032 = vsel %vm9031, %v9030, %v9027
    %9033 = vrot.lane.b32.xlu0 %v9032, 24
    %v9034 = vpop.permute.xlu0 %9033
    %vm9035 = vcmask 261312
    %s9036 = scalar_lea.vmem [#allocation0], 16
    %9037 = vst.msk [vmem:[%s9036] sm:$0xff] %vm9035, %v9034
    %s9038 = scalar_lea.vmem [#allocation1], 771
    %s9039 = smov 3
    %v9040 = vld [vmem:[%s9038] ss:$16 sm:%s9039]
    %s9041 = scalar_lea.vmem [#allocation1], 771
    %s9042 = smov 12
    %v9043 = vld [vmem:[%s9041] ss:$16 sm:%s9042]
    %vm9044 = vcmask 1043458
    %v9045 = vsel %vm9044, %v9043, %v9040
    %s9046 = scalar_lea.vmem [#allocation1], 771
    %s9047 = smov 48
    %v9048 = vld [vmem:[%s9046] ss:$16 sm:%s9047]
    %vm9049 = vcmask 1045508
    %v9050 = vsel %vm9049, %v9048, %v9045
    %s9051 = scalar_lea.vmem [#allocation1], 771
    %s9052 = smov 192
    %v9053 = vld [vmem:[%s9051] ss:$16 sm:%s9052]
    %vm9054 = vcmask 1047558
    %v9055 = vsel %vm9054, %v9053, %v9050
    %9056 = vrot.lane.b32.xlu0 %v9055, 24
    %v9057 = vpop.permute.xlu0 %9056
    %vm9058 = vcmask 261312
    %s9059 = scalar_lea.vmem [#allocation0], 48
    %9060 = vst.msk [vmem:[%s9059] sm:$0xff] %vm9058, %v9057
    %s9061 = scalar_lea.vmem [#allocation1], 1283
    %s9062 = smov 3
    %v9063 = vld [vmem:[%s9061] ss:$16 sm:%s9062]
    %s9064 = scalar_lea.vmem [#allocation1], 1283
    %s9065 = smov 12
    %v9066 = vld [vmem:[%s9064] ss:$16 sm:%s9065]
    %vm9067 = vcmask 1043458
    %v9068 = vsel %vm9067, %v9066, %v9063
    %s9069 = scalar_lea.vmem [#allocation1], 1283
    %s9070 = smov 48
    %v9071 = vld [vmem:[%s9069] ss:$16 sm:%s9070]
    %vm9072 = vcmask 1045508
    %v9073 = vsel %vm9072, %v9071, %v9068
    %s9074 = scalar_lea.vmem [#allocation1], 1283
    %s9075 = smov 192
    %v9076 = vld [vmem:[%s9074] ss:$16 sm:%s9075]
    %vm9077 = vcmask 1047558
    %v9078 = vsel %vm9077, %v9076, %v9073
    %9079 = vrot.lane.b32.xlu0 %v9078, 24
    %v9080 = vpop.permute.xlu0 %9079
    %vm9081 = vcmask 261312
    %s9082 = scalar_lea.vmem [#allocation0], 80
    %9083 = vst.msk [vmem:[%s9082] sm:$0xff] %vm9081, %v9080
    %s9084 = scalar_lea.vmem [#allocation1], 1795
    %s9085 = smov 3
    %v9086 = vld [vmem:[%s9084] ss:$16 sm:%s9085]
    %s9087 = scalar_lea.vmem [#allocation1], 1795
    %s9088 = smov 12
    %v9089 = vld [vmem:[%s9087] ss:$16 sm:%s9088]
    %vm9090 = vcmask 1043458
    %v9091 = vsel %vm9090, %v9089, %v9086
    %s9092 = scalar_lea.vmem [#allocation1], 1795
    %s9093 = smov 48
    %v9094 = vld [vmem:[%s9092] ss:$16 sm:%s9093]
    %vm9095 = vcmask 1045508
    %v9096 = vsel %vm9095, %v9094, %v9091
    %s9097 = scalar_lea.vmem [#allocation1], 1795
    %s9098 = smov 192
    %v9099 = vld [vmem:[%s9097] ss:$16 sm:%s9098]
    %vm9100 = vcmask 1047558
    %v9101 = vsel %vm9100, %v9099, %v9096
    %9102 = vrot.lane.b32.xlu0 %v9101, 24
    %v9103 = vpop.permute.xlu0 %9102
    %vm9104 = vcmask 261312
    %s9105 = scalar_lea.vmem [#allocation0], 112
    %9106 = vst.msk [vmem:[%s9105] sm:$0xff] %vm9104, %v9103
    %s9107 = scalar_lea.vmem [#allocation1], 387
    %s9108 = smov 3
    %v9109 = vld [vmem:[%s9107] ss:$16 sm:%s9108]
    %s9110 = scalar_lea.vmem [#allocation1], 387
    %s9111 = smov 12
    %v9112 = vld [vmem:[%s9110] ss:$16 sm:%s9111]
    %vm9113 = vcmask 1043458
    %v9114 = vsel %vm9113, %v9112, %v9109
    %s9115 = scalar_lea.vmem [#allocation1], 387
    %s9116 = smov 48
    %v9117 = vld [vmem:[%s9115] ss:$16 sm:%s9116]
    %vm9118 = vcmask 1045508
    %v9119 = vsel %vm9118, %v9117, %v9114
    %s9120 = scalar_lea.vmem [#allocation1], 387
    %s9121 = smov 192
    %v9122 = vld [vmem:[%s9120] ss:$16 sm:%s9121]
    %vm9123 = vcmask 1047558
    %v9124 = vsel %vm9123, %v9122, %v9119
    %9125 = vrot.lane.b32.xlu0 %v9124, 24
    %v9126 = vpop.permute.xlu0 %9125
    %vm9127 = vcmask 261312
    %s9128 = scalar_lea.vmem [#allocation0], 24
    %9129 = vst.msk [vmem:[%s9128] sm:$0xff] %vm9127, %v9126
    %s9130 = scalar_lea.vmem [#allocation1], 899
    %s9131 = smov 3
    %v9132 = vld [vmem:[%s9130] ss:$16 sm:%s9131]
    %s9133 = scalar_lea.vmem [#allocation1], 899
    %s9134 = smov 12
    %v9135 = vld [vmem:[%s9133] ss:$16 sm:%s9134]
    %vm9136 = vcmask 1043458
    %v9137 = vsel %vm9136, %v9135, %v9132
    %s9138 = scalar_lea.vmem [#allocation1], 899
    %s9139 = smov 48
    %v9140 = vld [vmem:[%s9138] ss:$16 sm:%s9139]
    %vm9141 = vcmask 1045508
    %v9142 = vsel %vm9141, %v9140, %v9137
    %s9143 = scalar_lea.vmem [#allocation1], 899
    %s9144 = smov 192
    %v9145 = vld [vmem:[%s9143] ss:$16 sm:%s9144]
    %vm9146 = vcmask 1047558
    %v9147 = vsel %vm9146, %v9145, %v9142
    %9148 = vrot.lane.b32.xlu0 %v9147, 24
    %v9149 = vpop.permute.xlu0 %9148
    %vm9150 = vcmask 261312
    %s9151 = scalar_lea.vmem [#allocation0], 56
    %9152 = vst.msk [vmem:[%s9151] sm:$0xff] %vm9150, %v9149
    %s9153 = scalar_lea.vmem [#allocation1], 1411
    %s9154 = smov 3
    %v9155 = vld [vmem:[%s9153] ss:$16 sm:%s9154]
    %s9156 = scalar_lea.vmem [#allocation1], 1411
    %s9157 = smov 12
    %v9158 = vld [vmem:[%s9156] ss:$16 sm:%s9157]
    %vm9159 = vcmask 1043458
    %v9160 = vsel %vm9159, %v9158, %v9155
    %s9161 = scalar_lea.vmem [#allocation1], 1411
    %s9162 = smov 48
    %v9163 = vld [vmem:[%s9161] ss:$16 sm:%s9162]
    %vm9164 = vcmask 1045508
    %v9165 = vsel %vm9164, %v9163, %v9160
    %s9166 = scalar_lea.vmem [#allocation1], 1411
    %s9167 = smov 192
    %v9168 = vld [vmem:[%s9166] ss:$16 sm:%s9167]
    %vm9169 = vcmask 1047558
    %v9170 = vsel %vm9169, %v9168, %v9165
    %9171 = vrot.lane.b32.xlu0 %v9170, 24
    %v9172 = vpop.permute.xlu0 %9171
    %vm9173 = vcmask 261312
    %s9174 = scalar_lea.vmem [#allocation0], 88
    %9175 = vst.msk [vmem:[%s9174] sm:$0xff] %vm9173, %v9172
    %s9176 = scalar_lea.vmem [#allocation1], 1923
    %s9177 = smov 3
    %v9178 = vld [vmem:[%s9176] ss:$16 sm:%s9177]
    %s9179 = scalar_lea.vmem [#allocation1], 1923
    %s9180 = smov 12
    %v9181 = vld [vmem:[%s9179] ss:$16 sm:%s9180]
    %vm9182 = vcmask 1043458
    %v9183 = vsel %vm9182, %v9181, %v9178
    %s9184 = scalar_lea.vmem [#allocation1], 1923
    %s9185 = smov 48
    %v9186 = vld [vmem:[%s9184] ss:$16 sm:%s9185]
    %vm9187 = vcmask 1045508
    %v9188 = vsel %vm9187, %v9186, %v9183
    %s9189 = scalar_lea.vmem [#allocation1], 1923
    %s9190 = smov 192
    %v9191 = vld [vmem:[%s9189] ss:$16 sm:%s9190]
    %vm9192 = vcmask 1047558
    %v9193 = vsel %vm9192, %v9191, %v9188
    %9194 = vrot.lane.b32.xlu0 %v9193, 24
    %v9195 = vpop.permute.xlu0 %9194
    %vm9196 = vcmask 261312
    %s9197 = scalar_lea.vmem [#allocation0], 120
    %9198 = vst.msk [vmem:[%s9197] sm:$0xff] %vm9196, %v9195
    %s9199 = scalar_lea.vmem [#allocation1], 2
    %s9200 = smov 3
    %v9201 = vld [vmem:[%s9199] ss:$16 sm:%s9200]
    %s9202 = scalar_lea.vmem [#allocation1], 2
    %s9203 = smov 12
    %v9204 = vld [vmem:[%s9202] ss:$16 sm:%s9203]
    %vm9205 = vcmask 1043458
    %v9206 = vsel %vm9205, %v9204, %v9201
    %s9207 = scalar_lea.vmem [#allocation1], 2
    %s9208 = smov 48
    %v9209 = vld [vmem:[%s9207] ss:$16 sm:%s9208]
    %vm9210 = vcmask 1045508
    %v9211 = vsel %vm9210, %v9209, %v9206
    %s9212 = scalar_lea.vmem [#allocation1], 2
    %s9213 = smov 192
    %v9214 = vld [vmem:[%s9212] ss:$16 sm:%s9213]
    %vm9215 = vcmask 1047558
    %v9216 = vsel %vm9215, %v9214, %v9211
    %9217 = vrot.lane.b32.xlu0 %v9216, 16
    %v9218 = vpop.permute.xlu0 %9217
    %vm9219 = vcmask 195712
    %9220 = vst.msk [vmem:[#allocation0] sm:$0xff] %vm9219, %v9218
    %s9221 = scalar_lea.vmem [#allocation1], 514
    %s9222 = smov 3
    %v9223 = vld [vmem:[%s9221] ss:$16 sm:%s9222]
    %s9224 = scalar_lea.vmem [#allocation1], 514
    %s9225 = smov 12
    %v9226 = vld [vmem:[%s9224] ss:$16 sm:%s9225]
    %vm9227 = vcmask 1043458
    %v9228 = vsel %vm9227, %v9226, %v9223
    %s9229 = scalar_lea.vmem [#allocation1], 514
    %s9230 = smov 48
    %v9231 = vld [vmem:[%s9229] ss:$16 sm:%s9230]
    %vm9232 = vcmask 1045508
    %v9233 = vsel %vm9232, %v9231, %v9228
    %s9234 = scalar_lea.vmem [#allocation1], 514
    %s9235 = smov 192
    %v9236 = vld [vmem:[%s9234] ss:$16 sm:%s9235]
    %vm9237 = vcmask 1047558
    %v9238 = vsel %vm9237, %v9236, %v9233
    %9239 = vrot.lane.b32.xlu0 %v9238, 16
    %v9240 = vpop.permute.xlu0 %9239
    %vm9241 = vcmask 195712
    %s9242 = scalar_lea.vmem [#allocation0], 32
    %9243 = vst.msk [vmem:[%s9242] sm:$0xff] %vm9241, %v9240
    %s9244 = scalar_lea.vmem [#allocation1], 1026
    %s9245 = smov 3
    %v9246 = vld [vmem:[%s9244] ss:$16 sm:%s9245]
    %s9247 = scalar_lea.vmem [#allocation1], 1026
    %s9248 = smov 12
    %v9249 = vld [vmem:[%s9247] ss:$16 sm:%s9248]
    %vm9250 = vcmask 1043458
    %v9251 = vsel %vm9250, %v9249, %v9246
    %s9252 = scalar_lea.vmem [#allocation1], 1026
    %s9253 = smov 48
    %v9254 = vld [vmem:[%s9252] ss:$16 sm:%s9253]
    %vm9255 = vcmask 1045508
    %v9256 = vsel %vm9255, %v9254, %v9251
    %s9257 = scalar_lea.vmem [#allocation1], 1026
    %s9258 = smov 192
    %v9259 = vld [vmem:[%s9257] ss:$16 sm:%s9258]
    %vm9260 = vcmask 1047558
    %v9261 = vsel %vm9260, %v9259, %v9256
    %9262 = vrot.lane.b32.xlu0 %v9261, 16
    %v9263 = vpop.permute.xlu0 %9262
    %vm9264 = vcmask 195712
    %s9265 = scalar_lea.vmem [#allocation0], 64
    %9266 = vst.msk [vmem:[%s9265] sm:$0xff] %vm9264, %v9263
    %s9267 = scalar_lea.vmem [#allocation1], 1538
    %s9268 = smov 3
    %v9269 = vld [vmem:[%s9267] ss:$16 sm:%s9268]
    %s9270 = scalar_lea.vmem [#allocation1], 1538
    %s9271 = smov 12
    %v9272 = vld [vmem:[%s9270] ss:$16 sm:%s9271]
    %vm9273 = vcmask 1043458
    %v9274 = vsel %vm9273, %v9272, %v9269
    %s9275 = scalar_lea.vmem [#allocation1], 1538
    %s9276 = smov 48
    %v9277 = vld [vmem:[%s9275] ss:$16 sm:%s9276]
    %vm9278 = vcmask 1045508
    %v9279 = vsel %vm9278, %v9277, %v9274
    %s9280 = scalar_lea.vmem [#allocation1], 1538
    %s9281 = smov 192
    %v9282 = vld [vmem:[%s9280] ss:$16 sm:%s9281]
    %vm9283 = vcmask 1047558
    %v9284 = vsel %vm9283, %v9282, %v9279
    %9285 = vrot.lane.b32.xlu0 %v9284, 16
    %v9286 = vpop.permute.xlu0 %9285
    %vm9287 = vcmask 195712
    %s9288 = scalar_lea.vmem [#allocation0], 96
    %9289 = vst.msk [vmem:[%s9288] sm:$0xff] %vm9287, %v9286
    %s9290 = scalar_lea.vmem [#allocation1], 130
    %s9291 = smov 3
    %v9292 = vld [vmem:[%s9290] ss:$16 sm:%s9291]
    %s9293 = scalar_lea.vmem [#allocation1], 130
    %s9294 = smov 12
    %v9295 = vld [vmem:[%s9293] ss:$16 sm:%s9294]
    %vm9296 = vcmask 1043458
    %v9297 = vsel %vm9296, %v9295, %v9292
    %s9298 = scalar_lea.vmem [#allocation1], 130
    %s9299 = smov 48
    %v9300 = vld [vmem:[%s9298] ss:$16 sm:%s9299]
    %vm9301 = vcmask 1045508
    %v9302 = vsel %vm9301, %v9300, %v9297
    %s9303 = scalar_lea.vmem [#allocation1], 130
    %s9304 = smov 192
    %v9305 = vld [vmem:[%s9303] ss:$16 sm:%s9304]
    %vm9306 = vcmask 1047558
    %v9307 = vsel %vm9306, %v9305, %v9302
    %9308 = vrot.lane.b32.xlu0 %v9307, 16
    %v9309 = vpop.permute.xlu0 %9308
    %vm9310 = vcmask 195712
    %s9311 = scalar_lea.vmem [#allocation0], 8
    %9312 = vst.msk [vmem:[%s9311] sm:$0xff] %vm9310, %v9309
    %s9313 = scalar_lea.vmem [#allocation1], 642
    %s9314 = smov 3
    %v9315 = vld [vmem:[%s9313] ss:$16 sm:%s9314]
    %s9316 = scalar_lea.vmem [#allocation1], 642
    %s9317 = smov 12
    %v9318 = vld [vmem:[%s9316] ss:$16 sm:%s9317]
    %vm9319 = vcmask 1043458
    %v9320 = vsel %vm9319, %v9318, %v9315
    %s9321 = scalar_lea.vmem [#allocation1], 642
    %s9322 = smov 48
    %v9323 = vld [vmem:[%s9321] ss:$16 sm:%s9322]
    %vm9324 = vcmask 1045508
    %v9325 = vsel %vm9324, %v9323, %v9320
    %s9326 = scalar_lea.vmem [#allocation1], 642
    %s9327 = smov 192
    %v9328 = vld [vmem:[%s9326] ss:$16 sm:%s9327]
    %vm9329 = vcmask 1047558
    %v9330 = vsel %vm9329, %v9328, %v9325
    %9331 = vrot.lane.b32.xlu0 %v9330, 16
    %v9332 = vpop.permute.xlu0 %9331
    %vm9333 = vcmask 195712
    %s9334 = scalar_lea.vmem [#allocation0], 40
    %9335 = vst.msk [vmem:[%s9334] sm:$0xff] %vm9333, %v9332
    %s9336 = scalar_lea.vmem [#allocation1], 1154
    %s9337 = smov 3
    %v9338 = vld [vmem:[%s9336] ss:$16 sm:%s9337]
    %s9339 = scalar_lea.vmem [#allocation1], 1154
    %s9340 = smov 12
    %v9341 = vld [vmem:[%s9339] ss:$16 sm:%s9340]
    %vm9342 = vcmask 1043458
    %v9343 = vsel %vm9342, %v9341, %v9338
    %s9344 = scalar_lea.vmem [#allocation1], 1154
    %s9345 = smov 48
    %v9346 = vld [vmem:[%s9344] ss:$16 sm:%s9345]
    %vm9347 = vcmask 1045508
    %v9348 = vsel %vm9347, %v9346, %v9343
    %s9349 = scalar_lea.vmem [#allocation1], 1154
    %s9350 = smov 192
    %v9351 = vld [vmem:[%s9349] ss:$16 sm:%s9350]
    %vm9352 = vcmask 1047558
    %v9353 = vsel %vm9352, %v9351, %v9348
    %9354 = vrot.lane.b32.xlu0 %v9353, 16
    %v9355 = vpop.permute.xlu0 %9354
    %vm9356 = vcmask 195712
    %s9357 = scalar_lea.vmem [#allocation0], 72
    %9358 = vst.msk [vmem:[%s9357] sm:$0xff] %vm9356, %v9355
    %s9359 = scalar_lea.vmem [#allocation1], 1666
    %s9360 = smov 3
    %v9361 = vld [vmem:[%s9359] ss:$16 sm:%s9360]
    %s9362 = scalar_lea.vmem [#allocation1], 1666
    %s9363 = smov 12
    %v9364 = vld [vmem:[%s9362] ss:$16 sm:%s9363]
    %vm9365 = vcmask 1043458
    %v9366 = vsel %vm9365, %v9364, %v9361
    %s9367 = scalar_lea.vmem [#allocation1], 1666
    %s9368 = smov 48
    %v9369 = vld [vmem:[%s9367] ss:$16 sm:%s9368]
    %vm9370 = vcmask 1045508
    %v9371 = vsel %vm9370, %v9369, %v9366
    %s9372 = scalar_lea.vmem [#allocation1], 1666
    %s9373 = smov 192
    %v9374 = vld [vmem:[%s9372] ss:$16 sm:%s9373]
    %vm9375 = vcmask 1047558
    %v9376 = vsel %vm9375, %v9374, %v9371
    %9377 = vrot.lane.b32.xlu0 %v9376, 16
    %v9378 = vpop.permute.xlu0 %9377
    %vm9379 = vcmask 195712
    %s9380 = scalar_lea.vmem [#allocation0], 104
    %9381 = vst.msk [vmem:[%s9380] sm:$0xff] %vm9379, %v9378
    %s9382 = scalar_lea.vmem [#allocation1], 258
    %s9383 = smov 3
    %v9384 = vld [vmem:[%s9382] ss:$16 sm:%s9383]
    %s9385 = scalar_lea.vmem [#allocation1], 258
    %s9386 = smov 12
    %v9387 = vld [vmem:[%s9385] ss:$16 sm:%s9386]
    %vm9388 = vcmask 1043458
    %v9389 = vsel %vm9388, %v9387, %v9384
    %s9390 = scalar_lea.vmem [#allocation1], 258
    %s9391 = smov 48
    %v9392 = vld [vmem:[%s9390] ss:$16 sm:%s9391]
    %vm9393 = vcmask 1045508
    %v9394 = vsel %vm9393, %v9392, %v9389
    %s9395 = scalar_lea.vmem [#allocation1], 258
    %s9396 = smov 192
    %v9397 = vld [vmem:[%s9395] ss:$16 sm:%s9396]
    %vm9398 = vcmask 1047558
    %v9399 = vsel %vm9398, %v9397, %v9394
    %9400 = vrot.lane.b32.xlu0 %v9399, 16
    %v9401 = vpop.permute.xlu0 %9400
    %vm9402 = vcmask 195712
    %s9403 = scalar_lea.vmem [#allocation0], 16
    %9404 = vst.msk [vmem:[%s9403] sm:$0xff] %vm9402, %v9401
    %s9405 = scalar_lea.vmem [#allocation1], 770
    %s9406 = smov 3
    %v9407 = vld [vmem:[%s9405] ss:$16 sm:%s9406]
    %s9408 = scalar_lea.vmem [#allocation1], 770
    %s9409 = smov 12
    %v9410 = vld [vmem:[%s9408] ss:$16 sm:%s9409]
    %vm9411 = vcmask 1043458
    %v9412 = vsel %vm9411, %v9410, %v9407
    %s9413 = scalar_lea.vmem [#allocation1], 770
    %s9414 = smov 48
    %v9415 = vld [vmem:[%s9413] ss:$16 sm:%s9414]
    %vm9416 = vcmask 1045508
    %v9417 = vsel %vm9416, %v9415, %v9412
    %s9418 = scalar_lea.vmem [#allocation1], 770
    %s9419 = smov 192
    %v9420 = vld [vmem:[%s9418] ss:$16 sm:%s9419]
    %vm9421 = vcmask 1047558
    %v9422 = vsel %vm9421, %v9420, %v9417
    %9423 = vrot.lane.b32.xlu0 %v9422, 16
    %v9424 = vpop.permute.xlu0 %9423
    %vm9425 = vcmask 195712
    %s9426 = scalar_lea.vmem [#allocation0], 48
    %9427 = vst.msk [vmem:[%s9426] sm:$0xff] %vm9425, %v9424
    %s9428 = scalar_lea.vmem [#allocation1], 1282
    %s9429 = smov 3
    %v9430 = vld [vmem:[%s9428] ss:$16 sm:%s9429]
    %s9431 = scalar_lea.vmem [#allocation1], 1282
    %s9432 = smov 12
    %v9433 = vld [vmem:[%s9431] ss:$16 sm:%s9432]
    %vm9434 = vcmask 1043458
    %v9435 = vsel %vm9434, %v9433, %v9430
    %s9436 = scalar_lea.vmem [#allocation1], 1282
    %s9437 = smov 48
    %v9438 = vld [vmem:[%s9436] ss:$16 sm:%s9437]
    %vm9439 = vcmask 1045508
    %v9440 = vsel %vm9439, %v9438, %v9435
    %s9441 = scalar_lea.vmem [#allocation1], 1282
    %s9442 = smov 192
    %v9443 = vld [vmem:[%s9441] ss:$16 sm:%s9442]
    %vm9444 = vcmask 1047558
    %v9445 = vsel %vm9444, %v9443, %v9440
    %9446 = vrot.lane.b32.xlu0 %v9445, 16
    %v9447 = vpop.permute.xlu0 %9446
    %vm9448 = vcmask 195712
    %s9449 = scalar_lea.vmem [#allocation0], 80
    %9450 = vst.msk [vmem:[%s9449] sm:$0xff] %vm9448, %v9447
    %s9451 = scalar_lea.vmem [#allocation1], 1794
    %s9452 = smov 3
    %v9453 = vld [vmem:[%s9451] ss:$16 sm:%s9452]
    %s9454 = scalar_lea.vmem [#allocation1], 1794
    %s9455 = smov 12
    %v9456 = vld [vmem:[%s9454] ss:$16 sm:%s9455]
    %vm9457 = vcmask 1043458
    %v9458 = vsel %vm9457, %v9456, %v9453
    %s9459 = scalar_lea.vmem [#allocation1], 1794
    %s9460 = smov 48
    %v9461 = vld [vmem:[%s9459] ss:$16 sm:%s9460]
    %vm9462 = vcmask 1045508
    %v9463 = vsel %vm9462, %v9461, %v9458
    %s9464 = scalar_lea.vmem [#allocation1], 1794
    %s9465 = smov 192
    %v9466 = vld [vmem:[%s9464] ss:$16 sm:%s9465]
    %vm9467 = vcmask 1047558
    %v9468 = vsel %vm9467, %v9466, %v9463
    %9469 = vrot.lane.b32.xlu0 %v9468, 16
    %v9470 = vpop.permute.xlu0 %9469
    %vm9471 = vcmask 195712
    %s9472 = scalar_lea.vmem [#allocation0], 112
    %9473 = vst.msk [vmem:[%s9472] sm:$0xff] %vm9471, %v9470
    %s9474 = scalar_lea.vmem [#allocation1], 386
    %s9475 = smov 3
    %v9476 = vld [vmem:[%s9474] ss:$16 sm:%s9475]
    %s9477 = scalar_lea.vmem [#allocation1], 386
    %s9478 = smov 12
    %v9479 = vld [vmem:[%s9477] ss:$16 sm:%s9478]
    %vm9480 = vcmask 1043458
    %v9481 = vsel %vm9480, %v9479, %v9476
    %s9482 = scalar_lea.vmem [#allocation1], 386
    %s9483 = smov 48
    %v9484 = vld [vmem:[%s9482] ss:$16 sm:%s9483]
    %vm9485 = vcmask 1045508
    %v9486 = vsel %vm9485, %v9484, %v9481
    %s9487 = scalar_lea.vmem [#allocation1], 386
    %s9488 = smov 192
    %v9489 = vld [vmem:[%s9487] ss:$16 sm:%s9488]
    %vm9490 = vcmask 1047558
    %v9491 = vsel %vm9490, %v9489, %v9486
    %9492 = vrot.lane.b32.xlu0 %v9491, 16
    %v9493 = vpop.permute.xlu0 %9492
    %vm9494 = vcmask 195712
    %s9495 = scalar_lea.vmem [#allocation0], 24
    %9496 = vst.msk [vmem:[%s9495] sm:$0xff] %vm9494, %v9493
    %s9497 = scalar_lea.vmem [#allocation1], 898
    %s9498 = smov 3
    %v9499 = vld [vmem:[%s9497] ss:$16 sm:%s9498]
    %s9500 = scalar_lea.vmem [#allocation1], 898
    %s9501 = smov 12
    %v9502 = vld [vmem:[%s9500] ss:$16 sm:%s9501]
    %vm9503 = vcmask 1043458
    %v9504 = vsel %vm9503, %v9502, %v9499
    %s9505 = scalar_lea.vmem [#allocation1], 898
    %s9506 = smov 48
    %v9507 = vld [vmem:[%s9505] ss:$16 sm:%s9506]
    %vm9508 = vcmask 1045508
    %v9509 = vsel %vm9508, %v9507, %v9504
    %s9510 = scalar_lea.vmem [#allocation1], 898
    %s9511 = smov 192
    %v9512 = vld [vmem:[%s9510] ss:$16 sm:%s9511]
    %vm9513 = vcmask 1047558
    %v9514 = vsel %vm9513, %v9512, %v9509
    %9515 = vrot.lane.b32.xlu0 %v9514, 16
    %v9516 = vpop.permute.xlu0 %9515
    %vm9517 = vcmask 195712
    %s9518 = scalar_lea.vmem [#allocation0], 56
    %9519 = vst.msk [vmem:[%s9518] sm:$0xff] %vm9517, %v9516
    %s9520 = scalar_lea.vmem [#allocation1], 1410
    %s9521 = smov 3
    %v9522 = vld [vmem:[%s9520] ss:$16 sm:%s9521]
    %s9523 = scalar_lea.vmem [#allocation1], 1410
    %s9524 = smov 12
    %v9525 = vld [vmem:[%s9523] ss:$16 sm:%s9524]
    %vm9526 = vcmask 1043458
    %v9527 = vsel %vm9526, %v9525, %v9522
    %s9528 = scalar_lea.vmem [#allocation1], 1410
    %s9529 = smov 48
    %v9530 = vld [vmem:[%s9528] ss:$16 sm:%s9529]
    %vm9531 = vcmask 1045508
    %v9532 = vsel %vm9531, %v9530, %v9527
    %s9533 = scalar_lea.vmem [#allocation1], 1410
    %s9534 = smov 192
    %v9535 = vld [vmem:[%s9533] ss:$16 sm:%s9534]
    %vm9536 = vcmask 1047558
    %v9537 = vsel %vm9536, %v9535, %v9532
    %9538 = vrot.lane.b32.xlu0 %v9537, 16
    %v9539 = vpop.permute.xlu0 %9538
    %vm9540 = vcmask 195712
    %s9541 = scalar_lea.vmem [#allocation0], 88
    %9542 = vst.msk [vmem:[%s9541] sm:$0xff] %vm9540, %v9539
    %s9543 = scalar_lea.vmem [#allocation1], 1922
    %s9544 = smov 3
    %v9545 = vld [vmem:[%s9543] ss:$16 sm:%s9544]
    %s9546 = scalar_lea.vmem [#allocation1], 1922
    %s9547 = smov 12
    %v9548 = vld [vmem:[%s9546] ss:$16 sm:%s9547]
    %vm9549 = vcmask 1043458
    %v9550 = vsel %vm9549, %v9548, %v9545
    %s9551 = scalar_lea.vmem [#allocation1], 1922
    %s9552 = smov 48
    %v9553 = vld [vmem:[%s9551] ss:$16 sm:%s9552]
    %vm9554 = vcmask 1045508
    %v9555 = vsel %vm9554, %v9553, %v9550
    %s9556 = scalar_lea.vmem [#allocation1], 1922
    %s9557 = smov 192
    %v9558 = vld [vmem:[%s9556] ss:$16 sm:%s9557]
    %vm9559 = vcmask 1047558
    %v9560 = vsel %vm9559, %v9558, %v9555
    %9561 = vrot.lane.b32.xlu0 %v9560, 16
    %v9562 = vpop.permute.xlu0 %9561
    %vm9563 = vcmask 195712
    %s9564 = scalar_lea.vmem [#allocation0], 120
    %9565 = vst.msk [vmem:[%s9564] sm:$0xff] %vm9563, %v9562
    %s9566 = scalar_lea.vmem [#allocation1], 1
    %s9567 = smov 3
    %v9568 = vld [vmem:[%s9566] ss:$16 sm:%s9567]
    %s9569 = scalar_lea.vmem [#allocation1], 1
    %s9570 = smov 12
    %v9571 = vld [vmem:[%s9569] ss:$16 sm:%s9570]
    %vm9572 = vcmask 1043458
    %v9573 = vsel %vm9572, %v9571, %v9568
    %s9574 = scalar_lea.vmem [#allocation1], 1
    %s9575 = smov 48
    %v9576 = vld [vmem:[%s9574] ss:$16 sm:%s9575]
    %vm9577 = vcmask 1045508
    %v9578 = vsel %vm9577, %v9576, %v9573
    %s9579 = scalar_lea.vmem [#allocation1], 1
    %s9580 = smov 192
    %v9581 = vld [vmem:[%s9579] ss:$16 sm:%s9580]
    %vm9582 = vcmask 1047558
    %v9583 = vsel %vm9582, %v9581, %v9578
    %9584 = vrot.lane.b32.xlu0 %v9583, 8
    %v9585 = vpop.permute.xlu0 %9584
    %vm9586 = vcmask 130112
    %9587 = vst.msk [vmem:[#allocation0] sm:$0xff] %vm9586, %v9585
    %s9588 = scalar_lea.vmem [#allocation1], 513
    %s9589 = smov 3
    %v9590 = vld [vmem:[%s9588] ss:$16 sm:%s9589]
    %s9591 = scalar_lea.vmem [#allocation1], 513
    %s9592 = smov 12
    %v9593 = vld [vmem:[%s9591] ss:$16 sm:%s9592]
    %vm9594 = vcmask 1043458
    %v9595 = vsel %vm9594, %v9593, %v9590
    %s9596 = scalar_lea.vmem [#allocation1], 513
    %s9597 = smov 48
    %v9598 = vld [vmem:[%s9596] ss:$16 sm:%s9597]
    %vm9599 = vcmask 1045508
    %v9600 = vsel %vm9599, %v9598, %v9595
    %s9601 = scalar_lea.vmem [#allocation1], 513
    %s9602 = smov 192
    %v9603 = vld [vmem:[%s9601] ss:$16 sm:%s9602]
    %vm9604 = vcmask 1047558
    %v9605 = vsel %vm9604, %v9603, %v9600
    %9606 = vrot.lane.b32.xlu0 %v9605, 8
    %v9607 = vpop.permute.xlu0 %9606
    %vm9608 = vcmask 130112
    %s9609 = scalar_lea.vmem [#allocation0], 32
    %9610 = vst.msk [vmem:[%s9609] sm:$0xff] %vm9608, %v9607
    %s9611 = scalar_lea.vmem [#allocation1], 1025
    %s9612 = smov 3
    %v9613 = vld [vmem:[%s9611] ss:$16 sm:%s9612]
    %s9614 = scalar_lea.vmem [#allocation1], 1025
    %s9615 = smov 12
    %v9616 = vld [vmem:[%s9614] ss:$16 sm:%s9615]
    %vm9617 = vcmask 1043458
    %v9618 = vsel %vm9617, %v9616, %v9613
    %s9619 = scalar_lea.vmem [#allocation1], 1025
    %s9620 = smov 48
    %v9621 = vld [vmem:[%s9619] ss:$16 sm:%s9620]
    %vm9622 = vcmask 1045508
    %v9623 = vsel %vm9622, %v9621, %v9618
    %s9624 = scalar_lea.vmem [#allocation1], 1025
    %s9625 = smov 192
    %v9626 = vld [vmem:[%s9624] ss:$16 sm:%s9625]
    %vm9627 = vcmask 1047558
    %v9628 = vsel %vm9627, %v9626, %v9623
    %9629 = vrot.lane.b32.xlu0 %v9628, 8
    %v9630 = vpop.permute.xlu0 %9629
    %vm9631 = vcmask 130112
    %s9632 = scalar_lea.vmem [#allocation0], 64
    %9633 = vst.msk [vmem:[%s9632] sm:$0xff] %vm9631, %v9630
    %s9634 = scalar_lea.vmem [#allocation1], 1537
    %s9635 = smov 3
    %v9636 = vld [vmem:[%s9634] ss:$16 sm:%s9635]
    %s9637 = scalar_lea.vmem [#allocation1], 1537
    %s9638 = smov 12
    %v9639 = vld [vmem:[%s9637] ss:$16 sm:%s9638]
    %vm9640 = vcmask 1043458
    %v9641 = vsel %vm9640, %v9639, %v9636
    %s9642 = scalar_lea.vmem [#allocation1], 1537
    %s9643 = smov 48
    %v9644 = vld [vmem:[%s9642] ss:$16 sm:%s9643]
    %vm9645 = vcmask 1045508
    %v9646 = vsel %vm9645, %v9644, %v9641
    %s9647 = scalar_lea.vmem [#allocation1], 1537
    %s9648 = smov 192
    %v9649 = vld [vmem:[%s9647] ss:$16 sm:%s9648]
    %vm9650 = vcmask 1047558
    %v9651 = vsel %vm9650, %v9649, %v9646
    %9652 = vrot.lane.b32.xlu0 %v9651, 8
    %v9653 = vpop.permute.xlu0 %9652
    %vm9654 = vcmask 130112
    %s9655 = scalar_lea.vmem [#allocation0], 96
    %9656 = vst.msk [vmem:[%s9655] sm:$0xff] %vm9654, %v9653
    %s9657 = scalar_lea.vmem [#allocation1], 129
    %s9658 = smov 3
    %v9659 = vld [vmem:[%s9657] ss:$16 sm:%s9658]
    %s9660 = scalar_lea.vmem [#allocation1], 129
    %s9661 = smov 12
    %v9662 = vld [vmem:[%s9660] ss:$16 sm:%s9661]
    %vm9663 = vcmask 1043458
    %v9664 = vsel %vm9663, %v9662, %v9659
    %s9665 = scalar_lea.vmem [#allocation1], 129
    %s9666 = smov 48
    %v9667 = vld [vmem:[%s9665] ss:$16 sm:%s9666]
    %vm9668 = vcmask 1045508
    %v9669 = vsel %vm9668, %v9667, %v9664
    %s9670 = scalar_lea.vmem [#allocation1], 129
    %s9671 = smov 192
    %v9672 = vld [vmem:[%s9670] ss:$16 sm:%s9671]
    %vm9673 = vcmask 1047558
    %v9674 = vsel %vm9673, %v9672, %v9669
    %9675 = vrot.lane.b32.xlu0 %v9674, 8
    %v9676 = vpop.permute.xlu0 %9675
    %vm9677 = vcmask 130112
    %s9678 = scalar_lea.vmem [#allocation0], 8
    %9679 = vst.msk [vmem:[%s9678] sm:$0xff] %vm9677, %v9676
    %s9680 = scalar_lea.vmem [#allocation1], 641
    %s9681 = smov 3
    %v9682 = vld [vmem:[%s9680] ss:$16 sm:%s9681]
    %s9683 = scalar_lea.vmem [#allocation1], 641
    %s9684 = smov 12
    %v9685 = vld [vmem:[%s9683] ss:$16 sm:%s9684]
    %vm9686 = vcmask 1043458
    %v9687 = vsel %vm9686, %v9685, %v9682
    %s9688 = scalar_lea.vmem [#allocation1], 641
    %s9689 = smov 48
    %v9690 = vld [vmem:[%s9688] ss:$16 sm:%s9689]
    %vm9691 = vcmask 1045508
    %v9692 = vsel %vm9691, %v9690, %v9687
    %s9693 = scalar_lea.vmem [#allocation1], 641
    %s9694 = smov 192
    %v9695 = vld [vmem:[%s9693] ss:$16 sm:%s9694]
    %vm9696 = vcmask 1047558
    %v9697 = vsel %vm9696, %v9695, %v9692
    %9698 = vrot.lane.b32.xlu0 %v9697, 8
    %v9699 = vpop.permute.xlu0 %9698
    %vm9700 = vcmask 130112
    %s9701 = scalar_lea.vmem [#allocation0], 40
    %9702 = vst.msk [vmem:[%s9701] sm:$0xff] %vm9700, %v9699
    %s9703 = scalar_lea.vmem [#allocation1], 1153
    %s9704 = smov 3
    %v9705 = vld [vmem:[%s9703] ss:$16 sm:%s9704]
    %s9706 = scalar_lea.vmem [#allocation1], 1153
    %s9707 = smov 12
    %v9708 = vld [vmem:[%s9706] ss:$16 sm:%s9707]
    %vm9709 = vcmask 1043458
    %v9710 = vsel %vm9709, %v9708, %v9705
    %s9711 = scalar_lea.vmem [#allocation1], 1153
    %s9712 = smov 48
    %v9713 = vld [vmem:[%s9711] ss:$16 sm:%s9712]
    %vm9714 = vcmask 1045508
    %v9715 = vsel %vm9714, %v9713, %v9710
    %s9716 = scalar_lea.vmem [#allocation1], 1153
    %s9717 = smov 192
    %v9718 = vld [vmem:[%s9716] ss:$16 sm:%s9717]
    %vm9719 = vcmask 1047558
    %v9720 = vsel %vm9719, %v9718, %v9715
    %9721 = vrot.lane.b32.xlu0 %v9720, 8
    %v9722 = vpop.permute.xlu0 %9721
    %vm9723 = vcmask 130112
    %s9724 = scalar_lea.vmem [#allocation0], 72
    %9725 = vst.msk [vmem:[%s9724] sm:$0xff] %vm9723, %v9722
    %s9726 = scalar_lea.vmem [#allocation1], 1665
    %s9727 = smov 3
    %v9728 = vld [vmem:[%s9726] ss:$16 sm:%s9727]
    %s9729 = scalar_lea.vmem [#allocation1], 1665
    %s9730 = smov 12
    %v9731 = vld [vmem:[%s9729] ss:$16 sm:%s9730]
    %vm9732 = vcmask 1043458
    %v9733 = vsel %vm9732, %v9731, %v9728
    %s9734 = scalar_lea.vmem [#allocation1], 1665
    %s9735 = smov 48
    %v9736 = vld [vmem:[%s9734] ss:$16 sm:%s9735]
    %vm9737 = vcmask 1045508
    %v9738 = vsel %vm9737, %v9736, %v9733
    %s9739 = scalar_lea.vmem [#allocation1], 1665
    %s9740 = smov 192
    %v9741 = vld [vmem:[%s9739] ss:$16 sm:%s9740]
    %vm9742 = vcmask 1047558
    %v9743 = vsel %vm9742, %v9741, %v9738
    %9744 = vrot.lane.b32.xlu0 %v9743, 8
    %v9745 = vpop.permute.xlu0 %9744
    %vm9746 = vcmask 130112
    %s9747 = scalar_lea.vmem [#allocation0], 104
    %9748 = vst.msk [vmem:[%s9747] sm:$0xff] %vm9746, %v9745
    %s9749 = scalar_lea.vmem [#allocation1], 257
    %s9750 = smov 3
    %v9751 = vld [vmem:[%s9749] ss:$16 sm:%s9750]
    %s9752 = scalar_lea.vmem [#allocation1], 257
    %s9753 = smov 12
    %v9754 = vld [vmem:[%s9752] ss:$16 sm:%s9753]
    %vm9755 = vcmask 1043458
    %v9756 = vsel %vm9755, %v9754, %v9751
    %s9757 = scalar_lea.vmem [#allocation1], 257
    %s9758 = smov 48
    %v9759 = vld [vmem:[%s9757] ss:$16 sm:%s9758]
    %vm9760 = vcmask 1045508
    %v9761 = vsel %vm9760, %v9759, %v9756
    %s9762 = scalar_lea.vmem [#allocation1], 257
    %s9763 = smov 192
    %v9764 = vld [vmem:[%s9762] ss:$16 sm:%s9763]
    %vm9765 = vcmask 1047558
    %v9766 = vsel %vm9765, %v9764, %v9761
    %9767 = vrot.lane.b32.xlu0 %v9766, 8
    %v9768 = vpop.permute.xlu0 %9767
    %vm9769 = vcmask 130112
    %s9770 = scalar_lea.vmem [#allocation0], 16
    %9771 = vst.msk [vmem:[%s9770] sm:$0xff] %vm9769, %v9768
    %s9772 = scalar_lea.vmem [#allocation1], 769
    %s9773 = smov 3
    %v9774 = vld [vmem:[%s9772] ss:$16 sm:%s9773]
    %s9775 = scalar_lea.vmem [#allocation1], 769
    %s9776 = smov 12
    %v9777 = vld [vmem:[%s9775] ss:$16 sm:%s9776]
    %vm9778 = vcmask 1043458
    %v9779 = vsel %vm9778, %v9777, %v9774
    %s9780 = scalar_lea.vmem [#allocation1], 769
    %s9781 = smov 48
    %v9782 = vld [vmem:[%s9780] ss:$16 sm:%s9781]
    %vm9783 = vcmask 1045508
    %v9784 = vsel %vm9783, %v9782, %v9779
    %s9785 = scalar_lea.vmem [#allocation1], 769
    %s9786 = smov 192
    %v9787 = vld [vmem:[%s9785] ss:$16 sm:%s9786]
    %vm9788 = vcmask 1047558
    %v9789 = vsel %vm9788, %v9787, %v9784
    %9790 = vrot.lane.b32.xlu0 %v9789, 8
    %v9791 = vpop.permute.xlu0 %9790
    %vm9792 = vcmask 130112
    %s9793 = scalar_lea.vmem [#allocation0], 48
    %9794 = vst.msk [vmem:[%s9793] sm:$0xff] %vm9792, %v9791
    %s9795 = scalar_lea.vmem [#allocation1], 1281
    %s9796 = smov 3
    %v9797 = vld [vmem:[%s9795] ss:$16 sm:%s9796]
    %s9798 = scalar_lea.vmem [#allocation1], 1281
    %s9799 = smov 12
    %v9800 = vld [vmem:[%s9798] ss:$16 sm:%s9799]
    %vm9801 = vcmask 1043458
    %v9802 = vsel %vm9801, %v9800, %v9797
    %s9803 = scalar_lea.vmem [#allocation1], 1281
    %s9804 = smov 48
    %v9805 = vld [vmem:[%s9803] ss:$16 sm:%s9804]
    %vm9806 = vcmask 1045508
    %v9807 = vsel %vm9806, %v9805, %v9802
    %s9808 = scalar_lea.vmem [#allocation1], 1281
    %s9809 = smov 192
    %v9810 = vld [vmem:[%s9808] ss:$16 sm:%s9809]
    %vm9811 = vcmask 1047558
    %v9812 = vsel %vm9811, %v9810, %v9807
    %9813 = vrot.lane.b32.xlu0 %v9812, 8
    %v9814 = vpop.permute.xlu0 %9813
    %vm9815 = vcmask 130112
    %s9816 = scalar_lea.vmem [#allocation0], 80
    %9817 = vst.msk [vmem:[%s9816] sm:$0xff] %vm9815, %v9814
    %s9818 = scalar_lea.vmem [#allocation1], 1793
    %s9819 = smov 3
    %v9820 = vld [vmem:[%s9818] ss:$16 sm:%s9819]
    %s9821 = scalar_lea.vmem [#allocation1], 1793
    %s9822 = smov 12
    %v9823 = vld [vmem:[%s9821] ss:$16 sm:%s9822]
    %vm9824 = vcmask 1043458
    %v9825 = vsel %vm9824, %v9823, %v9820
    %s9826 = scalar_lea.vmem [#allocation1], 1793
    %s9827 = smov 48
    %v9828 = vld [vmem:[%s9826] ss:$16 sm:%s9827]
    %vm9829 = vcmask 1045508
    %v9830 = vsel %vm9829, %v9828, %v9825
    %s9831 = scalar_lea.vmem [#allocation1], 1793
    %s9832 = smov 192
    %v9833 = vld [vmem:[%s9831] ss:$16 sm:%s9832]
    %vm9834 = vcmask 1047558
    %v9835 = vsel %vm9834, %v9833, %v9830
    %9836 = vrot.lane.b32.xlu0 %v9835, 8
    %v9837 = vpop.permute.xlu0 %9836
    %vm9838 = vcmask 130112
    %s9839 = scalar_lea.vmem [#allocation0], 112
    %9840 = vst.msk [vmem:[%s9839] sm:$0xff] %vm9838, %v9837
    %s9841 = scalar_lea.vmem [#allocation1], 385
    %s9842 = smov 3
    %v9843 = vld [vmem:[%s9841] ss:$16 sm:%s9842]
    %s9844 = scalar_lea.vmem [#allocation1], 385
    %s9845 = smov 12
    %v9846 = vld [vmem:[%s9844] ss:$16 sm:%s9845]
    %vm9847 = vcmask 1043458
    %v9848 = vsel %vm9847, %v9846, %v9843
    %s9849 = scalar_lea.vmem [#allocation1], 385
    %s9850 = smov 48
    %v9851 = vld [vmem:[%s9849] ss:$16 sm:%s9850]
    %vm9852 = vcmask 1045508
    %v9853 = vsel %vm9852, %v9851, %v9848
    %s9854 = scalar_lea.vmem [#allocation1], 385
    %s9855 = smov 192
    %v9856 = vld [vmem:[%s9854] ss:$16 sm:%s9855]
    %vm9857 = vcmask 1047558
    %v9858 = vsel %vm9857, %v9856, %v9853
    %9859 = vrot.lane.b32.xlu0 %v9858, 8
    %v9860 = vpop.permute.xlu0 %9859
    %vm9861 = vcmask 130112
    %s9862 = scalar_lea.vmem [#allocation0], 24
    %9863 = vst.msk [vmem:[%s9862] sm:$0xff] %vm9861, %v9860
    %s9864 = scalar_lea.vmem [#allocation1], 897
    %s9865 = smov 3
    %v9866 = vld [vmem:[%s9864] ss:$16 sm:%s9865]
    %s9867 = scalar_lea.vmem [#allocation1], 897
    %s9868 = smov 12
    %v9869 = vld [vmem:[%s9867] ss:$16 sm:%s9868]
    %vm9870 = vcmask 1043458
    %v9871 = vsel %vm9870, %v9869, %v9866
    %s9872 = scalar_lea.vmem [#allocation1], 897
    %s9873 = smov 48
    %v9874 = vld [vmem:[%s9872] ss:$16 sm:%s9873]
    %vm9875 = vcmask 1045508
    %v9876 = vsel %vm9875, %v9874, %v9871
    %s9877 = scalar_lea.vmem [#allocation1], 897
    %s9878 = smov 192
    %v9879 = vld [vmem:[%s9877] ss:$16 sm:%s9878]
    %vm9880 = vcmask 1047558
    %v9881 = vsel %vm9880, %v9879, %v9876
    %9882 = vrot.lane.b32.xlu0 %v9881, 8
    %v9883 = vpop.permute.xlu0 %9882
    %vm9884 = vcmask 130112
    %s9885 = scalar_lea.vmem [#allocation0], 56
    %9886 = vst.msk [vmem:[%s9885] sm:$0xff] %vm9884, %v9883
    %s9887 = scalar_lea.vmem [#allocation1], 1409
    %s9888 = smov 3
    %v9889 = vld [vmem:[%s9887] ss:$16 sm:%s9888]
    %s9890 = scalar_lea.vmem [#allocation1], 1409
    %s9891 = smov 12
    %v9892 = vld [vmem:[%s9890] ss:$16 sm:%s9891]
    %vm9893 = vcmask 1043458
    %v9894 = vsel %vm9893, %v9892, %v9889
    %s9895 = scalar_lea.vmem [#allocation1], 1409
    %s9896 = smov 48
    %v9897 = vld [vmem:[%s9895] ss:$16 sm:%s9896]
    %vm9898 = vcmask 1045508
    %v9899 = vsel %vm9898, %v9897, %v9894
    %s9900 = scalar_lea.vmem [#allocation1], 1409
    %s9901 = smov 192
    %v9902 = vld [vmem:[%s9900] ss:$16 sm:%s9901]
    %vm9903 = vcmask 1047558
    %v9904 = vsel %vm9903, %v9902, %v9899
    %9905 = vrot.lane.b32.xlu0 %v9904, 8
    %v9906 = vpop.permute.xlu0 %9905
    %vm9907 = vcmask 130112
    %s9908 = scalar_lea.vmem [#allocation0], 88
    %9909 = vst.msk [vmem:[%s9908] sm:$0xff] %vm9907, %v9906
    %s9910 = scalar_lea.vmem [#allocation1], 1921
    %s9911 = smov 3
    %v9912 = vld [vmem:[%s9910] ss:$16 sm:%s9911]
    %s9913 = scalar_lea.vmem [#allocation1], 1921
    %s9914 = smov 12
    %v9915 = vld [vmem:[%s9913] ss:$16 sm:%s9914]
    %vm9916 = vcmask 1043458
    %v9917 = vsel %vm9916, %v9915, %v9912
    %s9918 = scalar_lea.vmem [#allocation1], 1921
    %s9919 = smov 48
    %v9920 = vld [vmem:[%s9918] ss:$16 sm:%s9919]
    %vm9921 = vcmask 1045508
    %v9922 = vsel %vm9921, %v9920, %v9917
    %s9923 = scalar_lea.vmem [#allocation1], 1921
    %s9924 = smov 192
    %v9925 = vld [vmem:[%s9923] ss:$16 sm:%s9924]
    %vm9926 = vcmask 1047558
    %v9927 = vsel %vm9926, %v9925, %v9922
    %9928 = vrot.lane.b32.xlu0 %v9927, 8
    %v9929 = vpop.permute.xlu0 %9928
    %vm9930 = vcmask 130112
    %s9931 = scalar_lea.vmem [#allocation0], 120
    %9932 = vst.msk [vmem:[%s9931] sm:$0xff] %vm9930, %v9929
    %s9934 = smul.u32 4, 2
    %s9935 = sshllo.u32 0, %s9934
    %s9936 = sshrl.u32 %s9934, 1
    %v9937 = vld [vmem:[#allocation0] sm:%s9935]
    %v9938 = vpack.c.bf16 0.0, %v9937
    %s9939 = sshllo.u32 0, %s9936
    %9940 = vst [vmem:[%s1] sm:%s9939] %v9938
    %s9941 = scalar_lea.vmem [#allocation0], 8
    %v9942 = vld [vmem:[%s9941] sm:%s9935]
    %v9943 = vpack.c.bf16 0.0, %v9942
    %s9944 = sshllo.u32 0, %s9936
    %s9945 = scalar_lea.vmem %s1, 4
    %9946 = vst [vmem:[%s9945] sm:%s9944] %v9943
    %s9947 = scalar_lea.vmem [#allocation0], 16
    %v9948 = vld [vmem:[%s9947] sm:%s9935]
    %v9949 = vpack.c.bf16 0.0, %v9948
    %s9950 = sshllo.u32 0, %s9936
    %s9951 = smul.addr 4, 2
    %s9952 = scalar_lea.vmem %s1, %s9951
    %9953 = vst [vmem:[%s9952] sm:%s9950] %v9949
    %s9954 = scalar_lea.vmem [#allocation0], 24
    %v9955 = vld [vmem:[%s9954] sm:%s9935]
    %v9956 = vpack.c.bf16 0.0, %v9955
    %s9957 = sshllo.u32 0, %s9936
    %s9958 = smul.addr 4, 3
    %s9959 = scalar_lea.vmem %s1, %s9958
    %9960 = vst [vmem:[%s9959] sm:%s9957] %v9956
    %s9961 = scalar_lea.vmem [#allocation0], 32
    %v9962 = vld [vmem:[%s9961] sm:%s9935]
    %v9963 = vpack.c.bf16 0.0, %v9962
    %s9964 = sshllo.u32 0, %s9936
    %s9965 = smul.addr 4, 4
    %s9966 = scalar_lea.vmem %s1, %s9965
    %9967 = vst [vmem:[%s9966] sm:%s9964] %v9963
    %s9968 = scalar_lea.vmem [#allocation0], 40
    %v9969 = vld [vmem:[%s9968] sm:%s9935]
    %v9970 = vpack.c.bf16 0.0, %v9969
    %s9971 = sshllo.u32 0, %s9936
    %s9972 = smul.addr 4, 5
    %s9973 = scalar_lea.vmem %s1, %s9972
    %9974 = vst [vmem:[%s9973] sm:%s9971] %v9970
    %s9975 = scalar_lea.vmem [#allocation0], 48
    %v9976 = vld [vmem:[%s9975] sm:%s9935]
    %v9977 = vpack.c.bf16 0.0, %v9976
    %s9978 = sshllo.u32 0, %s9936
    %s9979 = smul.addr 4, 6
    %s9980 = scalar_lea.vmem %s1, %s9979
    %9981 = vst [vmem:[%s9980] sm:%s9978] %v9977
    %s9982 = scalar_lea.vmem [#allocation0], 56
    %v9983 = vld [vmem:[%s9982] sm:%s9935]
    %v9984 = vpack.c.bf16 0.0, %v9983
    %s9985 = sshllo.u32 0, %s9936
    %s9986 = smul.addr 4, 7
    %s9987 = scalar_lea.vmem %s1, %s9986
    %9988 = vst [vmem:[%s9987] sm:%s9985] %v9984
    %s9989 = scalar_lea.vmem [#allocation0], 64
    %v9990 = vld [vmem:[%s9989] sm:%s9935]
    %v9991 = vpack.c.bf16 0.0, %v9990
    %s9992 = sshllo.u32 0, %s9936
    %s9993 = smul.addr 4, 8
    %s9994 = scalar_lea.vmem %s1, %s9993
    %9995 = vst [vmem:[%s9994] sm:%s9992] %v9991
    %s9996 = scalar_lea.vmem [#allocation0], 72
    %v9997 = vld [vmem:[%s9996] sm:%s9935]
    %v9998 = vpack.c.bf16 0.0, %v9997
    %s9999 = sshllo.u32 0, %s9936
    %s10000 = smul.addr 4, 9
    %s10001 = scalar_lea.vmem %s1, %s10000
    %10002 = vst [vmem:[%s10001] sm:%s9999] %v9998
    %s10003 = scalar_lea.vmem [#allocation0], 80
    %v10004 = vld [vmem:[%s10003] sm:%s9935]
    %v10005 = vpack.c.bf16 0.0, %v10004
    %s10006 = sshllo.u32 0, %s9936
    %s10007 = smul.addr 4, 10
    %s10008 = scalar_lea.vmem %s1, %s10007
    %10009 = vst [vmem:[%s10008] sm:%s10006] %v10005
    %s10010 = scalar_lea.vmem [#allocation0], 88
    %v10011 = vld [vmem:[%s10010] sm:%s9935]
    %v10012 = vpack.c.bf16 0.0, %v10011
    %s10013 = sshllo.u32 0, %s9936
    %s10014 = smul.addr 4, 11
    %s10015 = scalar_lea.vmem %s1, %s10014
    %10016 = vst [vmem:[%s10015] sm:%s10013] %v10012
    %s10017 = scalar_lea.vmem [#allocation0], 96
    %v10018 = vld [vmem:[%s10017] sm:%s9935]
    %v10019 = vpack.c.bf16 0.0, %v10018
    %s10020 = sshllo.u32 0, %s9936
    %s10021 = smul.addr 4, 12
    %s10022 = scalar_lea.vmem %s1, %s10021
    %10023 = vst [vmem:[%s10022] sm:%s10020] %v10019
    %s10024 = scalar_lea.vmem [#allocation0], 104
    %v10025 = vld [vmem:[%s10024] sm:%s9935]
    %v10026 = vpack.c.bf16 0.0, %v10025
    %s10027 = sshllo.u32 0, %s9936
    %s10028 = smul.addr 4, 13
    %s10029 = scalar_lea.vmem %s1, %s10028
    %10030 = vst [vmem:[%s10029] sm:%s10027] %v10026
    %s10031 = scalar_lea.vmem [#allocation0], 112
    %v10032 = vld [vmem:[%s10031] sm:%s9935]
    %v10033 = vpack.c.bf16 0.0, %v10032
    %s10034 = sshllo.u32 0, %s9936
    %s10035 = smul.addr 4, 14
    %s10036 = scalar_lea.vmem %s1, %s10035
    %10037 = vst [vmem:[%s10036] sm:%s10034] %v10033
    %s10038 = scalar_lea.vmem [#allocation0], 120
    %v10039 = vld [vmem:[%s10038] sm:%s9935]
    %v10040 = vpack.c.bf16 0.0, %v10039
    %s10041 = sshllo.u32 0, %s9936
    %s10042 = smul.addr 4, 15
    %s10043 = scalar_lea.vmem %s1, %s10042
    %10044 = vst [vmem:[%s10043] sm:%s10041] %v10040

// kernel: tile.38
$region0: #{tile.38}
  #allocation0 [shape = 's32[1]{0}', space=sflag, size = 0x4, scoped, tag = 'scoped memory for tile.38']
  %s0 = inlined_call_operand.vmem [shape: f32[8], index: 0, kind: input, shape index: {}]
  %s1 = inlined_call_operand.vmem [shape: f32[16,8], index: 1, kind: output, shape index: {}]
  // Predicated region
  $region2: #{tile.38} parent=0 // pred_check
    _
  $region3: #{tile.38} parent=0 // pred_check_branch
    %3 = sbr.rel (0) target = $region5
  $region4: #{tile.38} parent=0 // pred_region
    _
  $region5: #{tile.38} parent=0 // pred_fallthru
    _
  %v4 = vld [vmem:[%s0] ss:$0 sm:$0xff]
  %5 = vst [vmem:[%s1] sm:$0xff] %v4
  %s6 = scalar_lea.vmem %s1, 8
  %7 = vst [vmem:[%s6] sm:$0xff] %v4

// kernel: tile.39
$region0: #{tile.39}
  %s0 = inlined_call_operand.vmem [shape: f32[16,8], index: 0, kind: input, shape index: {}]
  %s1 = inlined_call_operand.vmem [shape: f32[1,128], index: 1, kind: output, shape index: {}]
  $region1: #{tile.39} parent=0
    #allocation0 [shape = 'u8[4096]{0}', space=vmem, size = 0x1000, scoped, tag = 'scoped mem for output reshape']
    %v2 = vld [vmem:[%s0] sm:$0x1]
    %vm3 = vcmask 64512
    %4 = vst.msk [vmem:[#allocation0] sm:$0x1] %vm3, %v2
    %s5 = scalar_lea.vmem %s0, 15
    %v6 = vld [vmem:[%s5] sm:$0x1]
    %7 = vrot.lane.b32.xlu0 %v6, 120
    %v8 = vpop.permute.xlu0 %7
    %vm9 = vcmask 1048512
    %10 = vst.msk [vmem:[#allocation0] sm:$0x1] %vm9, %v8
    %s11 = scalar_lea.vmem %s0, 14
    %v12 = vld [vmem:[%s11] sm:$0x1]
    %13 = vrot.lane.b32.xlu0 %v12, 112
    %v14 = vpop.permute.xlu0 %13
    %vm15 = vcmask 982912
    %16 = vst.msk [vmem:[#allocation0] sm:$0x1] %vm15, %v14
    %s17 = scalar_lea.vmem %s0, 13
    %v18 = vld [vmem:[%s17] sm:$0x1]
    %19 = vrot.lane.b32.xlu0 %v18, 104
    %v20 = vpop.permute.xlu0 %19
    %vm21 = vcmask 917312
    %22 = vst.msk [vmem:[#allocation0] sm:$0x1] %vm21, %v20
    %s23 = scalar_lea.vmem %s0, 12
    %v24 = vld [vmem:[%s23] sm:$0x1]
    %25 = vrot.lane.b32.xlu0 %v24, 96
    %v26 = vpop.permute.xlu0 %25
    %vm27 = vcmask 851712
    %28 = vst.msk [vmem:[#allocation0] sm:$0x1] %vm27, %v26
    %s29 = scalar_lea.vmem %s0, 11
    %v30 = vld [vmem:[%s29] sm:$0x1]
    %31 = vrot.lane.b32.xlu0 %v30, 88
    %v32 = vpop.permute.xlu0 %31
    %vm33 = vcmask 786112
    %34 = vst.msk [vmem:[#allocation0] sm:$0x1] %vm33, %v32
    %s35 = scalar_lea.vmem %s0, 10
    %v36 = vld [vmem:[%s35] sm:$0x1]
    %37 = vrot.lane.b32.xlu0 %v36, 80
    %v38 = vpop.permute.xlu0 %37
    %vm39 = vcmask 720512
    %40 = vst.msk [vmem:[#allocation0] sm:$0x1] %vm39, %v38
    %s41 = scalar_lea.vmem %s0, 9
    %v42 = vld [vmem:[%s41] sm:$0x1]
    %43 = vrot.lane.b32.xlu0 %v42, 72
    %v44 = vpop.permute.xlu0 %43
    %vm45 = vcmask 654912
    %46 = vst.msk [vmem:[#allocation0] sm:$0x1] %vm45, %v44
    %s47 = scalar_lea.vmem %s0, 8
    %v48 = vld [vmem:[%s47] sm:$0x1]
    %49 = vrot.lane.b32.xlu0 %v48, 64
    %v50 = vpop.permute.xlu0 %49
    %vm51 = vcmask 589312
    %52 = vst.msk [vmem:[#allocation0] sm:$0x1] %vm51, %v50
    %s53 = scalar_lea.vmem %s0, 7
    %v54 = vld [vmem:[%s53] sm:$0x1]
    %55 = vrot.lane.b32.xlu0 %v54, 56
    %v56 = vpop.permute.xlu0 %55
    %vm57 = vcmask 523712
    %58 = vst.msk [vmem:[#allocation0] sm:$0x1] %vm57, %v56
    %s59 = scalar_lea.vmem %s0, 6
    %v60 = vld [vmem:[%s59] sm:$0x1]
    %61 = vrot.lane.b32.xlu0 %v60, 48
    %v62 = vpop.permute.xlu0 %61
    %vm63 = vcmask 458112
    %64 = vst.msk [vmem:[#allocation0] sm:$0x1] %vm63, %v62
    %s65 = scalar_lea.vmem %s0, 5
    %v66 = vld [vmem:[%s65] sm:$0x1]
    %67 = vrot.lane.b32.xlu0 %v66, 40
    %v68 = vpop.permute.xlu0 %67
    %vm69 = vcmask 392512
    %70 = vst.msk [vmem:[#allocation0] sm:$0x1] %vm69, %v68
    %s71 = scalar_lea.vmem %s0, 4
    %v72 = vld [vmem:[%s71] sm:$0x1]
    %73 = vrot.lane.b32.xlu0 %v72, 32
    %v74 = vpop.permute.xlu0 %73
    %vm75 = vcmask 326912
    %76 = vst.msk [vmem:[#allocation0] sm:$0x1] %vm75, %v74
    %s77 = scalar_lea.vmem %s0, 3
    %v78 = vld [vmem:[%s77] sm:$0x1]
    %79 = vrot.lane.b32.xlu0 %v78, 24
    %v80 = vpop.permute.xlu0 %79
    %vm81 = vcmask 261312
    %82 = vst.msk [vmem:[#allocation0] sm:$0x1] %vm81, %v80
    %s83 = scalar_lea.vmem %s0, 2
    %v84 = vld [vmem:[%s83] sm:$0x1]
    %85 = vrot.lane.b32.xlu0 %v84, 16
    %v86 = vpop.permute.xlu0 %85
    %vm87 = vcmask 195712
    %88 = vst.msk [vmem:[#allocation0] sm:$0x1] %vm87, %v86
    %s89 = scalar_lea.vmem %s0, 1
    %v90 = vld [vmem:[%s89] sm:$0x1]
    %91 = vrot.lane.b32.xlu0 %v90, 8
    %v92 = vpop.permute.xlu0 %91
    %vm93 = vcmask 130112
    %94 = vst.msk [vmem:[#allocation0] sm:$0x1] %vm93, %v92
    %s96 = sshllo.u32 0, 1
    %v98 = vld [vmem:[#allocation0] sm:%s96]
    %s99 = sshllo.u32 0, 1
    %100 = vst [vmem:[%s1] sm:%s99] %v98

// kernel: bridge_forward.1
$region0: #{bridge_forward.1}
  #allocation0 [shape = 'u32[]', space=smem, size = 0x4, offset = 0x4, fixed_abs, tag = 'smem constant byte address 0x4 - core index']
  #allocation1 [shape = 'u32[144,128]{1,0:T(1,128)}', space=vmem, size = 0x12000, scoped, tag = 'internal scratch']
  %s0 = inlined_call_operand.vmem [shape: bf16[32,128], index: 0, kind: input, shape index: {}]
  %s1 = inlined_call_operand.vmem [shape: bf16[128,384], index: 1, kind: input, shape index: {}]
  %s2 = inlined_call_operand.vmem [shape: bf16[128,384], index: 2, kind: input, shape index: {}]
  %s3 = inlined_call_operand.vmem [shape: f32[1,128], index: 3, kind: input, shape index: {}]
  %s4 = inlined_call_operand.vmem [shape: f32[1,128], index: 4, kind: input, shape index: {}]
  %s5 = inlined_call_operand.vmem [shape: f32[1,128], index: 5, kind: input, shape index: {}]
  %s6 = inlined_call_operand.vmem [shape: f32[1,128], index: 6, kind: input, shape index: {}]
  %s7 = inlined_call_operand.vmem [shape: f32[256,256], index: 7, kind: input, shape index: {}]
  %s8 = inlined_call_operand.vmem [shape: f32[32,1], index: 8, kind: input, shape index: {}]
  %s9 = inlined_call_operand.vmem [shape: f32[32,1], index: 9, kind: input, shape index: {}]
  %s10 = inlined_call_operand.vmem [shape: f32[32,128], index: 10, kind: output, shape index: {}]
  %s11 = sld [smem:[#allocation0]]
  $region50: #{bridge_forward.1} parent=0
    _
  %s13 = ssub.s32 1, %s11
  %s14 = scalar_select 0, %s13, %s11
  // Predicated region
  $region2: #{bridge_forward.1} parent=0 // pred_check
    _
  $region3: #{bridge_forward.1} parent=0 // pred_check_branch
    %16 = sbr.rel (0) target = $region5
  $region4: #{bridge_forward.1} parent=0 // pred_region
    _
  $region5: #{bridge_forward.1} parent=0 // pred_fallthru
    _
  // Predicated region
  $region6: #{bridge_forward.1} parent=0 // pred_check
    _
  $region7: #{bridge_forward.1} parent=0 // pred_check_branch
    %18 = sbr.rel (0) target = $region9
  $region8: #{bridge_forward.1} parent=0 // pred_region
    _
  $region9: #{bridge_forward.1} parent=0 // pred_fallthru
    _
  // Predicated region
  $region10: #{bridge_forward.1} parent=0 // pred_check
    _
  $region11: #{bridge_forward.1} parent=0 // pred_check_branch
    %20 = sbr.rel (0) target = $region13
  $region12: #{bridge_forward.1} parent=0 // pred_region
    _
  $region13: #{bridge_forward.1} parent=0 // pred_fallthru
    _
  // Predicated region
  $region14: #{bridge_forward.1} parent=0 // pred_check
    _
  $region15: #{bridge_forward.1} parent=0 // pred_check_branch
    %22 = sbr.rel (0) target = $region17
  $region16: #{bridge_forward.1} parent=0 // pred_region
    _
  $region17: #{bridge_forward.1} parent=0 // pred_fallthru
    _
  // Predicated region
  $region18: #{bridge_forward.1} parent=0 // pred_check
    _
  $region19: #{bridge_forward.1} parent=0 // pred_check_branch
    %24 = sbr.rel (0) target = $region21
  $region20: #{bridge_forward.1} parent=0 // pred_region
    _
  $region21: #{bridge_forward.1} parent=0 // pred_fallthru
    _
  // Predicated region
  $region22: #{bridge_forward.1} parent=0 // pred_check
    _
  $region23: #{bridge_forward.1} parent=0 // pred_check_branch
    %26 = sbr.rel (0) target = $region25
  $region24: #{bridge_forward.1} parent=0 // pred_region
    _
  $region25: #{bridge_forward.1} parent=0 // pred_fallthru
    _
  // Predicated region
  $region26: #{bridge_forward.1} parent=0 // pred_check
    _
  $region27: #{bridge_forward.1} parent=0 // pred_check_branch
    %28 = sbr.rel (0) target = $region29
  $region28: #{bridge_forward.1} parent=0 // pred_region
    _
  $region29: #{bridge_forward.1} parent=0 // pred_fallthru
    _
  // Predicated region
  $region30: #{bridge_forward.1} parent=0 // pred_check
    _
  $region31: #{bridge_forward.1} parent=0 // pred_check_branch
    %30 = sbr.rel (0) target = $region33
  $region32: #{bridge_forward.1} parent=0 // pred_region
    _
  $region33: #{bridge_forward.1} parent=0 // pred_fallthru
    _
  // Predicated region
  $region34: #{bridge_forward.1} parent=0 // pred_check
    _
  $region35: #{bridge_forward.1} parent=0 // pred_check_branch
    %32 = sbr.rel (0) target = $region37
  $region36: #{bridge_forward.1} parent=0 // pred_region
    _
  $region37: #{bridge_forward.1} parent=0 // pred_fallthru
    _
  // Predicated region
  $region38: #{bridge_forward.1} parent=0 // pred_check
    _
  $region39: #{bridge_forward.1} parent=0 // pred_check_branch
    %34 = sbr.rel (0) target = $region41
  $region40: #{bridge_forward.1} parent=0 // pred_region
    _
  $region41: #{bridge_forward.1} parent=0 // pred_fallthru
    _
  %v36 = vld [vmem:[%s8] sm:$0xff]
  %v37 = vld [vmem:[%s8 + $0x8] sm:$0xff]
  %v38 = vld [vmem:[%s8 + $0x10] sm:$0xff]
  %v39 = vld [vmem:[%s8 + $0x18] sm:$0xff]
  %v40 = vld [vmem:[%s9] sm:$0xff]
  %v41 = vld [vmem:[%s9 + $0x8] sm:$0xff]
  %v42 = vld [vmem:[%s9 + $0x10] sm:$0xff]
  %v43 = vld [vmem:[%s9 + $0x18] sm:$0xff]
  %v44 = vld [vmem:[%s7] sm:$0xff]
  %v45 = vld [vmem:[%s7 + $0x8] sm:$0xff]
  %v46 = vld [vmem:[%s7 + $0x10] sm:$0xff]
  %v47 = vld [vmem:[%s7 + $0x18] sm:$0xff]
  %v48 = vld [vmem:[%s7 + $0x20] sm:$0xff]
  %v49 = vld [vmem:[%s7 + $0x28] sm:$0xff]
  %v50 = vld [vmem:[%s7 + $0x30] sm:$0xff]
  %v51 = vld [vmem:[%s7 + $0x38] sm:$0xff]
  %v52 = vld [vmem:[%s7 + $0x40] sm:$0xff]
  %v53 = vld [vmem:[%s7 + $0x48] sm:$0xff]
  %v54 = vld [vmem:[%s7 + $0x50] sm:$0xff]
  %v55 = vld [vmem:[%s7 + $0x58] sm:$0xff]
  %v56 = vld [vmem:[%s7 + $0x60] sm:$0xff]
  %v57 = vld [vmem:[%s7 + $0x68] sm:$0xff]
  %v58 = vld [vmem:[%s7 + $0x70] sm:$0xff]
  %v59 = vld [vmem:[%s7 + $0x78] sm:$0xff]
  %v60 = vld [vmem:[%s7 + $0x80] sm:$0xff]
  %v61 = vld [vmem:[%s7 + $0x88] sm:$0xff]
  %v62 = vld [vmem:[%s7 + $0x90] sm:$0xff]
  %v63 = vld [vmem:[%s7 + $0x98] sm:$0xff]
  %v64 = vld [vmem:[%s7 + $0xa0] sm:$0xff]
  %v65 = vld [vmem:[%s7 + $0xa8] sm:$0xff]
  %v66 = vld [vmem:[%s7 + $0xb0] sm:$0xff]
  %v67 = vld [vmem:[%s7 + $0xb8] sm:$0xff]
  %v68 = vld [vmem:[%s7 + $0xc0] sm:$0xff]
  %v69 = vld [vmem:[%s7 + $0xc8] sm:$0xff]
  %v70 = vld [vmem:[%s7 + $0xd0] sm:$0xff]
  %v71 = vld [vmem:[%s7 + $0xd8] sm:$0xff]
  %v72 = vld [vmem:[%s7 + $0xe0] sm:$0xff]
  %v73 = vld [vmem:[%s7 + $0xe8] sm:$0xff]
  %v74 = vld [vmem:[%s7 + $0xf0] sm:$0xff]
  %v75 = vld [vmem:[%s7 + $0xf8] sm:$0xff]
  %v76 = vld [vmem:[%s7 + $0x100] sm:$0xff]
  %v77 = vld [vmem:[%s7 + $0x108] sm:$0xff]
  %v78 = vld [vmem:[%s7 + $0x110] sm:$0xff]
  %v79 = vld [vmem:[%s7 + $0x118] sm:$0xff]
  %v80 = vld [vmem:[%s7 + $0x120] sm:$0xff]
  %v81 = vld [vmem:[%s7 + $0x128] sm:$0xff]
  %v82 = vld [vmem:[%s7 + $0x130] sm:$0xff]
  %v83 = vld [vmem:[%s7 + $0x138] sm:$0xff]
  %v84 = vld [vmem:[%s7 + $0x140] sm:$0xff]
  %v85 = vld [vmem:[%s7 + $0x148] sm:$0xff]
  %v86 = vld [vmem:[%s7 + $0x150] sm:$0xff]
  %v87 = vld [vmem:[%s7 + $0x158] sm:$0xff]
  %v88 = vld [vmem:[%s7 + $0x160] sm:$0xff]
  %v89 = vld [vmem:[%s7 + $0x168] sm:$0xff]
  %v90 = vld [vmem:[%s7 + $0x170] sm:$0xff]
  %v91 = vld [vmem:[%s7 + $0x178] sm:$0xff]
  %v92 = vld [vmem:[%s7 + $0x180] sm:$0xff]
  %v93 = vld [vmem:[%s7 + $0x188] sm:$0xff]
  %v94 = vld [vmem:[%s7 + $0x190] sm:$0xff]
  %v95 = vld [vmem:[%s7 + $0x198] sm:$0xff]
  %v96 = vld [vmem:[%s7 + $0x1a0] sm:$0xff]
  %v97 = vld [vmem:[%s7 + $0x1a8] sm:$0xff]
  %v98 = vld [vmem:[%s7 + $0x1b0] sm:$0xff]
  %v99 = vld [vmem:[%s7 + $0x1b8] sm:$0xff]
  %v100 = vld [vmem:[%s7 + $0x1c0] sm:$0xff]
  %v101 = vld [vmem:[%s7 + $0x1c8] sm:$0xff]
  %v102 = vld [vmem:[%s7 + $0x1d0] sm:$0xff]
  %v103 = vld [vmem:[%s7 + $0x1d8] sm:$0xff]
  %v104 = vld [vmem:[%s7 + $0x1e0] sm:$0xff]
  %v105 = vld [vmem:[%s7 + $0x1e8] sm:$0xff]
  %v106 = vld [vmem:[%s7 + $0x1f0] sm:$0xff]
  %v107 = vld [vmem:[%s7 + $0x1f8] sm:$0xff]
  %v108 = vld [vmem:[%s0] sm:$0xf]
  %v109 = vld [vmem:[%s0 + $0x4] sm:$0xf]
  %v110 = vld [vmem:[%s0 + $0x8] sm:$0xf]
  %v111 = vld [vmem:[%s0 + $0xc] sm:$0xf]
  %v112 = vld [vmem:[%s1] sm:$0xff]
  %v113 = vld [vmem:[%s1 + $0x8] sm:$0xf]
  %v114 = vld [vmem:[%s1 + $0xc] sm:$0xff]
  %v115 = vld [vmem:[%s1 + $0x14] sm:$0xf]
  %v116 = vld [vmem:[%s1 + $0x18] sm:$0xff]
  %v117 = vld [vmem:[%s1 + $0x20] sm:$0xf]
  %v118 = vld [vmem:[%s1 + $0x24] sm:$0xff]
  %v119 = vld [vmem:[%s1 + $0x2c] sm:$0xf]
  %v120 = vld [vmem:[%s1 + $0x30] sm:$0xff]
  %v121 = vld [vmem:[%s1 + $0x38] sm:$0xf]
  %v122 = vld [vmem:[%s1 + $0x3c] sm:$0xff]
  %v123 = vld [vmem:[%s1 + $0x44] sm:$0xf]
  %v124 = vld [vmem:[%s1 + $0x48] sm:$0xff]
  %v125 = vld [vmem:[%s1 + $0x50] sm:$0xf]
  %v126 = vld [vmem:[%s1 + $0x54] sm:$0xff]
  %v127 = vld [vmem:[%s1 + $0x5c] sm:$0xf]
  %v128 = vld [vmem:[%s1 + $0x60] sm:$0xff]
  %v129 = vld [vmem:[%s1 + $0x68] sm:$0xf]
  %v130 = vld [vmem:[%s1 + $0x6c] sm:$0xff]
  %v131 = vld [vmem:[%s1 + $0x74] sm:$0xf]
  %v132 = vld [vmem:[%s1 + $0x78] sm:$0xff]
  %v133 = vld [vmem:[%s1 + $0x80] sm:$0xf]
  %v134 = vld [vmem:[%s1 + $0x84] sm:$0xff]
  %v135 = vld [vmem:[%s1 + $0x8c] sm:$0xf]
  %v136 = vld [vmem:[%s1 + $0x90] sm:$0xff]
  %v137 = vld [vmem:[%s1 + $0x98] sm:$0xf]
  %v138 = vld [vmem:[%s1 + $0x9c] sm:$0xff]
  %v139 = vld [vmem:[%s1 + $0xa4] sm:$0xf]
  %v140 = vld [vmem:[%s1 + $0xa8] sm:$0xff]
  %v141 = vld [vmem:[%s1 + $0xb0] sm:$0xf]
  %v142 = vld [vmem:[%s1 + $0xb4] sm:$0xff]
  %v143 = vld [vmem:[%s1 + $0xbc] sm:$0xf]
  %v148 = vunpack.c.l.b16 %v108
  %v149 = vunpack.c.l.b16 %v109
  %v150 = vunpack.c.l.b16 %v110
  %v151 = vunpack.c.l.b16 %v111
  %v152 = vpack.c.b16 %v149, %v148
  %v153 = vpack.c.b16 %v151, %v150
  %v188 = vunpack.c.l.b16 %v112
  %v189 = vunpack.c.h.b16 %v112
  %v190 = vunpack.c.l.b16 %v113
  %v191 = vunpack.c.l.b16 %v114
  %v192 = vunpack.c.h.b16 %v114
  %v193 = vunpack.c.l.b16 %v115
  %v194 = vunpack.c.l.b16 %v116
  %v195 = vunpack.c.h.b16 %v116
  %v196 = vunpack.c.l.b16 %v117
  %v197 = vunpack.c.l.b16 %v118
  %v198 = vunpack.c.h.b16 %v118
  %v199 = vunpack.c.l.b16 %v119
  %v200 = vunpack.c.l.b16 %v120
  %v201 = vunpack.c.h.b16 %v120
  %v202 = vunpack.c.l.b16 %v121
  %v203 = vunpack.c.l.b16 %v122
  %v204 = vunpack.c.h.b16 %v122
  %v205 = vunpack.c.l.b16 %v123
  %v206 = vunpack.c.l.b16 %v124
  %v207 = vunpack.c.h.b16 %v124
  %v208 = vunpack.c.l.b16 %v125
  %v209 = vunpack.c.l.b16 %v126
  %v210 = vunpack.c.h.b16 %v126
  %v211 = vunpack.c.l.b16 %v127
  %v212 = vunpack.c.l.b16 %v128
  %v213 = vunpack.c.h.b16 %v128
  %v214 = vunpack.c.l.b16 %v129
  %v215 = vunpack.c.l.b16 %v130
  %v216 = vunpack.c.h.b16 %v130
  %v217 = vunpack.c.l.b16 %v131
  %v218 = vunpack.c.l.b16 %v132
  %v219 = vunpack.c.h.b16 %v132
  %v220 = vunpack.c.l.b16 %v133
  %v221 = vunpack.c.l.b16 %v134
  %v222 = vunpack.c.h.b16 %v134
  %v223 = vunpack.c.l.b16 %v135
  %v224 = vunpack.c.l.b16 %v136
  %v225 = vunpack.c.h.b16 %v136
  %v226 = vunpack.c.l.b16 %v137
  %v227 = vunpack.c.l.b16 %v138
  %v228 = vunpack.c.h.b16 %v138
  %v229 = vunpack.c.l.b16 %v139
  %v230 = vunpack.c.l.b16 %v140
  %v231 = vunpack.c.h.b16 %v140
  %v232 = vunpack.c.l.b16 %v141
  %v233 = vunpack.c.l.b16 %v142
  %v234 = vunpack.c.h.b16 %v142
  %v235 = vunpack.c.l.b16 %v143
  %v236 = vpack.c.b16 %v191, %v188
  %v237 = vpack.c.b16 %v192, %v189
  %v238 = vpack.c.b16 %v193, %v190
  %v239 = vpack.c.b16 %v197, %v194
  %v240 = vpack.c.b16 %v198, %v195
  %v241 = vpack.c.b16 %v199, %v196
  %v242 = vpack.c.b16 %v203, %v200
  %v243 = vpack.c.b16 %v204, %v201
  %v244 = vpack.c.b16 %v205, %v202
  %v245 = vpack.c.b16 %v209, %v206
  %v246 = vpack.c.b16 %v210, %v207
  %v247 = vpack.c.b16 %v211, %v208
  %v248 = vpack.c.b16 %v215, %v212
  %v249 = vpack.c.b16 %v216, %v213
  %v250 = vpack.c.b16 %v217, %v214
  %v251 = vpack.c.b16 %v221, %v218
  %v252 = vpack.c.b16 %v222, %v219
  %v253 = vpack.c.b16 %v223, %v220
  %v254 = vpack.c.b16 %v227, %v224
  %v255 = vpack.c.b16 %v228, %v225
  %v256 = vpack.c.b16 %v229, %v226
  %v257 = vpack.c.b16 %v233, %v230
  %v258 = vpack.c.b16 %v234, %v231
  %v259 = vpack.c.b16 %v235, %v232
  %284 = vmatprep.subr.bf16.mxu0 %v237
  %285 = vmatpush1.bf16.msra.mxu0 %v236
  %286 = vmatprep.subr.bf16.mxu0 %v240
  %287 = vmatpush1.bf16.msra.mxu0 %v239
  %288 = vmatprep.subr.bf16.mxu0 %v243
  %289 = vmatpush1.bf16.msra.mxu0 %v242
  %290 = vmatprep.subr.bf16.mxu0 %v246
  %291 = vmatpush1.bf16.msra.mxu0 %v245
  %292 = vmatprep.subr.bf16.mxu0 %v249
  %293 = vmatpush1.bf16.msra.mxu0 %v248
  %294 = vmatprep.subr.bf16.mxu0 %v252
  %295 = vmatpush1.bf16.msra.mxu0 %v251
  %296 = vmatprep.subr.bf16.mxu0 %v255
  %297 = vmatpush1.bf16.msra.mxu0 %v254
  %298 = vmatprep.subr.bf16.mxu0 %v258
  %299 = vmatpush1.bf16.msra.mxu0 %v257
  %300 = vmatprep.subr.bf16.mxu0 0
  %301 = vmatpush1.bf16.msra.mxu0 0
  %302 = vmatprep.subr.bf16.mxu0 0
  %303 = vmatpush1.bf16.msra.mxu0 0
  %304 = vmatprep.subr.bf16.mxu0 0
  %305 = vmatpush1.bf16.msra.mxu0 0
  %306 = vmatprep.subr.bf16.mxu0 0
  %307 = vmatpush1.bf16.msra.mxu0 0
  %308 = vmatprep.subr.bf16.mxu0 0
  %309 = vmatpush1.bf16.msra.mxu0 0
  %310 = vmatprep.subr.bf16.mxu0 0
  %311 = vmatpush1.bf16.msra.mxu0 0
  %312 = vmatprep.subr.bf16.mxu0 0
  %313 = vmatpush1.bf16.msra.mxu0 0
  %314 = vmatprep.subr.bf16.mxu0 0
  %315 = vmatpush1.bf16.msra.mxu0 0
  %316 = vmatprep.mubr.bf16.mxu0 0
  %317 = vmatmul.mubr.bf16.gmra.mrb[0].mxu0 %v152
  %v318 = vpop.f32.mrb[0].mxu0
  %v319 = vadd.f32 0.0, %v318
  %v320 = vpop.f32.mrb[0].mxu0
  %v321 = vadd.f32 0.0, %v320
  %v322 = vpop.f32.mrb[0].mxu0
  %v323 = vadd.f32 0.0, %v322
  %v324 = vpop.f32.mrb[0].mxu0
  %v325 = vadd.f32 0.0, %v324
  %326 = vmatprep.mubr.bf16.mxu0 0
  %327 = vmatmul.mubr.bf16.gmra.mrb[0].mxu0 %v153
  %v328 = vpop.f32.mrb[0].mxu0
  %v329 = vadd.f32 0.0, %v328
  %v330 = vpop.f32.mrb[0].mxu0
  %v331 = vadd.f32 0.0, %v330
  %v332 = vpop.f32.mrb[0].mxu0
  %v333 = vadd.f32 0.0, %v332
  %v334 = vpop.f32.mrb[0].mxu0
  %v335 = vadd.f32 0.0, %v334
  %336 = vdwg.mxu0
  %337 = vmatprep.subr.bf16.mxu0 0
  %338 = vmatpush1.bf16.msra.mxu0 %v238
  %339 = vmatprep.subr.bf16.mxu0 0
  %340 = vmatpush1.bf16.msra.mxu0 %v241
  %341 = vmatprep.subr.bf16.mxu0 0
  %342 = vmatpush1.bf16.msra.mxu0 %v244
  %343 = vmatprep.subr.bf16.mxu0 0
  %344 = vmatpush1.bf16.msra.mxu0 %v247
  %345 = vmatprep.subr.bf16.mxu0 0
  %346 = vmatpush1.bf16.msra.mxu0 %v250
  %347 = vmatprep.subr.bf16.mxu0 0
  %348 = vmatpush1.bf16.msra.mxu0 %v253
  %349 = vmatprep.subr.bf16.mxu0 0
  %350 = vmatpush1.bf16.msra.mxu0 %v256
  %351 = vmatprep.subr.bf16.mxu0 0
  %352 = vmatpush1.bf16.msra.mxu0 %v259
  %353 = vmatprep.subr.bf16.mxu0 0
  %354 = vmatpush1.bf16.msra.mxu0 0
  %355 = vmatprep.subr.bf16.mxu0 0
  %356 = vmatpush1.bf16.msra.mxu0 0
  %357 = vmatprep.subr.bf16.mxu0 0
  %358 = vmatpush1.bf16.msra.mxu0 0
  %359 = vmatprep.subr.bf16.mxu0 0
  %360 = vmatpush1.bf16.msra.mxu0 0
  %361 = vmatprep.subr.bf16.mxu0 0
  %362 = vmatpush1.bf16.msra.mxu0 0
  %363 = vmatprep.subr.bf16.mxu0 0
  %364 = vmatpush1.bf16.msra.mxu0 0
  %365 = vmatprep.subr.bf16.mxu0 0
  %366 = vmatpush1.bf16.msra.mxu0 0
  %367 = vmatprep.subr.bf16.mxu0 0
  %368 = vmatpush1.bf16.msra.mxu0 0
  %369 = vmatprep.mubr.bf16.mxu0 0
  %370 = vmatmul.mubr.bf16.gmra.mrb[0].mxu0 %v152
  %v371 = vpop.f32.mrb[0].mxu0
  %v372 = vadd.f32 0.0, %v371
  %v373 = vpop.f32.mrb[0].mxu0
  %v374 = vpop.f32.mrb[0].mxu0
  %v375 = vadd.f32 0.0, %v374
  %v376 = vpop.f32.mrb[0].mxu0
  %377 = vmatprep.mubr.bf16.mxu0 0
  %378 = vmatmul.mubr.bf16.gmra.mrb[0].mxu0 %v153
  %v379 = vpop.f32.mrb[0].mxu0
  %v380 = vadd.f32 0.0, %v379
  %v381 = vpop.f32.mrb[0].mxu0
  %v382 = vpop.f32.mrb[0].mxu0
  %v383 = vadd.f32 0.0, %v382
  %v384 = vpop.f32.mrb[0].mxu0
  %385 = vdwg.mxu0
  %v386 = vrot.slane %v319, 7
  %v387 = vrot.slane %v323, 7
  %v388 = vrot.slane %v329, 7
  %v389 = vrot.slane %v333, 7
  %v390 = vlaneseq
  %v391 = vshrl.u32 %v390, 7
  %vm392 = vcmp.lt.s32.totalorder %v391, 1
  %v393 = vsel %vm392, %v388, %v389
  %v394 = vsel %vm392, %v387, %v388
  %v395 = vsel %vm392, %v386, %v387
  %v396 = vsel %vm392, %v389, %v386
  %398 = vset.pattern.permute.xlu0 0
  %399 = vperm.xlu0 %398, %v36
  %v400 = vpop.permute.xlu0 %399
  %403 = vset.pattern.permute.xlu0 0
  %404 = vperm.xlu0 %403, %v37
  %v405 = vpop.permute.xlu0 %404
  %408 = vset.pattern.permute.xlu0 0
  %409 = vperm.xlu0 %408, %v38
  %v410 = vpop.permute.xlu0 %409
  %413 = vset.pattern.permute.xlu0 0
  %414 = vperm.xlu0 %413, %v39
  %v415 = vpop.permute.xlu0 %414
  %v417 = vmul.f32 %v396, %v400
  %v418 = vmul.f32 %v395, %v405
  %v419 = vmul.f32 %v394, %v410
  %v420 = vmul.f32 %v393, %v415
  %v421 = vrot.slane %v372, 1
  %v422 = vrot.slane %v375, 1
  %v423 = vrot.slane %v380, 1
  %v424 = vrot.slane %v383, 1
  %vm425 = vcmp.lt.s32.totalorder %v391, 7
  %v426 = vsel %vm425, %v423, %v424
  %v427 = vsel %vm425, %v422, %v423
  %v428 = vsel %vm425, %v421, %v422
  %v429 = vsel %vm425, %v424, %v421
  %431 = vset.pattern.permute.xlu0 0
  %432 = vperm.xlu0 %431, %v40
  %v433 = vpop.permute.xlu0 %432
  %436 = vset.pattern.permute.xlu0 0
  %437 = vperm.xlu0 %436, %v41
  %v438 = vpop.permute.xlu0 %437
  %441 = vset.pattern.permute.xlu0 0
  %442 = vperm.xlu0 %441, %v42
  %v443 = vpop.permute.xlu0 %442
  %446 = vset.pattern.permute.xlu0 0
  %447 = vperm.xlu0 %446, %v43
  %v448 = vpop.permute.xlu0 %447
  %v450 = vmul.f32 %v428, %v433
  %v451 = vmul.f32 %v427, %v438
  %v452 = vmul.f32 %v426, %v443
  %v453 = vmul.f32 %v429, %v448
  %v454 = vadd.f32 %v417, %v321
  %v455 = vadd.f32 %v418, %v325
  %v456 = vadd.f32 %v419, %v331
  %v457 = vadd.f32 %v420, %v335
  %v458 = vadd.f32 %v454, %v450
  %v459 = vadd.f32 %v455, %v451
  %v460 = vadd.f32 %v456, %v452
  %v461 = vadd.f32 %v457, %v453
  %v462 = vld [vmem:[%s3] sm:$0x1]
  %v463 = vld [vmem:[%s4] sm:$0x1]
  %v464 = vadd.f32 %v458, %v459
  %v465 = vadd.f32 %v464, %v460
  %v466 = vadd.f32 %v465, %v461
  %v467 = vrot.slane %v466, 4
  %v468 = vadd.f32 %v466, %v467
  %v469 = vrot.slane %v468, 2
  %v470 = vadd.f32 %v468, %v469
  %v471 = vrot.slane %v470, 1
  %v472 = vadd.f32 %v470, %v471
  %v473 = vmul.f32 %v458, %v458
  %v474 = vmul.f32 %v459, %v459
  %v475 = vmul.f32 %v460, %v460
  %v476 = vmul.f32 %v461, %v461
  %v477 = vadd.f32 %v473, %v474
  %v478 = vadd.f32 %v477, %v475
  %v479 = vadd.f32 %v478, %v476
  %v480 = vrot.slane %v479, 4
  %v481 = vadd.f32 %v479, %v480
  %v482 = vrot.slane %v481, 2
  %v483 = vadd.f32 %v481, %v482
  %v484 = vrot.slane %v483, 1
  %v485 = vadd.f32 %v483, %v484
  %486 = vmatprep.subr.mxu0 %v45
  %487 = vmatpush1.msra.mxu0 %v44
  %488 = vmatprep.subr.mxu0 %v47
  %489 = vmatpush1.msra.mxu0 %v46
  %490 = vmatprep.subr.mxu0 %v49
  %491 = vmatpush1.msra.mxu0 %v48
  %492 = vmatprep.subr.mxu0 %v51
  %493 = vmatpush1.msra.mxu0 %v50
  %494 = vmatprep.subr.mxu0 %v53
  %495 = vmatpush1.msra.mxu0 %v52
  %496 = vmatprep.subr.mxu0 %v55
  %497 = vmatpush1.msra.mxu0 %v54
  %498 = vmatprep.subr.mxu0 %v57
  %499 = vmatpush1.msra.mxu0 %v56
  %500 = vmatprep.subr.mxu0 %v59
  %501 = vmatpush1.msra.mxu0 %v58
  %502 = vmatprep.subr.mxu0 %v61
  %503 = vmatpush1.msra.mxu0 %v60
  %504 = vmatprep.subr.mxu0 %v63
  %505 = vmatpush1.msra.mxu0 %v62
  %506 = vmatprep.subr.mxu0 %v65
  %507 = vmatpush1.msra.mxu0 %v64
  %508 = vmatprep.subr.mxu0 %v67
  %509 = vmatpush1.msra.mxu0 %v66
  %510 = vmatprep.subr.mxu0 %v69
  %511 = vmatpush1.msra.mxu0 %v68
  %512 = vmatprep.subr.mxu0 %v71
  %513 = vmatpush1.msra.mxu0 %v70
  %514 = vmatprep.subr.mxu0 %v73
  %515 = vmatpush1.msra.mxu0 %v72
  %516 = vmatprep.subr.mxu0 %v75
  %517 = vmatpush1.msra.mxu0 %v74
  %518 = vmatprep.subr.mxu0 %v77
  %519 = vmatpush1.msra.mxu0 %v76
  %520 = vmatprep.subr.mxu0 %v79
  %521 = vmatpush1.msra.mxu0 %v78
  %522 = vmatprep.subr.mxu0 %v81
  %523 = vmatpush1.msra.mxu0 %v80
  %524 = vmatprep.subr.mxu0 %v83
  %525 = vmatpush1.msra.mxu0 %v82
  %526 = vmatprep.subr.mxu0 %v85
  %527 = vmatpush1.msra.mxu0 %v84
  %528 = vmatprep.subr.mxu0 %v87
  %529 = vmatpush1.msra.mxu0 %v86
  %530 = vmatprep.subr.mxu0 %v89
  %531 = vmatpush1.msra.mxu0 %v88
  %532 = vmatprep.subr.mxu0 %v91
  %533 = vmatpush1.msra.mxu0 %v90
  %534 = vmatprep.subr.mxu0 %v93
  %535 = vmatpush1.msra.mxu0 %v92
  %536 = vmatprep.subr.mxu0 %v95
  %537 = vmatpush1.msra.mxu0 %v94
  %538 = vmatprep.subr.mxu0 %v97
  %539 = vmatpush1.msra.mxu0 %v96
  %540 = vmatprep.subr.mxu0 %v99
  %541 = vmatpush1.msra.mxu0 %v98
  %542 = vmatprep.subr.mxu0 %v101
  %543 = vmatpush1.msra.mxu0 %v100
  %544 = vmatprep.subr.mxu0 %v103
  %545 = vmatpush1.msra.mxu0 %v102
  %546 = vmatprep.subr.mxu0 %v105
  %547 = vmatpush1.msra.mxu0 %v104
  %548 = vmatprep.subr.mxu0 %v107
  %549 = vmatpush1.msra.mxu0 %v106
  %550 = vmatprep.mubr.f32.mxu0 %v485
  %551 = vmatmul.mubr.f32.gmra.mrb[0].mxu0 %v472
  %v552 = vpop.f32.mrb[0].mxu0
  %v553 = vadd.f32 0.0, %v552
  %v554 = vpop.f32.mrb[0].mxu0
  %v555 = vadd.f32 0.0, %v554
  %556 = vdwg.mxu0
  %v557 = vmul.f32 %v553, %v553
  %v558 = vsub.f32 %v555, %v557
  %v559 = vadd.f32 %v558, 1e-05
  %v560 = vrsqrt.pop %v559
  %v561 = vmul.f32 %v462, %v560
  %v562 = vmul.f32 %v553, %v561
  %v563 = vsub.f32 %v463, %v562
  %v565 = vlaneseq
  %v566 = vshrl.u32 %v565, 7
  %v567 = vsub.s32 0, %v566
  %v568 = vrot.slane %v561, %v567
  %v570 = vmul.f32 %v458, %v568
  %v571 = vmul.f32 %v459, %v568
  %v572 = vmul.f32 %v460, %v568
  %v573 = vmul.f32 %v461, %v568
  %v575 = vlaneseq
  %v576 = vshrl.u32 %v575, 7
  %v577 = vsub.s32 0, %v576
  %v578 = vrot.slane %v563, %v577
  %v580 = vadd.f32 %v570, %v578
  %v581 = vadd.f32 %v571, %v578
  %v582 = vadd.f32 %v572, %v578
  %v583 = vadd.f32 %v573, %v578
  %v584 = vmax.f32 %v580, 0.0
  %v585 = vmax.f32 %v581, 0.0
  %v586 = vmax.f32 %v582, 0.0
  %v587 = vmax.f32 %v583, 0.0
  %v588 = vpack.c.bf16 %v585, %v584
  %v589 = vpack.c.bf16 %v587, %v586
  %v590 = vld [vmem:[%s2] sm:$0xff]
  %v591 = vld [vmem:[%s2 + $0x8] sm:$0xf]
  %v592 = vld [vmem:[%s2 + $0xc] sm:$0xff]
  %v593 = vld [vmem:[%s2 + $0x14] sm:$0xf]
  %v594 = vld [vmem:[%s2 + $0x18] sm:$0xff]
  %v595 = vld [vmem:[%s2 + $0x20] sm:$0xf]
  %v596 = vld [vmem:[%s2 + $0x24] sm:$0xff]
  %v597 = vld [vmem:[%s2 + $0x2c] sm:$0xf]
  %v598 = vld [vmem:[%s2 + $0x30] sm:$0xff]
  %v599 = vld [vmem:[%s2 + $0x38] sm:$0xf]
  %v600 = vld [vmem:[%s2 + $0x3c] sm:$0xff]
  %v601 = vld [vmem:[%s2 + $0x44] sm:$0xf]
  %v602 = vld [vmem:[%s2 + $0x48] sm:$0xff]
  %v603 = vld [vmem:[%s2 + $0x50] sm:$0xf]
  %v604 = vld [vmem:[%s2 + $0x54] sm:$0xff]
  %v605 = vld [vmem:[%s2 + $0x5c] sm:$0xf]
  %v606 = vld [vmem:[%s2 + $0x60] sm:$0xff]
  %v607 = vld [vmem:[%s2 + $0x68] sm:$0xf]
  %v608 = vld [vmem:[%s2 + $0x6c] sm:$0xff]
  %v609 = vld [vmem:[%s2 + $0x74] sm:$0xf]
  %v610 = vld [vmem:[%s2 + $0x78] sm:$0xff]
  %v611 = vld [vmem:[%s2 + $0x80] sm:$0xf]
  %v612 = vld [vmem:[%s2 + $0x84] sm:$0xff]
  %v613 = vld [vmem:[%s2 + $0x8c] sm:$0xf]
  %v614 = vld [vmem:[%s2 + $0x90] sm:$0xff]
  %v615 = vld [vmem:[%s2 + $0x98] sm:$0xf]
  %v616 = vld [vmem:[%s2 + $0x9c] sm:$0xff]
  %v617 = vld [vmem:[%s2 + $0xa4] sm:$0xf]
  %v618 = vld [vmem:[%s2 + $0xa8] sm:$0xff]
  %v619 = vld [vmem:[%s2 + $0xb0] sm:$0xf]
  %v620 = vld [vmem:[%s2 + $0xb4] sm:$0xff]
  %v621 = vld [vmem:[%s2 + $0xbc] sm:$0xf]
  %v654 = vunpack.c.l.b16 %v590
  %v655 = vunpack.c.h.b16 %v590
  %v656 = vunpack.c.l.b16 %v591
  %v657 = vunpack.c.l.b16 %v592
  %v658 = vunpack.c.h.b16 %v592
  %v659 = vunpack.c.l.b16 %v593
  %v660 = vunpack.c.l.b16 %v594
  %v661 = vunpack.c.h.b16 %v594
  %v662 = vunpack.c.l.b16 %v595
  %v663 = vunpack.c.l.b16 %v596
  %v664 = vunpack.c.h.b16 %v596
  %v665 = vunpack.c.l.b16 %v597
  %v666 = vunpack.c.l.b16 %v598
  %v667 = vunpack.c.h.b16 %v598
  %v668 = vunpack.c.l.b16 %v599
  %v669 = vunpack.c.l.b16 %v600
  %v670 = vunpack.c.h.b16 %v600
  %v671 = vunpack.c.l.b16 %v601
  %v672 = vunpack.c.l.b16 %v602
  %v673 = vunpack.c.h.b16 %v602
  %v674 = vunpack.c.l.b16 %v603
  %v675 = vunpack.c.l.b16 %v604
  %v676 = vunpack.c.h.b16 %v604
  %v677 = vunpack.c.l.b16 %v605
  %v678 = vunpack.c.l.b16 %v606
  %v679 = vunpack.c.h.b16 %v606
  %v680 = vunpack.c.l.b16 %v607
  %v681 = vunpack.c.l.b16 %v608
  %v682 = vunpack.c.h.b16 %v608
  %v683 = vunpack.c.l.b16 %v609
  %v684 = vunpack.c.l.b16 %v610
  %v685 = vunpack.c.h.b16 %v610
  %v686 = vunpack.c.l.b16 %v611
  %v687 = vunpack.c.l.b16 %v612
  %v688 = vunpack.c.h.b16 %v612
  %v689 = vunpack.c.l.b16 %v613
  %v690 = vunpack.c.l.b16 %v614
  %v691 = vunpack.c.h.b16 %v614
  %v692 = vunpack.c.l.b16 %v615
  %v693 = vunpack.c.l.b16 %v616
  %v694 = vunpack.c.h.b16 %v616
  %v695 = vunpack.c.l.b16 %v617
  %v696 = vunpack.c.l.b16 %v618
  %v697 = vunpack.c.h.b16 %v618
  %v698 = vunpack.c.l.b16 %v619
  %v699 = vunpack.c.l.b16 %v620
  %v700 = vunpack.c.h.b16 %v620
  %v701 = vunpack.c.l.b16 %v621
  %v702 = vpack.c.b16 %v657, %v654
  %v703 = vpack.c.b16 %v658, %v655
  %v704 = vpack.c.b16 %v659, %v656
  %v705 = vpack.c.b16 %v663, %v660
  %v706 = vpack.c.b16 %v664, %v661
  %v707 = vpack.c.b16 %v665, %v662
  %v708 = vpack.c.b16 %v669, %v666
  %v709 = vpack.c.b16 %v670, %v667
  %v710 = vpack.c.b16 %v671, %v668
  %v711 = vpack.c.b16 %v675, %v672
  %v712 = vpack.c.b16 %v676, %v673
  %v713 = vpack.c.b16 %v677, %v674
  %v714 = vpack.c.b16 %v681, %v678
  %v715 = vpack.c.b16 %v682, %v679
  %v716 = vpack.c.b16 %v683, %v680
  %v717 = vpack.c.b16 %v687, %v684
  %v718 = vpack.c.b16 %v688, %v685
  %v719 = vpack.c.b16 %v689, %v686
  %v720 = vpack.c.b16 %v693, %v690
  %v721 = vpack.c.b16 %v694, %v691
  %v722 = vpack.c.b16 %v695, %v692
  %v723 = vpack.c.b16 %v699, %v696
  %v724 = vpack.c.b16 %v700, %v697
  %v725 = vpack.c.b16 %v701, %v698
  %750 = vmatprep.subr.bf16.mxu0 %v703
  %751 = vmatpush1.bf16.msra.mxu0 %v702
  %752 = vmatprep.subr.bf16.mxu0 %v706
  %753 = vmatpush1.bf16.msra.mxu0 %v705
  %754 = vmatprep.subr.bf16.mxu0 %v709
  %755 = vmatpush1.bf16.msra.mxu0 %v708
  %756 = vmatprep.subr.bf16.mxu0 %v712
  %757 = vmatpush1.bf16.msra.mxu0 %v711
  %758 = vmatprep.subr.bf16.mxu0 %v715
  %759 = vmatpush1.bf16.msra.mxu0 %v714
  %760 = vmatprep.subr.bf16.mxu0 %v718
  %761 = vmatpush1.bf16.msra.mxu0 %v717
  %762 = vmatprep.subr.bf16.mxu0 %v721
  %763 = vmatpush1.bf16.msra.mxu0 %v720
  %764 = vmatprep.subr.bf16.mxu0 %v724
  %765 = vmatpush1.bf16.msra.mxu0 %v723
  %766 = vmatprep.subr.bf16.mxu0 0
  %767 = vmatpush1.bf16.msra.mxu0 0
  %768 = vmatprep.subr.bf16.mxu0 0
  %769 = vmatpush1.bf16.msra.mxu0 0
  %770 = vmatprep.subr.bf16.mxu0 0
  %771 = vmatpush1.bf16.msra.mxu0 0
  %772 = vmatprep.subr.bf16.mxu0 0
  %773 = vmatpush1.bf16.msra.mxu0 0
  %774 = vmatprep.subr.bf16.mxu0 0
  %775 = vmatpush1.bf16.msra.mxu0 0
  %776 = vmatprep.subr.bf16.mxu0 0
  %777 = vmatpush1.bf16.msra.mxu0 0
  %778 = vmatprep.subr.bf16.mxu0 0
  %779 = vmatpush1.bf16.msra.mxu0 0
  %780 = vmatprep.subr.bf16.mxu0 0
  %781 = vmatpush1.bf16.msra.mxu0 0
  %782 = vmatprep.mubr.bf16.mxu0 0
  %783 = vmatmul.mubr.bf16.gmra.mrb[0].mxu0 %v588
  %v784 = vpop.f32.mrb[0].mxu0
  %v785 = vadd.f32 0.0, %v784
  %v786 = vpop.f32.mrb[0].mxu0
  %v787 = vadd.f32 0.0, %v786
  %v788 = vpop.f32.mrb[0].mxu0
  %v789 = vadd.f32 0.0, %v788
  %v790 = vpop.f32.mrb[0].mxu0
  %v791 = vadd.f32 0.0, %v790
  %792 = vmatprep.mubr.bf16.mxu0 0
  %793 = vmatmul.mubr.bf16.gmra.mrb[0].mxu0 %v589
  %v794 = vpop.f32.mrb[0].mxu0
  %v795 = vadd.f32 0.0, %v794
  %v796 = vpop.f32.mrb[0].mxu0
  %v797 = vadd.f32 0.0, %v796
  %v798 = vpop.f32.mrb[0].mxu0
  %v799 = vadd.f32 0.0, %v798
  %v800 = vpop.f32.mrb[0].mxu0
  %v801 = vadd.f32 0.0, %v800
  %802 = vdwg.mxu0
  %803 = vmatprep.subr.bf16.mxu0 0
  %804 = vmatpush1.bf16.msra.mxu0 %v704
  %805 = vmatprep.subr.bf16.mxu0 0
  %806 = vmatpush1.bf16.msra.mxu0 %v707
  %807 = vmatprep.subr.bf16.mxu0 0
  %808 = vmatpush1.bf16.msra.mxu0 %v710
  %809 = vmatprep.subr.bf16.mxu0 0
  %810 = vmatpush1.bf16.msra.mxu0 %v713
  %811 = vmatprep.subr.bf16.mxu0 0
  %812 = vmatpush1.bf16.msra.mxu0 %v716
  %813 = vmatprep.subr.bf16.mxu0 0
  %814 = vmatpush1.bf16.msra.mxu0 %v719
  %815 = vmatprep.subr.bf16.mxu0 0
  %816 = vmatpush1.bf16.msra.mxu0 %v722
  %817 = vmatprep.subr.bf16.mxu0 0
  %818 = vmatpush1.bf16.msra.mxu0 %v725
  %819 = vmatprep.subr.bf16.mxu0 0
  %820 = vmatpush1.bf16.msra.mxu0 0
  %821 = vmatprep.subr.bf16.mxu0 0
  %822 = vmatpush1.bf16.msra.mxu0 0
  %823 = vmatprep.subr.bf16.mxu0 0
  %824 = vmatpush1.bf16.msra.mxu0 0
  %825 = vmatprep.subr.bf16.mxu0 0
  %826 = vmatpush1.bf16.msra.mxu0 0
  %827 = vmatprep.subr.bf16.mxu0 0
  %828 = vmatpush1.bf16.msra.mxu0 0
  %829 = vmatprep.subr.bf16.mxu0 0
  %830 = vmatpush1.bf16.msra.mxu0 0
  %831 = vmatprep.subr.bf16.mxu0 0
  %832 = vmatpush1.bf16.msra.mxu0 0
  %833 = vmatprep.subr.bf16.mxu0 0
  %834 = vmatpush1.bf16.msra.mxu0 0
  %835 = vmatprep.mubr.bf16.mxu0 0
  %836 = vmatmul.mubr.bf16.gmra.mrb[0].mxu0 %v588
  %v837 = vpop.f32.mrb[0].mxu0
  %v838 = vadd.f32 0.0, %v837
  %v839 = vpop.f32.mrb[0].mxu0
  %v840 = vpop.f32.mrb[0].mxu0
  %v841 = vadd.f32 0.0, %v840
  %v842 = vpop.f32.mrb[0].mxu0
  %843 = vmatprep.mubr.bf16.mxu0 0
  %844 = vmatmul.mubr.bf16.gmra.mrb[0].mxu0 %v589
  %v845 = vpop.f32.mrb[0].mxu0
  %v846 = vadd.f32 0.0, %v845
  %v847 = vpop.f32.mrb[0].mxu0
  %v848 = vpop.f32.mrb[0].mxu0
  %v849 = vadd.f32 0.0, %v848
  %v850 = vpop.f32.mrb[0].mxu0
  %851 = vdwg.mxu0
  %v852 = vrot.slane %v785, 7
  %v853 = vrot.slane %v789, 7
  %v854 = vrot.slane %v795, 7
  %v855 = vrot.slane %v799, 7
  %v856 = vsel %vm392, %v854, %v855
  %v857 = vsel %vm392, %v853, %v854
  %v858 = vsel %vm392, %v852, %v853
  %v859 = vsel %vm392, %v855, %v852
  %v860 = vmul.f32 %v859, %v400
  %v861 = vmul.f32 %v858, %v405
  %v862 = vmul.f32 %v857, %v410
  %v863 = vmul.f32 %v856, %v415
  %v864 = vrot.slane %v838, 1
  %v865 = vrot.slane %v841, 1
  %v866 = vrot.slane %v846, 1
  %v867 = vrot.slane %v849, 1
  %v868 = vsel %vm425, %v866, %v867
  %v869 = vsel %vm425, %v865, %v866
  %v870 = vsel %vm425, %v864, %v865
  %v871 = vsel %vm425, %v867, %v864
  %v872 = vmul.f32 %v870, %v433
  %v873 = vmul.f32 %v869, %v438
  %v874 = vmul.f32 %v868, %v443
  %v875 = vmul.f32 %v871, %v448
  %v876 = vadd.f32 %v860, %v787
  %v877 = vadd.f32 %v861, %v791
  %v878 = vadd.f32 %v862, %v797
  %v879 = vadd.f32 %v863, %v801
  %v880 = vadd.f32 %v876, %v872
  %v881 = vadd.f32 %v877, %v873
  %v882 = vadd.f32 %v878, %v874
  %v883 = vadd.f32 %v879, %v875
  %v884 = vld [vmem:[%s5] sm:$0x1]
  %v885 = vld [vmem:[%s6] sm:$0x1]
  %v886 = vadd.f32 %v880, %v881
  %v887 = vadd.f32 %v886, %v882
  %v888 = vadd.f32 %v887, %v883
  %v889 = vrot.slane %v888, 4
  %v890 = vadd.f32 %v888, %v889
  %v891 = vrot.slane %v890, 2
  %v892 = vadd.f32 %v890, %v891
  %v893 = vrot.slane %v892, 1
  %v894 = vadd.f32 %v892, %v893
  %v895 = vmul.f32 %v880, %v880
  %v896 = vmul.f32 %v881, %v881
  %v897 = vmul.f32 %v882, %v882
  %v898 = vmul.f32 %v883, %v883
  %v899 = vadd.f32 %v895, %v896
  %v900 = vadd.f32 %v899, %v897
  %v901 = vadd.f32 %v900, %v898
  %v902 = vrot.slane %v901, 4
  %v903 = vadd.f32 %v901, %v902
  %v904 = vrot.slane %v903, 2
  %v905 = vadd.f32 %v903, %v904
  %v906 = vrot.slane %v905, 1
  %v907 = vadd.f32 %v905, %v906
  %908 = vmatprep.subr.mxu0 %v45
  %909 = vmatpush1.msra.mxu0 %v44
  %910 = vmatprep.subr.mxu0 %v47
  %911 = vmatpush1.msra.mxu0 %v46
  %912 = vmatprep.subr.mxu0 %v49
  %913 = vmatpush1.msra.mxu0 %v48
  %914 = vmatprep.subr.mxu0 %v51
  %915 = vmatpush1.msra.mxu0 %v50
  %916 = vmatprep.subr.mxu0 %v53
  %917 = vmatpush1.msra.mxu0 %v52
  %918 = vmatprep.subr.mxu0 %v55
  %919 = vmatpush1.msra.mxu0 %v54
  %920 = vmatprep.subr.mxu0 %v57
  %921 = vmatpush1.msra.mxu0 %v56
  %922 = vmatprep.subr.mxu0 %v59
  %923 = vmatpush1.msra.mxu0 %v58
  %924 = vmatprep.subr.mxu0 %v61
  %925 = vmatpush1.msra.mxu0 %v60
  %926 = vmatprep.subr.mxu0 %v63
  %927 = vmatpush1.msra.mxu0 %v62
  %928 = vmatprep.subr.mxu0 %v65
  %929 = vmatpush1.msra.mxu0 %v64
  %930 = vmatprep.subr.mxu0 %v67
  %931 = vmatpush1.msra.mxu0 %v66
  %932 = vmatprep.subr.mxu0 %v69
  %933 = vmatpush1.msra.mxu0 %v68
  %934 = vmatprep.subr.mxu0 %v71
  %935 = vmatpush1.msra.mxu0 %v70
  %936 = vmatprep.subr.mxu0 %v73
  %937 = vmatpush1.msra.mxu0 %v72
  %938 = vmatprep.subr.mxu0 %v75
  %939 = vmatpush1.msra.mxu0 %v74
  %940 = vmatprep.subr.mxu0 %v77
  %941 = vmatpush1.msra.mxu0 %v76
  %942 = vmatprep.subr.mxu0 %v79
  %943 = vmatpush1.msra.mxu0 %v78
  %944 = vmatprep.subr.mxu0 %v81
  %945 = vmatpush1.msra.mxu0 %v80
  %946 = vmatprep.subr.mxu0 %v83
  %947 = vmatpush1.msra.mxu0 %v82
  %948 = vmatprep.subr.mxu0 %v85
  %949 = vmatpush1.msra.mxu0 %v84
  %950 = vmatprep.subr.mxu0 %v87
  %951 = vmatpush1.msra.mxu0 %v86
  %952 = vmatprep.subr.mxu0 %v89
  %953 = vmatpush1.msra.mxu0 %v88
  %954 = vmatprep.subr.mxu0 %v91
  %955 = vmatpush1.msra.mxu0 %v90
  %956 = vmatprep.subr.mxu0 %v93
  %957 = vmatpush1.msra.mxu0 %v92
  %958 = vmatprep.subr.mxu0 %v95
  %959 = vmatpush1.msra.mxu0 %v94
  %960 = vmatprep.subr.mxu0 %v97
  %961 = vmatpush1.msra.mxu0 %v96
  %962 = vmatprep.subr.mxu0 %v99
  %963 = vmatpush1.msra.mxu0 %v98
  %964 = vmatprep.subr.mxu0 %v101
  %965 = vmatpush1.msra.mxu0 %v100
  %966 = vmatprep.subr.mxu0 %v103
  %967 = vmatpush1.msra.mxu0 %v102
  %968 = vmatprep.subr.mxu0 %v105
  %969 = vmatpush1.msra.mxu0 %v104
  %970 = vmatprep.subr.mxu0 %v107
  %971 = vmatpush1.msra.mxu0 %v106
  %972 = vmatprep.mubr.f32.mxu0 %v907
  %973 = vmatmul.mubr.f32.gmra.mrb[0].mxu0 %v894
  %v974 = vpop.f32.mrb[0].mxu0
  %v975 = vadd.f32 0.0, %v974
  %v976 = vpop.f32.mrb[0].mxu0
  %v977 = vadd.f32 0.0, %v976
  %978 = vdwg.mxu0
  %v979 = vmul.f32 %v975, %v975
  %v980 = vsub.f32 %v977, %v979
  %v981 = vadd.f32 %v980, 1e-05
  %v982 = vrsqrt.pop %v981
  %v983 = vmul.f32 %v884, %v982
  %v984 = vmul.f32 %v975, %v983
  %v985 = vsub.f32 %v885, %v984
  %v987 = vlaneseq
  %v988 = vshrl.u32 %v987, 7
  %v989 = vsub.s32 0, %v988
  %v990 = vrot.slane %v983, %v989
  %v992 = vmul.f32 %v880, %v990
  %v993 = vmul.f32 %v881, %v990
  %v994 = vmul.f32 %v882, %v990
  %v995 = vmul.f32 %v883, %v990
  %v997 = vlaneseq
  %v998 = vshrl.u32 %v997, 7
  %v999 = vsub.s32 0, %v998
  %v1000 = vrot.slane %v985, %v999
  %v1002 = vadd.f32 %v992, %v1000
  %v1003 = vadd.f32 %v993, %v1000
  %v1004 = vadd.f32 %v994, %v1000
  %v1005 = vadd.f32 %v995, %v1000
  %v1006 = vmax.f32 %v1002, 0.0
  %v1007 = vmax.f32 %v1003, 0.0
  %v1008 = vmax.f32 %v1004, 0.0
  %v1009 = vmax.f32 %v1005, 0.0
  %1010 = vst [vmem:[%s10] sm:$0xff] %v1006
  %1011 = vst [vmem:[%s10 + $0x8] sm:$0xff] %v1007
  %1012 = vst [vmem:[%s10 + $0x10] sm:$0xff] %v1008
  %1013 = vst [vmem:[%s10 + $0x18] sm:$0xff] %v1009
  // Predicated region
  $region42: #{bridge_forward.1} parent=0 // pred_check
    _
  $region43: #{bridge_forward.1} parent=0 // pred_check_branch
    %1015 = sbr.rel (0) target = $region45
  $region44: #{bridge_forward.1} parent=0 // pred_region
    _
  $region45: #{bridge_forward.1} parent=0 // pred_fallthru
    _
  // Predicated region
  $region46: #{bridge_forward.1} parent=0 // pred_check
    _
  $region47: #{bridge_forward.1} parent=0 // pred_check_branch
    %1017 = sbr.rel (0) target = $region49
  $region48: #{bridge_forward.1} parent=0 // pred_region
    _
  $region49: #{bridge_forward.1} parent=0 // pred_fallthru
    _

</llo_original>
